<compile_context>
chip_gen: v5e
topology: v5e:2x2
jax: 0.10.0
libtpu: 0.0.40
codegen_flags: <defaults>
</compile_context>

<pallas_src>
import functools
import math

import jax
import jax.numpy as jnp
from jax.experimental import pallas as pl
from jax.experimental.pallas import tpu as pltpu


def squarer_kernel(x_ref, w_ref, b_ref, o_ref, *, harmonic_coefs):
    """harmonic_coefs[t] = (4/pi) / (2t+1); omega is pre-folded into w/b."""
    x = x_ref[...]                       # [tile_n, in_f]
    w = w_ref[...]                       # [in_f, out_f]   (omega-scaled)
    b = b_ref[...]                       # [1, out_f]      (omega-scaled)

    # arg = omega * (x @ W + b); the matmul runs on the otherwise-idle MXU.
    arg = jnp.dot(x, w, preferred_element_type=jnp.float32) + b

    n = len(harmonic_coefs)
    s1 = jnp.sin(arg)                    # the ONLY sin evaluation in the kernel
    if n == 1:
        out = harmonic_coefs[0] * s1
    elif n == 2:
        # (8/pi) s - (16/(3 pi)) s^3, in Horner form (coefficients are Python
        # floats -> folded at trace time).
        c1 = 2.0 * harmonic_coefs[0]      # 8/pi
        c3 = -4.0 * harmonic_coefs[1]     # -16/(3*pi)
        out = s1 * (c1 + c3 * (s1 * s1))
    else:
        two_cos2a = 2.0 - 4.0 * (s1 * s1)     # 2*cos(2a), derived from s
        s_prev, s_cur = -s1, s1               # sin(-a), sin(a)
        acc = harmonic_coefs[0] * s1
        for t in range(1, n):
            s_next = two_cos2a * s_cur - s_prev   # sin((2t+1) a)
            acc = acc + harmonic_coefs[t] * s_next
            s_prev, s_cur = s_cur, s_next
        out = acc

    o_ref[...] = out.astype(o_ref.dtype)


def _pick_tile_n(N, requested):
    """Largest batch tile that divides N, is sublane-aligned, and leaves >= 4
    grid steps whenever N allows it (so both v7x TensorCores get work)."""
    if N % 8 != 0:
        return N                          # single full-extent block is legal
    cap = min(requested, N)
    if N >= 32:
        cap = min(cap, max(8, (N // 4) // 8 * 8))
    t = max(8, cap - cap % 8)
    while N % t:
        t -= 8
    return t


def squarer_pallas(x, w, b, *, omega=30.0, n=2, tile_n=1024, out_dtype=None):
    """x: [N, in_f]; w: [in_f, out_f]; b: [1, out_f] -> [N, out_f]."""
    N, in_f = x.shape
    in_f_w, out_f = w.shape
    assert in_f == in_f_w
    assert b.shape == (1, out_f)

    # One-time host-side parameter rescale: folds omega out of the kernel.
    w_s = (w * omega).astype(jnp.float32)
    b_s = (b * omega).astype(jnp.float32)
    # 4/pi folded into the per-harmonic coefficients (compile-time constants).
    harmonic_coefs = tuple((4.0 / math.pi) / float(2 * t + 1) for t in range(int(n)))

    tile_n = _pick_tile_n(N, tile_n)
    grid = (N // tile_n,)
    out_dtype = x.dtype if out_dtype is None else out_dtype

    kernel = functools.partial(squarer_kernel, harmonic_coefs=harmonic_coefs)

    return pl.pallas_call(
        kernel,
        out_shape=jax.ShapeDtypeStruct((N, out_f), out_dtype),
        grid_spec=pltpu.PrefetchScalarGridSpec(
            num_scalar_prefetch=0,
            grid=grid,
            in_specs=[
                pl.BlockSpec((tile_n, in_f), lambda i: (i, 0)),   # x (streamed)
                pl.BlockSpec((in_f, out_f), lambda i: (0, 0)),    # W*omega (resident)
                pl.BlockSpec((1, out_f), lambda i: (0, 0)),       # b*omega (resident)
            ],
            out_specs=pl.BlockSpec((tile_n, out_f), lambda i: (i, 0)),
        ),
        compiler_params=pltpu.CompilerParams(
            dimension_semantics=("parallel",)),
    )(x, w_s, b_s)


def init_params(key, in_features, out_features, *, is_first=True, omega=30.0):
    """Matches SquarerLayer init: siren_init_ for W, PyTorch-default bias.
    W stored as [in_features, out_features] (transpose of nn.Linear)."""
    kw, kb = jax.random.split(key)
    if is_first:
        bound_w = 1.0 / in_features
    else:
        bound_w = (6.0 / in_features) ** 0.5 / omega
    w = jax.random.uniform(kw, (in_features, out_features), dtype=jnp.float32,
                           minval=-bound_w, maxval=bound_w)
    bound_b = 1.0 / (in_features ** 0.5)
    b = jax.random.uniform(kb, (1, out_features), dtype=jnp.float32,
                           minval=-bound_b, maxval=bound_b)
    return w, b


def squarer_ref(x, w, b, *, omega=30.0, n=2):
    """Pure-JAX reference matching the PyTorch forward exactly."""
    arg = omega * (x @ w + b)                             # [N, out_f]
    idx = jnp.arange(1, 2 * n, 2, dtype=jnp.float32)      # [n]
    terms = jnp.sin(idx[None, None, :] * arg[..., None]) / idx[None, None, :]
    return terms.sum(axis=-1) * (4.0 / jnp.pi)


if __name__ == "__main__":
    key = jax.random.PRNGKey(0)
    k_param, k_x = jax.random.split(key)

    # SIREN-style coordinate layer: 2 input coords -> 128 features.
    in_features, out_features = 2, 128
    omega, n = 30.0, 2
    w, b = init_params(k_param, in_features, out_features,
                       is_first=True, omega=omega)

    # 2048 coordinate rows -> grid of 4 parallel steps of 512 rows each.
    N = 2048
    x = jax.random.uniform(k_x, (N, in_features), dtype=jnp.float32,
                           minval=-1.0, maxval=1.0)

    out = squarer_pallas(x, w, b, omega=omega, n=n)
    out = jax.block_until_ready(out)
    ref = squarer_ref(x, w, b, omega=omega, n=n)
    assert out.shape == (N, out_features)
    # Tolerance covers the (tiny) rounding difference from folding omega into
    # W/b and from the triple-angle form vs. a direct sin(3a).
    assert jnp.allclose(out, ref, atol=5e-4, rtol=1e-3), \
        float(jnp.max(jnp.abs(out - ref)))

    # Also exercise the general (n >= 3) multiple-angle recurrence path once.
    out4 = jax.block_until_ready(squarer_pallas(x, w, b, omega=omega, n=4))
    ref4 = squarer_ref(x, w, b, omega=omega, n=4)
    assert jnp.allclose(out4, ref4, atol=5e-4, rtol=1e-3), \
        float(jnp.max(jnp.abs(out4 - ref4)))

    print("KERNEL_OK")
</pallas_src>

<mosaic_0001>
module attributes {stable_mosaic.version = 11 : i64} {
  func.func @squarer_kernel(%arg0: i32, %arg1: memref<512x2xf32, #tpu.memory_space<vmem>>, %arg2: memref<2x128xf32, #tpu.memory_space<vmem>>, %arg3: memref<1x128xf32, #tpu.memory_space<vmem>>, %arg4: memref<512x128xf32, #tpu.memory_space<vmem>>) attributes {dimension_semantics = [#tpu.dimension_semantics<parallel>], iteration_bounds = array<i64: 4>, scalar_prefetch = 0 : i64, scratch_operands = 0 : i64, tpu.core_type = #tpu.core_type<tc>, window_params = [{transform_indices = @transform_0, window_bounds = array<i64: 512, 2>}, {pipeline_mode = #tpu.pipeline_mode<synchronous>, transform_indices = @transform_1, window_bounds = array<i64: 2, 128>}, {pipeline_mode = #tpu.pipeline_mode<synchronous>, transform_indices = @transform_2, window_bounds = array<i64: 1, 128>}, {transform_indices = @transform_3, window_bounds = array<i64: 512, 128>}]} {
    %c0 = arith.constant 0 : index
    %c0_0 = arith.constant 0 : index
    %0 = vector.load %arg1[%c0, %c0_0] : memref<512x2xf32, #tpu.memory_space<vmem>>, vector<512x2xf32>
    %c0_1 = arith.constant 0 : index
    %c0_2 = arith.constant 0 : index
    %1 = vector.load %arg2[%c0_1, %c0_2] : memref<2x128xf32, #tpu.memory_space<vmem>>, vector<2x128xf32>
    %c0_3 = arith.constant 0 : index
    %c0_4 = arith.constant 0 : index
    %2 = vector.load %arg3[%c0_3, %c0_4] : memref<1x128xf32, #tpu.memory_space<vmem>>, vector<1x128xf32>
    %cst = arith.constant dense<0.000000e+00> : vector<512x128xf32>
    %3 = tpu.matmul %0, %1, %cst {dimension_numbers = #tpu.dot_dimension_numbers<[1], [0], [0], [1], [0, 0, 1, 1], [], []>} : vector<512x2xf32>, vector<2x128xf32>, vector<512x128xf32> -> vector<512x128xf32>
    %4 = vector.broadcast %2 : vector<1x128xf32> to vector<512x128xf32>
    %5 = arith.addf %3, %4 : vector<512x128xf32>
    %6 = math.sin %5 : vector<512x128xf32>
    %7 = arith.mulf %6, %6 : vector<512x128xf32>
    %cst_5 = arith.constant -1.6976527 : f32
    %8 = vector.broadcast %cst_5 : f32 to vector<512x128xf32>
    %9 = arith.mulf %8, %7 : vector<512x128xf32>
    %cst_6 = arith.constant 2.54647899 : f32
    %10 = vector.broadcast %cst_6 : f32 to vector<512x128xf32>
    %11 = arith.addf %10, %9 : vector<512x128xf32>
    %12 = arith.mulf %6, %11 : vector<512x128xf32>
    %c0_7 = arith.constant 0 : index
    %c0_8 = arith.constant 0 : index
    %13 = vector.load %arg4[%c0_7, %c0_8] : memref<512x128xf32, #tpu.memory_space<vmem>>, vector<512x128xf32>
    tpu.vector_store %arg4[%c0_7, %c0_8], %12 {strides = array<i32>} : memref<512x128xf32, #tpu.memory_space<vmem>>, vector<512x128xf32>,
    return
  }
  func.func @transform_0(%arg0: i32) -> (i32, i32) {
    %c0_i32 = arith.constant 0 : i32
    %c0_i32_0 = arith.constant 0 : i32
    return %arg0, %c0_i32 : i32, i32
  }
  func.func @transform_1(%arg0: i32) -> (i32, i32) {
    %c0_i32 = arith.constant 0 : i32
    %c0_i32_0 = arith.constant 0 : i32
    %c0_i32_1 = arith.constant 0 : i32
    return %c0_i32, %c0_i32_0 : i32, i32
  }
  func.func @transform_2(%arg0: i32) -> (i32, i32) {
    %c0_i32 = arith.constant 0 : i32
    %c0_i32_0 = arith.constant 0 : i32
    %c0_i32_1 = arith.constant 0 : i32
    return %c0_i32, %c0_i32_0 : i32, i32
  }
  func.func @transform_3(%arg0: i32) -> (i32, i32) {
    %c0_i32 = arith.constant 0 : i32
    %c0_i32_0 = arith.constant 0 : i32
    return %arg0, %c0_i32 : i32, i32
  }
}

</mosaic_0001>

<llo_original>
// kernel: tpu_custom_call.1
$region0: #{tpu_custom_call.1}
  #allocation0 [shape = 'u32[]', space=smem, size = 0x4, offset = 0x4, fixed_abs, tag = 'smem constant byte address 0x4 - core index']
  #allocation1 [shape = 'u32[72,128]{1,0:T(1,128)}', space=vmem, size = 0x9000, scoped, tag = 'internal scratch']
  %s0 = inlined_call_operand.vmem [shape: f32[2048,2], index: 0, kind: input, shape index: {}]
  %s1 = inlined_call_operand.vmem [shape: f32[2,128], index: 1, kind: input, shape index: {}]
  %s2 = inlined_call_operand.vmem [shape: f32[1,128], index: 2, kind: input, shape index: {}]
  %s3 = inlined_call_operand.hbm [shape: f32[2048,128], index: 3, kind: output, shape index: {}]
  %s4 = sld [smem:[#allocation0]]
  $region45: #{tpu_custom_call.1} parent=0
    _
  %s6 = ssub.s32 1, %s4
  %s7 = scalar_select 0, %s6, %s4
  $region1: #{tpu_custom_call.1} parent=0
    #allocation2 [shape = 'u8[524288]{0}', space=vmem, size = 0x80000, scoped, tag = 'output window, operand 0']
    #allocation3 [shape = 's32[2]{0}', space=sflag, size = 0x8, scoped, tag = 'scoped memory for tpu_custom_call.1']
    %8 = vsyncpa [#allocation3], 0
    %s9 = scalar_lea.sflag [#allocation3], 1
    %10 = vsyncpa %s9, 0
    loop: start=0, step=1, limit=6
    $region2: #{tpu_custom_call.1} parent=1 // loop_pre_header
      _
    $region3: #{tpu_custom_call.1} parent=1 // loop_header
      %s12 = sphi 0, %s16
      %p13 = scmp.ge.s32.totalorder %s12, 6
      %s22 = sphi 0, %s24
      %s25 = sphi 0, %s22
      %s26 = sphi 0, %s25
      %s42 = sphi 0, %s26
      %s46 = sphi 0, %s46
      %s48 = sphi 0, %s46
      %s49 = sphi 0, %s48
      %s63 = sphi 0, %s49
      %s67 = sphi 0, %s67
      %s69 = sphi 0, %s67
      %s70 = sphi 0, %s69
      %s84 = sphi 0, %s70
      %s90 = sphi 0, %s92
      %s93 = sphi 0, %s90
      %s94 = sphi 0, %s93
      %s110 = sphi 0, %s94
    $region4: #{tpu_custom_call.1} parent=1 // loop_header_branch
      %15 = sbr.rel (%p13) target = $region8
    $region5: #{tpu_custom_call.1} parent=1 // loop_body
      %s17 = ssub.s32 %s12, 1
      %s18 = ssub.s32 %s12, 2
      %s19 = sadd.s32 %s12, 1
      %s20 = ssub.s32 %s12, %s19
      %p21 = scmp.eq.s32.totalorder %s20, 0
      %s23 = sadd.s32 %s22, 1
      %s24 = scalar_select %p21, %s22, %s23
      %p27 = pneg %p21
      %p28 = scmp.eq.s32.totalorder %s12, 3
      %p29 = por %p27, %p28
      %p30 = scmp.ne.s32.totalorder %s22, %s25
      %p31 = scmp.eq.s32.totalorder %s12, 0
      %p32 = por %p30, %p31
      %p33 = scmp.ne.s32.totalorder %s22, %s25
      %p34 = scmp.eq.s32.totalorder %s17, 3
      %p35 = por %p33, %p34
      %p36 = scmp.ne.s32.totalorder %s25, %s26
      %p37 = scmp.eq.s32.totalorder %s17, 0
      %p38 = por %p36, %p37
      %p39 = scmp.ne.s32.totalorder %s25, %s26
      %p40 = scmp.eq.s32.totalorder %s18, 3
      %p41 = por %p39, %p40
      %p43 = scmp.ne.s32.totalorder %s26, %s42
      %p44 = scmp.eq.s32.totalorder %s18, 0
      %p45 = por %p43, %p44
      %s47 = sadd.s32 %s46, 1
      %p50 = scmp.eq.s32.totalorder %s12, 3
      %p51 = scmp.ne.s32.totalorder %s46, %s48
      %p52 = scmp.eq.s32.totalorder %s12, 0
      %p53 = por %p51, %p52
      %p54 = scmp.ne.s32.totalorder %s46, %s48
      %p55 = scmp.eq.s32.totalorder %s17, 3
      %p56 = por %p54, %p55
      %p57 = scmp.ne.s32.totalorder %s48, %s49
      %p58 = scmp.eq.s32.totalorder %s17, 0
      %p59 = por %p57, %p58
      %p60 = scmp.ne.s32.totalorder %s48, %s49
      %p61 = scmp.eq.s32.totalorder %s18, 3
      %p62 = por %p60, %p61
      %p64 = scmp.ne.s32.totalorder %s49, %s63
      %p65 = scmp.eq.s32.totalorder %s18, 0
      %p66 = por %p64, %p65
      %s68 = sadd.s32 %s67, 1
      %p71 = scmp.eq.s32.totalorder %s12, 3
      %p72 = scmp.ne.s32.totalorder %s67, %s69
      %p73 = scmp.eq.s32.totalorder %s12, 0
      %p74 = por %p72, %p73
      %p75 = scmp.ne.s32.totalorder %s67, %s69
      %p76 = scmp.eq.s32.totalorder %s17, 3
      %p77 = por %p75, %p76
      %p78 = scmp.ne.s32.totalorder %s69, %s70
      %p79 = scmp.eq.s32.totalorder %s17, 0
      %p80 = por %p78, %p79
      %p81 = scmp.ne.s32.totalorder %s69, %s70
      %p82 = scmp.eq.s32.totalorder %s18, 3
      %p83 = por %p81, %p82
      %p85 = scmp.ne.s32.totalorder %s70, %s84
      %p86 = scmp.eq.s32.totalorder %s18, 0
      %p87 = por %p85, %p86
      %s88 = ssub.s32 %s12, %s19
      %p89 = scmp.eq.s32.totalorder %s88, 0
      %s91 = sadd.s32 %s90, 1
      %s92 = scalar_select %p89, %s90, %s91
      %p95 = pneg %p89
      %p96 = scmp.eq.s32.totalorder %s12, 3
      %p97 = por %p95, %p96
      %p98 = scmp.ne.s32.totalorder %s90, %s93
      %p99 = scmp.eq.s32.totalorder %s12, 0
      %p100 = por %p98, %p99
      %p101 = scmp.ne.s32.totalorder %s90, %s93
      %p102 = scmp.eq.s32.totalorder %s17, 3
      %p103 = por %p101, %p102
      %p104 = scmp.ne.s32.totalorder %s93, %s94
      %p105 = scmp.eq.s32.totalorder %s17, 0
      %p106 = por %p104, %p105
      %p107 = scmp.ne.s32.totalorder %s93, %s94
      %p108 = scmp.eq.s32.totalorder %s18, 3
      %p109 = por %p107, %p108
      %p111 = scmp.ne.s32.totalorder %s94, %s110
      %p112 = scmp.eq.s32.totalorder %s18, 0
      %p113 = por %p111, %p112
      %p114 = scmp.le.s32.totalorder 1, %s12
      %p115 = scmp.lt.s32.totalorder %s12, 5
      %p116 = pnand %p114, %p115
      %p117 = pneg %p116
      // Predicated region
      $region9: #{tpu_custom_call.1} parent=5 // pred_check
        _
      $region10: #{tpu_custom_call.1} parent=5 // pred_check_branch
        %119 = sbr.rel (%p116) target = $region12
      $region11: #{tpu_custom_call.1} parent=5 // pred_region
        %s120 = ssub.s32 %s12, 1
        // Predicated region
        $region13: #{tpu_custom_call.1} parent=11 // pred_check
          %p121 = pneg %p59
        $region14: #{tpu_custom_call.1} parent=11 // pred_check_branch
          %123 = sbr.rel (%p121) target = $region16
        $region15: #{tpu_custom_call.1} parent=11 // pred_region
          _
        $region16: #{tpu_custom_call.1} parent=11 // pred_fallthru
          _
        // Predicated region
        $region17: #{tpu_custom_call.1} parent=11 // pred_check
          %p124 = pneg %p80
        $region18: #{tpu_custom_call.1} parent=11 // pred_check_branch
          %126 = sbr.rel (%p124) target = $region20
        $region19: #{tpu_custom_call.1} parent=11 // pred_region
          _
        $region20: #{tpu_custom_call.1} parent=11 // pred_fallthru
          _
      $region12: #{tpu_custom_call.1} parent=5 // pred_fallthru
        _
      %p127 = scmp.lt.s32.totalorder %s12, 4
      // Predicated region
      $region21: #{tpu_custom_call.1} parent=5 // pred_check
        %p128 = pneg %p127
      $region22: #{tpu_custom_call.1} parent=5 // pred_check_branch
        %130 = sbr.rel (%p128) target = $region24
      $region23: #{tpu_custom_call.1} parent=5 // pred_region
        // Predicated region
        $region25: #{tpu_custom_call.1} parent=23 // pred_check
          %p131 = pneg %p32
        $region26: #{tpu_custom_call.1} parent=23 // pred_check_branch
          %133 = sbr.rel (%p131) target = $region28
        $region27: #{tpu_custom_call.1} parent=23 // pred_region
          %s134 = smul.u32 64, %s12
          %p135 = scmp.lt.s32.totalorder %s134, 255
          %s136 = scalar_select %p135, %s134, 255
          %s137 = smul.addr %s136, 8
          %s138 = scalar_lea.vmem %s0, %s137
          %s139 = smul.u32 64, %s12
        $region28: #{tpu_custom_call.1} parent=23 // pred_fallthru
          _
      $region24: #{tpu_custom_call.1} parent=5 // pred_fallthru
        _
      %p140 = scmp.le.s32.totalorder 1, %s12
      %p141 = scmp.lt.s32.totalorder %s12, 5
      %p142 = pnand %p140, %p141
      %p143 = pneg %p142
      // Predicated region
      $region29: #{tpu_custom_call.1} parent=5 // pred_check
        _
      $region30: #{tpu_custom_call.1} parent=5 // pred_check_branch
        %145 = sbr.rel (%p142) target = $region32
      $region31: #{tpu_custom_call.1} parent=5 // pred_region
        %s146 = ssub.s32 %s12, 1
        %s147 = smul.u32 64, %s17
        %p148 = scmp.lt.s32.totalorder %s147, 255
        %s149 = scalar_select %p148, %s147, 255
        %s150 = smul.addr %s149, 8
        %s151 = scalar_lea.vmem %s0, %s150
        %p152 = pneg %p38
        %p153 = pneg %p35
        %p154 = pneg %p59
        %p155 = pneg %p56
        %p156 = pneg %p80
        %p157 = pneg %p77
        %p158 = pneg %p106
        %p159 = pneg %p103
        %s160 = sand.u32 %s93, 1
        %s161 = scalar_lea.sflag [#allocation3], %s160
        %s162 = sand.u32 %s93, 1
        %s163 = smul.addr %s162, 512
        %s164 = scalar_lea.vmem [#allocation2], %s163
        %s165 = smul.u32 64, %s17
        %p166 = scmp.lt.s32.totalorder %s165, 255
        %s167 = scalar_select %p166, %s165, 255
        %s168 = smul.addr %s167, 8
        %s169 = scalar_lea.vmem %s0, %s168
        %s170 = smul.u32 64, %s17
        %s171 = smul.u32 64, %s17
        %v172 = vld [vmem:[%s169] sm:$0xff]
        %v173 = vld [vmem:[%s169 + $0x8] sm:$0xff]
        %v174 = vld [vmem:[%s169 + $0x10] sm:$0xff]
        %v175 = vld [vmem:[%s169 + $0x18] sm:$0xff]
        %v176 = vld [vmem:[%s169 + $0x20] sm:$0xff]
        %v177 = vld [vmem:[%s169 + $0x28] sm:$0xff]
        %v178 = vld [vmem:[%s169 + $0x30] sm:$0xff]
        %v179 = vld [vmem:[%s169 + $0x38] sm:$0xff]
        %v180 = vld [vmem:[%s169 + $0x40] sm:$0xff]
        %v181 = vld [vmem:[%s169 + $0x48] sm:$0xff]
        %v182 = vld [vmem:[%s169 + $0x50] sm:$0xff]
        %v183 = vld [vmem:[%s169 + $0x58] sm:$0xff]
        %v184 = vld [vmem:[%s169 + $0x60] sm:$0xff]
        %v185 = vld [vmem:[%s169 + $0x68] sm:$0xff]
        %v186 = vld [vmem:[%s169 + $0x70] sm:$0xff]
        %v187 = vld [vmem:[%s169 + $0x78] sm:$0xff]
        %v188 = vld [vmem:[%s169 + $0x80] sm:$0xff]
        %v189 = vld [vmem:[%s169 + $0x88] sm:$0xff]
        %v190 = vld [vmem:[%s169 + $0x90] sm:$0xff]
        %v191 = vld [vmem:[%s169 + $0x98] sm:$0xff]
        %v192 = vld [vmem:[%s169 + $0xa0] sm:$0xff]
        %v193 = vld [vmem:[%s169 + $0xa8] sm:$0xff]
        %v194 = vld [vmem:[%s169 + $0xb0] sm:$0xff]
        %v195 = vld [vmem:[%s169 + $0xb8] sm:$0xff]
        %v196 = vld [vmem:[%s169 + $0xc0] sm:$0xff]
        %v197 = vld [vmem:[%s169 + $0xc8] sm:$0xff]
        %v198 = vld [vmem:[%s169 + $0xd0] sm:$0xff]
        %v199 = vld [vmem:[%s169 + $0xd8] sm:$0xff]
        %v200 = vld [vmem:[%s169 + $0xe0] sm:$0xff]
        %v201 = vld [vmem:[%s169 + $0xe8] sm:$0xff]
        %v202 = vld [vmem:[%s169 + $0xf0] sm:$0xff]
        %v203 = vld [vmem:[%s169 + $0xf8] sm:$0xff]
        %v204 = vld [vmem:[%s169 + $0x100] sm:$0xff]
        %v205 = vld [vmem:[%s169 + $0x108] sm:$0xff]
        %v206 = vld [vmem:[%s169 + $0x110] sm:$0xff]
        %v207 = vld [vmem:[%s169 + $0x118] sm:$0xff]
        %v208 = vld [vmem:[%s169 + $0x120] sm:$0xff]
        %v209 = vld [vmem:[%s169 + $0x128] sm:$0xff]
        %v210 = vld [vmem:[%s169 + $0x130] sm:$0xff]
        %v211 = vld [vmem:[%s169 + $0x138] sm:$0xff]
        %v212 = vld [vmem:[%s169 + $0x140] sm:$0xff]
        %v213 = vld [vmem:[%s169 + $0x148] sm:$0xff]
        %v214 = vld [vmem:[%s169 + $0x150] sm:$0xff]
        %v215 = vld [vmem:[%s169 + $0x158] sm:$0xff]
        %v216 = vld [vmem:[%s169 + $0x160] sm:$0xff]
        %v217 = vld [vmem:[%s169 + $0x168] sm:$0xff]
        %v218 = vld [vmem:[%s169 + $0x170] sm:$0xff]
        %v219 = vld [vmem:[%s169 + $0x178] sm:$0xff]
        %v220 = vld [vmem:[%s169 + $0x180] sm:$0xff]
        %v221 = vld [vmem:[%s169 + $0x188] sm:$0xff]
        %v222 = vld [vmem:[%s169 + $0x190] sm:$0xff]
        %v223 = vld [vmem:[%s169 + $0x198] sm:$0xff]
        %v224 = vld [vmem:[%s169 + $0x1a0] sm:$0xff]
        %v225 = vld [vmem:[%s169 + $0x1a8] sm:$0xff]
        %v226 = vld [vmem:[%s169 + $0x1b0] sm:$0xff]
        %v227 = vld [vmem:[%s169 + $0x1b8] sm:$0xff]
        %v228 = vld [vmem:[%s169 + $0x1c0] sm:$0xff]
        %v229 = vld [vmem:[%s169 + $0x1c8] sm:$0xff]
        %v230 = vld [vmem:[%s169 + $0x1d0] sm:$0xff]
        %v231 = vld [vmem:[%s169 + $0x1d8] sm:$0xff]
        %v232 = vld [vmem:[%s169 + $0x1e0] sm:$0xff]
        %v233 = vld [vmem:[%s169 + $0x1e8] sm:$0xff]
        %v234 = vld [vmem:[%s169 + $0x1f0] sm:$0xff]
        %v235 = vld [vmem:[%s169 + $0x1f8] sm:$0xff]
        %v236 = vld [vmem:[%s1] sm:$0x3]
        %v237 = vld [vmem:[%s2] sm:$0x1]
        %v239 = vperm.slane %v237, 0
        %vm241 = vcmask 15360
        %v243 = vsel %vm241, %v172, 0
        %v246 = vsel %vm241, %v173, 0
        %v249 = vsel %vm241, %v174, 0
        %v252 = vsel %vm241, %v175, 0
        %v255 = vsel %vm241, %v176, 0
        %v258 = vsel %vm241, %v177, 0
        %v261 = vsel %vm241, %v178, 0
        %v264 = vsel %vm241, %v179, 0
        %v267 = vsel %vm241, %v180, 0
        %v270 = vsel %vm241, %v181, 0
        %v273 = vsel %vm241, %v182, 0
        %v276 = vsel %vm241, %v183, 0
        %v279 = vsel %vm241, %v184, 0
        %v282 = vsel %vm241, %v185, 0
        %v285 = vsel %vm241, %v186, 0
        %v288 = vsel %vm241, %v187, 0
        %v291 = vsel %vm241, %v188, 0
        %v294 = vsel %vm241, %v189, 0
        %v297 = vsel %vm241, %v190, 0
        %v300 = vsel %vm241, %v191, 0
        %v303 = vsel %vm241, %v192, 0
        %v306 = vsel %vm241, %v193, 0
        %v309 = vsel %vm241, %v194, 0
        %v312 = vsel %vm241, %v195, 0
        %v315 = vsel %vm241, %v196, 0
        %v318 = vsel %vm241, %v197, 0
        %v321 = vsel %vm241, %v198, 0
        %v324 = vsel %vm241, %v199, 0
        %v327 = vsel %vm241, %v200, 0
        %v330 = vsel %vm241, %v201, 0
        %v333 = vsel %vm241, %v202, 0
        %v336 = vsel %vm241, %v203, 0
        %v339 = vsel %vm241, %v204, 0
        %v342 = vsel %vm241, %v205, 0
        %v345 = vsel %vm241, %v206, 0
        %v348 = vsel %vm241, %v207, 0
        %v351 = vsel %vm241, %v208, 0
        %v354 = vsel %vm241, %v209, 0
        %v357 = vsel %vm241, %v210, 0
        %v360 = vsel %vm241, %v211, 0
        %v363 = vsel %vm241, %v212, 0
        %v366 = vsel %vm241, %v213, 0
        %v369 = vsel %vm241, %v214, 0
        %v372 = vsel %vm241, %v215, 0
        %v375 = vsel %vm241, %v216, 0
        %v378 = vsel %vm241, %v217, 0
        %v381 = vsel %vm241, %v218, 0
        %v384 = vsel %vm241, %v219, 0
        %v387 = vsel %vm241, %v220, 0
        %v390 = vsel %vm241, %v221, 0
        %v393 = vsel %vm241, %v222, 0
        %v396 = vsel %vm241, %v223, 0
        %v399 = vsel %vm241, %v224, 0
        %v402 = vsel %vm241, %v225, 0
        %v405 = vsel %vm241, %v226, 0
        %v408 = vsel %vm241, %v227, 0
        %v411 = vsel %vm241, %v228, 0
        %v414 = vsel %vm241, %v229, 0
        %v417 = vsel %vm241, %v230, 0
        %v420 = vsel %vm241, %v231, 0
        %v423 = vsel %vm241, %v232, 0
        %v426 = vsel %vm241, %v233, 0
        %v429 = vsel %vm241, %v234, 0
        %v432 = vsel %vm241, %v235, 0
        %vm434 = vcmask 1041408
        %v436 = vsel %vm434, %v236, 0
        %438 = vmatpush.msra.mxu0 0.0
        %439 = vmatpush.msra.mxu0 0.0
        %440 = vmatpush.msra.mxu0 0.0
        %441 = vmatpush.msra.mxu0 0.0
        %442 = vmatpush.msra.mxu0 0.0
        %443 = vmatpush.msra.mxu0 0.0
        %444 = vmatpush.msra.mxu0 0.0
        %445 = vmatpush.msra.mxu0 0.0
        %446 = vmatpush.msra.mxu0 0.0
        %447 = vmatpush.msra.mxu0 0.0
        %448 = vmatpush.msra.mxu0 0.0
        %449 = vmatpush.msra.mxu0 0.0
        %450 = vmatpush.msra.mxu0 0.0
        %451 = vmatpush.msra.mxu0 0.0
        %452 = vmatpush.msra.mxu0 0.0
        %453 = vmatpush.msra.mxu0 %v436
        %454 = vmatmul.f32.gmra.mxu0 %v243
        %v455 = vpop.f32.mrf.mxu0
        %v456 = vadd.f32 %v239, %v455
        %457 = vmatmul.f32.gmra.mxu0 %v246
        %v458 = vpop.f32.mrf.mxu0
        %v459 = vadd.f32 %v239, %v458
        %460 = vmatmul.f32.gmra.mxu0 %v249
        %v461 = vpop.f32.mrf.mxu0
        %v462 = vadd.f32 %v239, %v461
        %463 = vmatmul.f32.gmra.mxu0 %v252
        %v464 = vpop.f32.mrf.mxu0
        %v465 = vadd.f32 %v239, %v464
        %466 = vmatmul.f32.gmra.mxu0 %v255
        %v467 = vpop.f32.mrf.mxu0
        %v468 = vadd.f32 %v239, %v467
        %469 = vmatmul.f32.gmra.mxu0 %v258
        %v470 = vpop.f32.mrf.mxu0
        %v471 = vadd.f32 %v239, %v470
        %472 = vmatmul.f32.gmra.mxu0 %v261
        %v473 = vpop.f32.mrf.mxu0
        %v474 = vadd.f32 %v239, %v473
        %475 = vmatmul.f32.gmra.mxu0 %v264
        %v476 = vpop.f32.mrf.mxu0
        %v477 = vadd.f32 %v239, %v476
        %478 = vmatmul.f32.gmra.mxu0 %v267
        %v479 = vpop.f32.mrf.mxu0
        %v480 = vadd.f32 %v239, %v479
        %481 = vmatmul.f32.gmra.mxu0 %v270
        %v482 = vpop.f32.mrf.mxu0
        %v483 = vadd.f32 %v239, %v482
        %484 = vmatmul.f32.gmra.mxu0 %v273
        %v485 = vpop.f32.mrf.mxu0
        %v486 = vadd.f32 %v239, %v485
        %487 = vmatmul.f32.gmra.mxu0 %v276
        %v488 = vpop.f32.mrf.mxu0
        %v489 = vadd.f32 %v239, %v488
        %490 = vmatmul.f32.gmra.mxu0 %v279
        %v491 = vpop.f32.mrf.mxu0
        %v492 = vadd.f32 %v239, %v491
        %493 = vmatmul.f32.gmra.mxu0 %v282
        %v494 = vpop.f32.mrf.mxu0
        %v495 = vadd.f32 %v239, %v494
        %496 = vmatmul.f32.gmra.mxu0 %v285
        %v497 = vpop.f32.mrf.mxu0
        %v498 = vadd.f32 %v239, %v497
        %499 = vmatmul.f32.gmra.mxu0 %v288
        %v500 = vpop.f32.mrf.mxu0
        %v501 = vadd.f32 %v239, %v500
        %502 = vmatmul.f32.gmra.mxu0 %v291
        %v503 = vpop.f32.mrf.mxu0
        %v504 = vadd.f32 %v239, %v503
        %505 = vmatmul.f32.gmra.mxu0 %v294
        %v506 = vpop.f32.mrf.mxu0
        %v507 = vadd.f32 %v239, %v506
        %508 = vmatmul.f32.gmra.mxu0 %v297
        %v509 = vpop.f32.mrf.mxu0
        %v510 = vadd.f32 %v239, %v509
        %511 = vmatmul.f32.gmra.mxu0 %v300
        %v512 = vpop.f32.mrf.mxu0
        %v513 = vadd.f32 %v239, %v512
        %514 = vmatmul.f32.gmra.mxu0 %v303
        %v515 = vpop.f32.mrf.mxu0
        %v516 = vadd.f32 %v239, %v515
        %517 = vmatmul.f32.gmra.mxu0 %v306
        %v518 = vpop.f32.mrf.mxu0
        %v519 = vadd.f32 %v239, %v518
        %520 = vmatmul.f32.gmra.mxu0 %v309
        %v521 = vpop.f32.mrf.mxu0
        %v522 = vadd.f32 %v239, %v521
        %523 = vmatmul.f32.gmra.mxu0 %v312
        %v524 = vpop.f32.mrf.mxu0
        %v525 = vadd.f32 %v239, %v524
        %526 = vmatmul.f32.gmra.mxu0 %v315
        %v527 = vpop.f32.mrf.mxu0
        %v528 = vadd.f32 %v239, %v527
        %529 = vmatmul.f32.gmra.mxu0 %v318
        %v530 = vpop.f32.mrf.mxu0
        %v531 = vadd.f32 %v239, %v530
        %532 = vmatmul.f32.gmra.mxu0 %v321
        %v533 = vpop.f32.mrf.mxu0
        %v534 = vadd.f32 %v239, %v533
        %535 = vmatmul.f32.gmra.mxu0 %v324
        %v536 = vpop.f32.mrf.mxu0
        %v537 = vadd.f32 %v239, %v536
        %538 = vmatmul.f32.gmra.mxu0 %v327
        %v539 = vpop.f32.mrf.mxu0
        %v540 = vadd.f32 %v239, %v539
        %541 = vmatmul.f32.gmra.mxu0 %v330
        %v542 = vpop.f32.mrf.mxu0
        %v543 = vadd.f32 %v239, %v542
        %544 = vmatmul.f32.gmra.mxu0 %v333
        %v545 = vpop.f32.mrf.mxu0
        %v546 = vadd.f32 %v239, %v545
        %547 = vmatmul.f32.gmra.mxu0 %v336
        %v548 = vpop.f32.mrf.mxu0
        %v549 = vadd.f32 %v239, %v548
        %550 = vmatmul.f32.gmra.mxu0 %v339
        %v551 = vpop.f32.mrf.mxu0
        %v552 = vadd.f32 %v239, %v551
        %553 = vmatmul.f32.gmra.mxu0 %v342
        %v554 = vpop.f32.mrf.mxu0
        %v555 = vadd.f32 %v239, %v554
        %556 = vmatmul.f32.gmra.mxu0 %v345
        %v557 = vpop.f32.mrf.mxu0
        %v558 = vadd.f32 %v239, %v557
        %559 = vmatmul.f32.gmra.mxu0 %v348
        %v560 = vpop.f32.mrf.mxu0
        %v561 = vadd.f32 %v239, %v560
        %562 = vmatmul.f32.gmra.mxu0 %v351
        %v563 = vpop.f32.mrf.mxu0
        %v564 = vadd.f32 %v239, %v563
        %565 = vmatmul.f32.gmra.mxu0 %v354
        %v566 = vpop.f32.mrf.mxu0
        %v567 = vadd.f32 %v239, %v566
        %568 = vmatmul.f32.gmra.mxu0 %v357
        %v569 = vpop.f32.mrf.mxu0
        %v570 = vadd.f32 %v239, %v569
        %571 = vmatmul.f32.gmra.mxu0 %v360
        %v572 = vpop.f32.mrf.mxu0
        %v573 = vadd.f32 %v239, %v572
        %574 = vmatmul.f32.gmra.mxu0 %v363
        %v575 = vpop.f32.mrf.mxu0
        %v576 = vadd.f32 %v239, %v575
        %577 = vmatmul.f32.gmra.mxu0 %v366
        %v578 = vpop.f32.mrf.mxu0
        %v579 = vadd.f32 %v239, %v578
        %580 = vmatmul.f32.gmra.mxu0 %v369
        %v581 = vpop.f32.mrf.mxu0
        %v582 = vadd.f32 %v239, %v581
        %583 = vmatmul.f32.gmra.mxu0 %v372
        %v584 = vpop.f32.mrf.mxu0
        %v585 = vadd.f32 %v239, %v584
        %586 = vmatmul.f32.gmra.mxu0 %v375
        %v587 = vpop.f32.mrf.mxu0
        %v588 = vadd.f32 %v239, %v587
        %589 = vmatmul.f32.gmra.mxu0 %v378
        %v590 = vpop.f32.mrf.mxu0
        %v591 = vadd.f32 %v239, %v590
        %592 = vmatmul.f32.gmra.mxu0 %v381
        %v593 = vpop.f32.mrf.mxu0
        %v594 = vadd.f32 %v239, %v593
        %595 = vmatmul.f32.gmra.mxu0 %v384
        %v596 = vpop.f32.mrf.mxu0
        %v597 = vadd.f32 %v239, %v596
        %598 = vmatmul.f32.gmra.mxu0 %v387
        %v599 = vpop.f32.mrf.mxu0
        %v600 = vadd.f32 %v239, %v599
        %601 = vmatmul.f32.gmra.mxu0 %v390
        %v602 = vpop.f32.mrf.mxu0
        %v603 = vadd.f32 %v239, %v602
        %604 = vmatmul.f32.gmra.mxu0 %v393
        %v605 = vpop.f32.mrf.mxu0
        %v606 = vadd.f32 %v239, %v605
        %607 = vmatmul.f32.gmra.mxu0 %v396
        %v608 = vpop.f32.mrf.mxu0
        %v609 = vadd.f32 %v239, %v608
        %610 = vmatmul.f32.gmra.mxu0 %v399
        %v611 = vpop.f32.mrf.mxu0
        %v612 = vadd.f32 %v239, %v611
        %613 = vmatmul.f32.gmra.mxu0 %v402
        %v614 = vpop.f32.mrf.mxu0
        %v615 = vadd.f32 %v239, %v614
        %616 = vmatmul.f32.gmra.mxu0 %v405
        %v617 = vpop.f32.mrf.mxu0
        %v618 = vadd.f32 %v239, %v617
        %619 = vmatmul.f32.gmra.mxu0 %v408
        %v620 = vpop.f32.mrf.mxu0
        %v621 = vadd.f32 %v239, %v620
        %622 = vmatmul.f32.gmra.mxu0 %v411
        %v623 = vpop.f32.mrf.mxu0
        %v624 = vadd.f32 %v239, %v623
        %625 = vmatmul.f32.gmra.mxu0 %v414
        %v626 = vpop.f32.mrf.mxu0
        %v627 = vadd.f32 %v239, %v626
        %628 = vmatmul.f32.gmra.mxu0 %v417
        %v629 = vpop.f32.mrf.mxu0
        %v630 = vadd.f32 %v239, %v629
        %631 = vmatmul.f32.gmra.mxu0 %v420
        %v632 = vpop.f32.mrf.mxu0
        %v633 = vadd.f32 %v239, %v632
        %634 = vmatmul.f32.gmra.mxu0 %v423
        %v635 = vpop.f32.mrf.mxu0
        %v636 = vadd.f32 %v239, %v635
        %637 = vmatmul.f32.gmra.mxu0 %v426
        %v638 = vpop.f32.mrf.mxu0
        %v639 = vadd.f32 %v239, %v638
        %640 = vmatmul.f32.gmra.mxu0 %v429
        %v641 = vpop.f32.mrf.mxu0
        %v642 = vadd.f32 %v239, %v641
        %643 = vmatmul.f32.gmra.mxu0 %v432
        %v644 = vpop.f32.mrf.mxu0
        %v645 = vadd.f32 %v239, %v644
        %646 = vdwg.mxu0
        %v647 = vand.u32 2147483647, %v456
        %vm648 = vcmp.le.f32.partialorder %v647, 0.7853982
        %vm649 = vcmp.lt.s32.totalorder %v456, 0
        %v650 = vand.u32 %v456, 2139095040
        %v651 = vshrl.u32 %v650, 23
        %v652 = vsub.s32 %v651, 127
        %v653 = vand.u32 2147483647, %v456
        %v654 = vand.u32 %v653, 8388607
        %v655 = vor.u32 %v654, 8388608
        %v656 = vsub.s32 0, %v655
        %v657 = vadd.s32 %v652, 1
        %vm658 = vcmp.gt.s32.totalorder %v657, 0
        %v659 = vsel %vm658, %v657, 0
        %v660 = vshrl.u32 %v659, 5
        %v661 = vand.u32 %v659, 31
        %v662 = vsub.s32 32, %v661
        %v663 = vshrl.u32 683565275, %v662
        %v664 = vshll.u32 683565275, %v661
        %v665 = vshrl.u32 2475754826, %v662
        %v666 = vor.u32 %v664, %v665
        %v667 = vshll.u32 2475754826, %v661
        %v668 = vshrl.u32 2131351028, %v662
        %v669 = vor.u32 %v667, %v668
        %v670 = vshll.u32 2131351028, %v661
        %v671 = vshrl.u32 2102212464, %v662
        %v672 = vor.u32 %v670, %v671
        %v673 = vshll.u32 2102212464, %v661
        %v674 = vshrl.u32 920167782, %v662
        %v675 = vor.u32 %v673, %v674
        %v676 = vshll.u32 920167782, %v661
        %v677 = vshrl.u32 1326507024, %v662
        %v678 = vor.u32 %v676, %v677
        %vm679 = vcmp.lt.s32.totalorder %v660, 1
        %vm680 = vcmp.lt.s32.totalorder %v660, 2
        %vm681 = vcmp.lt.s32.totalorder %v660, 3
        %vm682 = vcmp.lt.s32.totalorder %v660, 4
        %v683 = vsel %vm679, %v663, %v666
        %v684 = vsel %vm682, %v672, 2102212464
        %v685 = vsel %vm681, %v669, %v684
        %v686 = vsel %vm680, %v683, %v685
        %v687 = vsel %vm679, %v666, %v669
        %v688 = vsel %vm682, %v675, 920167782
        %v689 = vsel %vm681, %v672, %v688
        %v690 = vsel %vm680, %v687, %v689
        %v691 = vsel %vm679, %v669, %v672
        %v692 = vsel %vm682, %v678, 1326507024
        %v693 = vsel %vm681, %v675, %v692
        %v694 = vsel %vm680, %v691, %v693
        %v695 = vshll.u32 %v655, 8
        %v696 = vand.u32 %v695, 65535
        %v697 = vshrl.u32 %v695, 16
        %v698 = vand.u32 %v694, 65535
        %v699 = vshrl.u32 %v694, 16
        %v700 = vmul.u32 %v696, %v698
        %v701 = vmul.u32 %v696, %v699
        %v702 = vmul.u32 %v697, %v698
        %v703 = vmul.u32 %v697, %v699
        %v704 = vshll.u32 %v701, 16
        %v705 = vshrl.u32 %v701, 16
        %v706 = vshll.u32 %v702, 16
        %v707 = vshrl.u32 %v702, 16
        %vm708 = vc.u32 %v700, %v704
        %v709 = vsel %vm708, 1, 0
        %v710 = vadd.s32 %v700, %v704
        %v711 = vadd.s32 %v703, %v709
        %vm712 = vc.u32 %v710, %v706
        %v713 = vsel %vm712, 1, 0
        %v714 = vadd.s32 %v710, %v706
        %v715 = vadd.s32 %v711, %v713
        %v716 = vadd.s32 %v715, %v705
        %v717 = vadd.s32 %v716, %v707
        %v718 = vand.u32 %v695, 65535
        %v719 = vshrl.u32 %v695, 16
        %v720 = vand.u32 %v690, 65535
        %v721 = vshrl.u32 %v690, 16
        %v722 = vmul.u32 %v718, %v720
        %v723 = vmul.u32 %v718, %v721
        %v724 = vmul.u32 %v719, %v720
        %v725 = vmul.u32 %v719, %v721
        %v726 = vshll.u32 %v723, 16
        %v727 = vshrl.u32 %v723, 16
        %v728 = vshll.u32 %v724, 16
        %v729 = vshrl.u32 %v724, 16
        %vm730 = vc.u32 %v722, %v726
        %v731 = vsel %vm730, 1, 0
        %v732 = vadd.s32 %v722, %v726
        %v733 = vadd.s32 %v725, %v731
        %vm734 = vc.u32 %v732, %v728
        %v735 = vsel %vm734, 1, 0
        %v736 = vadd.s32 %v732, %v728
        %v737 = vadd.s32 %v733, %v735
        %v738 = vadd.s32 %v737, %v727
        %v739 = vadd.s32 %v738, %v729
        %v740 = vmul.u32 %v695, %v686
        %v741 = vadd.s32 %v717, %v736
        %vm742 = vc.u32 %v717, %v736
        %v743 = vadd.s32 %v739, 1
        %v744 = vsel %vm742, %v743, %v739
        %v745 = vadd.s32 %v740, %v744
        %v746 = vadd.s32 %v745, 536870912
        %v747 = vshrl.u32 %v746, 30
        %v748 = vshll.u32 %v747, 30
        %v749 = vsub.s32 %v745, %v748
        %vm750 = vcmp.lt.s32.totalorder %v749, 0
        %v751 = vsub.s32 0, %v749
        %v752 = vsel %vm750, %v751, %v749
        %v753 = vclz %v752
        %v754 = vsub.s32 %v753, 2
        %vm755 = vcmp.gt.s32.totalorder 0, %v754
        %v756 = vsel %vm755, 0, %v754
        %v757 = vsub.s32 32, %v756
        %v758 = vshll.u32 %v749, %v756
        %v759 = vshrl.u32 %v741, %v757
        %v760 = vor.u32 %v758, %v759
        %v761 = vsub.s32 4294967266, %v756
        %v762 = vadd.s32 %v761, 127
        %v763 = vshll.u32 %v762, 23
        %v764 = vor.u32 4788187, %v763
        %v765 = vand.u32 2147483647, %v764
        %v767 = vcvt.s32.f32 %v760
        %v768 = vmul.f32 %v767, %v765
        %v769 = vxor.u32 %v768, 2147483648
        %v770 = vsel %vm649, %v769, %v768
        %v771 = vsub.s32 4, %v747
        %v772 = vsel %vm649, %v771, %v747
        %v773 = vsel %vm648, %v456, %v770
        %v774 = vsel %vm648, 0, %v772
        %v775 = vmul.f32 %v773, %v773
        %v776 = vmul.f32 %v775, -0.001358992
        %v777 = vadd.f32 %v776, 0.041655596
        %v778 = vmul.f32 %v775, %v777
        %v779 = vadd.f32 %v778, -0.4999988
        %v780 = vmul.f32 %v775, %v779
        %v781 = vadd.f32 1.0, %v780
        %v782 = vmul.f32 %v773, %v773
        %v783 = vmul.f32 %v782, -0.00019511016
        %v784 = vadd.f32 %v783, 0.008332121
        %v785 = vmul.f32 %v782, %v784
        %v786 = vadd.f32 %v785, -0.16666654
        %v787 = vmul.f32 %v782, %v786
        %v788 = vadd.f32 %v787, 1.0
        %v789 = vmul.f32 %v788, %v773
        %vm790 = vweird.f32 %v456
        %v791 = vadd.s32 %v774, 3
        %v792 = vand.u32 %v791, 3
        %vm793 = vcmp.lt.s32.totalorder %v792, 2
        %vm794 = vcmp.eq.s32.totalorder %v792, 0
        %v795 = vxor.u32 %v789, 2147483648
        %v796 = vsel %vm794, %v781, %v795
        %vm797 = vcmp.eq.s32.totalorder %v792, 2
        %v798 = vxor.u32 %v781, 2147483648
        %v799 = vsel %vm797, %v798, %v789
        %v800 = vsel %vm793, %v796, %v799
        %v801 = vsel %vm790, nan, %v800
        %v802 = vand.u32 2147483647, %v459
        %vm803 = vcmp.le.f32.partialorder %v802, 0.7853982
        %vm804 = vcmp.lt.s32.totalorder %v459, 0
        %v805 = vand.u32 %v459, 2139095040
        %v806 = vshrl.u32 %v805, 23
        %v807 = vsub.s32 %v806, 127
        %v808 = vand.u32 2147483647, %v459
        %v809 = vand.u32 %v808, 8388607
        %v810 = vor.u32 %v809, 8388608
        %v811 = vsub.s32 0, %v810
        %v812 = vadd.s32 %v807, 1
        %vm813 = vcmp.gt.s32.totalorder %v812, 0
        %v814 = vsel %vm813, %v812, 0
        %v815 = vshrl.u32 %v814, 5
        %v816 = vand.u32 %v814, 31
        %v817 = vsub.s32 32, %v816
        %v818 = vshrl.u32 683565275, %v817
        %v819 = vshll.u32 683565275, %v816
        %v820 = vshrl.u32 2475754826, %v817
        %v821 = vor.u32 %v819, %v820
        %v822 = vshll.u32 2475754826, %v816
        %v823 = vshrl.u32 2131351028, %v817
        %v824 = vor.u32 %v822, %v823
        %v825 = vshll.u32 2131351028, %v816
        %v826 = vshrl.u32 2102212464, %v817
        %v827 = vor.u32 %v825, %v826
        %v828 = vshll.u32 2102212464, %v816
        %v829 = vshrl.u32 920167782, %v817
        %v830 = vor.u32 %v828, %v829
        %v831 = vshll.u32 920167782, %v816
        %v832 = vshrl.u32 1326507024, %v817
        %v833 = vor.u32 %v831, %v832
        %vm834 = vcmp.lt.s32.totalorder %v815, 1
        %vm835 = vcmp.lt.s32.totalorder %v815, 2
        %vm836 = vcmp.lt.s32.totalorder %v815, 3
        %vm837 = vcmp.lt.s32.totalorder %v815, 4
        %v838 = vsel %vm834, %v818, %v821
        %v839 = vsel %vm837, %v827, 2102212464
        %v840 = vsel %vm836, %v824, %v839
        %v841 = vsel %vm835, %v838, %v840
        %v842 = vsel %vm834, %v821, %v824
        %v843 = vsel %vm837, %v830, 920167782
        %v844 = vsel %vm836, %v827, %v843
        %v845 = vsel %vm835, %v842, %v844
        %v846 = vsel %vm834, %v824, %v827
        %v847 = vsel %vm837, %v833, 1326507024
        %v848 = vsel %vm836, %v830, %v847
        %v849 = vsel %vm835, %v846, %v848
        %v850 = vshll.u32 %v810, 8
        %v851 = vand.u32 %v850, 65535
        %v852 = vshrl.u32 %v850, 16
        %v853 = vand.u32 %v849, 65535
        %v854 = vshrl.u32 %v849, 16
        %v855 = vmul.u32 %v851, %v853
        %v856 = vmul.u32 %v851, %v854
        %v857 = vmul.u32 %v852, %v853
        %v858 = vmul.u32 %v852, %v854
        %v859 = vshll.u32 %v856, 16
        %v860 = vshrl.u32 %v856, 16
        %v861 = vshll.u32 %v857, 16
        %v862 = vshrl.u32 %v857, 16
        %vm863 = vc.u32 %v855, %v859
        %v864 = vsel %vm863, 1, 0
        %v865 = vadd.s32 %v855, %v859
        %v866 = vadd.s32 %v858, %v864
        %vm867 = vc.u32 %v865, %v861
        %v868 = vsel %vm867, 1, 0
        %v869 = vadd.s32 %v865, %v861
        %v870 = vadd.s32 %v866, %v868
        %v871 = vadd.s32 %v870, %v860
        %v872 = vadd.s32 %v871, %v862
        %v873 = vand.u32 %v850, 65535
        %v874 = vshrl.u32 %v850, 16
        %v875 = vand.u32 %v845, 65535
        %v876 = vshrl.u32 %v845, 16
        %v877 = vmul.u32 %v873, %v875
        %v878 = vmul.u32 %v873, %v876
        %v879 = vmul.u32 %v874, %v875
        %v880 = vmul.u32 %v874, %v876
        %v881 = vshll.u32 %v878, 16
        %v882 = vshrl.u32 %v878, 16
        %v883 = vshll.u32 %v879, 16
        %v884 = vshrl.u32 %v879, 16
        %vm885 = vc.u32 %v877, %v881
        %v886 = vsel %vm885, 1, 0
        %v887 = vadd.s32 %v877, %v881
        %v888 = vadd.s32 %v880, %v886
        %vm889 = vc.u32 %v887, %v883
        %v890 = vsel %vm889, 1, 0
        %v891 = vadd.s32 %v887, %v883
        %v892 = vadd.s32 %v888, %v890
        %v893 = vadd.s32 %v892, %v882
        %v894 = vadd.s32 %v893, %v884
        %v895 = vmul.u32 %v850, %v841
        %v896 = vadd.s32 %v872, %v891
        %vm897 = vc.u32 %v872, %v891
        %v898 = vadd.s32 %v894, 1
        %v899 = vsel %vm897, %v898, %v894
        %v900 = vadd.s32 %v895, %v899
        %v901 = vadd.s32 %v900, 536870912
        %v902 = vshrl.u32 %v901, 30
        %v903 = vshll.u32 %v902, 30
        %v904 = vsub.s32 %v900, %v903
        %vm905 = vcmp.lt.s32.totalorder %v904, 0
        %v906 = vsub.s32 0, %v904
        %v907 = vsel %vm905, %v906, %v904
        %v908 = vclz %v907
        %v909 = vsub.s32 %v908, 2
        %vm910 = vcmp.gt.s32.totalorder 0, %v909
        %v911 = vsel %vm910, 0, %v909
        %v912 = vsub.s32 32, %v911
        %v913 = vshll.u32 %v904, %v911
        %v914 = vshrl.u32 %v896, %v912
        %v915 = vor.u32 %v913, %v914
        %v916 = vsub.s32 4294967266, %v911
        %v917 = vadd.s32 %v916, 127
        %v918 = vshll.u32 %v917, 23
        %v919 = vor.u32 4788187, %v918
        %v920 = vand.u32 2147483647, %v919
        %v922 = vcvt.s32.f32 %v915
        %v923 = vmul.f32 %v922, %v920
        %v924 = vxor.u32 %v923, 2147483648
        %v925 = vsel %vm804, %v924, %v923
        %v926 = vsub.s32 4, %v902
        %v927 = vsel %vm804, %v926, %v902
        %v928 = vsel %vm803, %v459, %v925
        %v929 = vsel %vm803, 0, %v927
        %v930 = vmul.f32 %v928, %v928
        %v931 = vmul.f32 %v930, -0.001358992
        %v932 = vadd.f32 %v931, 0.041655596
        %v933 = vmul.f32 %v930, %v932
        %v934 = vadd.f32 %v933, -0.4999988
        %v935 = vmul.f32 %v930, %v934
        %v936 = vadd.f32 1.0, %v935
        %v937 = vmul.f32 %v928, %v928
        %v938 = vmul.f32 %v937, -0.00019511016
        %v939 = vadd.f32 %v938, 0.008332121
        %v940 = vmul.f32 %v937, %v939
        %v941 = vadd.f32 %v940, -0.16666654
        %v942 = vmul.f32 %v937, %v941
        %v943 = vadd.f32 %v942, 1.0
        %v944 = vmul.f32 %v943, %v928
        %vm945 = vweird.f32 %v459
        %v946 = vadd.s32 %v929, 3
        %v947 = vand.u32 %v946, 3
        %vm948 = vcmp.lt.s32.totalorder %v947, 2
        %vm949 = vcmp.eq.s32.totalorder %v947, 0
        %v950 = vxor.u32 %v944, 2147483648
        %v951 = vsel %vm949, %v936, %v950
        %vm952 = vcmp.eq.s32.totalorder %v947, 2
        %v953 = vxor.u32 %v936, 2147483648
        %v954 = vsel %vm952, %v953, %v944
        %v955 = vsel %vm948, %v951, %v954
        %v956 = vsel %vm945, nan, %v955
        %v957 = vand.u32 2147483647, %v462
        %vm958 = vcmp.le.f32.partialorder %v957, 0.7853982
        %vm959 = vcmp.lt.s32.totalorder %v462, 0
        %v960 = vand.u32 %v462, 2139095040
        %v961 = vshrl.u32 %v960, 23
        %v962 = vsub.s32 %v961, 127
        %v963 = vand.u32 2147483647, %v462
        %v964 = vand.u32 %v963, 8388607
        %v965 = vor.u32 %v964, 8388608
        %v966 = vsub.s32 0, %v965
        %v967 = vadd.s32 %v962, 1
        %vm968 = vcmp.gt.s32.totalorder %v967, 0
        %v969 = vsel %vm968, %v967, 0
        %v970 = vshrl.u32 %v969, 5
        %v971 = vand.u32 %v969, 31
        %v972 = vsub.s32 32, %v971
        %v973 = vshrl.u32 683565275, %v972
        %v974 = vshll.u32 683565275, %v971
        %v975 = vshrl.u32 2475754826, %v972
        %v976 = vor.u32 %v974, %v975
        %v977 = vshll.u32 2475754826, %v971
        %v978 = vshrl.u32 2131351028, %v972
        %v979 = vor.u32 %v977, %v978
        %v980 = vshll.u32 2131351028, %v971
        %v981 = vshrl.u32 2102212464, %v972
        %v982 = vor.u32 %v980, %v981
        %v983 = vshll.u32 2102212464, %v971
        %v984 = vshrl.u32 920167782, %v972
        %v985 = vor.u32 %v983, %v984
        %v986 = vshll.u32 920167782, %v971
        %v987 = vshrl.u32 1326507024, %v972
        %v988 = vor.u32 %v986, %v987
        %vm989 = vcmp.lt.s32.totalorder %v970, 1
        %vm990 = vcmp.lt.s32.totalorder %v970, 2
        %vm991 = vcmp.lt.s32.totalorder %v970, 3
        %vm992 = vcmp.lt.s32.totalorder %v970, 4
        %v993 = vsel %vm989, %v973, %v976
        %v994 = vsel %vm992, %v982, 2102212464
        %v995 = vsel %vm991, %v979, %v994
        %v996 = vsel %vm990, %v993, %v995
        %v997 = vsel %vm989, %v976, %v979
        %v998 = vsel %vm992, %v985, 920167782
        %v999 = vsel %vm991, %v982, %v998
        %v1000 = vsel %vm990, %v997, %v999
        %v1001 = vsel %vm989, %v979, %v982
        %v1002 = vsel %vm992, %v988, 1326507024
        %v1003 = vsel %vm991, %v985, %v1002
        %v1004 = vsel %vm990, %v1001, %v1003
        %v1005 = vshll.u32 %v965, 8
        %v1006 = vand.u32 %v1005, 65535
        %v1007 = vshrl.u32 %v1005, 16
        %v1008 = vand.u32 %v1004, 65535
        %v1009 = vshrl.u32 %v1004, 16
        %v1010 = vmul.u32 %v1006, %v1008
        %v1011 = vmul.u32 %v1006, %v1009
        %v1012 = vmul.u32 %v1007, %v1008
        %v1013 = vmul.u32 %v1007, %v1009
        %v1014 = vshll.u32 %v1011, 16
        %v1015 = vshrl.u32 %v1011, 16
        %v1016 = vshll.u32 %v1012, 16
        %v1017 = vshrl.u32 %v1012, 16
        %vm1018 = vc.u32 %v1010, %v1014
        %v1019 = vsel %vm1018, 1, 0
        %v1020 = vadd.s32 %v1010, %v1014
        %v1021 = vadd.s32 %v1013, %v1019
        %vm1022 = vc.u32 %v1020, %v1016
        %v1023 = vsel %vm1022, 1, 0
        %v1024 = vadd.s32 %v1020, %v1016
        %v1025 = vadd.s32 %v1021, %v1023
        %v1026 = vadd.s32 %v1025, %v1015
        %v1027 = vadd.s32 %v1026, %v1017
        %v1028 = vand.u32 %v1005, 65535
        %v1029 = vshrl.u32 %v1005, 16
        %v1030 = vand.u32 %v1000, 65535
        %v1031 = vshrl.u32 %v1000, 16
        %v1032 = vmul.u32 %v1028, %v1030
        %v1033 = vmul.u32 %v1028, %v1031
        %v1034 = vmul.u32 %v1029, %v1030
        %v1035 = vmul.u32 %v1029, %v1031
        %v1036 = vshll.u32 %v1033, 16
        %v1037 = vshrl.u32 %v1033, 16
        %v1038 = vshll.u32 %v1034, 16
        %v1039 = vshrl.u32 %v1034, 16
        %vm1040 = vc.u32 %v1032, %v1036
        %v1041 = vsel %vm1040, 1, 0
        %v1042 = vadd.s32 %v1032, %v1036
        %v1043 = vadd.s32 %v1035, %v1041
        %vm1044 = vc.u32 %v1042, %v1038
        %v1045 = vsel %vm1044, 1, 0
        %v1046 = vadd.s32 %v1042, %v1038
        %v1047 = vadd.s32 %v1043, %v1045
        %v1048 = vadd.s32 %v1047, %v1037
        %v1049 = vadd.s32 %v1048, %v1039
        %v1050 = vmul.u32 %v1005, %v996
        %v1051 = vadd.s32 %v1027, %v1046
        %vm1052 = vc.u32 %v1027, %v1046
        %v1053 = vadd.s32 %v1049, 1
        %v1054 = vsel %vm1052, %v1053, %v1049
        %v1055 = vadd.s32 %v1050, %v1054
        %v1056 = vadd.s32 %v1055, 536870912
        %v1057 = vshrl.u32 %v1056, 30
        %v1058 = vshll.u32 %v1057, 30
        %v1059 = vsub.s32 %v1055, %v1058
        %vm1060 = vcmp.lt.s32.totalorder %v1059, 0
        %v1061 = vsub.s32 0, %v1059
        %v1062 = vsel %vm1060, %v1061, %v1059
        %v1063 = vclz %v1062
        %v1064 = vsub.s32 %v1063, 2
        %vm1065 = vcmp.gt.s32.totalorder 0, %v1064
        %v1066 = vsel %vm1065, 0, %v1064
        %v1067 = vsub.s32 32, %v1066
        %v1068 = vshll.u32 %v1059, %v1066
        %v1069 = vshrl.u32 %v1051, %v1067
        %v1070 = vor.u32 %v1068, %v1069
        %v1071 = vsub.s32 4294967266, %v1066
        %v1072 = vadd.s32 %v1071, 127
        %v1073 = vshll.u32 %v1072, 23
        %v1074 = vor.u32 4788187, %v1073
        %v1075 = vand.u32 2147483647, %v1074
        %v1077 = vcvt.s32.f32 %v1070
        %v1078 = vmul.f32 %v1077, %v1075
        %v1079 = vxor.u32 %v1078, 2147483648
        %v1080 = vsel %vm959, %v1079, %v1078
        %v1081 = vsub.s32 4, %v1057
        %v1082 = vsel %vm959, %v1081, %v1057
        %v1083 = vsel %vm958, %v462, %v1080
        %v1084 = vsel %vm958, 0, %v1082
        %v1085 = vmul.f32 %v1083, %v1083
        %v1086 = vmul.f32 %v1085, -0.001358992
        %v1087 = vadd.f32 %v1086, 0.041655596
        %v1088 = vmul.f32 %v1085, %v1087
        %v1089 = vadd.f32 %v1088, -0.4999988
        %v1090 = vmul.f32 %v1085, %v1089
        %v1091 = vadd.f32 1.0, %v1090
        %v1092 = vmul.f32 %v1083, %v1083
        %v1093 = vmul.f32 %v1092, -0.00019511016
        %v1094 = vadd.f32 %v1093, 0.008332121
        %v1095 = vmul.f32 %v1092, %v1094
        %v1096 = vadd.f32 %v1095, -0.16666654
        %v1097 = vmul.f32 %v1092, %v1096
        %v1098 = vadd.f32 %v1097, 1.0
        %v1099 = vmul.f32 %v1098, %v1083
        %vm1100 = vweird.f32 %v462
        %v1101 = vadd.s32 %v1084, 3
        %v1102 = vand.u32 %v1101, 3
        %vm1103 = vcmp.lt.s32.totalorder %v1102, 2
        %vm1104 = vcmp.eq.s32.totalorder %v1102, 0
        %v1105 = vxor.u32 %v1099, 2147483648
        %v1106 = vsel %vm1104, %v1091, %v1105
        %vm1107 = vcmp.eq.s32.totalorder %v1102, 2
        %v1108 = vxor.u32 %v1091, 2147483648
        %v1109 = vsel %vm1107, %v1108, %v1099
        %v1110 = vsel %vm1103, %v1106, %v1109
        %v1111 = vsel %vm1100, nan, %v1110
        %v1112 = vand.u32 2147483647, %v465
        %vm1113 = vcmp.le.f32.partialorder %v1112, 0.7853982
        %vm1114 = vcmp.lt.s32.totalorder %v465, 0
        %v1115 = vand.u32 %v465, 2139095040
        %v1116 = vshrl.u32 %v1115, 23
        %v1117 = vsub.s32 %v1116, 127
        %v1118 = vand.u32 2147483647, %v465
        %v1119 = vand.u32 %v1118, 8388607
        %v1120 = vor.u32 %v1119, 8388608
        %v1121 = vsub.s32 0, %v1120
        %v1122 = vadd.s32 %v1117, 1
        %vm1123 = vcmp.gt.s32.totalorder %v1122, 0
        %v1124 = vsel %vm1123, %v1122, 0
        %v1125 = vshrl.u32 %v1124, 5
        %v1126 = vand.u32 %v1124, 31
        %v1127 = vsub.s32 32, %v1126
        %v1128 = vshrl.u32 683565275, %v1127
        %v1129 = vshll.u32 683565275, %v1126
        %v1130 = vshrl.u32 2475754826, %v1127
        %v1131 = vor.u32 %v1129, %v1130
        %v1132 = vshll.u32 2475754826, %v1126
        %v1133 = vshrl.u32 2131351028, %v1127
        %v1134 = vor.u32 %v1132, %v1133
        %v1135 = vshll.u32 2131351028, %v1126
        %v1136 = vshrl.u32 2102212464, %v1127
        %v1137 = vor.u32 %v1135, %v1136
        %v1138 = vshll.u32 2102212464, %v1126
        %v1139 = vshrl.u32 920167782, %v1127
        %v1140 = vor.u32 %v1138, %v1139
        %v1141 = vshll.u32 920167782, %v1126
        %v1142 = vshrl.u32 1326507024, %v1127
        %v1143 = vor.u32 %v1141, %v1142
        %vm1144 = vcmp.lt.s32.totalorder %v1125, 1
        %vm1145 = vcmp.lt.s32.totalorder %v1125, 2
        %vm1146 = vcmp.lt.s32.totalorder %v1125, 3
        %vm1147 = vcmp.lt.s32.totalorder %v1125, 4
        %v1148 = vsel %vm1144, %v1128, %v1131
        %v1149 = vsel %vm1147, %v1137, 2102212464
        %v1150 = vsel %vm1146, %v1134, %v1149
        %v1151 = vsel %vm1145, %v1148, %v1150
        %v1152 = vsel %vm1144, %v1131, %v1134
        %v1153 = vsel %vm1147, %v1140, 920167782
        %v1154 = vsel %vm1146, %v1137, %v1153
        %v1155 = vsel %vm1145, %v1152, %v1154
        %v1156 = vsel %vm1144, %v1134, %v1137
        %v1157 = vsel %vm1147, %v1143, 1326507024
        %v1158 = vsel %vm1146, %v1140, %v1157
        %v1159 = vsel %vm1145, %v1156, %v1158
        %v1160 = vshll.u32 %v1120, 8
        %v1161 = vand.u32 %v1160, 65535
        %v1162 = vshrl.u32 %v1160, 16
        %v1163 = vand.u32 %v1159, 65535
        %v1164 = vshrl.u32 %v1159, 16
        %v1165 = vmul.u32 %v1161, %v1163
        %v1166 = vmul.u32 %v1161, %v1164
        %v1167 = vmul.u32 %v1162, %v1163
        %v1168 = vmul.u32 %v1162, %v1164
        %v1169 = vshll.u32 %v1166, 16
        %v1170 = vshrl.u32 %v1166, 16
        %v1171 = vshll.u32 %v1167, 16
        %v1172 = vshrl.u32 %v1167, 16
        %vm1173 = vc.u32 %v1165, %v1169
        %v1174 = vsel %vm1173, 1, 0
        %v1175 = vadd.s32 %v1165, %v1169
        %v1176 = vadd.s32 %v1168, %v1174
        %vm1177 = vc.u32 %v1175, %v1171
        %v1178 = vsel %vm1177, 1, 0
        %v1179 = vadd.s32 %v1175, %v1171
        %v1180 = vadd.s32 %v1176, %v1178
        %v1181 = vadd.s32 %v1180, %v1170
        %v1182 = vadd.s32 %v1181, %v1172
        %v1183 = vand.u32 %v1160, 65535
        %v1184 = vshrl.u32 %v1160, 16
        %v1185 = vand.u32 %v1155, 65535
        %v1186 = vshrl.u32 %v1155, 16
        %v1187 = vmul.u32 %v1183, %v1185
        %v1188 = vmul.u32 %v1183, %v1186
        %v1189 = vmul.u32 %v1184, %v1185
        %v1190 = vmul.u32 %v1184, %v1186
        %v1191 = vshll.u32 %v1188, 16
        %v1192 = vshrl.u32 %v1188, 16
        %v1193 = vshll.u32 %v1189, 16
        %v1194 = vshrl.u32 %v1189, 16
        %vm1195 = vc.u32 %v1187, %v1191
        %v1196 = vsel %vm1195, 1, 0
        %v1197 = vadd.s32 %v1187, %v1191
        %v1198 = vadd.s32 %v1190, %v1196
        %vm1199 = vc.u32 %v1197, %v1193
        %v1200 = vsel %vm1199, 1, 0
        %v1201 = vadd.s32 %v1197, %v1193
        %v1202 = vadd.s32 %v1198, %v1200
        %v1203 = vadd.s32 %v1202, %v1192
        %v1204 = vadd.s32 %v1203, %v1194
        %v1205 = vmul.u32 %v1160, %v1151
        %v1206 = vadd.s32 %v1182, %v1201
        %vm1207 = vc.u32 %v1182, %v1201
        %v1208 = vadd.s32 %v1204, 1
        %v1209 = vsel %vm1207, %v1208, %v1204
        %v1210 = vadd.s32 %v1205, %v1209
        %v1211 = vadd.s32 %v1210, 536870912
        %v1212 = vshrl.u32 %v1211, 30
        %v1213 = vshll.u32 %v1212, 30
        %v1214 = vsub.s32 %v1210, %v1213
        %vm1215 = vcmp.lt.s32.totalorder %v1214, 0
        %v1216 = vsub.s32 0, %v1214
        %v1217 = vsel %vm1215, %v1216, %v1214
        %v1218 = vclz %v1217
        %v1219 = vsub.s32 %v1218, 2
        %vm1220 = vcmp.gt.s32.totalorder 0, %v1219
        %v1221 = vsel %vm1220, 0, %v1219
        %v1222 = vsub.s32 32, %v1221
        %v1223 = vshll.u32 %v1214, %v1221
        %v1224 = vshrl.u32 %v1206, %v1222
        %v1225 = vor.u32 %v1223, %v1224
        %v1226 = vsub.s32 4294967266, %v1221
        %v1227 = vadd.s32 %v1226, 127
        %v1228 = vshll.u32 %v1227, 23
        %v1229 = vor.u32 4788187, %v1228
        %v1230 = vand.u32 2147483647, %v1229
        %v1232 = vcvt.s32.f32 %v1225
        %v1233 = vmul.f32 %v1232, %v1230
        %v1234 = vxor.u32 %v1233, 2147483648
        %v1235 = vsel %vm1114, %v1234, %v1233
        %v1236 = vsub.s32 4, %v1212
        %v1237 = vsel %vm1114, %v1236, %v1212
        %v1238 = vsel %vm1113, %v465, %v1235
        %v1239 = vsel %vm1113, 0, %v1237
        %v1240 = vmul.f32 %v1238, %v1238
        %v1241 = vmul.f32 %v1240, -0.001358992
        %v1242 = vadd.f32 %v1241, 0.041655596
        %v1243 = vmul.f32 %v1240, %v1242
        %v1244 = vadd.f32 %v1243, -0.4999988
        %v1245 = vmul.f32 %v1240, %v1244
        %v1246 = vadd.f32 1.0, %v1245
        %v1247 = vmul.f32 %v1238, %v1238
        %v1248 = vmul.f32 %v1247, -0.00019511016
        %v1249 = vadd.f32 %v1248, 0.008332121
        %v1250 = vmul.f32 %v1247, %v1249
        %v1251 = vadd.f32 %v1250, -0.16666654
        %v1252 = vmul.f32 %v1247, %v1251
        %v1253 = vadd.f32 %v1252, 1.0
        %v1254 = vmul.f32 %v1253, %v1238
        %vm1255 = vweird.f32 %v465
        %v1256 = vadd.s32 %v1239, 3
        %v1257 = vand.u32 %v1256, 3
        %vm1258 = vcmp.lt.s32.totalorder %v1257, 2
        %vm1259 = vcmp.eq.s32.totalorder %v1257, 0
        %v1260 = vxor.u32 %v1254, 2147483648
        %v1261 = vsel %vm1259, %v1246, %v1260
        %vm1262 = vcmp.eq.s32.totalorder %v1257, 2
        %v1263 = vxor.u32 %v1246, 2147483648
        %v1264 = vsel %vm1262, %v1263, %v1254
        %v1265 = vsel %vm1258, %v1261, %v1264
        %v1266 = vsel %vm1255, nan, %v1265
        %v1267 = vand.u32 2147483647, %v468
        %vm1268 = vcmp.le.f32.partialorder %v1267, 0.7853982
        %vm1269 = vcmp.lt.s32.totalorder %v468, 0
        %v1270 = vand.u32 %v468, 2139095040
        %v1271 = vshrl.u32 %v1270, 23
        %v1272 = vsub.s32 %v1271, 127
        %v1273 = vand.u32 2147483647, %v468
        %v1274 = vand.u32 %v1273, 8388607
        %v1275 = vor.u32 %v1274, 8388608
        %v1276 = vsub.s32 0, %v1275
        %v1277 = vadd.s32 %v1272, 1
        %vm1278 = vcmp.gt.s32.totalorder %v1277, 0
        %v1279 = vsel %vm1278, %v1277, 0
        %v1280 = vshrl.u32 %v1279, 5
        %v1281 = vand.u32 %v1279, 31
        %v1282 = vsub.s32 32, %v1281
        %v1283 = vshrl.u32 683565275, %v1282
        %v1284 = vshll.u32 683565275, %v1281
        %v1285 = vshrl.u32 2475754826, %v1282
        %v1286 = vor.u32 %v1284, %v1285
        %v1287 = vshll.u32 2475754826, %v1281
        %v1288 = vshrl.u32 2131351028, %v1282
        %v1289 = vor.u32 %v1287, %v1288
        %v1290 = vshll.u32 2131351028, %v1281
        %v1291 = vshrl.u32 2102212464, %v1282
        %v1292 = vor.u32 %v1290, %v1291
        %v1293 = vshll.u32 2102212464, %v1281
        %v1294 = vshrl.u32 920167782, %v1282
        %v1295 = vor.u32 %v1293, %v1294
        %v1296 = vshll.u32 920167782, %v1281
        %v1297 = vshrl.u32 1326507024, %v1282
        %v1298 = vor.u32 %v1296, %v1297
        %vm1299 = vcmp.lt.s32.totalorder %v1280, 1
        %vm1300 = vcmp.lt.s32.totalorder %v1280, 2
        %vm1301 = vcmp.lt.s32.totalorder %v1280, 3
        %vm1302 = vcmp.lt.s32.totalorder %v1280, 4
        %v1303 = vsel %vm1299, %v1283, %v1286
        %v1304 = vsel %vm1302, %v1292, 2102212464
        %v1305 = vsel %vm1301, %v1289, %v1304
        %v1306 = vsel %vm1300, %v1303, %v1305
        %v1307 = vsel %vm1299, %v1286, %v1289
        %v1308 = vsel %vm1302, %v1295, 920167782
        %v1309 = vsel %vm1301, %v1292, %v1308
        %v1310 = vsel %vm1300, %v1307, %v1309
        %v1311 = vsel %vm1299, %v1289, %v1292
        %v1312 = vsel %vm1302, %v1298, 1326507024
        %v1313 = vsel %vm1301, %v1295, %v1312
        %v1314 = vsel %vm1300, %v1311, %v1313
        %v1315 = vshll.u32 %v1275, 8
        %v1316 = vand.u32 %v1315, 65535
        %v1317 = vshrl.u32 %v1315, 16
        %v1318 = vand.u32 %v1314, 65535
        %v1319 = vshrl.u32 %v1314, 16
        %v1320 = vmul.u32 %v1316, %v1318
        %v1321 = vmul.u32 %v1316, %v1319
        %v1322 = vmul.u32 %v1317, %v1318
        %v1323 = vmul.u32 %v1317, %v1319
        %v1324 = vshll.u32 %v1321, 16
        %v1325 = vshrl.u32 %v1321, 16
        %v1326 = vshll.u32 %v1322, 16
        %v1327 = vshrl.u32 %v1322, 16
        %vm1328 = vc.u32 %v1320, %v1324
        %v1329 = vsel %vm1328, 1, 0
        %v1330 = vadd.s32 %v1320, %v1324
        %v1331 = vadd.s32 %v1323, %v1329
        %vm1332 = vc.u32 %v1330, %v1326
        %v1333 = vsel %vm1332, 1, 0
        %v1334 = vadd.s32 %v1330, %v1326
        %v1335 = vadd.s32 %v1331, %v1333
        %v1336 = vadd.s32 %v1335, %v1325
        %v1337 = vadd.s32 %v1336, %v1327
        %v1338 = vand.u32 %v1315, 65535
        %v1339 = vshrl.u32 %v1315, 16
        %v1340 = vand.u32 %v1310, 65535
        %v1341 = vshrl.u32 %v1310, 16
        %v1342 = vmul.u32 %v1338, %v1340
        %v1343 = vmul.u32 %v1338, %v1341
        %v1344 = vmul.u32 %v1339, %v1340
        %v1345 = vmul.u32 %v1339, %v1341
        %v1346 = vshll.u32 %v1343, 16
        %v1347 = vshrl.u32 %v1343, 16
        %v1348 = vshll.u32 %v1344, 16
        %v1349 = vshrl.u32 %v1344, 16
        %vm1350 = vc.u32 %v1342, %v1346
        %v1351 = vsel %vm1350, 1, 0
        %v1352 = vadd.s32 %v1342, %v1346
        %v1353 = vadd.s32 %v1345, %v1351
        %vm1354 = vc.u32 %v1352, %v1348
        %v1355 = vsel %vm1354, 1, 0
        %v1356 = vadd.s32 %v1352, %v1348
        %v1357 = vadd.s32 %v1353, %v1355
        %v1358 = vadd.s32 %v1357, %v1347
        %v1359 = vadd.s32 %v1358, %v1349
        %v1360 = vmul.u32 %v1315, %v1306
        %v1361 = vadd.s32 %v1337, %v1356
        %vm1362 = vc.u32 %v1337, %v1356
        %v1363 = vadd.s32 %v1359, 1
        %v1364 = vsel %vm1362, %v1363, %v1359
        %v1365 = vadd.s32 %v1360, %v1364
        %v1366 = vadd.s32 %v1365, 536870912
        %v1367 = vshrl.u32 %v1366, 30
        %v1368 = vshll.u32 %v1367, 30
        %v1369 = vsub.s32 %v1365, %v1368
        %vm1370 = vcmp.lt.s32.totalorder %v1369, 0
        %v1371 = vsub.s32 0, %v1369
        %v1372 = vsel %vm1370, %v1371, %v1369
        %v1373 = vclz %v1372
        %v1374 = vsub.s32 %v1373, 2
        %vm1375 = vcmp.gt.s32.totalorder 0, %v1374
        %v1376 = vsel %vm1375, 0, %v1374
        %v1377 = vsub.s32 32, %v1376
        %v1378 = vshll.u32 %v1369, %v1376
        %v1379 = vshrl.u32 %v1361, %v1377
        %v1380 = vor.u32 %v1378, %v1379
        %v1381 = vsub.s32 4294967266, %v1376
        %v1382 = vadd.s32 %v1381, 127
        %v1383 = vshll.u32 %v1382, 23
        %v1384 = vor.u32 4788187, %v1383
        %v1385 = vand.u32 2147483647, %v1384
        %v1387 = vcvt.s32.f32 %v1380
        %v1388 = vmul.f32 %v1387, %v1385
        %v1389 = vxor.u32 %v1388, 2147483648
        %v1390 = vsel %vm1269, %v1389, %v1388
        %v1391 = vsub.s32 4, %v1367
        %v1392 = vsel %vm1269, %v1391, %v1367
        %v1393 = vsel %vm1268, %v468, %v1390
        %v1394 = vsel %vm1268, 0, %v1392
        %v1395 = vmul.f32 %v1393, %v1393
        %v1396 = vmul.f32 %v1395, -0.001358992
        %v1397 = vadd.f32 %v1396, 0.041655596
        %v1398 = vmul.f32 %v1395, %v1397
        %v1399 = vadd.f32 %v1398, -0.4999988
        %v1400 = vmul.f32 %v1395, %v1399
        %v1401 = vadd.f32 1.0, %v1400
        %v1402 = vmul.f32 %v1393, %v1393
        %v1403 = vmul.f32 %v1402, -0.00019511016
        %v1404 = vadd.f32 %v1403, 0.008332121
        %v1405 = vmul.f32 %v1402, %v1404
        %v1406 = vadd.f32 %v1405, -0.16666654
        %v1407 = vmul.f32 %v1402, %v1406
        %v1408 = vadd.f32 %v1407, 1.0
        %v1409 = vmul.f32 %v1408, %v1393
        %vm1410 = vweird.f32 %v468
        %v1411 = vadd.s32 %v1394, 3
        %v1412 = vand.u32 %v1411, 3
        %vm1413 = vcmp.lt.s32.totalorder %v1412, 2
        %vm1414 = vcmp.eq.s32.totalorder %v1412, 0
        %v1415 = vxor.u32 %v1409, 2147483648
        %v1416 = vsel %vm1414, %v1401, %v1415
        %vm1417 = vcmp.eq.s32.totalorder %v1412, 2
        %v1418 = vxor.u32 %v1401, 2147483648
        %v1419 = vsel %vm1417, %v1418, %v1409
        %v1420 = vsel %vm1413, %v1416, %v1419
        %v1421 = vsel %vm1410, nan, %v1420
        %v1422 = vand.u32 2147483647, %v471
        %vm1423 = vcmp.le.f32.partialorder %v1422, 0.7853982
        %vm1424 = vcmp.lt.s32.totalorder %v471, 0
        %v1425 = vand.u32 %v471, 2139095040
        %v1426 = vshrl.u32 %v1425, 23
        %v1427 = vsub.s32 %v1426, 127
        %v1428 = vand.u32 2147483647, %v471
        %v1429 = vand.u32 %v1428, 8388607
        %v1430 = vor.u32 %v1429, 8388608
        %v1431 = vsub.s32 0, %v1430
        %v1432 = vadd.s32 %v1427, 1
        %vm1433 = vcmp.gt.s32.totalorder %v1432, 0
        %v1434 = vsel %vm1433, %v1432, 0
        %v1435 = vshrl.u32 %v1434, 5
        %v1436 = vand.u32 %v1434, 31
        %v1437 = vsub.s32 32, %v1436
        %v1438 = vshrl.u32 683565275, %v1437
        %v1439 = vshll.u32 683565275, %v1436
        %v1440 = vshrl.u32 2475754826, %v1437
        %v1441 = vor.u32 %v1439, %v1440
        %v1442 = vshll.u32 2475754826, %v1436
        %v1443 = vshrl.u32 2131351028, %v1437
        %v1444 = vor.u32 %v1442, %v1443
        %v1445 = vshll.u32 2131351028, %v1436
        %v1446 = vshrl.u32 2102212464, %v1437
        %v1447 = vor.u32 %v1445, %v1446
        %v1448 = vshll.u32 2102212464, %v1436
        %v1449 = vshrl.u32 920167782, %v1437
        %v1450 = vor.u32 %v1448, %v1449
        %v1451 = vshll.u32 920167782, %v1436
        %v1452 = vshrl.u32 1326507024, %v1437
        %v1453 = vor.u32 %v1451, %v1452
        %vm1454 = vcmp.lt.s32.totalorder %v1435, 1
        %vm1455 = vcmp.lt.s32.totalorder %v1435, 2
        %vm1456 = vcmp.lt.s32.totalorder %v1435, 3
        %vm1457 = vcmp.lt.s32.totalorder %v1435, 4
        %v1458 = vsel %vm1454, %v1438, %v1441
        %v1459 = vsel %vm1457, %v1447, 2102212464
        %v1460 = vsel %vm1456, %v1444, %v1459
        %v1461 = vsel %vm1455, %v1458, %v1460
        %v1462 = vsel %vm1454, %v1441, %v1444
        %v1463 = vsel %vm1457, %v1450, 920167782
        %v1464 = vsel %vm1456, %v1447, %v1463
        %v1465 = vsel %vm1455, %v1462, %v1464
        %v1466 = vsel %vm1454, %v1444, %v1447
        %v1467 = vsel %vm1457, %v1453, 1326507024
        %v1468 = vsel %vm1456, %v1450, %v1467
        %v1469 = vsel %vm1455, %v1466, %v1468
        %v1470 = vshll.u32 %v1430, 8
        %v1471 = vand.u32 %v1470, 65535
        %v1472 = vshrl.u32 %v1470, 16
        %v1473 = vand.u32 %v1469, 65535
        %v1474 = vshrl.u32 %v1469, 16
        %v1475 = vmul.u32 %v1471, %v1473
        %v1476 = vmul.u32 %v1471, %v1474
        %v1477 = vmul.u32 %v1472, %v1473
        %v1478 = vmul.u32 %v1472, %v1474
        %v1479 = vshll.u32 %v1476, 16
        %v1480 = vshrl.u32 %v1476, 16
        %v1481 = vshll.u32 %v1477, 16
        %v1482 = vshrl.u32 %v1477, 16
        %vm1483 = vc.u32 %v1475, %v1479
        %v1484 = vsel %vm1483, 1, 0
        %v1485 = vadd.s32 %v1475, %v1479
        %v1486 = vadd.s32 %v1478, %v1484
        %vm1487 = vc.u32 %v1485, %v1481
        %v1488 = vsel %vm1487, 1, 0
        %v1489 = vadd.s32 %v1485, %v1481
        %v1490 = vadd.s32 %v1486, %v1488
        %v1491 = vadd.s32 %v1490, %v1480
        %v1492 = vadd.s32 %v1491, %v1482
        %v1493 = vand.u32 %v1470, 65535
        %v1494 = vshrl.u32 %v1470, 16
        %v1495 = vand.u32 %v1465, 65535
        %v1496 = vshrl.u32 %v1465, 16
        %v1497 = vmul.u32 %v1493, %v1495
        %v1498 = vmul.u32 %v1493, %v1496
        %v1499 = vmul.u32 %v1494, %v1495
        %v1500 = vmul.u32 %v1494, %v1496
        %v1501 = vshll.u32 %v1498, 16
        %v1502 = vshrl.u32 %v1498, 16
        %v1503 = vshll.u32 %v1499, 16
        %v1504 = vshrl.u32 %v1499, 16
        %vm1505 = vc.u32 %v1497, %v1501
        %v1506 = vsel %vm1505, 1, 0
        %v1507 = vadd.s32 %v1497, %v1501
        %v1508 = vadd.s32 %v1500, %v1506
        %vm1509 = vc.u32 %v1507, %v1503
        %v1510 = vsel %vm1509, 1, 0
        %v1511 = vadd.s32 %v1507, %v1503
        %v1512 = vadd.s32 %v1508, %v1510
        %v1513 = vadd.s32 %v1512, %v1502
        %v1514 = vadd.s32 %v1513, %v1504
        %v1515 = vmul.u32 %v1470, %v1461
        %v1516 = vadd.s32 %v1492, %v1511
        %vm1517 = vc.u32 %v1492, %v1511
        %v1518 = vadd.s32 %v1514, 1
        %v1519 = vsel %vm1517, %v1518, %v1514
        %v1520 = vadd.s32 %v1515, %v1519
        %v1521 = vadd.s32 %v1520, 536870912
        %v1522 = vshrl.u32 %v1521, 30
        %v1523 = vshll.u32 %v1522, 30
        %v1524 = vsub.s32 %v1520, %v1523
        %vm1525 = vcmp.lt.s32.totalorder %v1524, 0
        %v1526 = vsub.s32 0, %v1524
        %v1527 = vsel %vm1525, %v1526, %v1524
        %v1528 = vclz %v1527
        %v1529 = vsub.s32 %v1528, 2
        %vm1530 = vcmp.gt.s32.totalorder 0, %v1529
        %v1531 = vsel %vm1530, 0, %v1529
        %v1532 = vsub.s32 32, %v1531
        %v1533 = vshll.u32 %v1524, %v1531
        %v1534 = vshrl.u32 %v1516, %v1532
        %v1535 = vor.u32 %v1533, %v1534
        %v1536 = vsub.s32 4294967266, %v1531
        %v1537 = vadd.s32 %v1536, 127
        %v1538 = vshll.u32 %v1537, 23
        %v1539 = vor.u32 4788187, %v1538
        %v1540 = vand.u32 2147483647, %v1539
        %v1542 = vcvt.s32.f32 %v1535
        %v1543 = vmul.f32 %v1542, %v1540
        %v1544 = vxor.u32 %v1543, 2147483648
        %v1545 = vsel %vm1424, %v1544, %v1543
        %v1546 = vsub.s32 4, %v1522
        %v1547 = vsel %vm1424, %v1546, %v1522
        %v1548 = vsel %vm1423, %v471, %v1545
        %v1549 = vsel %vm1423, 0, %v1547
        %v1550 = vmul.f32 %v1548, %v1548
        %v1551 = vmul.f32 %v1550, -0.001358992
        %v1552 = vadd.f32 %v1551, 0.041655596
        %v1553 = vmul.f32 %v1550, %v1552
        %v1554 = vadd.f32 %v1553, -0.4999988
        %v1555 = vmul.f32 %v1550, %v1554
        %v1556 = vadd.f32 1.0, %v1555
        %v1557 = vmul.f32 %v1548, %v1548
        %v1558 = vmul.f32 %v1557, -0.00019511016
        %v1559 = vadd.f32 %v1558, 0.008332121
        %v1560 = vmul.f32 %v1557, %v1559
        %v1561 = vadd.f32 %v1560, -0.16666654
        %v1562 = vmul.f32 %v1557, %v1561
        %v1563 = vadd.f32 %v1562, 1.0
        %v1564 = vmul.f32 %v1563, %v1548
        %vm1565 = vweird.f32 %v471
        %v1566 = vadd.s32 %v1549, 3
        %v1567 = vand.u32 %v1566, 3
        %vm1568 = vcmp.lt.s32.totalorder %v1567, 2
        %vm1569 = vcmp.eq.s32.totalorder %v1567, 0
        %v1570 = vxor.u32 %v1564, 2147483648
        %v1571 = vsel %vm1569, %v1556, %v1570
        %vm1572 = vcmp.eq.s32.totalorder %v1567, 2
        %v1573 = vxor.u32 %v1556, 2147483648
        %v1574 = vsel %vm1572, %v1573, %v1564
        %v1575 = vsel %vm1568, %v1571, %v1574
        %v1576 = vsel %vm1565, nan, %v1575
        %v1577 = vand.u32 2147483647, %v474
        %vm1578 = vcmp.le.f32.partialorder %v1577, 0.7853982
        %vm1579 = vcmp.lt.s32.totalorder %v474, 0
        %v1580 = vand.u32 %v474, 2139095040
        %v1581 = vshrl.u32 %v1580, 23
        %v1582 = vsub.s32 %v1581, 127
        %v1583 = vand.u32 2147483647, %v474
        %v1584 = vand.u32 %v1583, 8388607
        %v1585 = vor.u32 %v1584, 8388608
        %v1586 = vsub.s32 0, %v1585
        %v1587 = vadd.s32 %v1582, 1
        %vm1588 = vcmp.gt.s32.totalorder %v1587, 0
        %v1589 = vsel %vm1588, %v1587, 0
        %v1590 = vshrl.u32 %v1589, 5
        %v1591 = vand.u32 %v1589, 31
        %v1592 = vsub.s32 32, %v1591
        %v1593 = vshrl.u32 683565275, %v1592
        %v1594 = vshll.u32 683565275, %v1591
        %v1595 = vshrl.u32 2475754826, %v1592
        %v1596 = vor.u32 %v1594, %v1595
        %v1597 = vshll.u32 2475754826, %v1591
        %v1598 = vshrl.u32 2131351028, %v1592
        %v1599 = vor.u32 %v1597, %v1598
        %v1600 = vshll.u32 2131351028, %v1591
        %v1601 = vshrl.u32 2102212464, %v1592
        %v1602 = vor.u32 %v1600, %v1601
        %v1603 = vshll.u32 2102212464, %v1591
        %v1604 = vshrl.u32 920167782, %v1592
        %v1605 = vor.u32 %v1603, %v1604
        %v1606 = vshll.u32 920167782, %v1591
        %v1607 = vshrl.u32 1326507024, %v1592
        %v1608 = vor.u32 %v1606, %v1607
        %vm1609 = vcmp.lt.s32.totalorder %v1590, 1
        %vm1610 = vcmp.lt.s32.totalorder %v1590, 2
        %vm1611 = vcmp.lt.s32.totalorder %v1590, 3
        %vm1612 = vcmp.lt.s32.totalorder %v1590, 4
        %v1613 = vsel %vm1609, %v1593, %v1596
        %v1614 = vsel %vm1612, %v1602, 2102212464
        %v1615 = vsel %vm1611, %v1599, %v1614
        %v1616 = vsel %vm1610, %v1613, %v1615
        %v1617 = vsel %vm1609, %v1596, %v1599
        %v1618 = vsel %vm1612, %v1605, 920167782
        %v1619 = vsel %vm1611, %v1602, %v1618
        %v1620 = vsel %vm1610, %v1617, %v1619
        %v1621 = vsel %vm1609, %v1599, %v1602
        %v1622 = vsel %vm1612, %v1608, 1326507024
        %v1623 = vsel %vm1611, %v1605, %v1622
        %v1624 = vsel %vm1610, %v1621, %v1623
        %v1625 = vshll.u32 %v1585, 8
        %v1626 = vand.u32 %v1625, 65535
        %v1627 = vshrl.u32 %v1625, 16
        %v1628 = vand.u32 %v1624, 65535
        %v1629 = vshrl.u32 %v1624, 16
        %v1630 = vmul.u32 %v1626, %v1628
        %v1631 = vmul.u32 %v1626, %v1629
        %v1632 = vmul.u32 %v1627, %v1628
        %v1633 = vmul.u32 %v1627, %v1629
        %v1634 = vshll.u32 %v1631, 16
        %v1635 = vshrl.u32 %v1631, 16
        %v1636 = vshll.u32 %v1632, 16
        %v1637 = vshrl.u32 %v1632, 16
        %vm1638 = vc.u32 %v1630, %v1634
        %v1639 = vsel %vm1638, 1, 0
        %v1640 = vadd.s32 %v1630, %v1634
        %v1641 = vadd.s32 %v1633, %v1639
        %vm1642 = vc.u32 %v1640, %v1636
        %v1643 = vsel %vm1642, 1, 0
        %v1644 = vadd.s32 %v1640, %v1636
        %v1645 = vadd.s32 %v1641, %v1643
        %v1646 = vadd.s32 %v1645, %v1635
        %v1647 = vadd.s32 %v1646, %v1637
        %v1648 = vand.u32 %v1625, 65535
        %v1649 = vshrl.u32 %v1625, 16
        %v1650 = vand.u32 %v1620, 65535
        %v1651 = vshrl.u32 %v1620, 16
        %v1652 = vmul.u32 %v1648, %v1650
        %v1653 = vmul.u32 %v1648, %v1651
        %v1654 = vmul.u32 %v1649, %v1650
        %v1655 = vmul.u32 %v1649, %v1651
        %v1656 = vshll.u32 %v1653, 16
        %v1657 = vshrl.u32 %v1653, 16
        %v1658 = vshll.u32 %v1654, 16
        %v1659 = vshrl.u32 %v1654, 16
        %vm1660 = vc.u32 %v1652, %v1656
        %v1661 = vsel %vm1660, 1, 0
        %v1662 = vadd.s32 %v1652, %v1656
        %v1663 = vadd.s32 %v1655, %v1661
        %vm1664 = vc.u32 %v1662, %v1658
        %v1665 = vsel %vm1664, 1, 0
        %v1666 = vadd.s32 %v1662, %v1658
        %v1667 = vadd.s32 %v1663, %v1665
        %v1668 = vadd.s32 %v1667, %v1657
        %v1669 = vadd.s32 %v1668, %v1659
        %v1670 = vmul.u32 %v1625, %v1616
        %v1671 = vadd.s32 %v1647, %v1666
        %vm1672 = vc.u32 %v1647, %v1666
        %v1673 = vadd.s32 %v1669, 1
        %v1674 = vsel %vm1672, %v1673, %v1669
        %v1675 = vadd.s32 %v1670, %v1674
        %v1676 = vadd.s32 %v1675, 536870912
        %v1677 = vshrl.u32 %v1676, 30
        %v1678 = vshll.u32 %v1677, 30
        %v1679 = vsub.s32 %v1675, %v1678
        %vm1680 = vcmp.lt.s32.totalorder %v1679, 0
        %v1681 = vsub.s32 0, %v1679
        %v1682 = vsel %vm1680, %v1681, %v1679
        %v1683 = vclz %v1682
        %v1684 = vsub.s32 %v1683, 2
        %vm1685 = vcmp.gt.s32.totalorder 0, %v1684
        %v1686 = vsel %vm1685, 0, %v1684
        %v1687 = vsub.s32 32, %v1686
        %v1688 = vshll.u32 %v1679, %v1686
        %v1689 = vshrl.u32 %v1671, %v1687
        %v1690 = vor.u32 %v1688, %v1689
        %v1691 = vsub.s32 4294967266, %v1686
        %v1692 = vadd.s32 %v1691, 127
        %v1693 = vshll.u32 %v1692, 23
        %v1694 = vor.u32 4788187, %v1693
        %v1695 = vand.u32 2147483647, %v1694
        %v1697 = vcvt.s32.f32 %v1690
        %v1698 = vmul.f32 %v1697, %v1695
        %v1699 = vxor.u32 %v1698, 2147483648
        %v1700 = vsel %vm1579, %v1699, %v1698
        %v1701 = vsub.s32 4, %v1677
        %v1702 = vsel %vm1579, %v1701, %v1677
        %v1703 = vsel %vm1578, %v474, %v1700
        %v1704 = vsel %vm1578, 0, %v1702
        %v1705 = vmul.f32 %v1703, %v1703
        %v1706 = vmul.f32 %v1705, -0.001358992
        %v1707 = vadd.f32 %v1706, 0.041655596
        %v1708 = vmul.f32 %v1705, %v1707
        %v1709 = vadd.f32 %v1708, -0.4999988
        %v1710 = vmul.f32 %v1705, %v1709
        %v1711 = vadd.f32 1.0, %v1710
        %v1712 = vmul.f32 %v1703, %v1703
        %v1713 = vmul.f32 %v1712, -0.00019511016
        %v1714 = vadd.f32 %v1713, 0.008332121
        %v1715 = vmul.f32 %v1712, %v1714
        %v1716 = vadd.f32 %v1715, -0.16666654
        %v1717 = vmul.f32 %v1712, %v1716
        %v1718 = vadd.f32 %v1717, 1.0
        %v1719 = vmul.f32 %v1718, %v1703
        %vm1720 = vweird.f32 %v474
        %v1721 = vadd.s32 %v1704, 3
        %v1722 = vand.u32 %v1721, 3
        %vm1723 = vcmp.lt.s32.totalorder %v1722, 2
        %vm1724 = vcmp.eq.s32.totalorder %v1722, 0
        %v1725 = vxor.u32 %v1719, 2147483648
        %v1726 = vsel %vm1724, %v1711, %v1725
        %vm1727 = vcmp.eq.s32.totalorder %v1722, 2
        %v1728 = vxor.u32 %v1711, 2147483648
        %v1729 = vsel %vm1727, %v1728, %v1719
        %v1730 = vsel %vm1723, %v1726, %v1729
        %v1731 = vsel %vm1720, nan, %v1730
        %v1732 = vand.u32 2147483647, %v477
        %vm1733 = vcmp.le.f32.partialorder %v1732, 0.7853982
        %vm1734 = vcmp.lt.s32.totalorder %v477, 0
        %v1735 = vand.u32 %v477, 2139095040
        %v1736 = vshrl.u32 %v1735, 23
        %v1737 = vsub.s32 %v1736, 127
        %v1738 = vand.u32 2147483647, %v477
        %v1739 = vand.u32 %v1738, 8388607
        %v1740 = vor.u32 %v1739, 8388608
        %v1741 = vsub.s32 0, %v1740
        %v1742 = vadd.s32 %v1737, 1
        %vm1743 = vcmp.gt.s32.totalorder %v1742, 0
        %v1744 = vsel %vm1743, %v1742, 0
        %v1745 = vshrl.u32 %v1744, 5
        %v1746 = vand.u32 %v1744, 31
        %v1747 = vsub.s32 32, %v1746
        %v1748 = vshrl.u32 683565275, %v1747
        %v1749 = vshll.u32 683565275, %v1746
        %v1750 = vshrl.u32 2475754826, %v1747
        %v1751 = vor.u32 %v1749, %v1750
        %v1752 = vshll.u32 2475754826, %v1746
        %v1753 = vshrl.u32 2131351028, %v1747
        %v1754 = vor.u32 %v1752, %v1753
        %v1755 = vshll.u32 2131351028, %v1746
        %v1756 = vshrl.u32 2102212464, %v1747
        %v1757 = vor.u32 %v1755, %v1756
        %v1758 = vshll.u32 2102212464, %v1746
        %v1759 = vshrl.u32 920167782, %v1747
        %v1760 = vor.u32 %v1758, %v1759
        %v1761 = vshll.u32 920167782, %v1746
        %v1762 = vshrl.u32 1326507024, %v1747
        %v1763 = vor.u32 %v1761, %v1762
        %vm1764 = vcmp.lt.s32.totalorder %v1745, 1
        %vm1765 = vcmp.lt.s32.totalorder %v1745, 2
        %vm1766 = vcmp.lt.s32.totalorder %v1745, 3
        %vm1767 = vcmp.lt.s32.totalorder %v1745, 4
        %v1768 = vsel %vm1764, %v1748, %v1751
        %v1769 = vsel %vm1767, %v1757, 2102212464
        %v1770 = vsel %vm1766, %v1754, %v1769
        %v1771 = vsel %vm1765, %v1768, %v1770
        %v1772 = vsel %vm1764, %v1751, %v1754
        %v1773 = vsel %vm1767, %v1760, 920167782
        %v1774 = vsel %vm1766, %v1757, %v1773
        %v1775 = vsel %vm1765, %v1772, %v1774
        %v1776 = vsel %vm1764, %v1754, %v1757
        %v1777 = vsel %vm1767, %v1763, 1326507024
        %v1778 = vsel %vm1766, %v1760, %v1777
        %v1779 = vsel %vm1765, %v1776, %v1778
        %v1780 = vshll.u32 %v1740, 8
        %v1781 = vand.u32 %v1780, 65535
        %v1782 = vshrl.u32 %v1780, 16
        %v1783 = vand.u32 %v1779, 65535
        %v1784 = vshrl.u32 %v1779, 16
        %v1785 = vmul.u32 %v1781, %v1783
        %v1786 = vmul.u32 %v1781, %v1784
        %v1787 = vmul.u32 %v1782, %v1783
        %v1788 = vmul.u32 %v1782, %v1784
        %v1789 = vshll.u32 %v1786, 16
        %v1790 = vshrl.u32 %v1786, 16
        %v1791 = vshll.u32 %v1787, 16
        %v1792 = vshrl.u32 %v1787, 16
        %vm1793 = vc.u32 %v1785, %v1789
        %v1794 = vsel %vm1793, 1, 0
        %v1795 = vadd.s32 %v1785, %v1789
        %v1796 = vadd.s32 %v1788, %v1794
        %vm1797 = vc.u32 %v1795, %v1791
        %v1798 = vsel %vm1797, 1, 0
        %v1799 = vadd.s32 %v1795, %v1791
        %v1800 = vadd.s32 %v1796, %v1798
        %v1801 = vadd.s32 %v1800, %v1790
        %v1802 = vadd.s32 %v1801, %v1792
        %v1803 = vand.u32 %v1780, 65535
        %v1804 = vshrl.u32 %v1780, 16
        %v1805 = vand.u32 %v1775, 65535
        %v1806 = vshrl.u32 %v1775, 16
        %v1807 = vmul.u32 %v1803, %v1805
        %v1808 = vmul.u32 %v1803, %v1806
        %v1809 = vmul.u32 %v1804, %v1805
        %v1810 = vmul.u32 %v1804, %v1806
        %v1811 = vshll.u32 %v1808, 16
        %v1812 = vshrl.u32 %v1808, 16
        %v1813 = vshll.u32 %v1809, 16
        %v1814 = vshrl.u32 %v1809, 16
        %vm1815 = vc.u32 %v1807, %v1811
        %v1816 = vsel %vm1815, 1, 0
        %v1817 = vadd.s32 %v1807, %v1811
        %v1818 = vadd.s32 %v1810, %v1816
        %vm1819 = vc.u32 %v1817, %v1813
        %v1820 = vsel %vm1819, 1, 0
        %v1821 = vadd.s32 %v1817, %v1813
        %v1822 = vadd.s32 %v1818, %v1820
        %v1823 = vadd.s32 %v1822, %v1812
        %v1824 = vadd.s32 %v1823, %v1814
        %v1825 = vmul.u32 %v1780, %v1771
        %v1826 = vadd.s32 %v1802, %v1821
        %vm1827 = vc.u32 %v1802, %v1821
        %v1828 = vadd.s32 %v1824, 1
        %v1829 = vsel %vm1827, %v1828, %v1824
        %v1830 = vadd.s32 %v1825, %v1829
        %v1831 = vadd.s32 %v1830, 536870912
        %v1832 = vshrl.u32 %v1831, 30
        %v1833 = vshll.u32 %v1832, 30
        %v1834 = vsub.s32 %v1830, %v1833
        %vm1835 = vcmp.lt.s32.totalorder %v1834, 0
        %v1836 = vsub.s32 0, %v1834
        %v1837 = vsel %vm1835, %v1836, %v1834
        %v1838 = vclz %v1837
        %v1839 = vsub.s32 %v1838, 2
        %vm1840 = vcmp.gt.s32.totalorder 0, %v1839
        %v1841 = vsel %vm1840, 0, %v1839
        %v1842 = vsub.s32 32, %v1841
        %v1843 = vshll.u32 %v1834, %v1841
        %v1844 = vshrl.u32 %v1826, %v1842
        %v1845 = vor.u32 %v1843, %v1844
        %v1846 = vsub.s32 4294967266, %v1841
        %v1847 = vadd.s32 %v1846, 127
        %v1848 = vshll.u32 %v1847, 23
        %v1849 = vor.u32 4788187, %v1848
        %v1850 = vand.u32 2147483647, %v1849
        %v1852 = vcvt.s32.f32 %v1845
        %v1853 = vmul.f32 %v1852, %v1850
        %v1854 = vxor.u32 %v1853, 2147483648
        %v1855 = vsel %vm1734, %v1854, %v1853
        %v1856 = vsub.s32 4, %v1832
        %v1857 = vsel %vm1734, %v1856, %v1832
        %v1858 = vsel %vm1733, %v477, %v1855
        %v1859 = vsel %vm1733, 0, %v1857
        %v1860 = vmul.f32 %v1858, %v1858
        %v1861 = vmul.f32 %v1860, -0.001358992
        %v1862 = vadd.f32 %v1861, 0.041655596
        %v1863 = vmul.f32 %v1860, %v1862
        %v1864 = vadd.f32 %v1863, -0.4999988
        %v1865 = vmul.f32 %v1860, %v1864
        %v1866 = vadd.f32 1.0, %v1865
        %v1867 = vmul.f32 %v1858, %v1858
        %v1868 = vmul.f32 %v1867, -0.00019511016
        %v1869 = vadd.f32 %v1868, 0.008332121
        %v1870 = vmul.f32 %v1867, %v1869
        %v1871 = vadd.f32 %v1870, -0.16666654
        %v1872 = vmul.f32 %v1867, %v1871
        %v1873 = vadd.f32 %v1872, 1.0
        %v1874 = vmul.f32 %v1873, %v1858
        %vm1875 = vweird.f32 %v477
        %v1876 = vadd.s32 %v1859, 3
        %v1877 = vand.u32 %v1876, 3
        %vm1878 = vcmp.lt.s32.totalorder %v1877, 2
        %vm1879 = vcmp.eq.s32.totalorder %v1877, 0
        %v1880 = vxor.u32 %v1874, 2147483648
        %v1881 = vsel %vm1879, %v1866, %v1880
        %vm1882 = vcmp.eq.s32.totalorder %v1877, 2
        %v1883 = vxor.u32 %v1866, 2147483648
        %v1884 = vsel %vm1882, %v1883, %v1874
        %v1885 = vsel %vm1878, %v1881, %v1884
        %v1886 = vsel %vm1875, nan, %v1885
        %v1887 = vand.u32 2147483647, %v480
        %vm1888 = vcmp.le.f32.partialorder %v1887, 0.7853982
        %vm1889 = vcmp.lt.s32.totalorder %v480, 0
        %v1890 = vand.u32 %v480, 2139095040
        %v1891 = vshrl.u32 %v1890, 23
        %v1892 = vsub.s32 %v1891, 127
        %v1893 = vand.u32 2147483647, %v480
        %v1894 = vand.u32 %v1893, 8388607
        %v1895 = vor.u32 %v1894, 8388608
        %v1896 = vsub.s32 0, %v1895
        %v1897 = vadd.s32 %v1892, 1
        %vm1898 = vcmp.gt.s32.totalorder %v1897, 0
        %v1899 = vsel %vm1898, %v1897, 0
        %v1900 = vshrl.u32 %v1899, 5
        %v1901 = vand.u32 %v1899, 31
        %v1902 = vsub.s32 32, %v1901
        %v1903 = vshrl.u32 683565275, %v1902
        %v1904 = vshll.u32 683565275, %v1901
        %v1905 = vshrl.u32 2475754826, %v1902
        %v1906 = vor.u32 %v1904, %v1905
        %v1907 = vshll.u32 2475754826, %v1901
        %v1908 = vshrl.u32 2131351028, %v1902
        %v1909 = vor.u32 %v1907, %v1908
        %v1910 = vshll.u32 2131351028, %v1901
        %v1911 = vshrl.u32 2102212464, %v1902
        %v1912 = vor.u32 %v1910, %v1911
        %v1913 = vshll.u32 2102212464, %v1901
        %v1914 = vshrl.u32 920167782, %v1902
        %v1915 = vor.u32 %v1913, %v1914
        %v1916 = vshll.u32 920167782, %v1901
        %v1917 = vshrl.u32 1326507024, %v1902
        %v1918 = vor.u32 %v1916, %v1917
        %vm1919 = vcmp.lt.s32.totalorder %v1900, 1
        %vm1920 = vcmp.lt.s32.totalorder %v1900, 2
        %vm1921 = vcmp.lt.s32.totalorder %v1900, 3
        %vm1922 = vcmp.lt.s32.totalorder %v1900, 4
        %v1923 = vsel %vm1919, %v1903, %v1906
        %v1924 = vsel %vm1922, %v1912, 2102212464
        %v1925 = vsel %vm1921, %v1909, %v1924
        %v1926 = vsel %vm1920, %v1923, %v1925
        %v1927 = vsel %vm1919, %v1906, %v1909
        %v1928 = vsel %vm1922, %v1915, 920167782
        %v1929 = vsel %vm1921, %v1912, %v1928
        %v1930 = vsel %vm1920, %v1927, %v1929
        %v1931 = vsel %vm1919, %v1909, %v1912
        %v1932 = vsel %vm1922, %v1918, 1326507024
        %v1933 = vsel %vm1921, %v1915, %v1932
        %v1934 = vsel %vm1920, %v1931, %v1933
        %v1935 = vshll.u32 %v1895, 8
        %v1936 = vand.u32 %v1935, 65535
        %v1937 = vshrl.u32 %v1935, 16
        %v1938 = vand.u32 %v1934, 65535
        %v1939 = vshrl.u32 %v1934, 16
        %v1940 = vmul.u32 %v1936, %v1938
        %v1941 = vmul.u32 %v1936, %v1939
        %v1942 = vmul.u32 %v1937, %v1938
        %v1943 = vmul.u32 %v1937, %v1939
        %v1944 = vshll.u32 %v1941, 16
        %v1945 = vshrl.u32 %v1941, 16
        %v1946 = vshll.u32 %v1942, 16
        %v1947 = vshrl.u32 %v1942, 16
        %vm1948 = vc.u32 %v1940, %v1944
        %v1949 = vsel %vm1948, 1, 0
        %v1950 = vadd.s32 %v1940, %v1944
        %v1951 = vadd.s32 %v1943, %v1949
        %vm1952 = vc.u32 %v1950, %v1946
        %v1953 = vsel %vm1952, 1, 0
        %v1954 = vadd.s32 %v1950, %v1946
        %v1955 = vadd.s32 %v1951, %v1953
        %v1956 = vadd.s32 %v1955, %v1945
        %v1957 = vadd.s32 %v1956, %v1947
        %v1958 = vand.u32 %v1935, 65535
        %v1959 = vshrl.u32 %v1935, 16
        %v1960 = vand.u32 %v1930, 65535
        %v1961 = vshrl.u32 %v1930, 16
        %v1962 = vmul.u32 %v1958, %v1960
        %v1963 = vmul.u32 %v1958, %v1961
        %v1964 = vmul.u32 %v1959, %v1960
        %v1965 = vmul.u32 %v1959, %v1961
        %v1966 = vshll.u32 %v1963, 16
        %v1967 = vshrl.u32 %v1963, 16
        %v1968 = vshll.u32 %v1964, 16
        %v1969 = vshrl.u32 %v1964, 16
        %vm1970 = vc.u32 %v1962, %v1966
        %v1971 = vsel %vm1970, 1, 0
        %v1972 = vadd.s32 %v1962, %v1966
        %v1973 = vadd.s32 %v1965, %v1971
        %vm1974 = vc.u32 %v1972, %v1968
        %v1975 = vsel %vm1974, 1, 0
        %v1976 = vadd.s32 %v1972, %v1968
        %v1977 = vadd.s32 %v1973, %v1975
        %v1978 = vadd.s32 %v1977, %v1967
        %v1979 = vadd.s32 %v1978, %v1969
        %v1980 = vmul.u32 %v1935, %v1926
        %v1981 = vadd.s32 %v1957, %v1976
        %vm1982 = vc.u32 %v1957, %v1976
        %v1983 = vadd.s32 %v1979, 1
        %v1984 = vsel %vm1982, %v1983, %v1979
        %v1985 = vadd.s32 %v1980, %v1984
        %v1986 = vadd.s32 %v1985, 536870912
        %v1987 = vshrl.u32 %v1986, 30
        %v1988 = vshll.u32 %v1987, 30
        %v1989 = vsub.s32 %v1985, %v1988
        %vm1990 = vcmp.lt.s32.totalorder %v1989, 0
        %v1991 = vsub.s32 0, %v1989
        %v1992 = vsel %vm1990, %v1991, %v1989
        %v1993 = vclz %v1992
        %v1994 = vsub.s32 %v1993, 2
        %vm1995 = vcmp.gt.s32.totalorder 0, %v1994
        %v1996 = vsel %vm1995, 0, %v1994
        %v1997 = vsub.s32 32, %v1996
        %v1998 = vshll.u32 %v1989, %v1996
        %v1999 = vshrl.u32 %v1981, %v1997
        %v2000 = vor.u32 %v1998, %v1999
        %v2001 = vsub.s32 4294967266, %v1996
        %v2002 = vadd.s32 %v2001, 127
        %v2003 = vshll.u32 %v2002, 23
        %v2004 = vor.u32 4788187, %v2003
        %v2005 = vand.u32 2147483647, %v2004
        %v2007 = vcvt.s32.f32 %v2000
        %v2008 = vmul.f32 %v2007, %v2005
        %v2009 = vxor.u32 %v2008, 2147483648
        %v2010 = vsel %vm1889, %v2009, %v2008
        %v2011 = vsub.s32 4, %v1987
        %v2012 = vsel %vm1889, %v2011, %v1987
        %v2013 = vsel %vm1888, %v480, %v2010
        %v2014 = vsel %vm1888, 0, %v2012
        %v2015 = vmul.f32 %v2013, %v2013
        %v2016 = vmul.f32 %v2015, -0.001358992
        %v2017 = vadd.f32 %v2016, 0.041655596
        %v2018 = vmul.f32 %v2015, %v2017
        %v2019 = vadd.f32 %v2018, -0.4999988
        %v2020 = vmul.f32 %v2015, %v2019
        %v2021 = vadd.f32 1.0, %v2020
        %v2022 = vmul.f32 %v2013, %v2013
        %v2023 = vmul.f32 %v2022, -0.00019511016
        %v2024 = vadd.f32 %v2023, 0.008332121
        %v2025 = vmul.f32 %v2022, %v2024
        %v2026 = vadd.f32 %v2025, -0.16666654
        %v2027 = vmul.f32 %v2022, %v2026
        %v2028 = vadd.f32 %v2027, 1.0
        %v2029 = vmul.f32 %v2028, %v2013
        %vm2030 = vweird.f32 %v480
        %v2031 = vadd.s32 %v2014, 3
        %v2032 = vand.u32 %v2031, 3
        %vm2033 = vcmp.lt.s32.totalorder %v2032, 2
        %vm2034 = vcmp.eq.s32.totalorder %v2032, 0
        %v2035 = vxor.u32 %v2029, 2147483648
        %v2036 = vsel %vm2034, %v2021, %v2035
        %vm2037 = vcmp.eq.s32.totalorder %v2032, 2
        %v2038 = vxor.u32 %v2021, 2147483648
        %v2039 = vsel %vm2037, %v2038, %v2029
        %v2040 = vsel %vm2033, %v2036, %v2039
        %v2041 = vsel %vm2030, nan, %v2040
        %v2042 = vand.u32 2147483647, %v483
        %vm2043 = vcmp.le.f32.partialorder %v2042, 0.7853982
        %vm2044 = vcmp.lt.s32.totalorder %v483, 0
        %v2045 = vand.u32 %v483, 2139095040
        %v2046 = vshrl.u32 %v2045, 23
        %v2047 = vsub.s32 %v2046, 127
        %v2048 = vand.u32 2147483647, %v483
        %v2049 = vand.u32 %v2048, 8388607
        %v2050 = vor.u32 %v2049, 8388608
        %v2051 = vsub.s32 0, %v2050
        %v2052 = vadd.s32 %v2047, 1
        %vm2053 = vcmp.gt.s32.totalorder %v2052, 0
        %v2054 = vsel %vm2053, %v2052, 0
        %v2055 = vshrl.u32 %v2054, 5
        %v2056 = vand.u32 %v2054, 31
        %v2057 = vsub.s32 32, %v2056
        %v2058 = vshrl.u32 683565275, %v2057
        %v2059 = vshll.u32 683565275, %v2056
        %v2060 = vshrl.u32 2475754826, %v2057
        %v2061 = vor.u32 %v2059, %v2060
        %v2062 = vshll.u32 2475754826, %v2056
        %v2063 = vshrl.u32 2131351028, %v2057
        %v2064 = vor.u32 %v2062, %v2063
        %v2065 = vshll.u32 2131351028, %v2056
        %v2066 = vshrl.u32 2102212464, %v2057
        %v2067 = vor.u32 %v2065, %v2066
        %v2068 = vshll.u32 2102212464, %v2056
        %v2069 = vshrl.u32 920167782, %v2057
        %v2070 = vor.u32 %v2068, %v2069
        %v2071 = vshll.u32 920167782, %v2056
        %v2072 = vshrl.u32 1326507024, %v2057
        %v2073 = vor.u32 %v2071, %v2072
        %vm2074 = vcmp.lt.s32.totalorder %v2055, 1
        %vm2075 = vcmp.lt.s32.totalorder %v2055, 2
        %vm2076 = vcmp.lt.s32.totalorder %v2055, 3
        %vm2077 = vcmp.lt.s32.totalorder %v2055, 4
        %v2078 = vsel %vm2074, %v2058, %v2061
        %v2079 = vsel %vm2077, %v2067, 2102212464
        %v2080 = vsel %vm2076, %v2064, %v2079
        %v2081 = vsel %vm2075, %v2078, %v2080
        %v2082 = vsel %vm2074, %v2061, %v2064
        %v2083 = vsel %vm2077, %v2070, 920167782
        %v2084 = vsel %vm2076, %v2067, %v2083
        %v2085 = vsel %vm2075, %v2082, %v2084
        %v2086 = vsel %vm2074, %v2064, %v2067
        %v2087 = vsel %vm2077, %v2073, 1326507024
        %v2088 = vsel %vm2076, %v2070, %v2087
        %v2089 = vsel %vm2075, %v2086, %v2088
        %v2090 = vshll.u32 %v2050, 8
        %v2091 = vand.u32 %v2090, 65535
        %v2092 = vshrl.u32 %v2090, 16
        %v2093 = vand.u32 %v2089, 65535
        %v2094 = vshrl.u32 %v2089, 16
        %v2095 = vmul.u32 %v2091, %v2093
        %v2096 = vmul.u32 %v2091, %v2094
        %v2097 = vmul.u32 %v2092, %v2093
        %v2098 = vmul.u32 %v2092, %v2094
        %v2099 = vshll.u32 %v2096, 16
        %v2100 = vshrl.u32 %v2096, 16
        %v2101 = vshll.u32 %v2097, 16
        %v2102 = vshrl.u32 %v2097, 16
        %vm2103 = vc.u32 %v2095, %v2099
        %v2104 = vsel %vm2103, 1, 0
        %v2105 = vadd.s32 %v2095, %v2099
        %v2106 = vadd.s32 %v2098, %v2104
        %vm2107 = vc.u32 %v2105, %v2101
        %v2108 = vsel %vm2107, 1, 0
        %v2109 = vadd.s32 %v2105, %v2101
        %v2110 = vadd.s32 %v2106, %v2108
        %v2111 = vadd.s32 %v2110, %v2100
        %v2112 = vadd.s32 %v2111, %v2102
        %v2113 = vand.u32 %v2090, 65535
        %v2114 = vshrl.u32 %v2090, 16
        %v2115 = vand.u32 %v2085, 65535
        %v2116 = vshrl.u32 %v2085, 16
        %v2117 = vmul.u32 %v2113, %v2115
        %v2118 = vmul.u32 %v2113, %v2116
        %v2119 = vmul.u32 %v2114, %v2115
        %v2120 = vmul.u32 %v2114, %v2116
        %v2121 = vshll.u32 %v2118, 16
        %v2122 = vshrl.u32 %v2118, 16
        %v2123 = vshll.u32 %v2119, 16
        %v2124 = vshrl.u32 %v2119, 16
        %vm2125 = vc.u32 %v2117, %v2121
        %v2126 = vsel %vm2125, 1, 0
        %v2127 = vadd.s32 %v2117, %v2121
        %v2128 = vadd.s32 %v2120, %v2126
        %vm2129 = vc.u32 %v2127, %v2123
        %v2130 = vsel %vm2129, 1, 0
        %v2131 = vadd.s32 %v2127, %v2123
        %v2132 = vadd.s32 %v2128, %v2130
        %v2133 = vadd.s32 %v2132, %v2122
        %v2134 = vadd.s32 %v2133, %v2124
        %v2135 = vmul.u32 %v2090, %v2081
        %v2136 = vadd.s32 %v2112, %v2131
        %vm2137 = vc.u32 %v2112, %v2131
        %v2138 = vadd.s32 %v2134, 1
        %v2139 = vsel %vm2137, %v2138, %v2134
        %v2140 = vadd.s32 %v2135, %v2139
        %v2141 = vadd.s32 %v2140, 536870912
        %v2142 = vshrl.u32 %v2141, 30
        %v2143 = vshll.u32 %v2142, 30
        %v2144 = vsub.s32 %v2140, %v2143
        %vm2145 = vcmp.lt.s32.totalorder %v2144, 0
        %v2146 = vsub.s32 0, %v2144
        %v2147 = vsel %vm2145, %v2146, %v2144
        %v2148 = vclz %v2147
        %v2149 = vsub.s32 %v2148, 2
        %vm2150 = vcmp.gt.s32.totalorder 0, %v2149
        %v2151 = vsel %vm2150, 0, %v2149
        %v2152 = vsub.s32 32, %v2151
        %v2153 = vshll.u32 %v2144, %v2151
        %v2154 = vshrl.u32 %v2136, %v2152
        %v2155 = vor.u32 %v2153, %v2154
        %v2156 = vsub.s32 4294967266, %v2151
        %v2157 = vadd.s32 %v2156, 127
        %v2158 = vshll.u32 %v2157, 23
        %v2159 = vor.u32 4788187, %v2158
        %v2160 = vand.u32 2147483647, %v2159
        %v2162 = vcvt.s32.f32 %v2155
        %v2163 = vmul.f32 %v2162, %v2160
        %v2164 = vxor.u32 %v2163, 2147483648
        %v2165 = vsel %vm2044, %v2164, %v2163
        %v2166 = vsub.s32 4, %v2142
        %v2167 = vsel %vm2044, %v2166, %v2142
        %v2168 = vsel %vm2043, %v483, %v2165
        %v2169 = vsel %vm2043, 0, %v2167
        %v2170 = vmul.f32 %v2168, %v2168
        %v2171 = vmul.f32 %v2170, -0.001358992
        %v2172 = vadd.f32 %v2171, 0.041655596
        %v2173 = vmul.f32 %v2170, %v2172
        %v2174 = vadd.f32 %v2173, -0.4999988
        %v2175 = vmul.f32 %v2170, %v2174
        %v2176 = vadd.f32 1.0, %v2175
        %v2177 = vmul.f32 %v2168, %v2168
        %v2178 = vmul.f32 %v2177, -0.00019511016
        %v2179 = vadd.f32 %v2178, 0.008332121
        %v2180 = vmul.f32 %v2177, %v2179
        %v2181 = vadd.f32 %v2180, -0.16666654
        %v2182 = vmul.f32 %v2177, %v2181
        %v2183 = vadd.f32 %v2182, 1.0
        %v2184 = vmul.f32 %v2183, %v2168
        %vm2185 = vweird.f32 %v483
        %v2186 = vadd.s32 %v2169, 3
        %v2187 = vand.u32 %v2186, 3
        %vm2188 = vcmp.lt.s32.totalorder %v2187, 2
        %vm2189 = vcmp.eq.s32.totalorder %v2187, 0
        %v2190 = vxor.u32 %v2184, 2147483648
        %v2191 = vsel %vm2189, %v2176, %v2190
        %vm2192 = vcmp.eq.s32.totalorder %v2187, 2
        %v2193 = vxor.u32 %v2176, 2147483648
        %v2194 = vsel %vm2192, %v2193, %v2184
        %v2195 = vsel %vm2188, %v2191, %v2194
        %v2196 = vsel %vm2185, nan, %v2195
        %v2197 = vand.u32 2147483647, %v486
        %vm2198 = vcmp.le.f32.partialorder %v2197, 0.7853982
        %vm2199 = vcmp.lt.s32.totalorder %v486, 0
        %v2200 = vand.u32 %v486, 2139095040
        %v2201 = vshrl.u32 %v2200, 23
        %v2202 = vsub.s32 %v2201, 127
        %v2203 = vand.u32 2147483647, %v486
        %v2204 = vand.u32 %v2203, 8388607
        %v2205 = vor.u32 %v2204, 8388608
        %v2206 = vsub.s32 0, %v2205
        %v2207 = vadd.s32 %v2202, 1
        %vm2208 = vcmp.gt.s32.totalorder %v2207, 0
        %v2209 = vsel %vm2208, %v2207, 0
        %v2210 = vshrl.u32 %v2209, 5
        %v2211 = vand.u32 %v2209, 31
        %v2212 = vsub.s32 32, %v2211
        %v2213 = vshrl.u32 683565275, %v2212
        %v2214 = vshll.u32 683565275, %v2211
        %v2215 = vshrl.u32 2475754826, %v2212
        %v2216 = vor.u32 %v2214, %v2215
        %v2217 = vshll.u32 2475754826, %v2211
        %v2218 = vshrl.u32 2131351028, %v2212
        %v2219 = vor.u32 %v2217, %v2218
        %v2220 = vshll.u32 2131351028, %v2211
        %v2221 = vshrl.u32 2102212464, %v2212
        %v2222 = vor.u32 %v2220, %v2221
        %v2223 = vshll.u32 2102212464, %v2211
        %v2224 = vshrl.u32 920167782, %v2212
        %v2225 = vor.u32 %v2223, %v2224
        %v2226 = vshll.u32 920167782, %v2211
        %v2227 = vshrl.u32 1326507024, %v2212
        %v2228 = vor.u32 %v2226, %v2227
        %vm2229 = vcmp.lt.s32.totalorder %v2210, 1
        %vm2230 = vcmp.lt.s32.totalorder %v2210, 2
        %vm2231 = vcmp.lt.s32.totalorder %v2210, 3
        %vm2232 = vcmp.lt.s32.totalorder %v2210, 4
        %v2233 = vsel %vm2229, %v2213, %v2216
        %v2234 = vsel %vm2232, %v2222, 2102212464
        %v2235 = vsel %vm2231, %v2219, %v2234
        %v2236 = vsel %vm2230, %v2233, %v2235
        %v2237 = vsel %vm2229, %v2216, %v2219
        %v2238 = vsel %vm2232, %v2225, 920167782
        %v2239 = vsel %vm2231, %v2222, %v2238
        %v2240 = vsel %vm2230, %v2237, %v2239
        %v2241 = vsel %vm2229, %v2219, %v2222
        %v2242 = vsel %vm2232, %v2228, 1326507024
        %v2243 = vsel %vm2231, %v2225, %v2242
        %v2244 = vsel %vm2230, %v2241, %v2243
        %v2245 = vshll.u32 %v2205, 8
        %v2246 = vand.u32 %v2245, 65535
        %v2247 = vshrl.u32 %v2245, 16
        %v2248 = vand.u32 %v2244, 65535
        %v2249 = vshrl.u32 %v2244, 16
        %v2250 = vmul.u32 %v2246, %v2248
        %v2251 = vmul.u32 %v2246, %v2249
        %v2252 = vmul.u32 %v2247, %v2248
        %v2253 = vmul.u32 %v2247, %v2249
        %v2254 = vshll.u32 %v2251, 16
        %v2255 = vshrl.u32 %v2251, 16
        %v2256 = vshll.u32 %v2252, 16
        %v2257 = vshrl.u32 %v2252, 16
        %vm2258 = vc.u32 %v2250, %v2254
        %v2259 = vsel %vm2258, 1, 0
        %v2260 = vadd.s32 %v2250, %v2254
        %v2261 = vadd.s32 %v2253, %v2259
        %vm2262 = vc.u32 %v2260, %v2256
        %v2263 = vsel %vm2262, 1, 0
        %v2264 = vadd.s32 %v2260, %v2256
        %v2265 = vadd.s32 %v2261, %v2263
        %v2266 = vadd.s32 %v2265, %v2255
        %v2267 = vadd.s32 %v2266, %v2257
        %v2268 = vand.u32 %v2245, 65535
        %v2269 = vshrl.u32 %v2245, 16
        %v2270 = vand.u32 %v2240, 65535
        %v2271 = vshrl.u32 %v2240, 16
        %v2272 = vmul.u32 %v2268, %v2270
        %v2273 = vmul.u32 %v2268, %v2271
        %v2274 = vmul.u32 %v2269, %v2270
        %v2275 = vmul.u32 %v2269, %v2271
        %v2276 = vshll.u32 %v2273, 16
        %v2277 = vshrl.u32 %v2273, 16
        %v2278 = vshll.u32 %v2274, 16
        %v2279 = vshrl.u32 %v2274, 16
        %vm2280 = vc.u32 %v2272, %v2276
        %v2281 = vsel %vm2280, 1, 0
        %v2282 = vadd.s32 %v2272, %v2276
        %v2283 = vadd.s32 %v2275, %v2281
        %vm2284 = vc.u32 %v2282, %v2278
        %v2285 = vsel %vm2284, 1, 0
        %v2286 = vadd.s32 %v2282, %v2278
        %v2287 = vadd.s32 %v2283, %v2285
        %v2288 = vadd.s32 %v2287, %v2277
        %v2289 = vadd.s32 %v2288, %v2279
        %v2290 = vmul.u32 %v2245, %v2236
        %v2291 = vadd.s32 %v2267, %v2286
        %vm2292 = vc.u32 %v2267, %v2286
        %v2293 = vadd.s32 %v2289, 1
        %v2294 = vsel %vm2292, %v2293, %v2289
        %v2295 = vadd.s32 %v2290, %v2294
        %v2296 = vadd.s32 %v2295, 536870912
        %v2297 = vshrl.u32 %v2296, 30
        %v2298 = vshll.u32 %v2297, 30
        %v2299 = vsub.s32 %v2295, %v2298
        %vm2300 = vcmp.lt.s32.totalorder %v2299, 0
        %v2301 = vsub.s32 0, %v2299
        %v2302 = vsel %vm2300, %v2301, %v2299
        %v2303 = vclz %v2302
        %v2304 = vsub.s32 %v2303, 2
        %vm2305 = vcmp.gt.s32.totalorder 0, %v2304
        %v2306 = vsel %vm2305, 0, %v2304
        %v2307 = vsub.s32 32, %v2306
        %v2308 = vshll.u32 %v2299, %v2306
        %v2309 = vshrl.u32 %v2291, %v2307
        %v2310 = vor.u32 %v2308, %v2309
        %v2311 = vsub.s32 4294967266, %v2306
        %v2312 = vadd.s32 %v2311, 127
        %v2313 = vshll.u32 %v2312, 23
        %v2314 = vor.u32 4788187, %v2313
        %v2315 = vand.u32 2147483647, %v2314
        %v2317 = vcvt.s32.f32 %v2310
        %v2318 = vmul.f32 %v2317, %v2315
        %v2319 = vxor.u32 %v2318, 2147483648
        %v2320 = vsel %vm2199, %v2319, %v2318
        %v2321 = vsub.s32 4, %v2297
        %v2322 = vsel %vm2199, %v2321, %v2297
        %v2323 = vsel %vm2198, %v486, %v2320
        %v2324 = vsel %vm2198, 0, %v2322
        %v2325 = vmul.f32 %v2323, %v2323
        %v2326 = vmul.f32 %v2325, -0.001358992
        %v2327 = vadd.f32 %v2326, 0.041655596
        %v2328 = vmul.f32 %v2325, %v2327
        %v2329 = vadd.f32 %v2328, -0.4999988
        %v2330 = vmul.f32 %v2325, %v2329
        %v2331 = vadd.f32 1.0, %v2330
        %v2332 = vmul.f32 %v2323, %v2323
        %v2333 = vmul.f32 %v2332, -0.00019511016
        %v2334 = vadd.f32 %v2333, 0.008332121
        %v2335 = vmul.f32 %v2332, %v2334
        %v2336 = vadd.f32 %v2335, -0.16666654
        %v2337 = vmul.f32 %v2332, %v2336
        %v2338 = vadd.f32 %v2337, 1.0
        %v2339 = vmul.f32 %v2338, %v2323
        %vm2340 = vweird.f32 %v486
        %v2341 = vadd.s32 %v2324, 3
        %v2342 = vand.u32 %v2341, 3
        %vm2343 = vcmp.lt.s32.totalorder %v2342, 2
        %vm2344 = vcmp.eq.s32.totalorder %v2342, 0
        %v2345 = vxor.u32 %v2339, 2147483648
        %v2346 = vsel %vm2344, %v2331, %v2345
        %vm2347 = vcmp.eq.s32.totalorder %v2342, 2
        %v2348 = vxor.u32 %v2331, 2147483648
        %v2349 = vsel %vm2347, %v2348, %v2339
        %v2350 = vsel %vm2343, %v2346, %v2349
        %v2351 = vsel %vm2340, nan, %v2350
        %v2352 = vand.u32 2147483647, %v489
        %vm2353 = vcmp.le.f32.partialorder %v2352, 0.7853982
        %vm2354 = vcmp.lt.s32.totalorder %v489, 0
        %v2355 = vand.u32 %v489, 2139095040
        %v2356 = vshrl.u32 %v2355, 23
        %v2357 = vsub.s32 %v2356, 127
        %v2358 = vand.u32 2147483647, %v489
        %v2359 = vand.u32 %v2358, 8388607
        %v2360 = vor.u32 %v2359, 8388608
        %v2361 = vsub.s32 0, %v2360
        %v2362 = vadd.s32 %v2357, 1
        %vm2363 = vcmp.gt.s32.totalorder %v2362, 0
        %v2364 = vsel %vm2363, %v2362, 0
        %v2365 = vshrl.u32 %v2364, 5
        %v2366 = vand.u32 %v2364, 31
        %v2367 = vsub.s32 32, %v2366
        %v2368 = vshrl.u32 683565275, %v2367
        %v2369 = vshll.u32 683565275, %v2366
        %v2370 = vshrl.u32 2475754826, %v2367
        %v2371 = vor.u32 %v2369, %v2370
        %v2372 = vshll.u32 2475754826, %v2366
        %v2373 = vshrl.u32 2131351028, %v2367
        %v2374 = vor.u32 %v2372, %v2373
        %v2375 = vshll.u32 2131351028, %v2366
        %v2376 = vshrl.u32 2102212464, %v2367
        %v2377 = vor.u32 %v2375, %v2376
        %v2378 = vshll.u32 2102212464, %v2366
        %v2379 = vshrl.u32 920167782, %v2367
        %v2380 = vor.u32 %v2378, %v2379
        %v2381 = vshll.u32 920167782, %v2366
        %v2382 = vshrl.u32 1326507024, %v2367
        %v2383 = vor.u32 %v2381, %v2382
        %vm2384 = vcmp.lt.s32.totalorder %v2365, 1
        %vm2385 = vcmp.lt.s32.totalorder %v2365, 2
        %vm2386 = vcmp.lt.s32.totalorder %v2365, 3
        %vm2387 = vcmp.lt.s32.totalorder %v2365, 4
        %v2388 = vsel %vm2384, %v2368, %v2371
        %v2389 = vsel %vm2387, %v2377, 2102212464
        %v2390 = vsel %vm2386, %v2374, %v2389
        %v2391 = vsel %vm2385, %v2388, %v2390
        %v2392 = vsel %vm2384, %v2371, %v2374
        %v2393 = vsel %vm2387, %v2380, 920167782
        %v2394 = vsel %vm2386, %v2377, %v2393
        %v2395 = vsel %vm2385, %v2392, %v2394
        %v2396 = vsel %vm2384, %v2374, %v2377
        %v2397 = vsel %vm2387, %v2383, 1326507024
        %v2398 = vsel %vm2386, %v2380, %v2397
        %v2399 = vsel %vm2385, %v2396, %v2398
        %v2400 = vshll.u32 %v2360, 8
        %v2401 = vand.u32 %v2400, 65535
        %v2402 = vshrl.u32 %v2400, 16
        %v2403 = vand.u32 %v2399, 65535
        %v2404 = vshrl.u32 %v2399, 16
        %v2405 = vmul.u32 %v2401, %v2403
        %v2406 = vmul.u32 %v2401, %v2404
        %v2407 = vmul.u32 %v2402, %v2403
        %v2408 = vmul.u32 %v2402, %v2404
        %v2409 = vshll.u32 %v2406, 16
        %v2410 = vshrl.u32 %v2406, 16
        %v2411 = vshll.u32 %v2407, 16
        %v2412 = vshrl.u32 %v2407, 16
        %vm2413 = vc.u32 %v2405, %v2409
        %v2414 = vsel %vm2413, 1, 0
        %v2415 = vadd.s32 %v2405, %v2409
        %v2416 = vadd.s32 %v2408, %v2414
        %vm2417 = vc.u32 %v2415, %v2411
        %v2418 = vsel %vm2417, 1, 0
        %v2419 = vadd.s32 %v2415, %v2411
        %v2420 = vadd.s32 %v2416, %v2418
        %v2421 = vadd.s32 %v2420, %v2410
        %v2422 = vadd.s32 %v2421, %v2412
        %v2423 = vand.u32 %v2400, 65535
        %v2424 = vshrl.u32 %v2400, 16
        %v2425 = vand.u32 %v2395, 65535
        %v2426 = vshrl.u32 %v2395, 16
        %v2427 = vmul.u32 %v2423, %v2425
        %v2428 = vmul.u32 %v2423, %v2426
        %v2429 = vmul.u32 %v2424, %v2425
        %v2430 = vmul.u32 %v2424, %v2426
        %v2431 = vshll.u32 %v2428, 16
        %v2432 = vshrl.u32 %v2428, 16
        %v2433 = vshll.u32 %v2429, 16
        %v2434 = vshrl.u32 %v2429, 16
        %vm2435 = vc.u32 %v2427, %v2431
        %v2436 = vsel %vm2435, 1, 0
        %v2437 = vadd.s32 %v2427, %v2431
        %v2438 = vadd.s32 %v2430, %v2436
        %vm2439 = vc.u32 %v2437, %v2433
        %v2440 = vsel %vm2439, 1, 0
        %v2441 = vadd.s32 %v2437, %v2433
        %v2442 = vadd.s32 %v2438, %v2440
        %v2443 = vadd.s32 %v2442, %v2432
        %v2444 = vadd.s32 %v2443, %v2434
        %v2445 = vmul.u32 %v2400, %v2391
        %v2446 = vadd.s32 %v2422, %v2441
        %vm2447 = vc.u32 %v2422, %v2441
        %v2448 = vadd.s32 %v2444, 1
        %v2449 = vsel %vm2447, %v2448, %v2444
        %v2450 = vadd.s32 %v2445, %v2449
        %v2451 = vadd.s32 %v2450, 536870912
        %v2452 = vshrl.u32 %v2451, 30
        %v2453 = vshll.u32 %v2452, 30
        %v2454 = vsub.s32 %v2450, %v2453
        %vm2455 = vcmp.lt.s32.totalorder %v2454, 0
        %v2456 = vsub.s32 0, %v2454
        %v2457 = vsel %vm2455, %v2456, %v2454
        %v2458 = vclz %v2457
        %v2459 = vsub.s32 %v2458, 2
        %vm2460 = vcmp.gt.s32.totalorder 0, %v2459
        %v2461 = vsel %vm2460, 0, %v2459
        %v2462 = vsub.s32 32, %v2461
        %v2463 = vshll.u32 %v2454, %v2461
        %v2464 = vshrl.u32 %v2446, %v2462
        %v2465 = vor.u32 %v2463, %v2464
        %v2466 = vsub.s32 4294967266, %v2461
        %v2467 = vadd.s32 %v2466, 127
        %v2468 = vshll.u32 %v2467, 23
        %v2469 = vor.u32 4788187, %v2468
        %v2470 = vand.u32 2147483647, %v2469
        %v2472 = vcvt.s32.f32 %v2465
        %v2473 = vmul.f32 %v2472, %v2470
        %v2474 = vxor.u32 %v2473, 2147483648
        %v2475 = vsel %vm2354, %v2474, %v2473
        %v2476 = vsub.s32 4, %v2452
        %v2477 = vsel %vm2354, %v2476, %v2452
        %v2478 = vsel %vm2353, %v489, %v2475
        %v2479 = vsel %vm2353, 0, %v2477
        %v2480 = vmul.f32 %v2478, %v2478
        %v2481 = vmul.f32 %v2480, -0.001358992
        %v2482 = vadd.f32 %v2481, 0.041655596
        %v2483 = vmul.f32 %v2480, %v2482
        %v2484 = vadd.f32 %v2483, -0.4999988
        %v2485 = vmul.f32 %v2480, %v2484
        %v2486 = vadd.f32 1.0, %v2485
        %v2487 = vmul.f32 %v2478, %v2478
        %v2488 = vmul.f32 %v2487, -0.00019511016
        %v2489 = vadd.f32 %v2488, 0.008332121
        %v2490 = vmul.f32 %v2487, %v2489
        %v2491 = vadd.f32 %v2490, -0.16666654
        %v2492 = vmul.f32 %v2487, %v2491
        %v2493 = vadd.f32 %v2492, 1.0
        %v2494 = vmul.f32 %v2493, %v2478
        %vm2495 = vweird.f32 %v489
        %v2496 = vadd.s32 %v2479, 3
        %v2497 = vand.u32 %v2496, 3
        %vm2498 = vcmp.lt.s32.totalorder %v2497, 2
        %vm2499 = vcmp.eq.s32.totalorder %v2497, 0
        %v2500 = vxor.u32 %v2494, 2147483648
        %v2501 = vsel %vm2499, %v2486, %v2500
        %vm2502 = vcmp.eq.s32.totalorder %v2497, 2
        %v2503 = vxor.u32 %v2486, 2147483648
        %v2504 = vsel %vm2502, %v2503, %v2494
        %v2505 = vsel %vm2498, %v2501, %v2504
        %v2506 = vsel %vm2495, nan, %v2505
        %v2507 = vand.u32 2147483647, %v492
        %vm2508 = vcmp.le.f32.partialorder %v2507, 0.7853982
        %vm2509 = vcmp.lt.s32.totalorder %v492, 0
        %v2510 = vand.u32 %v492, 2139095040
        %v2511 = vshrl.u32 %v2510, 23
        %v2512 = vsub.s32 %v2511, 127
        %v2513 = vand.u32 2147483647, %v492
        %v2514 = vand.u32 %v2513, 8388607
        %v2515 = vor.u32 %v2514, 8388608
        %v2516 = vsub.s32 0, %v2515
        %v2517 = vadd.s32 %v2512, 1
        %vm2518 = vcmp.gt.s32.totalorder %v2517, 0
        %v2519 = vsel %vm2518, %v2517, 0
        %v2520 = vshrl.u32 %v2519, 5
        %v2521 = vand.u32 %v2519, 31
        %v2522 = vsub.s32 32, %v2521
        %v2523 = vshrl.u32 683565275, %v2522
        %v2524 = vshll.u32 683565275, %v2521
        %v2525 = vshrl.u32 2475754826, %v2522
        %v2526 = vor.u32 %v2524, %v2525
        %v2527 = vshll.u32 2475754826, %v2521
        %v2528 = vshrl.u32 2131351028, %v2522
        %v2529 = vor.u32 %v2527, %v2528
        %v2530 = vshll.u32 2131351028, %v2521
        %v2531 = vshrl.u32 2102212464, %v2522
        %v2532 = vor.u32 %v2530, %v2531
        %v2533 = vshll.u32 2102212464, %v2521
        %v2534 = vshrl.u32 920167782, %v2522
        %v2535 = vor.u32 %v2533, %v2534
        %v2536 = vshll.u32 920167782, %v2521
        %v2537 = vshrl.u32 1326507024, %v2522
        %v2538 = vor.u32 %v2536, %v2537
        %vm2539 = vcmp.lt.s32.totalorder %v2520, 1
        %vm2540 = vcmp.lt.s32.totalorder %v2520, 2
        %vm2541 = vcmp.lt.s32.totalorder %v2520, 3
        %vm2542 = vcmp.lt.s32.totalorder %v2520, 4
        %v2543 = vsel %vm2539, %v2523, %v2526
        %v2544 = vsel %vm2542, %v2532, 2102212464
        %v2545 = vsel %vm2541, %v2529, %v2544
        %v2546 = vsel %vm2540, %v2543, %v2545
        %v2547 = vsel %vm2539, %v2526, %v2529
        %v2548 = vsel %vm2542, %v2535, 920167782
        %v2549 = vsel %vm2541, %v2532, %v2548
        %v2550 = vsel %vm2540, %v2547, %v2549
        %v2551 = vsel %vm2539, %v2529, %v2532
        %v2552 = vsel %vm2542, %v2538, 1326507024
        %v2553 = vsel %vm2541, %v2535, %v2552
        %v2554 = vsel %vm2540, %v2551, %v2553
        %v2555 = vshll.u32 %v2515, 8
        %v2556 = vand.u32 %v2555, 65535
        %v2557 = vshrl.u32 %v2555, 16
        %v2558 = vand.u32 %v2554, 65535
        %v2559 = vshrl.u32 %v2554, 16
        %v2560 = vmul.u32 %v2556, %v2558
        %v2561 = vmul.u32 %v2556, %v2559
        %v2562 = vmul.u32 %v2557, %v2558
        %v2563 = vmul.u32 %v2557, %v2559
        %v2564 = vshll.u32 %v2561, 16
        %v2565 = vshrl.u32 %v2561, 16
        %v2566 = vshll.u32 %v2562, 16
        %v2567 = vshrl.u32 %v2562, 16
        %vm2568 = vc.u32 %v2560, %v2564
        %v2569 = vsel %vm2568, 1, 0
        %v2570 = vadd.s32 %v2560, %v2564
        %v2571 = vadd.s32 %v2563, %v2569
        %vm2572 = vc.u32 %v2570, %v2566
        %v2573 = vsel %vm2572, 1, 0
        %v2574 = vadd.s32 %v2570, %v2566
        %v2575 = vadd.s32 %v2571, %v2573
        %v2576 = vadd.s32 %v2575, %v2565
        %v2577 = vadd.s32 %v2576, %v2567
        %v2578 = vand.u32 %v2555, 65535
        %v2579 = vshrl.u32 %v2555, 16
        %v2580 = vand.u32 %v2550, 65535
        %v2581 = vshrl.u32 %v2550, 16
        %v2582 = vmul.u32 %v2578, %v2580
        %v2583 = vmul.u32 %v2578, %v2581
        %v2584 = vmul.u32 %v2579, %v2580
        %v2585 = vmul.u32 %v2579, %v2581
        %v2586 = vshll.u32 %v2583, 16
        %v2587 = vshrl.u32 %v2583, 16
        %v2588 = vshll.u32 %v2584, 16
        %v2589 = vshrl.u32 %v2584, 16
        %vm2590 = vc.u32 %v2582, %v2586
        %v2591 = vsel %vm2590, 1, 0
        %v2592 = vadd.s32 %v2582, %v2586
        %v2593 = vadd.s32 %v2585, %v2591
        %vm2594 = vc.u32 %v2592, %v2588
        %v2595 = vsel %vm2594, 1, 0
        %v2596 = vadd.s32 %v2592, %v2588
        %v2597 = vadd.s32 %v2593, %v2595
        %v2598 = vadd.s32 %v2597, %v2587
        %v2599 = vadd.s32 %v2598, %v2589
        %v2600 = vmul.u32 %v2555, %v2546
        %v2601 = vadd.s32 %v2577, %v2596
        %vm2602 = vc.u32 %v2577, %v2596
        %v2603 = vadd.s32 %v2599, 1
        %v2604 = vsel %vm2602, %v2603, %v2599
        %v2605 = vadd.s32 %v2600, %v2604
        %v2606 = vadd.s32 %v2605, 536870912
        %v2607 = vshrl.u32 %v2606, 30
        %v2608 = vshll.u32 %v2607, 30
        %v2609 = vsub.s32 %v2605, %v2608
        %vm2610 = vcmp.lt.s32.totalorder %v2609, 0
        %v2611 = vsub.s32 0, %v2609
        %v2612 = vsel %vm2610, %v2611, %v2609
        %v2613 = vclz %v2612
        %v2614 = vsub.s32 %v2613, 2
        %vm2615 = vcmp.gt.s32.totalorder 0, %v2614
        %v2616 = vsel %vm2615, 0, %v2614
        %v2617 = vsub.s32 32, %v2616
        %v2618 = vshll.u32 %v2609, %v2616
        %v2619 = vshrl.u32 %v2601, %v2617
        %v2620 = vor.u32 %v2618, %v2619
        %v2621 = vsub.s32 4294967266, %v2616
        %v2622 = vadd.s32 %v2621, 127
        %v2623 = vshll.u32 %v2622, 23
        %v2624 = vor.u32 4788187, %v2623
        %v2625 = vand.u32 2147483647, %v2624
        %v2627 = vcvt.s32.f32 %v2620
        %v2628 = vmul.f32 %v2627, %v2625
        %v2629 = vxor.u32 %v2628, 2147483648
        %v2630 = vsel %vm2509, %v2629, %v2628
        %v2631 = vsub.s32 4, %v2607
        %v2632 = vsel %vm2509, %v2631, %v2607
        %v2633 = vsel %vm2508, %v492, %v2630
        %v2634 = vsel %vm2508, 0, %v2632
        %v2635 = vmul.f32 %v2633, %v2633
        %v2636 = vmul.f32 %v2635, -0.001358992
        %v2637 = vadd.f32 %v2636, 0.041655596
        %v2638 = vmul.f32 %v2635, %v2637
        %v2639 = vadd.f32 %v2638, -0.4999988
        %v2640 = vmul.f32 %v2635, %v2639
        %v2641 = vadd.f32 1.0, %v2640
        %v2642 = vmul.f32 %v2633, %v2633
        %v2643 = vmul.f32 %v2642, -0.00019511016
        %v2644 = vadd.f32 %v2643, 0.008332121
        %v2645 = vmul.f32 %v2642, %v2644
        %v2646 = vadd.f32 %v2645, -0.16666654
        %v2647 = vmul.f32 %v2642, %v2646
        %v2648 = vadd.f32 %v2647, 1.0
        %v2649 = vmul.f32 %v2648, %v2633
        %vm2650 = vweird.f32 %v492
        %v2651 = vadd.s32 %v2634, 3
        %v2652 = vand.u32 %v2651, 3
        %vm2653 = vcmp.lt.s32.totalorder %v2652, 2
        %vm2654 = vcmp.eq.s32.totalorder %v2652, 0
        %v2655 = vxor.u32 %v2649, 2147483648
        %v2656 = vsel %vm2654, %v2641, %v2655
        %vm2657 = vcmp.eq.s32.totalorder %v2652, 2
        %v2658 = vxor.u32 %v2641, 2147483648
        %v2659 = vsel %vm2657, %v2658, %v2649
        %v2660 = vsel %vm2653, %v2656, %v2659
        %v2661 = vsel %vm2650, nan, %v2660
        %v2662 = vand.u32 2147483647, %v495
        %vm2663 = vcmp.le.f32.partialorder %v2662, 0.7853982
        %vm2664 = vcmp.lt.s32.totalorder %v495, 0
        %v2665 = vand.u32 %v495, 2139095040
        %v2666 = vshrl.u32 %v2665, 23
        %v2667 = vsub.s32 %v2666, 127
        %v2668 = vand.u32 2147483647, %v495
        %v2669 = vand.u32 %v2668, 8388607
        %v2670 = vor.u32 %v2669, 8388608
        %v2671 = vsub.s32 0, %v2670
        %v2672 = vadd.s32 %v2667, 1
        %vm2673 = vcmp.gt.s32.totalorder %v2672, 0
        %v2674 = vsel %vm2673, %v2672, 0
        %v2675 = vshrl.u32 %v2674, 5
        %v2676 = vand.u32 %v2674, 31
        %v2677 = vsub.s32 32, %v2676
        %v2678 = vshrl.u32 683565275, %v2677
        %v2679 = vshll.u32 683565275, %v2676
        %v2680 = vshrl.u32 2475754826, %v2677
        %v2681 = vor.u32 %v2679, %v2680
        %v2682 = vshll.u32 2475754826, %v2676
        %v2683 = vshrl.u32 2131351028, %v2677
        %v2684 = vor.u32 %v2682, %v2683
        %v2685 = vshll.u32 2131351028, %v2676
        %v2686 = vshrl.u32 2102212464, %v2677
        %v2687 = vor.u32 %v2685, %v2686
        %v2688 = vshll.u32 2102212464, %v2676
        %v2689 = vshrl.u32 920167782, %v2677
        %v2690 = vor.u32 %v2688, %v2689
        %v2691 = vshll.u32 920167782, %v2676
        %v2692 = vshrl.u32 1326507024, %v2677
        %v2693 = vor.u32 %v2691, %v2692
        %vm2694 = vcmp.lt.s32.totalorder %v2675, 1
        %vm2695 = vcmp.lt.s32.totalorder %v2675, 2
        %vm2696 = vcmp.lt.s32.totalorder %v2675, 3
        %vm2697 = vcmp.lt.s32.totalorder %v2675, 4
        %v2698 = vsel %vm2694, %v2678, %v2681
        %v2699 = vsel %vm2697, %v2687, 2102212464
        %v2700 = vsel %vm2696, %v2684, %v2699
        %v2701 = vsel %vm2695, %v2698, %v2700
        %v2702 = vsel %vm2694, %v2681, %v2684
        %v2703 = vsel %vm2697, %v2690, 920167782
        %v2704 = vsel %vm2696, %v2687, %v2703
        %v2705 = vsel %vm2695, %v2702, %v2704
        %v2706 = vsel %vm2694, %v2684, %v2687
        %v2707 = vsel %vm2697, %v2693, 1326507024
        %v2708 = vsel %vm2696, %v2690, %v2707
        %v2709 = vsel %vm2695, %v2706, %v2708
        %v2710 = vshll.u32 %v2670, 8
        %v2711 = vand.u32 %v2710, 65535
        %v2712 = vshrl.u32 %v2710, 16
        %v2713 = vand.u32 %v2709, 65535
        %v2714 = vshrl.u32 %v2709, 16
        %v2715 = vmul.u32 %v2711, %v2713
        %v2716 = vmul.u32 %v2711, %v2714
        %v2717 = vmul.u32 %v2712, %v2713
        %v2718 = vmul.u32 %v2712, %v2714
        %v2719 = vshll.u32 %v2716, 16
        %v2720 = vshrl.u32 %v2716, 16
        %v2721 = vshll.u32 %v2717, 16
        %v2722 = vshrl.u32 %v2717, 16
        %vm2723 = vc.u32 %v2715, %v2719
        %v2724 = vsel %vm2723, 1, 0
        %v2725 = vadd.s32 %v2715, %v2719
        %v2726 = vadd.s32 %v2718, %v2724
        %vm2727 = vc.u32 %v2725, %v2721
        %v2728 = vsel %vm2727, 1, 0
        %v2729 = vadd.s32 %v2725, %v2721
        %v2730 = vadd.s32 %v2726, %v2728
        %v2731 = vadd.s32 %v2730, %v2720
        %v2732 = vadd.s32 %v2731, %v2722
        %v2733 = vand.u32 %v2710, 65535
        %v2734 = vshrl.u32 %v2710, 16
        %v2735 = vand.u32 %v2705, 65535
        %v2736 = vshrl.u32 %v2705, 16
        %v2737 = vmul.u32 %v2733, %v2735
        %v2738 = vmul.u32 %v2733, %v2736
        %v2739 = vmul.u32 %v2734, %v2735
        %v2740 = vmul.u32 %v2734, %v2736
        %v2741 = vshll.u32 %v2738, 16
        %v2742 = vshrl.u32 %v2738, 16
        %v2743 = vshll.u32 %v2739, 16
        %v2744 = vshrl.u32 %v2739, 16
        %vm2745 = vc.u32 %v2737, %v2741
        %v2746 = vsel %vm2745, 1, 0
        %v2747 = vadd.s32 %v2737, %v2741
        %v2748 = vadd.s32 %v2740, %v2746
        %vm2749 = vc.u32 %v2747, %v2743
        %v2750 = vsel %vm2749, 1, 0
        %v2751 = vadd.s32 %v2747, %v2743
        %v2752 = vadd.s32 %v2748, %v2750
        %v2753 = vadd.s32 %v2752, %v2742
        %v2754 = vadd.s32 %v2753, %v2744
        %v2755 = vmul.u32 %v2710, %v2701
        %v2756 = vadd.s32 %v2732, %v2751
        %vm2757 = vc.u32 %v2732, %v2751
        %v2758 = vadd.s32 %v2754, 1
        %v2759 = vsel %vm2757, %v2758, %v2754
        %v2760 = vadd.s32 %v2755, %v2759
        %v2761 = vadd.s32 %v2760, 536870912
        %v2762 = vshrl.u32 %v2761, 30
        %v2763 = vshll.u32 %v2762, 30
        %v2764 = vsub.s32 %v2760, %v2763
        %vm2765 = vcmp.lt.s32.totalorder %v2764, 0
        %v2766 = vsub.s32 0, %v2764
        %v2767 = vsel %vm2765, %v2766, %v2764
        %v2768 = vclz %v2767
        %v2769 = vsub.s32 %v2768, 2
        %vm2770 = vcmp.gt.s32.totalorder 0, %v2769
        %v2771 = vsel %vm2770, 0, %v2769
        %v2772 = vsub.s32 32, %v2771
        %v2773 = vshll.u32 %v2764, %v2771
        %v2774 = vshrl.u32 %v2756, %v2772
        %v2775 = vor.u32 %v2773, %v2774
        %v2776 = vsub.s32 4294967266, %v2771
        %v2777 = vadd.s32 %v2776, 127
        %v2778 = vshll.u32 %v2777, 23
        %v2779 = vor.u32 4788187, %v2778
        %v2780 = vand.u32 2147483647, %v2779
        %v2782 = vcvt.s32.f32 %v2775
        %v2783 = vmul.f32 %v2782, %v2780
        %v2784 = vxor.u32 %v2783, 2147483648
        %v2785 = vsel %vm2664, %v2784, %v2783
        %v2786 = vsub.s32 4, %v2762
        %v2787 = vsel %vm2664, %v2786, %v2762
        %v2788 = vsel %vm2663, %v495, %v2785
        %v2789 = vsel %vm2663, 0, %v2787
        %v2790 = vmul.f32 %v2788, %v2788
        %v2791 = vmul.f32 %v2790, -0.001358992
        %v2792 = vadd.f32 %v2791, 0.041655596
        %v2793 = vmul.f32 %v2790, %v2792
        %v2794 = vadd.f32 %v2793, -0.4999988
        %v2795 = vmul.f32 %v2790, %v2794
        %v2796 = vadd.f32 1.0, %v2795
        %v2797 = vmul.f32 %v2788, %v2788
        %v2798 = vmul.f32 %v2797, -0.00019511016
        %v2799 = vadd.f32 %v2798, 0.008332121
        %v2800 = vmul.f32 %v2797, %v2799
        %v2801 = vadd.f32 %v2800, -0.16666654
        %v2802 = vmul.f32 %v2797, %v2801
        %v2803 = vadd.f32 %v2802, 1.0
        %v2804 = vmul.f32 %v2803, %v2788
        %vm2805 = vweird.f32 %v495
        %v2806 = vadd.s32 %v2789, 3
        %v2807 = vand.u32 %v2806, 3
        %vm2808 = vcmp.lt.s32.totalorder %v2807, 2
        %vm2809 = vcmp.eq.s32.totalorder %v2807, 0
        %v2810 = vxor.u32 %v2804, 2147483648
        %v2811 = vsel %vm2809, %v2796, %v2810
        %vm2812 = vcmp.eq.s32.totalorder %v2807, 2
        %v2813 = vxor.u32 %v2796, 2147483648
        %v2814 = vsel %vm2812, %v2813, %v2804
        %v2815 = vsel %vm2808, %v2811, %v2814
        %v2816 = vsel %vm2805, nan, %v2815
        %v2817 = vand.u32 2147483647, %v498
        %vm2818 = vcmp.le.f32.partialorder %v2817, 0.7853982
        %vm2819 = vcmp.lt.s32.totalorder %v498, 0
        %v2820 = vand.u32 %v498, 2139095040
        %v2821 = vshrl.u32 %v2820, 23
        %v2822 = vsub.s32 %v2821, 127
        %v2823 = vand.u32 2147483647, %v498
        %v2824 = vand.u32 %v2823, 8388607
        %v2825 = vor.u32 %v2824, 8388608
        %v2826 = vsub.s32 0, %v2825
        %v2827 = vadd.s32 %v2822, 1
        %vm2828 = vcmp.gt.s32.totalorder %v2827, 0
        %v2829 = vsel %vm2828, %v2827, 0
        %v2830 = vshrl.u32 %v2829, 5
        %v2831 = vand.u32 %v2829, 31
        %v2832 = vsub.s32 32, %v2831
        %v2833 = vshrl.u32 683565275, %v2832
        %v2834 = vshll.u32 683565275, %v2831
        %v2835 = vshrl.u32 2475754826, %v2832
        %v2836 = vor.u32 %v2834, %v2835
        %v2837 = vshll.u32 2475754826, %v2831
        %v2838 = vshrl.u32 2131351028, %v2832
        %v2839 = vor.u32 %v2837, %v2838
        %v2840 = vshll.u32 2131351028, %v2831
        %v2841 = vshrl.u32 2102212464, %v2832
        %v2842 = vor.u32 %v2840, %v2841
        %v2843 = vshll.u32 2102212464, %v2831
        %v2844 = vshrl.u32 920167782, %v2832
        %v2845 = vor.u32 %v2843, %v2844
        %v2846 = vshll.u32 920167782, %v2831
        %v2847 = vshrl.u32 1326507024, %v2832
        %v2848 = vor.u32 %v2846, %v2847
        %vm2849 = vcmp.lt.s32.totalorder %v2830, 1
        %vm2850 = vcmp.lt.s32.totalorder %v2830, 2
        %vm2851 = vcmp.lt.s32.totalorder %v2830, 3
        %vm2852 = vcmp.lt.s32.totalorder %v2830, 4
        %v2853 = vsel %vm2849, %v2833, %v2836
        %v2854 = vsel %vm2852, %v2842, 2102212464
        %v2855 = vsel %vm2851, %v2839, %v2854
        %v2856 = vsel %vm2850, %v2853, %v2855
        %v2857 = vsel %vm2849, %v2836, %v2839
        %v2858 = vsel %vm2852, %v2845, 920167782
        %v2859 = vsel %vm2851, %v2842, %v2858
        %v2860 = vsel %vm2850, %v2857, %v2859
        %v2861 = vsel %vm2849, %v2839, %v2842
        %v2862 = vsel %vm2852, %v2848, 1326507024
        %v2863 = vsel %vm2851, %v2845, %v2862
        %v2864 = vsel %vm2850, %v2861, %v2863
        %v2865 = vshll.u32 %v2825, 8
        %v2866 = vand.u32 %v2865, 65535
        %v2867 = vshrl.u32 %v2865, 16
        %v2868 = vand.u32 %v2864, 65535
        %v2869 = vshrl.u32 %v2864, 16
        %v2870 = vmul.u32 %v2866, %v2868
        %v2871 = vmul.u32 %v2866, %v2869
        %v2872 = vmul.u32 %v2867, %v2868
        %v2873 = vmul.u32 %v2867, %v2869
        %v2874 = vshll.u32 %v2871, 16
        %v2875 = vshrl.u32 %v2871, 16
        %v2876 = vshll.u32 %v2872, 16
        %v2877 = vshrl.u32 %v2872, 16
        %vm2878 = vc.u32 %v2870, %v2874
        %v2879 = vsel %vm2878, 1, 0
        %v2880 = vadd.s32 %v2870, %v2874
        %v2881 = vadd.s32 %v2873, %v2879
        %vm2882 = vc.u32 %v2880, %v2876
        %v2883 = vsel %vm2882, 1, 0
        %v2884 = vadd.s32 %v2880, %v2876
        %v2885 = vadd.s32 %v2881, %v2883
        %v2886 = vadd.s32 %v2885, %v2875
        %v2887 = vadd.s32 %v2886, %v2877
        %v2888 = vand.u32 %v2865, 65535
        %v2889 = vshrl.u32 %v2865, 16
        %v2890 = vand.u32 %v2860, 65535
        %v2891 = vshrl.u32 %v2860, 16
        %v2892 = vmul.u32 %v2888, %v2890
        %v2893 = vmul.u32 %v2888, %v2891
        %v2894 = vmul.u32 %v2889, %v2890
        %v2895 = vmul.u32 %v2889, %v2891
        %v2896 = vshll.u32 %v2893, 16
        %v2897 = vshrl.u32 %v2893, 16
        %v2898 = vshll.u32 %v2894, 16
        %v2899 = vshrl.u32 %v2894, 16
        %vm2900 = vc.u32 %v2892, %v2896
        %v2901 = vsel %vm2900, 1, 0
        %v2902 = vadd.s32 %v2892, %v2896
        %v2903 = vadd.s32 %v2895, %v2901
        %vm2904 = vc.u32 %v2902, %v2898
        %v2905 = vsel %vm2904, 1, 0
        %v2906 = vadd.s32 %v2902, %v2898
        %v2907 = vadd.s32 %v2903, %v2905
        %v2908 = vadd.s32 %v2907, %v2897
        %v2909 = vadd.s32 %v2908, %v2899
        %v2910 = vmul.u32 %v2865, %v2856
        %v2911 = vadd.s32 %v2887, %v2906
        %vm2912 = vc.u32 %v2887, %v2906
        %v2913 = vadd.s32 %v2909, 1
        %v2914 = vsel %vm2912, %v2913, %v2909
        %v2915 = vadd.s32 %v2910, %v2914
        %v2916 = vadd.s32 %v2915, 536870912
        %v2917 = vshrl.u32 %v2916, 30
        %v2918 = vshll.u32 %v2917, 30
        %v2919 = vsub.s32 %v2915, %v2918
        %vm2920 = vcmp.lt.s32.totalorder %v2919, 0
        %v2921 = vsub.s32 0, %v2919
        %v2922 = vsel %vm2920, %v2921, %v2919
        %v2923 = vclz %v2922
        %v2924 = vsub.s32 %v2923, 2
        %vm2925 = vcmp.gt.s32.totalorder 0, %v2924
        %v2926 = vsel %vm2925, 0, %v2924
        %v2927 = vsub.s32 32, %v2926
        %v2928 = vshll.u32 %v2919, %v2926
        %v2929 = vshrl.u32 %v2911, %v2927
        %v2930 = vor.u32 %v2928, %v2929
        %v2931 = vsub.s32 4294967266, %v2926
        %v2932 = vadd.s32 %v2931, 127
        %v2933 = vshll.u32 %v2932, 23
        %v2934 = vor.u32 4788187, %v2933
        %v2935 = vand.u32 2147483647, %v2934
        %v2937 = vcvt.s32.f32 %v2930
        %v2938 = vmul.f32 %v2937, %v2935
        %v2939 = vxor.u32 %v2938, 2147483648
        %v2940 = vsel %vm2819, %v2939, %v2938
        %v2941 = vsub.s32 4, %v2917
        %v2942 = vsel %vm2819, %v2941, %v2917
        %v2943 = vsel %vm2818, %v498, %v2940
        %v2944 = vsel %vm2818, 0, %v2942
        %v2945 = vmul.f32 %v2943, %v2943
        %v2946 = vmul.f32 %v2945, -0.001358992
        %v2947 = vadd.f32 %v2946, 0.041655596
        %v2948 = vmul.f32 %v2945, %v2947
        %v2949 = vadd.f32 %v2948, -0.4999988
        %v2950 = vmul.f32 %v2945, %v2949
        %v2951 = vadd.f32 1.0, %v2950
        %v2952 = vmul.f32 %v2943, %v2943
        %v2953 = vmul.f32 %v2952, -0.00019511016
        %v2954 = vadd.f32 %v2953, 0.008332121
        %v2955 = vmul.f32 %v2952, %v2954
        %v2956 = vadd.f32 %v2955, -0.16666654
        %v2957 = vmul.f32 %v2952, %v2956
        %v2958 = vadd.f32 %v2957, 1.0
        %v2959 = vmul.f32 %v2958, %v2943
        %vm2960 = vweird.f32 %v498
        %v2961 = vadd.s32 %v2944, 3
        %v2962 = vand.u32 %v2961, 3
        %vm2963 = vcmp.lt.s32.totalorder %v2962, 2
        %vm2964 = vcmp.eq.s32.totalorder %v2962, 0
        %v2965 = vxor.u32 %v2959, 2147483648
        %v2966 = vsel %vm2964, %v2951, %v2965
        %vm2967 = vcmp.eq.s32.totalorder %v2962, 2
        %v2968 = vxor.u32 %v2951, 2147483648
        %v2969 = vsel %vm2967, %v2968, %v2959
        %v2970 = vsel %vm2963, %v2966, %v2969
        %v2971 = vsel %vm2960, nan, %v2970
        %v2972 = vand.u32 2147483647, %v501
        %vm2973 = vcmp.le.f32.partialorder %v2972, 0.7853982
        %vm2974 = vcmp.lt.s32.totalorder %v501, 0
        %v2975 = vand.u32 %v501, 2139095040
        %v2976 = vshrl.u32 %v2975, 23
        %v2977 = vsub.s32 %v2976, 127
        %v2978 = vand.u32 2147483647, %v501
        %v2979 = vand.u32 %v2978, 8388607
        %v2980 = vor.u32 %v2979, 8388608
        %v2981 = vsub.s32 0, %v2980
        %v2982 = vadd.s32 %v2977, 1
        %vm2983 = vcmp.gt.s32.totalorder %v2982, 0
        %v2984 = vsel %vm2983, %v2982, 0
        %v2985 = vshrl.u32 %v2984, 5
        %v2986 = vand.u32 %v2984, 31
        %v2987 = vsub.s32 32, %v2986
        %v2988 = vshrl.u32 683565275, %v2987
        %v2989 = vshll.u32 683565275, %v2986
        %v2990 = vshrl.u32 2475754826, %v2987
        %v2991 = vor.u32 %v2989, %v2990
        %v2992 = vshll.u32 2475754826, %v2986
        %v2993 = vshrl.u32 2131351028, %v2987
        %v2994 = vor.u32 %v2992, %v2993
        %v2995 = vshll.u32 2131351028, %v2986
        %v2996 = vshrl.u32 2102212464, %v2987
        %v2997 = vor.u32 %v2995, %v2996
        %v2998 = vshll.u32 2102212464, %v2986
        %v2999 = vshrl.u32 920167782, %v2987
        %v3000 = vor.u32 %v2998, %v2999
        %v3001 = vshll.u32 920167782, %v2986
        %v3002 = vshrl.u32 1326507024, %v2987
        %v3003 = vor.u32 %v3001, %v3002
        %vm3004 = vcmp.lt.s32.totalorder %v2985, 1
        %vm3005 = vcmp.lt.s32.totalorder %v2985, 2
        %vm3006 = vcmp.lt.s32.totalorder %v2985, 3
        %vm3007 = vcmp.lt.s32.totalorder %v2985, 4
        %v3008 = vsel %vm3004, %v2988, %v2991
        %v3009 = vsel %vm3007, %v2997, 2102212464
        %v3010 = vsel %vm3006, %v2994, %v3009
        %v3011 = vsel %vm3005, %v3008, %v3010
        %v3012 = vsel %vm3004, %v2991, %v2994
        %v3013 = vsel %vm3007, %v3000, 920167782
        %v3014 = vsel %vm3006, %v2997, %v3013
        %v3015 = vsel %vm3005, %v3012, %v3014
        %v3016 = vsel %vm3004, %v2994, %v2997
        %v3017 = vsel %vm3007, %v3003, 1326507024
        %v3018 = vsel %vm3006, %v3000, %v3017
        %v3019 = vsel %vm3005, %v3016, %v3018
        %v3020 = vshll.u32 %v2980, 8
        %v3021 = vand.u32 %v3020, 65535
        %v3022 = vshrl.u32 %v3020, 16
        %v3023 = vand.u32 %v3019, 65535
        %v3024 = vshrl.u32 %v3019, 16
        %v3025 = vmul.u32 %v3021, %v3023
        %v3026 = vmul.u32 %v3021, %v3024
        %v3027 = vmul.u32 %v3022, %v3023
        %v3028 = vmul.u32 %v3022, %v3024
        %v3029 = vshll.u32 %v3026, 16
        %v3030 = vshrl.u32 %v3026, 16
        %v3031 = vshll.u32 %v3027, 16
        %v3032 = vshrl.u32 %v3027, 16
        %vm3033 = vc.u32 %v3025, %v3029
        %v3034 = vsel %vm3033, 1, 0
        %v3035 = vadd.s32 %v3025, %v3029
        %v3036 = vadd.s32 %v3028, %v3034
        %vm3037 = vc.u32 %v3035, %v3031
        %v3038 = vsel %vm3037, 1, 0
        %v3039 = vadd.s32 %v3035, %v3031
        %v3040 = vadd.s32 %v3036, %v3038
        %v3041 = vadd.s32 %v3040, %v3030
        %v3042 = vadd.s32 %v3041, %v3032
        %v3043 = vand.u32 %v3020, 65535
        %v3044 = vshrl.u32 %v3020, 16
        %v3045 = vand.u32 %v3015, 65535
        %v3046 = vshrl.u32 %v3015, 16
        %v3047 = vmul.u32 %v3043, %v3045
        %v3048 = vmul.u32 %v3043, %v3046
        %v3049 = vmul.u32 %v3044, %v3045
        %v3050 = vmul.u32 %v3044, %v3046
        %v3051 = vshll.u32 %v3048, 16
        %v3052 = vshrl.u32 %v3048, 16
        %v3053 = vshll.u32 %v3049, 16
        %v3054 = vshrl.u32 %v3049, 16
        %vm3055 = vc.u32 %v3047, %v3051
        %v3056 = vsel %vm3055, 1, 0
        %v3057 = vadd.s32 %v3047, %v3051
        %v3058 = vadd.s32 %v3050, %v3056
        %vm3059 = vc.u32 %v3057, %v3053
        %v3060 = vsel %vm3059, 1, 0
        %v3061 = vadd.s32 %v3057, %v3053
        %v3062 = vadd.s32 %v3058, %v3060
        %v3063 = vadd.s32 %v3062, %v3052
        %v3064 = vadd.s32 %v3063, %v3054
        %v3065 = vmul.u32 %v3020, %v3011
        %v3066 = vadd.s32 %v3042, %v3061
        %vm3067 = vc.u32 %v3042, %v3061
        %v3068 = vadd.s32 %v3064, 1
        %v3069 = vsel %vm3067, %v3068, %v3064
        %v3070 = vadd.s32 %v3065, %v3069
        %v3071 = vadd.s32 %v3070, 536870912
        %v3072 = vshrl.u32 %v3071, 30
        %v3073 = vshll.u32 %v3072, 30
        %v3074 = vsub.s32 %v3070, %v3073
        %vm3075 = vcmp.lt.s32.totalorder %v3074, 0
        %v3076 = vsub.s32 0, %v3074
        %v3077 = vsel %vm3075, %v3076, %v3074
        %v3078 = vclz %v3077
        %v3079 = vsub.s32 %v3078, 2
        %vm3080 = vcmp.gt.s32.totalorder 0, %v3079
        %v3081 = vsel %vm3080, 0, %v3079
        %v3082 = vsub.s32 32, %v3081
        %v3083 = vshll.u32 %v3074, %v3081
        %v3084 = vshrl.u32 %v3066, %v3082
        %v3085 = vor.u32 %v3083, %v3084
        %v3086 = vsub.s32 4294967266, %v3081
        %v3087 = vadd.s32 %v3086, 127
        %v3088 = vshll.u32 %v3087, 23
        %v3089 = vor.u32 4788187, %v3088
        %v3090 = vand.u32 2147483647, %v3089
        %v3092 = vcvt.s32.f32 %v3085
        %v3093 = vmul.f32 %v3092, %v3090
        %v3094 = vxor.u32 %v3093, 2147483648
        %v3095 = vsel %vm2974, %v3094, %v3093
        %v3096 = vsub.s32 4, %v3072
        %v3097 = vsel %vm2974, %v3096, %v3072
        %v3098 = vsel %vm2973, %v501, %v3095
        %v3099 = vsel %vm2973, 0, %v3097
        %v3100 = vmul.f32 %v3098, %v3098
        %v3101 = vmul.f32 %v3100, -0.001358992
        %v3102 = vadd.f32 %v3101, 0.041655596
        %v3103 = vmul.f32 %v3100, %v3102
        %v3104 = vadd.f32 %v3103, -0.4999988
        %v3105 = vmul.f32 %v3100, %v3104
        %v3106 = vadd.f32 1.0, %v3105
        %v3107 = vmul.f32 %v3098, %v3098
        %v3108 = vmul.f32 %v3107, -0.00019511016
        %v3109 = vadd.f32 %v3108, 0.008332121
        %v3110 = vmul.f32 %v3107, %v3109
        %v3111 = vadd.f32 %v3110, -0.16666654
        %v3112 = vmul.f32 %v3107, %v3111
        %v3113 = vadd.f32 %v3112, 1.0
        %v3114 = vmul.f32 %v3113, %v3098
        %vm3115 = vweird.f32 %v501
        %v3116 = vadd.s32 %v3099, 3
        %v3117 = vand.u32 %v3116, 3
        %vm3118 = vcmp.lt.s32.totalorder %v3117, 2
        %vm3119 = vcmp.eq.s32.totalorder %v3117, 0
        %v3120 = vxor.u32 %v3114, 2147483648
        %v3121 = vsel %vm3119, %v3106, %v3120
        %vm3122 = vcmp.eq.s32.totalorder %v3117, 2
        %v3123 = vxor.u32 %v3106, 2147483648
        %v3124 = vsel %vm3122, %v3123, %v3114
        %v3125 = vsel %vm3118, %v3121, %v3124
        %v3126 = vsel %vm3115, nan, %v3125
        %v3127 = vand.u32 2147483647, %v504
        %vm3128 = vcmp.le.f32.partialorder %v3127, 0.7853982
        %vm3129 = vcmp.lt.s32.totalorder %v504, 0
        %v3130 = vand.u32 %v504, 2139095040
        %v3131 = vshrl.u32 %v3130, 23
        %v3132 = vsub.s32 %v3131, 127
        %v3133 = vand.u32 2147483647, %v504
        %v3134 = vand.u32 %v3133, 8388607
        %v3135 = vor.u32 %v3134, 8388608
        %v3136 = vsub.s32 0, %v3135
        %v3137 = vadd.s32 %v3132, 1
        %vm3138 = vcmp.gt.s32.totalorder %v3137, 0
        %v3139 = vsel %vm3138, %v3137, 0
        %v3140 = vshrl.u32 %v3139, 5
        %v3141 = vand.u32 %v3139, 31
        %v3142 = vsub.s32 32, %v3141
        %v3143 = vshrl.u32 683565275, %v3142
        %v3144 = vshll.u32 683565275, %v3141
        %v3145 = vshrl.u32 2475754826, %v3142
        %v3146 = vor.u32 %v3144, %v3145
        %v3147 = vshll.u32 2475754826, %v3141
        %v3148 = vshrl.u32 2131351028, %v3142
        %v3149 = vor.u32 %v3147, %v3148
        %v3150 = vshll.u32 2131351028, %v3141
        %v3151 = vshrl.u32 2102212464, %v3142
        %v3152 = vor.u32 %v3150, %v3151
        %v3153 = vshll.u32 2102212464, %v3141
        %v3154 = vshrl.u32 920167782, %v3142
        %v3155 = vor.u32 %v3153, %v3154
        %v3156 = vshll.u32 920167782, %v3141
        %v3157 = vshrl.u32 1326507024, %v3142
        %v3158 = vor.u32 %v3156, %v3157
        %vm3159 = vcmp.lt.s32.totalorder %v3140, 1
        %vm3160 = vcmp.lt.s32.totalorder %v3140, 2
        %vm3161 = vcmp.lt.s32.totalorder %v3140, 3
        %vm3162 = vcmp.lt.s32.totalorder %v3140, 4
        %v3163 = vsel %vm3159, %v3143, %v3146
        %v3164 = vsel %vm3162, %v3152, 2102212464
        %v3165 = vsel %vm3161, %v3149, %v3164
        %v3166 = vsel %vm3160, %v3163, %v3165
        %v3167 = vsel %vm3159, %v3146, %v3149
        %v3168 = vsel %vm3162, %v3155, 920167782
        %v3169 = vsel %vm3161, %v3152, %v3168
        %v3170 = vsel %vm3160, %v3167, %v3169
        %v3171 = vsel %vm3159, %v3149, %v3152
        %v3172 = vsel %vm3162, %v3158, 1326507024
        %v3173 = vsel %vm3161, %v3155, %v3172
        %v3174 = vsel %vm3160, %v3171, %v3173
        %v3175 = vshll.u32 %v3135, 8
        %v3176 = vand.u32 %v3175, 65535
        %v3177 = vshrl.u32 %v3175, 16
        %v3178 = vand.u32 %v3174, 65535
        %v3179 = vshrl.u32 %v3174, 16
        %v3180 = vmul.u32 %v3176, %v3178
        %v3181 = vmul.u32 %v3176, %v3179
        %v3182 = vmul.u32 %v3177, %v3178
        %v3183 = vmul.u32 %v3177, %v3179
        %v3184 = vshll.u32 %v3181, 16
        %v3185 = vshrl.u32 %v3181, 16
        %v3186 = vshll.u32 %v3182, 16
        %v3187 = vshrl.u32 %v3182, 16
        %vm3188 = vc.u32 %v3180, %v3184
        %v3189 = vsel %vm3188, 1, 0
        %v3190 = vadd.s32 %v3180, %v3184
        %v3191 = vadd.s32 %v3183, %v3189
        %vm3192 = vc.u32 %v3190, %v3186
        %v3193 = vsel %vm3192, 1, 0
        %v3194 = vadd.s32 %v3190, %v3186
        %v3195 = vadd.s32 %v3191, %v3193
        %v3196 = vadd.s32 %v3195, %v3185
        %v3197 = vadd.s32 %v3196, %v3187
        %v3198 = vand.u32 %v3175, 65535
        %v3199 = vshrl.u32 %v3175, 16
        %v3200 = vand.u32 %v3170, 65535
        %v3201 = vshrl.u32 %v3170, 16
        %v3202 = vmul.u32 %v3198, %v3200
        %v3203 = vmul.u32 %v3198, %v3201
        %v3204 = vmul.u32 %v3199, %v3200
        %v3205 = vmul.u32 %v3199, %v3201
        %v3206 = vshll.u32 %v3203, 16
        %v3207 = vshrl.u32 %v3203, 16
        %v3208 = vshll.u32 %v3204, 16
        %v3209 = vshrl.u32 %v3204, 16
        %vm3210 = vc.u32 %v3202, %v3206
        %v3211 = vsel %vm3210, 1, 0
        %v3212 = vadd.s32 %v3202, %v3206
        %v3213 = vadd.s32 %v3205, %v3211
        %vm3214 = vc.u32 %v3212, %v3208
        %v3215 = vsel %vm3214, 1, 0
        %v3216 = vadd.s32 %v3212, %v3208
        %v3217 = vadd.s32 %v3213, %v3215
        %v3218 = vadd.s32 %v3217, %v3207
        %v3219 = vadd.s32 %v3218, %v3209
        %v3220 = vmul.u32 %v3175, %v3166
        %v3221 = vadd.s32 %v3197, %v3216
        %vm3222 = vc.u32 %v3197, %v3216
        %v3223 = vadd.s32 %v3219, 1
        %v3224 = vsel %vm3222, %v3223, %v3219
        %v3225 = vadd.s32 %v3220, %v3224
        %v3226 = vadd.s32 %v3225, 536870912
        %v3227 = vshrl.u32 %v3226, 30
        %v3228 = vshll.u32 %v3227, 30
        %v3229 = vsub.s32 %v3225, %v3228
        %vm3230 = vcmp.lt.s32.totalorder %v3229, 0
        %v3231 = vsub.s32 0, %v3229
        %v3232 = vsel %vm3230, %v3231, %v3229
        %v3233 = vclz %v3232
        %v3234 = vsub.s32 %v3233, 2
        %vm3235 = vcmp.gt.s32.totalorder 0, %v3234
        %v3236 = vsel %vm3235, 0, %v3234
        %v3237 = vsub.s32 32, %v3236
        %v3238 = vshll.u32 %v3229, %v3236
        %v3239 = vshrl.u32 %v3221, %v3237
        %v3240 = vor.u32 %v3238, %v3239
        %v3241 = vsub.s32 4294967266, %v3236
        %v3242 = vadd.s32 %v3241, 127
        %v3243 = vshll.u32 %v3242, 23
        %v3244 = vor.u32 4788187, %v3243
        %v3245 = vand.u32 2147483647, %v3244
        %v3247 = vcvt.s32.f32 %v3240
        %v3248 = vmul.f32 %v3247, %v3245
        %v3249 = vxor.u32 %v3248, 2147483648
        %v3250 = vsel %vm3129, %v3249, %v3248
        %v3251 = vsub.s32 4, %v3227
        %v3252 = vsel %vm3129, %v3251, %v3227
        %v3253 = vsel %vm3128, %v504, %v3250
        %v3254 = vsel %vm3128, 0, %v3252
        %v3255 = vmul.f32 %v3253, %v3253
        %v3256 = vmul.f32 %v3255, -0.001358992
        %v3257 = vadd.f32 %v3256, 0.041655596
        %v3258 = vmul.f32 %v3255, %v3257
        %v3259 = vadd.f32 %v3258, -0.4999988
        %v3260 = vmul.f32 %v3255, %v3259
        %v3261 = vadd.f32 1.0, %v3260
        %v3262 = vmul.f32 %v3253, %v3253
        %v3263 = vmul.f32 %v3262, -0.00019511016
        %v3264 = vadd.f32 %v3263, 0.008332121
        %v3265 = vmul.f32 %v3262, %v3264
        %v3266 = vadd.f32 %v3265, -0.16666654
        %v3267 = vmul.f32 %v3262, %v3266
        %v3268 = vadd.f32 %v3267, 1.0
        %v3269 = vmul.f32 %v3268, %v3253
        %vm3270 = vweird.f32 %v504
        %v3271 = vadd.s32 %v3254, 3
        %v3272 = vand.u32 %v3271, 3
        %vm3273 = vcmp.lt.s32.totalorder %v3272, 2
        %vm3274 = vcmp.eq.s32.totalorder %v3272, 0
        %v3275 = vxor.u32 %v3269, 2147483648
        %v3276 = vsel %vm3274, %v3261, %v3275
        %vm3277 = vcmp.eq.s32.totalorder %v3272, 2
        %v3278 = vxor.u32 %v3261, 2147483648
        %v3279 = vsel %vm3277, %v3278, %v3269
        %v3280 = vsel %vm3273, %v3276, %v3279
        %v3281 = vsel %vm3270, nan, %v3280
        %v3282 = vand.u32 2147483647, %v507
        %vm3283 = vcmp.le.f32.partialorder %v3282, 0.7853982
        %vm3284 = vcmp.lt.s32.totalorder %v507, 0
        %v3285 = vand.u32 %v507, 2139095040
        %v3286 = vshrl.u32 %v3285, 23
        %v3287 = vsub.s32 %v3286, 127
        %v3288 = vand.u32 2147483647, %v507
        %v3289 = vand.u32 %v3288, 8388607
        %v3290 = vor.u32 %v3289, 8388608
        %v3291 = vsub.s32 0, %v3290
        %v3292 = vadd.s32 %v3287, 1
        %vm3293 = vcmp.gt.s32.totalorder %v3292, 0
        %v3294 = vsel %vm3293, %v3292, 0
        %v3295 = vshrl.u32 %v3294, 5
        %v3296 = vand.u32 %v3294, 31
        %v3297 = vsub.s32 32, %v3296
        %v3298 = vshrl.u32 683565275, %v3297
        %v3299 = vshll.u32 683565275, %v3296
        %v3300 = vshrl.u32 2475754826, %v3297
        %v3301 = vor.u32 %v3299, %v3300
        %v3302 = vshll.u32 2475754826, %v3296
        %v3303 = vshrl.u32 2131351028, %v3297
        %v3304 = vor.u32 %v3302, %v3303
        %v3305 = vshll.u32 2131351028, %v3296
        %v3306 = vshrl.u32 2102212464, %v3297
        %v3307 = vor.u32 %v3305, %v3306
        %v3308 = vshll.u32 2102212464, %v3296
        %v3309 = vshrl.u32 920167782, %v3297
        %v3310 = vor.u32 %v3308, %v3309
        %v3311 = vshll.u32 920167782, %v3296
        %v3312 = vshrl.u32 1326507024, %v3297
        %v3313 = vor.u32 %v3311, %v3312
        %vm3314 = vcmp.lt.s32.totalorder %v3295, 1
        %vm3315 = vcmp.lt.s32.totalorder %v3295, 2
        %vm3316 = vcmp.lt.s32.totalorder %v3295, 3
        %vm3317 = vcmp.lt.s32.totalorder %v3295, 4
        %v3318 = vsel %vm3314, %v3298, %v3301
        %v3319 = vsel %vm3317, %v3307, 2102212464
        %v3320 = vsel %vm3316, %v3304, %v3319
        %v3321 = vsel %vm3315, %v3318, %v3320
        %v3322 = vsel %vm3314, %v3301, %v3304
        %v3323 = vsel %vm3317, %v3310, 920167782
        %v3324 = vsel %vm3316, %v3307, %v3323
        %v3325 = vsel %vm3315, %v3322, %v3324
        %v3326 = vsel %vm3314, %v3304, %v3307
        %v3327 = vsel %vm3317, %v3313, 1326507024
        %v3328 = vsel %vm3316, %v3310, %v3327
        %v3329 = vsel %vm3315, %v3326, %v3328
        %v3330 = vshll.u32 %v3290, 8
        %v3331 = vand.u32 %v3330, 65535
        %v3332 = vshrl.u32 %v3330, 16
        %v3333 = vand.u32 %v3329, 65535
        %v3334 = vshrl.u32 %v3329, 16
        %v3335 = vmul.u32 %v3331, %v3333
        %v3336 = vmul.u32 %v3331, %v3334
        %v3337 = vmul.u32 %v3332, %v3333
        %v3338 = vmul.u32 %v3332, %v3334
        %v3339 = vshll.u32 %v3336, 16
        %v3340 = vshrl.u32 %v3336, 16
        %v3341 = vshll.u32 %v3337, 16
        %v3342 = vshrl.u32 %v3337, 16
        %vm3343 = vc.u32 %v3335, %v3339
        %v3344 = vsel %vm3343, 1, 0
        %v3345 = vadd.s32 %v3335, %v3339
        %v3346 = vadd.s32 %v3338, %v3344
        %vm3347 = vc.u32 %v3345, %v3341
        %v3348 = vsel %vm3347, 1, 0
        %v3349 = vadd.s32 %v3345, %v3341
        %v3350 = vadd.s32 %v3346, %v3348
        %v3351 = vadd.s32 %v3350, %v3340
        %v3352 = vadd.s32 %v3351, %v3342
        %v3353 = vand.u32 %v3330, 65535
        %v3354 = vshrl.u32 %v3330, 16
        %v3355 = vand.u32 %v3325, 65535
        %v3356 = vshrl.u32 %v3325, 16
        %v3357 = vmul.u32 %v3353, %v3355
        %v3358 = vmul.u32 %v3353, %v3356
        %v3359 = vmul.u32 %v3354, %v3355
        %v3360 = vmul.u32 %v3354, %v3356
        %v3361 = vshll.u32 %v3358, 16
        %v3362 = vshrl.u32 %v3358, 16
        %v3363 = vshll.u32 %v3359, 16
        %v3364 = vshrl.u32 %v3359, 16
        %vm3365 = vc.u32 %v3357, %v3361
        %v3366 = vsel %vm3365, 1, 0
        %v3367 = vadd.s32 %v3357, %v3361
        %v3368 = vadd.s32 %v3360, %v3366
        %vm3369 = vc.u32 %v3367, %v3363
        %v3370 = vsel %vm3369, 1, 0
        %v3371 = vadd.s32 %v3367, %v3363
        %v3372 = vadd.s32 %v3368, %v3370
        %v3373 = vadd.s32 %v3372, %v3362
        %v3374 = vadd.s32 %v3373, %v3364
        %v3375 = vmul.u32 %v3330, %v3321
        %v3376 = vadd.s32 %v3352, %v3371
        %vm3377 = vc.u32 %v3352, %v3371
        %v3378 = vadd.s32 %v3374, 1
        %v3379 = vsel %vm3377, %v3378, %v3374
        %v3380 = vadd.s32 %v3375, %v3379
        %v3381 = vadd.s32 %v3380, 536870912
        %v3382 = vshrl.u32 %v3381, 30
        %v3383 = vshll.u32 %v3382, 30
        %v3384 = vsub.s32 %v3380, %v3383
        %vm3385 = vcmp.lt.s32.totalorder %v3384, 0
        %v3386 = vsub.s32 0, %v3384
        %v3387 = vsel %vm3385, %v3386, %v3384
        %v3388 = vclz %v3387
        %v3389 = vsub.s32 %v3388, 2
        %vm3390 = vcmp.gt.s32.totalorder 0, %v3389
        %v3391 = vsel %vm3390, 0, %v3389
        %v3392 = vsub.s32 32, %v3391
        %v3393 = vshll.u32 %v3384, %v3391
        %v3394 = vshrl.u32 %v3376, %v3392
        %v3395 = vor.u32 %v3393, %v3394
        %v3396 = vsub.s32 4294967266, %v3391
        %v3397 = vadd.s32 %v3396, 127
        %v3398 = vshll.u32 %v3397, 23
        %v3399 = vor.u32 4788187, %v3398
        %v3400 = vand.u32 2147483647, %v3399
        %v3402 = vcvt.s32.f32 %v3395
        %v3403 = vmul.f32 %v3402, %v3400
        %v3404 = vxor.u32 %v3403, 2147483648
        %v3405 = vsel %vm3284, %v3404, %v3403
        %v3406 = vsub.s32 4, %v3382
        %v3407 = vsel %vm3284, %v3406, %v3382
        %v3408 = vsel %vm3283, %v507, %v3405
        %v3409 = vsel %vm3283, 0, %v3407
        %v3410 = vmul.f32 %v3408, %v3408
        %v3411 = vmul.f32 %v3410, -0.001358992
        %v3412 = vadd.f32 %v3411, 0.041655596
        %v3413 = vmul.f32 %v3410, %v3412
        %v3414 = vadd.f32 %v3413, -0.4999988
        %v3415 = vmul.f32 %v3410, %v3414
        %v3416 = vadd.f32 1.0, %v3415
        %v3417 = vmul.f32 %v3408, %v3408
        %v3418 = vmul.f32 %v3417, -0.00019511016
        %v3419 = vadd.f32 %v3418, 0.008332121
        %v3420 = vmul.f32 %v3417, %v3419
        %v3421 = vadd.f32 %v3420, -0.16666654
        %v3422 = vmul.f32 %v3417, %v3421
        %v3423 = vadd.f32 %v3422, 1.0
        %v3424 = vmul.f32 %v3423, %v3408
        %vm3425 = vweird.f32 %v507
        %v3426 = vadd.s32 %v3409, 3
        %v3427 = vand.u32 %v3426, 3
        %vm3428 = vcmp.lt.s32.totalorder %v3427, 2
        %vm3429 = vcmp.eq.s32.totalorder %v3427, 0
        %v3430 = vxor.u32 %v3424, 2147483648
        %v3431 = vsel %vm3429, %v3416, %v3430
        %vm3432 = vcmp.eq.s32.totalorder %v3427, 2
        %v3433 = vxor.u32 %v3416, 2147483648
        %v3434 = vsel %vm3432, %v3433, %v3424
        %v3435 = vsel %vm3428, %v3431, %v3434
        %v3436 = vsel %vm3425, nan, %v3435
        %v3437 = vand.u32 2147483647, %v510
        %vm3438 = vcmp.le.f32.partialorder %v3437, 0.7853982
        %vm3439 = vcmp.lt.s32.totalorder %v510, 0
        %v3440 = vand.u32 %v510, 2139095040
        %v3441 = vshrl.u32 %v3440, 23
        %v3442 = vsub.s32 %v3441, 127
        %v3443 = vand.u32 2147483647, %v510
        %v3444 = vand.u32 %v3443, 8388607
        %v3445 = vor.u32 %v3444, 8388608
        %v3446 = vsub.s32 0, %v3445
        %v3447 = vadd.s32 %v3442, 1
        %vm3448 = vcmp.gt.s32.totalorder %v3447, 0
        %v3449 = vsel %vm3448, %v3447, 0
        %v3450 = vshrl.u32 %v3449, 5
        %v3451 = vand.u32 %v3449, 31
        %v3452 = vsub.s32 32, %v3451
        %v3453 = vshrl.u32 683565275, %v3452
        %v3454 = vshll.u32 683565275, %v3451
        %v3455 = vshrl.u32 2475754826, %v3452
        %v3456 = vor.u32 %v3454, %v3455
        %v3457 = vshll.u32 2475754826, %v3451
        %v3458 = vshrl.u32 2131351028, %v3452
        %v3459 = vor.u32 %v3457, %v3458
        %v3460 = vshll.u32 2131351028, %v3451
        %v3461 = vshrl.u32 2102212464, %v3452
        %v3462 = vor.u32 %v3460, %v3461
        %v3463 = vshll.u32 2102212464, %v3451
        %v3464 = vshrl.u32 920167782, %v3452
        %v3465 = vor.u32 %v3463, %v3464
        %v3466 = vshll.u32 920167782, %v3451
        %v3467 = vshrl.u32 1326507024, %v3452
        %v3468 = vor.u32 %v3466, %v3467
        %vm3469 = vcmp.lt.s32.totalorder %v3450, 1
        %vm3470 = vcmp.lt.s32.totalorder %v3450, 2
        %vm3471 = vcmp.lt.s32.totalorder %v3450, 3
        %vm3472 = vcmp.lt.s32.totalorder %v3450, 4
        %v3473 = vsel %vm3469, %v3453, %v3456
        %v3474 = vsel %vm3472, %v3462, 2102212464
        %v3475 = vsel %vm3471, %v3459, %v3474
        %v3476 = vsel %vm3470, %v3473, %v3475
        %v3477 = vsel %vm3469, %v3456, %v3459
        %v3478 = vsel %vm3472, %v3465, 920167782
        %v3479 = vsel %vm3471, %v3462, %v3478
        %v3480 = vsel %vm3470, %v3477, %v3479
        %v3481 = vsel %vm3469, %v3459, %v3462
        %v3482 = vsel %vm3472, %v3468, 1326507024
        %v3483 = vsel %vm3471, %v3465, %v3482
        %v3484 = vsel %vm3470, %v3481, %v3483
        %v3485 = vshll.u32 %v3445, 8
        %v3486 = vand.u32 %v3485, 65535
        %v3487 = vshrl.u32 %v3485, 16
        %v3488 = vand.u32 %v3484, 65535
        %v3489 = vshrl.u32 %v3484, 16
        %v3490 = vmul.u32 %v3486, %v3488
        %v3491 = vmul.u32 %v3486, %v3489
        %v3492 = vmul.u32 %v3487, %v3488
        %v3493 = vmul.u32 %v3487, %v3489
        %v3494 = vshll.u32 %v3491, 16
        %v3495 = vshrl.u32 %v3491, 16
        %v3496 = vshll.u32 %v3492, 16
        %v3497 = vshrl.u32 %v3492, 16
        %vm3498 = vc.u32 %v3490, %v3494
        %v3499 = vsel %vm3498, 1, 0
        %v3500 = vadd.s32 %v3490, %v3494
        %v3501 = vadd.s32 %v3493, %v3499
        %vm3502 = vc.u32 %v3500, %v3496
        %v3503 = vsel %vm3502, 1, 0
        %v3504 = vadd.s32 %v3500, %v3496
        %v3505 = vadd.s32 %v3501, %v3503
        %v3506 = vadd.s32 %v3505, %v3495
        %v3507 = vadd.s32 %v3506, %v3497
        %v3508 = vand.u32 %v3485, 65535
        %v3509 = vshrl.u32 %v3485, 16
        %v3510 = vand.u32 %v3480, 65535
        %v3511 = vshrl.u32 %v3480, 16
        %v3512 = vmul.u32 %v3508, %v3510
        %v3513 = vmul.u32 %v3508, %v3511
        %v3514 = vmul.u32 %v3509, %v3510
        %v3515 = vmul.u32 %v3509, %v3511
        %v3516 = vshll.u32 %v3513, 16
        %v3517 = vshrl.u32 %v3513, 16
        %v3518 = vshll.u32 %v3514, 16
        %v3519 = vshrl.u32 %v3514, 16
        %vm3520 = vc.u32 %v3512, %v3516
        %v3521 = vsel %vm3520, 1, 0
        %v3522 = vadd.s32 %v3512, %v3516
        %v3523 = vadd.s32 %v3515, %v3521
        %vm3524 = vc.u32 %v3522, %v3518
        %v3525 = vsel %vm3524, 1, 0
        %v3526 = vadd.s32 %v3522, %v3518
        %v3527 = vadd.s32 %v3523, %v3525
        %v3528 = vadd.s32 %v3527, %v3517
        %v3529 = vadd.s32 %v3528, %v3519
        %v3530 = vmul.u32 %v3485, %v3476
        %v3531 = vadd.s32 %v3507, %v3526
        %vm3532 = vc.u32 %v3507, %v3526
        %v3533 = vadd.s32 %v3529, 1
        %v3534 = vsel %vm3532, %v3533, %v3529
        %v3535 = vadd.s32 %v3530, %v3534
        %v3536 = vadd.s32 %v3535, 536870912
        %v3537 = vshrl.u32 %v3536, 30
        %v3538 = vshll.u32 %v3537, 30
        %v3539 = vsub.s32 %v3535, %v3538
        %vm3540 = vcmp.lt.s32.totalorder %v3539, 0
        %v3541 = vsub.s32 0, %v3539
        %v3542 = vsel %vm3540, %v3541, %v3539
        %v3543 = vclz %v3542
        %v3544 = vsub.s32 %v3543, 2
        %vm3545 = vcmp.gt.s32.totalorder 0, %v3544
        %v3546 = vsel %vm3545, 0, %v3544
        %v3547 = vsub.s32 32, %v3546
        %v3548 = vshll.u32 %v3539, %v3546
        %v3549 = vshrl.u32 %v3531, %v3547
        %v3550 = vor.u32 %v3548, %v3549
        %v3551 = vsub.s32 4294967266, %v3546
        %v3552 = vadd.s32 %v3551, 127
        %v3553 = vshll.u32 %v3552, 23
        %v3554 = vor.u32 4788187, %v3553
        %v3555 = vand.u32 2147483647, %v3554
        %v3557 = vcvt.s32.f32 %v3550
        %v3558 = vmul.f32 %v3557, %v3555
        %v3559 = vxor.u32 %v3558, 2147483648
        %v3560 = vsel %vm3439, %v3559, %v3558
        %v3561 = vsub.s32 4, %v3537
        %v3562 = vsel %vm3439, %v3561, %v3537
        %v3563 = vsel %vm3438, %v510, %v3560
        %v3564 = vsel %vm3438, 0, %v3562
        %v3565 = vmul.f32 %v3563, %v3563
        %v3566 = vmul.f32 %v3565, -0.001358992
        %v3567 = vadd.f32 %v3566, 0.041655596
        %v3568 = vmul.f32 %v3565, %v3567
        %v3569 = vadd.f32 %v3568, -0.4999988
        %v3570 = vmul.f32 %v3565, %v3569
        %v3571 = vadd.f32 1.0, %v3570
        %v3572 = vmul.f32 %v3563, %v3563
        %v3573 = vmul.f32 %v3572, -0.00019511016
        %v3574 = vadd.f32 %v3573, 0.008332121
        %v3575 = vmul.f32 %v3572, %v3574
        %v3576 = vadd.f32 %v3575, -0.16666654
        %v3577 = vmul.f32 %v3572, %v3576
        %v3578 = vadd.f32 %v3577, 1.0
        %v3579 = vmul.f32 %v3578, %v3563
        %vm3580 = vweird.f32 %v510
        %v3581 = vadd.s32 %v3564, 3
        %v3582 = vand.u32 %v3581, 3
        %vm3583 = vcmp.lt.s32.totalorder %v3582, 2
        %vm3584 = vcmp.eq.s32.totalorder %v3582, 0
        %v3585 = vxor.u32 %v3579, 2147483648
        %v3586 = vsel %vm3584, %v3571, %v3585
        %vm3587 = vcmp.eq.s32.totalorder %v3582, 2
        %v3588 = vxor.u32 %v3571, 2147483648
        %v3589 = vsel %vm3587, %v3588, %v3579
        %v3590 = vsel %vm3583, %v3586, %v3589
        %v3591 = vsel %vm3580, nan, %v3590
        %v3592 = vand.u32 2147483647, %v513
        %vm3593 = vcmp.le.f32.partialorder %v3592, 0.7853982
        %vm3594 = vcmp.lt.s32.totalorder %v513, 0
        %v3595 = vand.u32 %v513, 2139095040
        %v3596 = vshrl.u32 %v3595, 23
        %v3597 = vsub.s32 %v3596, 127
        %v3598 = vand.u32 2147483647, %v513
        %v3599 = vand.u32 %v3598, 8388607
        %v3600 = vor.u32 %v3599, 8388608
        %v3601 = vsub.s32 0, %v3600
        %v3602 = vadd.s32 %v3597, 1
        %vm3603 = vcmp.gt.s32.totalorder %v3602, 0
        %v3604 = vsel %vm3603, %v3602, 0
        %v3605 = vshrl.u32 %v3604, 5
        %v3606 = vand.u32 %v3604, 31
        %v3607 = vsub.s32 32, %v3606
        %v3608 = vshrl.u32 683565275, %v3607
        %v3609 = vshll.u32 683565275, %v3606
        %v3610 = vshrl.u32 2475754826, %v3607
        %v3611 = vor.u32 %v3609, %v3610
        %v3612 = vshll.u32 2475754826, %v3606
        %v3613 = vshrl.u32 2131351028, %v3607
        %v3614 = vor.u32 %v3612, %v3613
        %v3615 = vshll.u32 2131351028, %v3606
        %v3616 = vshrl.u32 2102212464, %v3607
        %v3617 = vor.u32 %v3615, %v3616
        %v3618 = vshll.u32 2102212464, %v3606
        %v3619 = vshrl.u32 920167782, %v3607
        %v3620 = vor.u32 %v3618, %v3619
        %v3621 = vshll.u32 920167782, %v3606
        %v3622 = vshrl.u32 1326507024, %v3607
        %v3623 = vor.u32 %v3621, %v3622
        %vm3624 = vcmp.lt.s32.totalorder %v3605, 1
        %vm3625 = vcmp.lt.s32.totalorder %v3605, 2
        %vm3626 = vcmp.lt.s32.totalorder %v3605, 3
        %vm3627 = vcmp.lt.s32.totalorder %v3605, 4
        %v3628 = vsel %vm3624, %v3608, %v3611
        %v3629 = vsel %vm3627, %v3617, 2102212464
        %v3630 = vsel %vm3626, %v3614, %v3629
        %v3631 = vsel %vm3625, %v3628, %v3630
        %v3632 = vsel %vm3624, %v3611, %v3614
        %v3633 = vsel %vm3627, %v3620, 920167782
        %v3634 = vsel %vm3626, %v3617, %v3633
        %v3635 = vsel %vm3625, %v3632, %v3634
        %v3636 = vsel %vm3624, %v3614, %v3617
        %v3637 = vsel %vm3627, %v3623, 1326507024
        %v3638 = vsel %vm3626, %v3620, %v3637
        %v3639 = vsel %vm3625, %v3636, %v3638
        %v3640 = vshll.u32 %v3600, 8
        %v3641 = vand.u32 %v3640, 65535
        %v3642 = vshrl.u32 %v3640, 16
        %v3643 = vand.u32 %v3639, 65535
        %v3644 = vshrl.u32 %v3639, 16
        %v3645 = vmul.u32 %v3641, %v3643
        %v3646 = vmul.u32 %v3641, %v3644
        %v3647 = vmul.u32 %v3642, %v3643
        %v3648 = vmul.u32 %v3642, %v3644
        %v3649 = vshll.u32 %v3646, 16
        %v3650 = vshrl.u32 %v3646, 16
        %v3651 = vshll.u32 %v3647, 16
        %v3652 = vshrl.u32 %v3647, 16
        %vm3653 = vc.u32 %v3645, %v3649
        %v3654 = vsel %vm3653, 1, 0
        %v3655 = vadd.s32 %v3645, %v3649
        %v3656 = vadd.s32 %v3648, %v3654
        %vm3657 = vc.u32 %v3655, %v3651
        %v3658 = vsel %vm3657, 1, 0
        %v3659 = vadd.s32 %v3655, %v3651
        %v3660 = vadd.s32 %v3656, %v3658
        %v3661 = vadd.s32 %v3660, %v3650
        %v3662 = vadd.s32 %v3661, %v3652
        %v3663 = vand.u32 %v3640, 65535
        %v3664 = vshrl.u32 %v3640, 16
        %v3665 = vand.u32 %v3635, 65535
        %v3666 = vshrl.u32 %v3635, 16
        %v3667 = vmul.u32 %v3663, %v3665
        %v3668 = vmul.u32 %v3663, %v3666
        %v3669 = vmul.u32 %v3664, %v3665
        %v3670 = vmul.u32 %v3664, %v3666
        %v3671 = vshll.u32 %v3668, 16
        %v3672 = vshrl.u32 %v3668, 16
        %v3673 = vshll.u32 %v3669, 16
        %v3674 = vshrl.u32 %v3669, 16
        %vm3675 = vc.u32 %v3667, %v3671
        %v3676 = vsel %vm3675, 1, 0
        %v3677 = vadd.s32 %v3667, %v3671
        %v3678 = vadd.s32 %v3670, %v3676
        %vm3679 = vc.u32 %v3677, %v3673
        %v3680 = vsel %vm3679, 1, 0
        %v3681 = vadd.s32 %v3677, %v3673
        %v3682 = vadd.s32 %v3678, %v3680
        %v3683 = vadd.s32 %v3682, %v3672
        %v3684 = vadd.s32 %v3683, %v3674
        %v3685 = vmul.u32 %v3640, %v3631
        %v3686 = vadd.s32 %v3662, %v3681
        %vm3687 = vc.u32 %v3662, %v3681
        %v3688 = vadd.s32 %v3684, 1
        %v3689 = vsel %vm3687, %v3688, %v3684
        %v3690 = vadd.s32 %v3685, %v3689
        %v3691 = vadd.s32 %v3690, 536870912
        %v3692 = vshrl.u32 %v3691, 30
        %v3693 = vshll.u32 %v3692, 30
        %v3694 = vsub.s32 %v3690, %v3693
        %vm3695 = vcmp.lt.s32.totalorder %v3694, 0
        %v3696 = vsub.s32 0, %v3694
        %v3697 = vsel %vm3695, %v3696, %v3694
        %v3698 = vclz %v3697
        %v3699 = vsub.s32 %v3698, 2
        %vm3700 = vcmp.gt.s32.totalorder 0, %v3699
        %v3701 = vsel %vm3700, 0, %v3699
        %v3702 = vsub.s32 32, %v3701
        %v3703 = vshll.u32 %v3694, %v3701
        %v3704 = vshrl.u32 %v3686, %v3702
        %v3705 = vor.u32 %v3703, %v3704
        %v3706 = vsub.s32 4294967266, %v3701
        %v3707 = vadd.s32 %v3706, 127
        %v3708 = vshll.u32 %v3707, 23
        %v3709 = vor.u32 4788187, %v3708
        %v3710 = vand.u32 2147483647, %v3709
        %v3712 = vcvt.s32.f32 %v3705
        %v3713 = vmul.f32 %v3712, %v3710
        %v3714 = vxor.u32 %v3713, 2147483648
        %v3715 = vsel %vm3594, %v3714, %v3713
        %v3716 = vsub.s32 4, %v3692
        %v3717 = vsel %vm3594, %v3716, %v3692
        %v3718 = vsel %vm3593, %v513, %v3715
        %v3719 = vsel %vm3593, 0, %v3717
        %v3720 = vmul.f32 %v3718, %v3718
        %v3721 = vmul.f32 %v3720, -0.001358992
        %v3722 = vadd.f32 %v3721, 0.041655596
        %v3723 = vmul.f32 %v3720, %v3722
        %v3724 = vadd.f32 %v3723, -0.4999988
        %v3725 = vmul.f32 %v3720, %v3724
        %v3726 = vadd.f32 1.0, %v3725
        %v3727 = vmul.f32 %v3718, %v3718
        %v3728 = vmul.f32 %v3727, -0.00019511016
        %v3729 = vadd.f32 %v3728, 0.008332121
        %v3730 = vmul.f32 %v3727, %v3729
        %v3731 = vadd.f32 %v3730, -0.16666654
        %v3732 = vmul.f32 %v3727, %v3731
        %v3733 = vadd.f32 %v3732, 1.0
        %v3734 = vmul.f32 %v3733, %v3718
        %vm3735 = vweird.f32 %v513
        %v3736 = vadd.s32 %v3719, 3
        %v3737 = vand.u32 %v3736, 3
        %vm3738 = vcmp.lt.s32.totalorder %v3737, 2
        %vm3739 = vcmp.eq.s32.totalorder %v3737, 0
        %v3740 = vxor.u32 %v3734, 2147483648
        %v3741 = vsel %vm3739, %v3726, %v3740
        %vm3742 = vcmp.eq.s32.totalorder %v3737, 2
        %v3743 = vxor.u32 %v3726, 2147483648
        %v3744 = vsel %vm3742, %v3743, %v3734
        %v3745 = vsel %vm3738, %v3741, %v3744
        %v3746 = vsel %vm3735, nan, %v3745
        %v3747 = vand.u32 2147483647, %v516
        %vm3748 = vcmp.le.f32.partialorder %v3747, 0.7853982
        %vm3749 = vcmp.lt.s32.totalorder %v516, 0
        %v3750 = vand.u32 %v516, 2139095040
        %v3751 = vshrl.u32 %v3750, 23
        %v3752 = vsub.s32 %v3751, 127
        %v3753 = vand.u32 2147483647, %v516
        %v3754 = vand.u32 %v3753, 8388607
        %v3755 = vor.u32 %v3754, 8388608
        %v3756 = vsub.s32 0, %v3755
        %v3757 = vadd.s32 %v3752, 1
        %vm3758 = vcmp.gt.s32.totalorder %v3757, 0
        %v3759 = vsel %vm3758, %v3757, 0
        %v3760 = vshrl.u32 %v3759, 5
        %v3761 = vand.u32 %v3759, 31
        %v3762 = vsub.s32 32, %v3761
        %v3763 = vshrl.u32 683565275, %v3762
        %v3764 = vshll.u32 683565275, %v3761
        %v3765 = vshrl.u32 2475754826, %v3762
        %v3766 = vor.u32 %v3764, %v3765
        %v3767 = vshll.u32 2475754826, %v3761
        %v3768 = vshrl.u32 2131351028, %v3762
        %v3769 = vor.u32 %v3767, %v3768
        %v3770 = vshll.u32 2131351028, %v3761
        %v3771 = vshrl.u32 2102212464, %v3762
        %v3772 = vor.u32 %v3770, %v3771
        %v3773 = vshll.u32 2102212464, %v3761
        %v3774 = vshrl.u32 920167782, %v3762
        %v3775 = vor.u32 %v3773, %v3774
        %v3776 = vshll.u32 920167782, %v3761
        %v3777 = vshrl.u32 1326507024, %v3762
        %v3778 = vor.u32 %v3776, %v3777
        %vm3779 = vcmp.lt.s32.totalorder %v3760, 1
        %vm3780 = vcmp.lt.s32.totalorder %v3760, 2
        %vm3781 = vcmp.lt.s32.totalorder %v3760, 3
        %vm3782 = vcmp.lt.s32.totalorder %v3760, 4
        %v3783 = vsel %vm3779, %v3763, %v3766
        %v3784 = vsel %vm3782, %v3772, 2102212464
        %v3785 = vsel %vm3781, %v3769, %v3784
        %v3786 = vsel %vm3780, %v3783, %v3785
        %v3787 = vsel %vm3779, %v3766, %v3769
        %v3788 = vsel %vm3782, %v3775, 920167782
        %v3789 = vsel %vm3781, %v3772, %v3788
        %v3790 = vsel %vm3780, %v3787, %v3789
        %v3791 = vsel %vm3779, %v3769, %v3772
        %v3792 = vsel %vm3782, %v3778, 1326507024
        %v3793 = vsel %vm3781, %v3775, %v3792
        %v3794 = vsel %vm3780, %v3791, %v3793
        %v3795 = vshll.u32 %v3755, 8
        %v3796 = vand.u32 %v3795, 65535
        %v3797 = vshrl.u32 %v3795, 16
        %v3798 = vand.u32 %v3794, 65535
        %v3799 = vshrl.u32 %v3794, 16
        %v3800 = vmul.u32 %v3796, %v3798
        %v3801 = vmul.u32 %v3796, %v3799
        %v3802 = vmul.u32 %v3797, %v3798
        %v3803 = vmul.u32 %v3797, %v3799
        %v3804 = vshll.u32 %v3801, 16
        %v3805 = vshrl.u32 %v3801, 16
        %v3806 = vshll.u32 %v3802, 16
        %v3807 = vshrl.u32 %v3802, 16
        %vm3808 = vc.u32 %v3800, %v3804
        %v3809 = vsel %vm3808, 1, 0
        %v3810 = vadd.s32 %v3800, %v3804
        %v3811 = vadd.s32 %v3803, %v3809
        %vm3812 = vc.u32 %v3810, %v3806
        %v3813 = vsel %vm3812, 1, 0
        %v3814 = vadd.s32 %v3810, %v3806
        %v3815 = vadd.s32 %v3811, %v3813
        %v3816 = vadd.s32 %v3815, %v3805
        %v3817 = vadd.s32 %v3816, %v3807
        %v3818 = vand.u32 %v3795, 65535
        %v3819 = vshrl.u32 %v3795, 16
        %v3820 = vand.u32 %v3790, 65535
        %v3821 = vshrl.u32 %v3790, 16
        %v3822 = vmul.u32 %v3818, %v3820
        %v3823 = vmul.u32 %v3818, %v3821
        %v3824 = vmul.u32 %v3819, %v3820
        %v3825 = vmul.u32 %v3819, %v3821
        %v3826 = vshll.u32 %v3823, 16
        %v3827 = vshrl.u32 %v3823, 16
        %v3828 = vshll.u32 %v3824, 16
        %v3829 = vshrl.u32 %v3824, 16
        %vm3830 = vc.u32 %v3822, %v3826
        %v3831 = vsel %vm3830, 1, 0
        %v3832 = vadd.s32 %v3822, %v3826
        %v3833 = vadd.s32 %v3825, %v3831
        %vm3834 = vc.u32 %v3832, %v3828
        %v3835 = vsel %vm3834, 1, 0
        %v3836 = vadd.s32 %v3832, %v3828
        %v3837 = vadd.s32 %v3833, %v3835
        %v3838 = vadd.s32 %v3837, %v3827
        %v3839 = vadd.s32 %v3838, %v3829
        %v3840 = vmul.u32 %v3795, %v3786
        %v3841 = vadd.s32 %v3817, %v3836
        %vm3842 = vc.u32 %v3817, %v3836
        %v3843 = vadd.s32 %v3839, 1
        %v3844 = vsel %vm3842, %v3843, %v3839
        %v3845 = vadd.s32 %v3840, %v3844
        %v3846 = vadd.s32 %v3845, 536870912
        %v3847 = vshrl.u32 %v3846, 30
        %v3848 = vshll.u32 %v3847, 30
        %v3849 = vsub.s32 %v3845, %v3848
        %vm3850 = vcmp.lt.s32.totalorder %v3849, 0
        %v3851 = vsub.s32 0, %v3849
        %v3852 = vsel %vm3850, %v3851, %v3849
        %v3853 = vclz %v3852
        %v3854 = vsub.s32 %v3853, 2
        %vm3855 = vcmp.gt.s32.totalorder 0, %v3854
        %v3856 = vsel %vm3855, 0, %v3854
        %v3857 = vsub.s32 32, %v3856
        %v3858 = vshll.u32 %v3849, %v3856
        %v3859 = vshrl.u32 %v3841, %v3857
        %v3860 = vor.u32 %v3858, %v3859
        %v3861 = vsub.s32 4294967266, %v3856
        %v3862 = vadd.s32 %v3861, 127
        %v3863 = vshll.u32 %v3862, 23
        %v3864 = vor.u32 4788187, %v3863
        %v3865 = vand.u32 2147483647, %v3864
        %v3867 = vcvt.s32.f32 %v3860
        %v3868 = vmul.f32 %v3867, %v3865
        %v3869 = vxor.u32 %v3868, 2147483648
        %v3870 = vsel %vm3749, %v3869, %v3868
        %v3871 = vsub.s32 4, %v3847
        %v3872 = vsel %vm3749, %v3871, %v3847
        %v3873 = vsel %vm3748, %v516, %v3870
        %v3874 = vsel %vm3748, 0, %v3872
        %v3875 = vmul.f32 %v3873, %v3873
        %v3876 = vmul.f32 %v3875, -0.001358992
        %v3877 = vadd.f32 %v3876, 0.041655596
        %v3878 = vmul.f32 %v3875, %v3877
        %v3879 = vadd.f32 %v3878, -0.4999988
        %v3880 = vmul.f32 %v3875, %v3879
        %v3881 = vadd.f32 1.0, %v3880
        %v3882 = vmul.f32 %v3873, %v3873
        %v3883 = vmul.f32 %v3882, -0.00019511016
        %v3884 = vadd.f32 %v3883, 0.008332121
        %v3885 = vmul.f32 %v3882, %v3884
        %v3886 = vadd.f32 %v3885, -0.16666654
        %v3887 = vmul.f32 %v3882, %v3886
        %v3888 = vadd.f32 %v3887, 1.0
        %v3889 = vmul.f32 %v3888, %v3873
        %vm3890 = vweird.f32 %v516
        %v3891 = vadd.s32 %v3874, 3
        %v3892 = vand.u32 %v3891, 3
        %vm3893 = vcmp.lt.s32.totalorder %v3892, 2
        %vm3894 = vcmp.eq.s32.totalorder %v3892, 0
        %v3895 = vxor.u32 %v3889, 2147483648
        %v3896 = vsel %vm3894, %v3881, %v3895
        %vm3897 = vcmp.eq.s32.totalorder %v3892, 2
        %v3898 = vxor.u32 %v3881, 2147483648
        %v3899 = vsel %vm3897, %v3898, %v3889
        %v3900 = vsel %vm3893, %v3896, %v3899
        %v3901 = vsel %vm3890, nan, %v3900
        %v3902 = vand.u32 2147483647, %v519
        %vm3903 = vcmp.le.f32.partialorder %v3902, 0.7853982
        %vm3904 = vcmp.lt.s32.totalorder %v519, 0
        %v3905 = vand.u32 %v519, 2139095040
        %v3906 = vshrl.u32 %v3905, 23
        %v3907 = vsub.s32 %v3906, 127
        %v3908 = vand.u32 2147483647, %v519
        %v3909 = vand.u32 %v3908, 8388607
        %v3910 = vor.u32 %v3909, 8388608
        %v3911 = vsub.s32 0, %v3910
        %v3912 = vadd.s32 %v3907, 1
        %vm3913 = vcmp.gt.s32.totalorder %v3912, 0
        %v3914 = vsel %vm3913, %v3912, 0
        %v3915 = vshrl.u32 %v3914, 5
        %v3916 = vand.u32 %v3914, 31
        %v3917 = vsub.s32 32, %v3916
        %v3918 = vshrl.u32 683565275, %v3917
        %v3919 = vshll.u32 683565275, %v3916
        %v3920 = vshrl.u32 2475754826, %v3917
        %v3921 = vor.u32 %v3919, %v3920
        %v3922 = vshll.u32 2475754826, %v3916
        %v3923 = vshrl.u32 2131351028, %v3917
        %v3924 = vor.u32 %v3922, %v3923
        %v3925 = vshll.u32 2131351028, %v3916
        %v3926 = vshrl.u32 2102212464, %v3917
        %v3927 = vor.u32 %v3925, %v3926
        %v3928 = vshll.u32 2102212464, %v3916
        %v3929 = vshrl.u32 920167782, %v3917
        %v3930 = vor.u32 %v3928, %v3929
        %v3931 = vshll.u32 920167782, %v3916
        %v3932 = vshrl.u32 1326507024, %v3917
        %v3933 = vor.u32 %v3931, %v3932
        %vm3934 = vcmp.lt.s32.totalorder %v3915, 1
        %vm3935 = vcmp.lt.s32.totalorder %v3915, 2
        %vm3936 = vcmp.lt.s32.totalorder %v3915, 3
        %vm3937 = vcmp.lt.s32.totalorder %v3915, 4
        %v3938 = vsel %vm3934, %v3918, %v3921
        %v3939 = vsel %vm3937, %v3927, 2102212464
        %v3940 = vsel %vm3936, %v3924, %v3939
        %v3941 = vsel %vm3935, %v3938, %v3940
        %v3942 = vsel %vm3934, %v3921, %v3924
        %v3943 = vsel %vm3937, %v3930, 920167782
        %v3944 = vsel %vm3936, %v3927, %v3943
        %v3945 = vsel %vm3935, %v3942, %v3944
        %v3946 = vsel %vm3934, %v3924, %v3927
        %v3947 = vsel %vm3937, %v3933, 1326507024
        %v3948 = vsel %vm3936, %v3930, %v3947
        %v3949 = vsel %vm3935, %v3946, %v3948
        %v3950 = vshll.u32 %v3910, 8
        %v3951 = vand.u32 %v3950, 65535
        %v3952 = vshrl.u32 %v3950, 16
        %v3953 = vand.u32 %v3949, 65535
        %v3954 = vshrl.u32 %v3949, 16
        %v3955 = vmul.u32 %v3951, %v3953
        %v3956 = vmul.u32 %v3951, %v3954
        %v3957 = vmul.u32 %v3952, %v3953
        %v3958 = vmul.u32 %v3952, %v3954
        %v3959 = vshll.u32 %v3956, 16
        %v3960 = vshrl.u32 %v3956, 16
        %v3961 = vshll.u32 %v3957, 16
        %v3962 = vshrl.u32 %v3957, 16
        %vm3963 = vc.u32 %v3955, %v3959
        %v3964 = vsel %vm3963, 1, 0
        %v3965 = vadd.s32 %v3955, %v3959
        %v3966 = vadd.s32 %v3958, %v3964
        %vm3967 = vc.u32 %v3965, %v3961
        %v3968 = vsel %vm3967, 1, 0
        %v3969 = vadd.s32 %v3965, %v3961
        %v3970 = vadd.s32 %v3966, %v3968
        %v3971 = vadd.s32 %v3970, %v3960
        %v3972 = vadd.s32 %v3971, %v3962
        %v3973 = vand.u32 %v3950, 65535
        %v3974 = vshrl.u32 %v3950, 16
        %v3975 = vand.u32 %v3945, 65535
        %v3976 = vshrl.u32 %v3945, 16
        %v3977 = vmul.u32 %v3973, %v3975
        %v3978 = vmul.u32 %v3973, %v3976
        %v3979 = vmul.u32 %v3974, %v3975
        %v3980 = vmul.u32 %v3974, %v3976
        %v3981 = vshll.u32 %v3978, 16
        %v3982 = vshrl.u32 %v3978, 16
        %v3983 = vshll.u32 %v3979, 16
        %v3984 = vshrl.u32 %v3979, 16
        %vm3985 = vc.u32 %v3977, %v3981
        %v3986 = vsel %vm3985, 1, 0
        %v3987 = vadd.s32 %v3977, %v3981
        %v3988 = vadd.s32 %v3980, %v3986
        %vm3989 = vc.u32 %v3987, %v3983
        %v3990 = vsel %vm3989, 1, 0
        %v3991 = vadd.s32 %v3987, %v3983
        %v3992 = vadd.s32 %v3988, %v3990
        %v3993 = vadd.s32 %v3992, %v3982
        %v3994 = vadd.s32 %v3993, %v3984
        %v3995 = vmul.u32 %v3950, %v3941
        %v3996 = vadd.s32 %v3972, %v3991
        %vm3997 = vc.u32 %v3972, %v3991
        %v3998 = vadd.s32 %v3994, 1
        %v3999 = vsel %vm3997, %v3998, %v3994
        %v4000 = vadd.s32 %v3995, %v3999
        %v4001 = vadd.s32 %v4000, 536870912
        %v4002 = vshrl.u32 %v4001, 30
        %v4003 = vshll.u32 %v4002, 30
        %v4004 = vsub.s32 %v4000, %v4003
        %vm4005 = vcmp.lt.s32.totalorder %v4004, 0
        %v4006 = vsub.s32 0, %v4004
        %v4007 = vsel %vm4005, %v4006, %v4004
        %v4008 = vclz %v4007
        %v4009 = vsub.s32 %v4008, 2
        %vm4010 = vcmp.gt.s32.totalorder 0, %v4009
        %v4011 = vsel %vm4010, 0, %v4009
        %v4012 = vsub.s32 32, %v4011
        %v4013 = vshll.u32 %v4004, %v4011
        %v4014 = vshrl.u32 %v3996, %v4012
        %v4015 = vor.u32 %v4013, %v4014
        %v4016 = vsub.s32 4294967266, %v4011
        %v4017 = vadd.s32 %v4016, 127
        %v4018 = vshll.u32 %v4017, 23
        %v4019 = vor.u32 4788187, %v4018
        %v4020 = vand.u32 2147483647, %v4019
        %v4022 = vcvt.s32.f32 %v4015
        %v4023 = vmul.f32 %v4022, %v4020
        %v4024 = vxor.u32 %v4023, 2147483648
        %v4025 = vsel %vm3904, %v4024, %v4023
        %v4026 = vsub.s32 4, %v4002
        %v4027 = vsel %vm3904, %v4026, %v4002
        %v4028 = vsel %vm3903, %v519, %v4025
        %v4029 = vsel %vm3903, 0, %v4027
        %v4030 = vmul.f32 %v4028, %v4028
        %v4031 = vmul.f32 %v4030, -0.001358992
        %v4032 = vadd.f32 %v4031, 0.041655596
        %v4033 = vmul.f32 %v4030, %v4032
        %v4034 = vadd.f32 %v4033, -0.4999988
        %v4035 = vmul.f32 %v4030, %v4034
        %v4036 = vadd.f32 1.0, %v4035
        %v4037 = vmul.f32 %v4028, %v4028
        %v4038 = vmul.f32 %v4037, -0.00019511016
        %v4039 = vadd.f32 %v4038, 0.008332121
        %v4040 = vmul.f32 %v4037, %v4039
        %v4041 = vadd.f32 %v4040, -0.16666654
        %v4042 = vmul.f32 %v4037, %v4041
        %v4043 = vadd.f32 %v4042, 1.0
        %v4044 = vmul.f32 %v4043, %v4028
        %vm4045 = vweird.f32 %v519
        %v4046 = vadd.s32 %v4029, 3
        %v4047 = vand.u32 %v4046, 3
        %vm4048 = vcmp.lt.s32.totalorder %v4047, 2
        %vm4049 = vcmp.eq.s32.totalorder %v4047, 0
        %v4050 = vxor.u32 %v4044, 2147483648
        %v4051 = vsel %vm4049, %v4036, %v4050
        %vm4052 = vcmp.eq.s32.totalorder %v4047, 2
        %v4053 = vxor.u32 %v4036, 2147483648
        %v4054 = vsel %vm4052, %v4053, %v4044
        %v4055 = vsel %vm4048, %v4051, %v4054
        %v4056 = vsel %vm4045, nan, %v4055
        %v4057 = vand.u32 2147483647, %v522
        %vm4058 = vcmp.le.f32.partialorder %v4057, 0.7853982
        %vm4059 = vcmp.lt.s32.totalorder %v522, 0
        %v4060 = vand.u32 %v522, 2139095040
        %v4061 = vshrl.u32 %v4060, 23
        %v4062 = vsub.s32 %v4061, 127
        %v4063 = vand.u32 2147483647, %v522
        %v4064 = vand.u32 %v4063, 8388607
        %v4065 = vor.u32 %v4064, 8388608
        %v4066 = vsub.s32 0, %v4065
        %v4067 = vadd.s32 %v4062, 1
        %vm4068 = vcmp.gt.s32.totalorder %v4067, 0
        %v4069 = vsel %vm4068, %v4067, 0
        %v4070 = vshrl.u32 %v4069, 5
        %v4071 = vand.u32 %v4069, 31
        %v4072 = vsub.s32 32, %v4071
        %v4073 = vshrl.u32 683565275, %v4072
        %v4074 = vshll.u32 683565275, %v4071
        %v4075 = vshrl.u32 2475754826, %v4072
        %v4076 = vor.u32 %v4074, %v4075
        %v4077 = vshll.u32 2475754826, %v4071
        %v4078 = vshrl.u32 2131351028, %v4072
        %v4079 = vor.u32 %v4077, %v4078
        %v4080 = vshll.u32 2131351028, %v4071
        %v4081 = vshrl.u32 2102212464, %v4072
        %v4082 = vor.u32 %v4080, %v4081
        %v4083 = vshll.u32 2102212464, %v4071
        %v4084 = vshrl.u32 920167782, %v4072
        %v4085 = vor.u32 %v4083, %v4084
        %v4086 = vshll.u32 920167782, %v4071
        %v4087 = vshrl.u32 1326507024, %v4072
        %v4088 = vor.u32 %v4086, %v4087
        %vm4089 = vcmp.lt.s32.totalorder %v4070, 1
        %vm4090 = vcmp.lt.s32.totalorder %v4070, 2
        %vm4091 = vcmp.lt.s32.totalorder %v4070, 3
        %vm4092 = vcmp.lt.s32.totalorder %v4070, 4
        %v4093 = vsel %vm4089, %v4073, %v4076
        %v4094 = vsel %vm4092, %v4082, 2102212464
        %v4095 = vsel %vm4091, %v4079, %v4094
        %v4096 = vsel %vm4090, %v4093, %v4095
        %v4097 = vsel %vm4089, %v4076, %v4079
        %v4098 = vsel %vm4092, %v4085, 920167782
        %v4099 = vsel %vm4091, %v4082, %v4098
        %v4100 = vsel %vm4090, %v4097, %v4099
        %v4101 = vsel %vm4089, %v4079, %v4082
        %v4102 = vsel %vm4092, %v4088, 1326507024
        %v4103 = vsel %vm4091, %v4085, %v4102
        %v4104 = vsel %vm4090, %v4101, %v4103
        %v4105 = vshll.u32 %v4065, 8
        %v4106 = vand.u32 %v4105, 65535
        %v4107 = vshrl.u32 %v4105, 16
        %v4108 = vand.u32 %v4104, 65535
        %v4109 = vshrl.u32 %v4104, 16
        %v4110 = vmul.u32 %v4106, %v4108
        %v4111 = vmul.u32 %v4106, %v4109
        %v4112 = vmul.u32 %v4107, %v4108
        %v4113 = vmul.u32 %v4107, %v4109
        %v4114 = vshll.u32 %v4111, 16
        %v4115 = vshrl.u32 %v4111, 16
        %v4116 = vshll.u32 %v4112, 16
        %v4117 = vshrl.u32 %v4112, 16
        %vm4118 = vc.u32 %v4110, %v4114
        %v4119 = vsel %vm4118, 1, 0
        %v4120 = vadd.s32 %v4110, %v4114
        %v4121 = vadd.s32 %v4113, %v4119
        %vm4122 = vc.u32 %v4120, %v4116
        %v4123 = vsel %vm4122, 1, 0
        %v4124 = vadd.s32 %v4120, %v4116
        %v4125 = vadd.s32 %v4121, %v4123
        %v4126 = vadd.s32 %v4125, %v4115
        %v4127 = vadd.s32 %v4126, %v4117
        %v4128 = vand.u32 %v4105, 65535
        %v4129 = vshrl.u32 %v4105, 16
        %v4130 = vand.u32 %v4100, 65535
        %v4131 = vshrl.u32 %v4100, 16
        %v4132 = vmul.u32 %v4128, %v4130
        %v4133 = vmul.u32 %v4128, %v4131
        %v4134 = vmul.u32 %v4129, %v4130
        %v4135 = vmul.u32 %v4129, %v4131
        %v4136 = vshll.u32 %v4133, 16
        %v4137 = vshrl.u32 %v4133, 16
        %v4138 = vshll.u32 %v4134, 16
        %v4139 = vshrl.u32 %v4134, 16
        %vm4140 = vc.u32 %v4132, %v4136
        %v4141 = vsel %vm4140, 1, 0
        %v4142 = vadd.s32 %v4132, %v4136
        %v4143 = vadd.s32 %v4135, %v4141
        %vm4144 = vc.u32 %v4142, %v4138
        %v4145 = vsel %vm4144, 1, 0
        %v4146 = vadd.s32 %v4142, %v4138
        %v4147 = vadd.s32 %v4143, %v4145
        %v4148 = vadd.s32 %v4147, %v4137
        %v4149 = vadd.s32 %v4148, %v4139
        %v4150 = vmul.u32 %v4105, %v4096
        %v4151 = vadd.s32 %v4127, %v4146
        %vm4152 = vc.u32 %v4127, %v4146
        %v4153 = vadd.s32 %v4149, 1
        %v4154 = vsel %vm4152, %v4153, %v4149
        %v4155 = vadd.s32 %v4150, %v4154
        %v4156 = vadd.s32 %v4155, 536870912
        %v4157 = vshrl.u32 %v4156, 30
        %v4158 = vshll.u32 %v4157, 30
        %v4159 = vsub.s32 %v4155, %v4158
        %vm4160 = vcmp.lt.s32.totalorder %v4159, 0
        %v4161 = vsub.s32 0, %v4159
        %v4162 = vsel %vm4160, %v4161, %v4159
        %v4163 = vclz %v4162
        %v4164 = vsub.s32 %v4163, 2
        %vm4165 = vcmp.gt.s32.totalorder 0, %v4164
        %v4166 = vsel %vm4165, 0, %v4164
        %v4167 = vsub.s32 32, %v4166
        %v4168 = vshll.u32 %v4159, %v4166
        %v4169 = vshrl.u32 %v4151, %v4167
        %v4170 = vor.u32 %v4168, %v4169
        %v4171 = vsub.s32 4294967266, %v4166
        %v4172 = vadd.s32 %v4171, 127
        %v4173 = vshll.u32 %v4172, 23
        %v4174 = vor.u32 4788187, %v4173
        %v4175 = vand.u32 2147483647, %v4174
        %v4177 = vcvt.s32.f32 %v4170
        %v4178 = vmul.f32 %v4177, %v4175
        %v4179 = vxor.u32 %v4178, 2147483648
        %v4180 = vsel %vm4059, %v4179, %v4178
        %v4181 = vsub.s32 4, %v4157
        %v4182 = vsel %vm4059, %v4181, %v4157
        %v4183 = vsel %vm4058, %v522, %v4180
        %v4184 = vsel %vm4058, 0, %v4182
        %v4185 = vmul.f32 %v4183, %v4183
        %v4186 = vmul.f32 %v4185, -0.001358992
        %v4187 = vadd.f32 %v4186, 0.041655596
        %v4188 = vmul.f32 %v4185, %v4187
        %v4189 = vadd.f32 %v4188, -0.4999988
        %v4190 = vmul.f32 %v4185, %v4189
        %v4191 = vadd.f32 1.0, %v4190
        %v4192 = vmul.f32 %v4183, %v4183
        %v4193 = vmul.f32 %v4192, -0.00019511016
        %v4194 = vadd.f32 %v4193, 0.008332121
        %v4195 = vmul.f32 %v4192, %v4194
        %v4196 = vadd.f32 %v4195, -0.16666654
        %v4197 = vmul.f32 %v4192, %v4196
        %v4198 = vadd.f32 %v4197, 1.0
        %v4199 = vmul.f32 %v4198, %v4183
        %vm4200 = vweird.f32 %v522
        %v4201 = vadd.s32 %v4184, 3
        %v4202 = vand.u32 %v4201, 3
        %vm4203 = vcmp.lt.s32.totalorder %v4202, 2
        %vm4204 = vcmp.eq.s32.totalorder %v4202, 0
        %v4205 = vxor.u32 %v4199, 2147483648
        %v4206 = vsel %vm4204, %v4191, %v4205
        %vm4207 = vcmp.eq.s32.totalorder %v4202, 2
        %v4208 = vxor.u32 %v4191, 2147483648
        %v4209 = vsel %vm4207, %v4208, %v4199
        %v4210 = vsel %vm4203, %v4206, %v4209
        %v4211 = vsel %vm4200, nan, %v4210
        %v4212 = vand.u32 2147483647, %v525
        %vm4213 = vcmp.le.f32.partialorder %v4212, 0.7853982
        %vm4214 = vcmp.lt.s32.totalorder %v525, 0
        %v4215 = vand.u32 %v525, 2139095040
        %v4216 = vshrl.u32 %v4215, 23
        %v4217 = vsub.s32 %v4216, 127
        %v4218 = vand.u32 2147483647, %v525
        %v4219 = vand.u32 %v4218, 8388607
        %v4220 = vor.u32 %v4219, 8388608
        %v4221 = vsub.s32 0, %v4220
        %v4222 = vadd.s32 %v4217, 1
        %vm4223 = vcmp.gt.s32.totalorder %v4222, 0
        %v4224 = vsel %vm4223, %v4222, 0
        %v4225 = vshrl.u32 %v4224, 5
        %v4226 = vand.u32 %v4224, 31
        %v4227 = vsub.s32 32, %v4226
        %v4228 = vshrl.u32 683565275, %v4227
        %v4229 = vshll.u32 683565275, %v4226
        %v4230 = vshrl.u32 2475754826, %v4227
        %v4231 = vor.u32 %v4229, %v4230
        %v4232 = vshll.u32 2475754826, %v4226
        %v4233 = vshrl.u32 2131351028, %v4227
        %v4234 = vor.u32 %v4232, %v4233
        %v4235 = vshll.u32 2131351028, %v4226
        %v4236 = vshrl.u32 2102212464, %v4227
        %v4237 = vor.u32 %v4235, %v4236
        %v4238 = vshll.u32 2102212464, %v4226
        %v4239 = vshrl.u32 920167782, %v4227
        %v4240 = vor.u32 %v4238, %v4239
        %v4241 = vshll.u32 920167782, %v4226
        %v4242 = vshrl.u32 1326507024, %v4227
        %v4243 = vor.u32 %v4241, %v4242
        %vm4244 = vcmp.lt.s32.totalorder %v4225, 1
        %vm4245 = vcmp.lt.s32.totalorder %v4225, 2
        %vm4246 = vcmp.lt.s32.totalorder %v4225, 3
        %vm4247 = vcmp.lt.s32.totalorder %v4225, 4
        %v4248 = vsel %vm4244, %v4228, %v4231
        %v4249 = vsel %vm4247, %v4237, 2102212464
        %v4250 = vsel %vm4246, %v4234, %v4249
        %v4251 = vsel %vm4245, %v4248, %v4250
        %v4252 = vsel %vm4244, %v4231, %v4234
        %v4253 = vsel %vm4247, %v4240, 920167782
        %v4254 = vsel %vm4246, %v4237, %v4253
        %v4255 = vsel %vm4245, %v4252, %v4254
        %v4256 = vsel %vm4244, %v4234, %v4237
        %v4257 = vsel %vm4247, %v4243, 1326507024
        %v4258 = vsel %vm4246, %v4240, %v4257
        %v4259 = vsel %vm4245, %v4256, %v4258
        %v4260 = vshll.u32 %v4220, 8
        %v4261 = vand.u32 %v4260, 65535
        %v4262 = vshrl.u32 %v4260, 16
        %v4263 = vand.u32 %v4259, 65535
        %v4264 = vshrl.u32 %v4259, 16
        %v4265 = vmul.u32 %v4261, %v4263
        %v4266 = vmul.u32 %v4261, %v4264
        %v4267 = vmul.u32 %v4262, %v4263
        %v4268 = vmul.u32 %v4262, %v4264
        %v4269 = vshll.u32 %v4266, 16
        %v4270 = vshrl.u32 %v4266, 16
        %v4271 = vshll.u32 %v4267, 16
        %v4272 = vshrl.u32 %v4267, 16
        %vm4273 = vc.u32 %v4265, %v4269
        %v4274 = vsel %vm4273, 1, 0
        %v4275 = vadd.s32 %v4265, %v4269
        %v4276 = vadd.s32 %v4268, %v4274
        %vm4277 = vc.u32 %v4275, %v4271
        %v4278 = vsel %vm4277, 1, 0
        %v4279 = vadd.s32 %v4275, %v4271
        %v4280 = vadd.s32 %v4276, %v4278
        %v4281 = vadd.s32 %v4280, %v4270
        %v4282 = vadd.s32 %v4281, %v4272
        %v4283 = vand.u32 %v4260, 65535
        %v4284 = vshrl.u32 %v4260, 16
        %v4285 = vand.u32 %v4255, 65535
        %v4286 = vshrl.u32 %v4255, 16
        %v4287 = vmul.u32 %v4283, %v4285
        %v4288 = vmul.u32 %v4283, %v4286
        %v4289 = vmul.u32 %v4284, %v4285
        %v4290 = vmul.u32 %v4284, %v4286
        %v4291 = vshll.u32 %v4288, 16
        %v4292 = vshrl.u32 %v4288, 16
        %v4293 = vshll.u32 %v4289, 16
        %v4294 = vshrl.u32 %v4289, 16
        %vm4295 = vc.u32 %v4287, %v4291
        %v4296 = vsel %vm4295, 1, 0
        %v4297 = vadd.s32 %v4287, %v4291
        %v4298 = vadd.s32 %v4290, %v4296
        %vm4299 = vc.u32 %v4297, %v4293
        %v4300 = vsel %vm4299, 1, 0
        %v4301 = vadd.s32 %v4297, %v4293
        %v4302 = vadd.s32 %v4298, %v4300
        %v4303 = vadd.s32 %v4302, %v4292
        %v4304 = vadd.s32 %v4303, %v4294
        %v4305 = vmul.u32 %v4260, %v4251
        %v4306 = vadd.s32 %v4282, %v4301
        %vm4307 = vc.u32 %v4282, %v4301
        %v4308 = vadd.s32 %v4304, 1
        %v4309 = vsel %vm4307, %v4308, %v4304
        %v4310 = vadd.s32 %v4305, %v4309
        %v4311 = vadd.s32 %v4310, 536870912
        %v4312 = vshrl.u32 %v4311, 30
        %v4313 = vshll.u32 %v4312, 30
        %v4314 = vsub.s32 %v4310, %v4313
        %vm4315 = vcmp.lt.s32.totalorder %v4314, 0
        %v4316 = vsub.s32 0, %v4314
        %v4317 = vsel %vm4315, %v4316, %v4314
        %v4318 = vclz %v4317
        %v4319 = vsub.s32 %v4318, 2
        %vm4320 = vcmp.gt.s32.totalorder 0, %v4319
        %v4321 = vsel %vm4320, 0, %v4319
        %v4322 = vsub.s32 32, %v4321
        %v4323 = vshll.u32 %v4314, %v4321
        %v4324 = vshrl.u32 %v4306, %v4322
        %v4325 = vor.u32 %v4323, %v4324
        %v4326 = vsub.s32 4294967266, %v4321
        %v4327 = vadd.s32 %v4326, 127
        %v4328 = vshll.u32 %v4327, 23
        %v4329 = vor.u32 4788187, %v4328
        %v4330 = vand.u32 2147483647, %v4329
        %v4332 = vcvt.s32.f32 %v4325
        %v4333 = vmul.f32 %v4332, %v4330
        %v4334 = vxor.u32 %v4333, 2147483648
        %v4335 = vsel %vm4214, %v4334, %v4333
        %v4336 = vsub.s32 4, %v4312
        %v4337 = vsel %vm4214, %v4336, %v4312
        %v4338 = vsel %vm4213, %v525, %v4335
        %v4339 = vsel %vm4213, 0, %v4337
        %v4340 = vmul.f32 %v4338, %v4338
        %v4341 = vmul.f32 %v4340, -0.001358992
        %v4342 = vadd.f32 %v4341, 0.041655596
        %v4343 = vmul.f32 %v4340, %v4342
        %v4344 = vadd.f32 %v4343, -0.4999988
        %v4345 = vmul.f32 %v4340, %v4344
        %v4346 = vadd.f32 1.0, %v4345
        %v4347 = vmul.f32 %v4338, %v4338
        %v4348 = vmul.f32 %v4347, -0.00019511016
        %v4349 = vadd.f32 %v4348, 0.008332121
        %v4350 = vmul.f32 %v4347, %v4349
        %v4351 = vadd.f32 %v4350, -0.16666654
        %v4352 = vmul.f32 %v4347, %v4351
        %v4353 = vadd.f32 %v4352, 1.0
        %v4354 = vmul.f32 %v4353, %v4338
        %vm4355 = vweird.f32 %v525
        %v4356 = vadd.s32 %v4339, 3
        %v4357 = vand.u32 %v4356, 3
        %vm4358 = vcmp.lt.s32.totalorder %v4357, 2
        %vm4359 = vcmp.eq.s32.totalorder %v4357, 0
        %v4360 = vxor.u32 %v4354, 2147483648
        %v4361 = vsel %vm4359, %v4346, %v4360
        %vm4362 = vcmp.eq.s32.totalorder %v4357, 2
        %v4363 = vxor.u32 %v4346, 2147483648
        %v4364 = vsel %vm4362, %v4363, %v4354
        %v4365 = vsel %vm4358, %v4361, %v4364
        %v4366 = vsel %vm4355, nan, %v4365
        %v4367 = vand.u32 2147483647, %v528
        %vm4368 = vcmp.le.f32.partialorder %v4367, 0.7853982
        %vm4369 = vcmp.lt.s32.totalorder %v528, 0
        %v4370 = vand.u32 %v528, 2139095040
        %v4371 = vshrl.u32 %v4370, 23
        %v4372 = vsub.s32 %v4371, 127
        %v4373 = vand.u32 2147483647, %v528
        %v4374 = vand.u32 %v4373, 8388607
        %v4375 = vor.u32 %v4374, 8388608
        %v4376 = vsub.s32 0, %v4375
        %v4377 = vadd.s32 %v4372, 1
        %vm4378 = vcmp.gt.s32.totalorder %v4377, 0
        %v4379 = vsel %vm4378, %v4377, 0
        %v4380 = vshrl.u32 %v4379, 5
        %v4381 = vand.u32 %v4379, 31
        %v4382 = vsub.s32 32, %v4381
        %v4383 = vshrl.u32 683565275, %v4382
        %v4384 = vshll.u32 683565275, %v4381
        %v4385 = vshrl.u32 2475754826, %v4382
        %v4386 = vor.u32 %v4384, %v4385
        %v4387 = vshll.u32 2475754826, %v4381
        %v4388 = vshrl.u32 2131351028, %v4382
        %v4389 = vor.u32 %v4387, %v4388
        %v4390 = vshll.u32 2131351028, %v4381
        %v4391 = vshrl.u32 2102212464, %v4382
        %v4392 = vor.u32 %v4390, %v4391
        %v4393 = vshll.u32 2102212464, %v4381
        %v4394 = vshrl.u32 920167782, %v4382
        %v4395 = vor.u32 %v4393, %v4394
        %v4396 = vshll.u32 920167782, %v4381
        %v4397 = vshrl.u32 1326507024, %v4382
        %v4398 = vor.u32 %v4396, %v4397
        %vm4399 = vcmp.lt.s32.totalorder %v4380, 1
        %vm4400 = vcmp.lt.s32.totalorder %v4380, 2
        %vm4401 = vcmp.lt.s32.totalorder %v4380, 3
        %vm4402 = vcmp.lt.s32.totalorder %v4380, 4
        %v4403 = vsel %vm4399, %v4383, %v4386
        %v4404 = vsel %vm4402, %v4392, 2102212464
        %v4405 = vsel %vm4401, %v4389, %v4404
        %v4406 = vsel %vm4400, %v4403, %v4405
        %v4407 = vsel %vm4399, %v4386, %v4389
        %v4408 = vsel %vm4402, %v4395, 920167782
        %v4409 = vsel %vm4401, %v4392, %v4408
        %v4410 = vsel %vm4400, %v4407, %v4409
        %v4411 = vsel %vm4399, %v4389, %v4392
        %v4412 = vsel %vm4402, %v4398, 1326507024
        %v4413 = vsel %vm4401, %v4395, %v4412
        %v4414 = vsel %vm4400, %v4411, %v4413
        %v4415 = vshll.u32 %v4375, 8
        %v4416 = vand.u32 %v4415, 65535
        %v4417 = vshrl.u32 %v4415, 16
        %v4418 = vand.u32 %v4414, 65535
        %v4419 = vshrl.u32 %v4414, 16
        %v4420 = vmul.u32 %v4416, %v4418
        %v4421 = vmul.u32 %v4416, %v4419
        %v4422 = vmul.u32 %v4417, %v4418
        %v4423 = vmul.u32 %v4417, %v4419
        %v4424 = vshll.u32 %v4421, 16
        %v4425 = vshrl.u32 %v4421, 16
        %v4426 = vshll.u32 %v4422, 16
        %v4427 = vshrl.u32 %v4422, 16
        %vm4428 = vc.u32 %v4420, %v4424
        %v4429 = vsel %vm4428, 1, 0
        %v4430 = vadd.s32 %v4420, %v4424
        %v4431 = vadd.s32 %v4423, %v4429
        %vm4432 = vc.u32 %v4430, %v4426
        %v4433 = vsel %vm4432, 1, 0
        %v4434 = vadd.s32 %v4430, %v4426
        %v4435 = vadd.s32 %v4431, %v4433
        %v4436 = vadd.s32 %v4435, %v4425
        %v4437 = vadd.s32 %v4436, %v4427
        %v4438 = vand.u32 %v4415, 65535
        %v4439 = vshrl.u32 %v4415, 16
        %v4440 = vand.u32 %v4410, 65535
        %v4441 = vshrl.u32 %v4410, 16
        %v4442 = vmul.u32 %v4438, %v4440
        %v4443 = vmul.u32 %v4438, %v4441
        %v4444 = vmul.u32 %v4439, %v4440
        %v4445 = vmul.u32 %v4439, %v4441
        %v4446 = vshll.u32 %v4443, 16
        %v4447 = vshrl.u32 %v4443, 16
        %v4448 = vshll.u32 %v4444, 16
        %v4449 = vshrl.u32 %v4444, 16
        %vm4450 = vc.u32 %v4442, %v4446
        %v4451 = vsel %vm4450, 1, 0
        %v4452 = vadd.s32 %v4442, %v4446
        %v4453 = vadd.s32 %v4445, %v4451
        %vm4454 = vc.u32 %v4452, %v4448
        %v4455 = vsel %vm4454, 1, 0
        %v4456 = vadd.s32 %v4452, %v4448
        %v4457 = vadd.s32 %v4453, %v4455
        %v4458 = vadd.s32 %v4457, %v4447
        %v4459 = vadd.s32 %v4458, %v4449
        %v4460 = vmul.u32 %v4415, %v4406
        %v4461 = vadd.s32 %v4437, %v4456
        %vm4462 = vc.u32 %v4437, %v4456
        %v4463 = vadd.s32 %v4459, 1
        %v4464 = vsel %vm4462, %v4463, %v4459
        %v4465 = vadd.s32 %v4460, %v4464
        %v4466 = vadd.s32 %v4465, 536870912
        %v4467 = vshrl.u32 %v4466, 30
        %v4468 = vshll.u32 %v4467, 30
        %v4469 = vsub.s32 %v4465, %v4468
        %vm4470 = vcmp.lt.s32.totalorder %v4469, 0
        %v4471 = vsub.s32 0, %v4469
        %v4472 = vsel %vm4470, %v4471, %v4469
        %v4473 = vclz %v4472
        %v4474 = vsub.s32 %v4473, 2
        %vm4475 = vcmp.gt.s32.totalorder 0, %v4474
        %v4476 = vsel %vm4475, 0, %v4474
        %v4477 = vsub.s32 32, %v4476
        %v4478 = vshll.u32 %v4469, %v4476
        %v4479 = vshrl.u32 %v4461, %v4477
        %v4480 = vor.u32 %v4478, %v4479
        %v4481 = vsub.s32 4294967266, %v4476
        %v4482 = vadd.s32 %v4481, 127
        %v4483 = vshll.u32 %v4482, 23
        %v4484 = vor.u32 4788187, %v4483
        %v4485 = vand.u32 2147483647, %v4484
        %v4487 = vcvt.s32.f32 %v4480
        %v4488 = vmul.f32 %v4487, %v4485
        %v4489 = vxor.u32 %v4488, 2147483648
        %v4490 = vsel %vm4369, %v4489, %v4488
        %v4491 = vsub.s32 4, %v4467
        %v4492 = vsel %vm4369, %v4491, %v4467
        %v4493 = vsel %vm4368, %v528, %v4490
        %v4494 = vsel %vm4368, 0, %v4492
        %v4495 = vmul.f32 %v4493, %v4493
        %v4496 = vmul.f32 %v4495, -0.001358992
        %v4497 = vadd.f32 %v4496, 0.041655596
        %v4498 = vmul.f32 %v4495, %v4497
        %v4499 = vadd.f32 %v4498, -0.4999988
        %v4500 = vmul.f32 %v4495, %v4499
        %v4501 = vadd.f32 1.0, %v4500
        %v4502 = vmul.f32 %v4493, %v4493
        %v4503 = vmul.f32 %v4502, -0.00019511016
        %v4504 = vadd.f32 %v4503, 0.008332121
        %v4505 = vmul.f32 %v4502, %v4504
        %v4506 = vadd.f32 %v4505, -0.16666654
        %v4507 = vmul.f32 %v4502, %v4506
        %v4508 = vadd.f32 %v4507, 1.0
        %v4509 = vmul.f32 %v4508, %v4493
        %vm4510 = vweird.f32 %v528
        %v4511 = vadd.s32 %v4494, 3
        %v4512 = vand.u32 %v4511, 3
        %vm4513 = vcmp.lt.s32.totalorder %v4512, 2
        %vm4514 = vcmp.eq.s32.totalorder %v4512, 0
        %v4515 = vxor.u32 %v4509, 2147483648
        %v4516 = vsel %vm4514, %v4501, %v4515
        %vm4517 = vcmp.eq.s32.totalorder %v4512, 2
        %v4518 = vxor.u32 %v4501, 2147483648
        %v4519 = vsel %vm4517, %v4518, %v4509
        %v4520 = vsel %vm4513, %v4516, %v4519
        %v4521 = vsel %vm4510, nan, %v4520
        %v4522 = vand.u32 2147483647, %v531
        %vm4523 = vcmp.le.f32.partialorder %v4522, 0.7853982
        %vm4524 = vcmp.lt.s32.totalorder %v531, 0
        %v4525 = vand.u32 %v531, 2139095040
        %v4526 = vshrl.u32 %v4525, 23
        %v4527 = vsub.s32 %v4526, 127
        %v4528 = vand.u32 2147483647, %v531
        %v4529 = vand.u32 %v4528, 8388607
        %v4530 = vor.u32 %v4529, 8388608
        %v4531 = vsub.s32 0, %v4530
        %v4532 = vadd.s32 %v4527, 1
        %vm4533 = vcmp.gt.s32.totalorder %v4532, 0
        %v4534 = vsel %vm4533, %v4532, 0
        %v4535 = vshrl.u32 %v4534, 5
        %v4536 = vand.u32 %v4534, 31
        %v4537 = vsub.s32 32, %v4536
        %v4538 = vshrl.u32 683565275, %v4537
        %v4539 = vshll.u32 683565275, %v4536
        %v4540 = vshrl.u32 2475754826, %v4537
        %v4541 = vor.u32 %v4539, %v4540
        %v4542 = vshll.u32 2475754826, %v4536
        %v4543 = vshrl.u32 2131351028, %v4537
        %v4544 = vor.u32 %v4542, %v4543
        %v4545 = vshll.u32 2131351028, %v4536
        %v4546 = vshrl.u32 2102212464, %v4537
        %v4547 = vor.u32 %v4545, %v4546
        %v4548 = vshll.u32 2102212464, %v4536
        %v4549 = vshrl.u32 920167782, %v4537
        %v4550 = vor.u32 %v4548, %v4549
        %v4551 = vshll.u32 920167782, %v4536
        %v4552 = vshrl.u32 1326507024, %v4537
        %v4553 = vor.u32 %v4551, %v4552
        %vm4554 = vcmp.lt.s32.totalorder %v4535, 1
        %vm4555 = vcmp.lt.s32.totalorder %v4535, 2
        %vm4556 = vcmp.lt.s32.totalorder %v4535, 3
        %vm4557 = vcmp.lt.s32.totalorder %v4535, 4
        %v4558 = vsel %vm4554, %v4538, %v4541
        %v4559 = vsel %vm4557, %v4547, 2102212464
        %v4560 = vsel %vm4556, %v4544, %v4559
        %v4561 = vsel %vm4555, %v4558, %v4560
        %v4562 = vsel %vm4554, %v4541, %v4544
        %v4563 = vsel %vm4557, %v4550, 920167782
        %v4564 = vsel %vm4556, %v4547, %v4563
        %v4565 = vsel %vm4555, %v4562, %v4564
        %v4566 = vsel %vm4554, %v4544, %v4547
        %v4567 = vsel %vm4557, %v4553, 1326507024
        %v4568 = vsel %vm4556, %v4550, %v4567
        %v4569 = vsel %vm4555, %v4566, %v4568
        %v4570 = vshll.u32 %v4530, 8
        %v4571 = vand.u32 %v4570, 65535
        %v4572 = vshrl.u32 %v4570, 16
        %v4573 = vand.u32 %v4569, 65535
        %v4574 = vshrl.u32 %v4569, 16
        %v4575 = vmul.u32 %v4571, %v4573
        %v4576 = vmul.u32 %v4571, %v4574
        %v4577 = vmul.u32 %v4572, %v4573
        %v4578 = vmul.u32 %v4572, %v4574
        %v4579 = vshll.u32 %v4576, 16
        %v4580 = vshrl.u32 %v4576, 16
        %v4581 = vshll.u32 %v4577, 16
        %v4582 = vshrl.u32 %v4577, 16
        %vm4583 = vc.u32 %v4575, %v4579
        %v4584 = vsel %vm4583, 1, 0
        %v4585 = vadd.s32 %v4575, %v4579
        %v4586 = vadd.s32 %v4578, %v4584
        %vm4587 = vc.u32 %v4585, %v4581
        %v4588 = vsel %vm4587, 1, 0
        %v4589 = vadd.s32 %v4585, %v4581
        %v4590 = vadd.s32 %v4586, %v4588
        %v4591 = vadd.s32 %v4590, %v4580
        %v4592 = vadd.s32 %v4591, %v4582
        %v4593 = vand.u32 %v4570, 65535
        %v4594 = vshrl.u32 %v4570, 16
        %v4595 = vand.u32 %v4565, 65535
        %v4596 = vshrl.u32 %v4565, 16
        %v4597 = vmul.u32 %v4593, %v4595
        %v4598 = vmul.u32 %v4593, %v4596
        %v4599 = vmul.u32 %v4594, %v4595
        %v4600 = vmul.u32 %v4594, %v4596
        %v4601 = vshll.u32 %v4598, 16
        %v4602 = vshrl.u32 %v4598, 16
        %v4603 = vshll.u32 %v4599, 16
        %v4604 = vshrl.u32 %v4599, 16
        %vm4605 = vc.u32 %v4597, %v4601
        %v4606 = vsel %vm4605, 1, 0
        %v4607 = vadd.s32 %v4597, %v4601
        %v4608 = vadd.s32 %v4600, %v4606
        %vm4609 = vc.u32 %v4607, %v4603
        %v4610 = vsel %vm4609, 1, 0
        %v4611 = vadd.s32 %v4607, %v4603
        %v4612 = vadd.s32 %v4608, %v4610
        %v4613 = vadd.s32 %v4612, %v4602
        %v4614 = vadd.s32 %v4613, %v4604
        %v4615 = vmul.u32 %v4570, %v4561
        %v4616 = vadd.s32 %v4592, %v4611
        %vm4617 = vc.u32 %v4592, %v4611
        %v4618 = vadd.s32 %v4614, 1
        %v4619 = vsel %vm4617, %v4618, %v4614
        %v4620 = vadd.s32 %v4615, %v4619
        %v4621 = vadd.s32 %v4620, 536870912
        %v4622 = vshrl.u32 %v4621, 30
        %v4623 = vshll.u32 %v4622, 30
        %v4624 = vsub.s32 %v4620, %v4623
        %vm4625 = vcmp.lt.s32.totalorder %v4624, 0
        %v4626 = vsub.s32 0, %v4624
        %v4627 = vsel %vm4625, %v4626, %v4624
        %v4628 = vclz %v4627
        %v4629 = vsub.s32 %v4628, 2
        %vm4630 = vcmp.gt.s32.totalorder 0, %v4629
        %v4631 = vsel %vm4630, 0, %v4629
        %v4632 = vsub.s32 32, %v4631
        %v4633 = vshll.u32 %v4624, %v4631
        %v4634 = vshrl.u32 %v4616, %v4632
        %v4635 = vor.u32 %v4633, %v4634
        %v4636 = vsub.s32 4294967266, %v4631
        %v4637 = vadd.s32 %v4636, 127
        %v4638 = vshll.u32 %v4637, 23
        %v4639 = vor.u32 4788187, %v4638
        %v4640 = vand.u32 2147483647, %v4639
        %v4642 = vcvt.s32.f32 %v4635
        %v4643 = vmul.f32 %v4642, %v4640
        %v4644 = vxor.u32 %v4643, 2147483648
        %v4645 = vsel %vm4524, %v4644, %v4643
        %v4646 = vsub.s32 4, %v4622
        %v4647 = vsel %vm4524, %v4646, %v4622
        %v4648 = vsel %vm4523, %v531, %v4645
        %v4649 = vsel %vm4523, 0, %v4647
        %v4650 = vmul.f32 %v4648, %v4648
        %v4651 = vmul.f32 %v4650, -0.001358992
        %v4652 = vadd.f32 %v4651, 0.041655596
        %v4653 = vmul.f32 %v4650, %v4652
        %v4654 = vadd.f32 %v4653, -0.4999988
        %v4655 = vmul.f32 %v4650, %v4654
        %v4656 = vadd.f32 1.0, %v4655
        %v4657 = vmul.f32 %v4648, %v4648
        %v4658 = vmul.f32 %v4657, -0.00019511016
        %v4659 = vadd.f32 %v4658, 0.008332121
        %v4660 = vmul.f32 %v4657, %v4659
        %v4661 = vadd.f32 %v4660, -0.16666654
        %v4662 = vmul.f32 %v4657, %v4661
        %v4663 = vadd.f32 %v4662, 1.0
        %v4664 = vmul.f32 %v4663, %v4648
        %vm4665 = vweird.f32 %v531
        %v4666 = vadd.s32 %v4649, 3
        %v4667 = vand.u32 %v4666, 3
        %vm4668 = vcmp.lt.s32.totalorder %v4667, 2
        %vm4669 = vcmp.eq.s32.totalorder %v4667, 0
        %v4670 = vxor.u32 %v4664, 2147483648
        %v4671 = vsel %vm4669, %v4656, %v4670
        %vm4672 = vcmp.eq.s32.totalorder %v4667, 2
        %v4673 = vxor.u32 %v4656, 2147483648
        %v4674 = vsel %vm4672, %v4673, %v4664
        %v4675 = vsel %vm4668, %v4671, %v4674
        %v4676 = vsel %vm4665, nan, %v4675
        %v4677 = vand.u32 2147483647, %v534
        %vm4678 = vcmp.le.f32.partialorder %v4677, 0.7853982
        %vm4679 = vcmp.lt.s32.totalorder %v534, 0
        %v4680 = vand.u32 %v534, 2139095040
        %v4681 = vshrl.u32 %v4680, 23
        %v4682 = vsub.s32 %v4681, 127
        %v4683 = vand.u32 2147483647, %v534
        %v4684 = vand.u32 %v4683, 8388607
        %v4685 = vor.u32 %v4684, 8388608
        %v4686 = vsub.s32 0, %v4685
        %v4687 = vadd.s32 %v4682, 1
        %vm4688 = vcmp.gt.s32.totalorder %v4687, 0
        %v4689 = vsel %vm4688, %v4687, 0
        %v4690 = vshrl.u32 %v4689, 5
        %v4691 = vand.u32 %v4689, 31
        %v4692 = vsub.s32 32, %v4691
        %v4693 = vshrl.u32 683565275, %v4692
        %v4694 = vshll.u32 683565275, %v4691
        %v4695 = vshrl.u32 2475754826, %v4692
        %v4696 = vor.u32 %v4694, %v4695
        %v4697 = vshll.u32 2475754826, %v4691
        %v4698 = vshrl.u32 2131351028, %v4692
        %v4699 = vor.u32 %v4697, %v4698
        %v4700 = vshll.u32 2131351028, %v4691
        %v4701 = vshrl.u32 2102212464, %v4692
        %v4702 = vor.u32 %v4700, %v4701
        %v4703 = vshll.u32 2102212464, %v4691
        %v4704 = vshrl.u32 920167782, %v4692
        %v4705 = vor.u32 %v4703, %v4704
        %v4706 = vshll.u32 920167782, %v4691
        %v4707 = vshrl.u32 1326507024, %v4692
        %v4708 = vor.u32 %v4706, %v4707
        %vm4709 = vcmp.lt.s32.totalorder %v4690, 1
        %vm4710 = vcmp.lt.s32.totalorder %v4690, 2
        %vm4711 = vcmp.lt.s32.totalorder %v4690, 3
        %vm4712 = vcmp.lt.s32.totalorder %v4690, 4
        %v4713 = vsel %vm4709, %v4693, %v4696
        %v4714 = vsel %vm4712, %v4702, 2102212464
        %v4715 = vsel %vm4711, %v4699, %v4714
        %v4716 = vsel %vm4710, %v4713, %v4715
        %v4717 = vsel %vm4709, %v4696, %v4699
        %v4718 = vsel %vm4712, %v4705, 920167782
        %v4719 = vsel %vm4711, %v4702, %v4718
        %v4720 = vsel %vm4710, %v4717, %v4719
        %v4721 = vsel %vm4709, %v4699, %v4702
        %v4722 = vsel %vm4712, %v4708, 1326507024
        %v4723 = vsel %vm4711, %v4705, %v4722
        %v4724 = vsel %vm4710, %v4721, %v4723
        %v4725 = vshll.u32 %v4685, 8
        %v4726 = vand.u32 %v4725, 65535
        %v4727 = vshrl.u32 %v4725, 16
        %v4728 = vand.u32 %v4724, 65535
        %v4729 = vshrl.u32 %v4724, 16
        %v4730 = vmul.u32 %v4726, %v4728
        %v4731 = vmul.u32 %v4726, %v4729
        %v4732 = vmul.u32 %v4727, %v4728
        %v4733 = vmul.u32 %v4727, %v4729
        %v4734 = vshll.u32 %v4731, 16
        %v4735 = vshrl.u32 %v4731, 16
        %v4736 = vshll.u32 %v4732, 16
        %v4737 = vshrl.u32 %v4732, 16
        %vm4738 = vc.u32 %v4730, %v4734
        %v4739 = vsel %vm4738, 1, 0
        %v4740 = vadd.s32 %v4730, %v4734
        %v4741 = vadd.s32 %v4733, %v4739
        %vm4742 = vc.u32 %v4740, %v4736
        %v4743 = vsel %vm4742, 1, 0
        %v4744 = vadd.s32 %v4740, %v4736
        %v4745 = vadd.s32 %v4741, %v4743
        %v4746 = vadd.s32 %v4745, %v4735
        %v4747 = vadd.s32 %v4746, %v4737
        %v4748 = vand.u32 %v4725, 65535
        %v4749 = vshrl.u32 %v4725, 16
        %v4750 = vand.u32 %v4720, 65535
        %v4751 = vshrl.u32 %v4720, 16
        %v4752 = vmul.u32 %v4748, %v4750
        %v4753 = vmul.u32 %v4748, %v4751
        %v4754 = vmul.u32 %v4749, %v4750
        %v4755 = vmul.u32 %v4749, %v4751
        %v4756 = vshll.u32 %v4753, 16
        %v4757 = vshrl.u32 %v4753, 16
        %v4758 = vshll.u32 %v4754, 16
        %v4759 = vshrl.u32 %v4754, 16
        %vm4760 = vc.u32 %v4752, %v4756
        %v4761 = vsel %vm4760, 1, 0
        %v4762 = vadd.s32 %v4752, %v4756
        %v4763 = vadd.s32 %v4755, %v4761
        %vm4764 = vc.u32 %v4762, %v4758
        %v4765 = vsel %vm4764, 1, 0
        %v4766 = vadd.s32 %v4762, %v4758
        %v4767 = vadd.s32 %v4763, %v4765
        %v4768 = vadd.s32 %v4767, %v4757
        %v4769 = vadd.s32 %v4768, %v4759
        %v4770 = vmul.u32 %v4725, %v4716
        %v4771 = vadd.s32 %v4747, %v4766
        %vm4772 = vc.u32 %v4747, %v4766
        %v4773 = vadd.s32 %v4769, 1
        %v4774 = vsel %vm4772, %v4773, %v4769
        %v4775 = vadd.s32 %v4770, %v4774
        %v4776 = vadd.s32 %v4775, 536870912
        %v4777 = vshrl.u32 %v4776, 30
        %v4778 = vshll.u32 %v4777, 30
        %v4779 = vsub.s32 %v4775, %v4778
        %vm4780 = vcmp.lt.s32.totalorder %v4779, 0
        %v4781 = vsub.s32 0, %v4779
        %v4782 = vsel %vm4780, %v4781, %v4779
        %v4783 = vclz %v4782
        %v4784 = vsub.s32 %v4783, 2
        %vm4785 = vcmp.gt.s32.totalorder 0, %v4784
        %v4786 = vsel %vm4785, 0, %v4784
        %v4787 = vsub.s32 32, %v4786
        %v4788 = vshll.u32 %v4779, %v4786
        %v4789 = vshrl.u32 %v4771, %v4787
        %v4790 = vor.u32 %v4788, %v4789
        %v4791 = vsub.s32 4294967266, %v4786
        %v4792 = vadd.s32 %v4791, 127
        %v4793 = vshll.u32 %v4792, 23
        %v4794 = vor.u32 4788187, %v4793
        %v4795 = vand.u32 2147483647, %v4794
        %v4797 = vcvt.s32.f32 %v4790
        %v4798 = vmul.f32 %v4797, %v4795
        %v4799 = vxor.u32 %v4798, 2147483648
        %v4800 = vsel %vm4679, %v4799, %v4798
        %v4801 = vsub.s32 4, %v4777
        %v4802 = vsel %vm4679, %v4801, %v4777
        %v4803 = vsel %vm4678, %v534, %v4800
        %v4804 = vsel %vm4678, 0, %v4802
        %v4805 = vmul.f32 %v4803, %v4803
        %v4806 = vmul.f32 %v4805, -0.001358992
        %v4807 = vadd.f32 %v4806, 0.041655596
        %v4808 = vmul.f32 %v4805, %v4807
        %v4809 = vadd.f32 %v4808, -0.4999988
        %v4810 = vmul.f32 %v4805, %v4809
        %v4811 = vadd.f32 1.0, %v4810
        %v4812 = vmul.f32 %v4803, %v4803
        %v4813 = vmul.f32 %v4812, -0.00019511016
        %v4814 = vadd.f32 %v4813, 0.008332121
        %v4815 = vmul.f32 %v4812, %v4814
        %v4816 = vadd.f32 %v4815, -0.16666654
        %v4817 = vmul.f32 %v4812, %v4816
        %v4818 = vadd.f32 %v4817, 1.0
        %v4819 = vmul.f32 %v4818, %v4803
        %vm4820 = vweird.f32 %v534
        %v4821 = vadd.s32 %v4804, 3
        %v4822 = vand.u32 %v4821, 3
        %vm4823 = vcmp.lt.s32.totalorder %v4822, 2
        %vm4824 = vcmp.eq.s32.totalorder %v4822, 0
        %v4825 = vxor.u32 %v4819, 2147483648
        %v4826 = vsel %vm4824, %v4811, %v4825
        %vm4827 = vcmp.eq.s32.totalorder %v4822, 2
        %v4828 = vxor.u32 %v4811, 2147483648
        %v4829 = vsel %vm4827, %v4828, %v4819
        %v4830 = vsel %vm4823, %v4826, %v4829
        %v4831 = vsel %vm4820, nan, %v4830
        %v4832 = vand.u32 2147483647, %v537
        %vm4833 = vcmp.le.f32.partialorder %v4832, 0.7853982
        %vm4834 = vcmp.lt.s32.totalorder %v537, 0
        %v4835 = vand.u32 %v537, 2139095040
        %v4836 = vshrl.u32 %v4835, 23
        %v4837 = vsub.s32 %v4836, 127
        %v4838 = vand.u32 2147483647, %v537
        %v4839 = vand.u32 %v4838, 8388607
        %v4840 = vor.u32 %v4839, 8388608
        %v4841 = vsub.s32 0, %v4840
        %v4842 = vadd.s32 %v4837, 1
        %vm4843 = vcmp.gt.s32.totalorder %v4842, 0
        %v4844 = vsel %vm4843, %v4842, 0
        %v4845 = vshrl.u32 %v4844, 5
        %v4846 = vand.u32 %v4844, 31
        %v4847 = vsub.s32 32, %v4846
        %v4848 = vshrl.u32 683565275, %v4847
        %v4849 = vshll.u32 683565275, %v4846
        %v4850 = vshrl.u32 2475754826, %v4847
        %v4851 = vor.u32 %v4849, %v4850
        %v4852 = vshll.u32 2475754826, %v4846
        %v4853 = vshrl.u32 2131351028, %v4847
        %v4854 = vor.u32 %v4852, %v4853
        %v4855 = vshll.u32 2131351028, %v4846
        %v4856 = vshrl.u32 2102212464, %v4847
        %v4857 = vor.u32 %v4855, %v4856
        %v4858 = vshll.u32 2102212464, %v4846
        %v4859 = vshrl.u32 920167782, %v4847
        %v4860 = vor.u32 %v4858, %v4859
        %v4861 = vshll.u32 920167782, %v4846
        %v4862 = vshrl.u32 1326507024, %v4847
        %v4863 = vor.u32 %v4861, %v4862
        %vm4864 = vcmp.lt.s32.totalorder %v4845, 1
        %vm4865 = vcmp.lt.s32.totalorder %v4845, 2
        %vm4866 = vcmp.lt.s32.totalorder %v4845, 3
        %vm4867 = vcmp.lt.s32.totalorder %v4845, 4
        %v4868 = vsel %vm4864, %v4848, %v4851
        %v4869 = vsel %vm4867, %v4857, 2102212464
        %v4870 = vsel %vm4866, %v4854, %v4869
        %v4871 = vsel %vm4865, %v4868, %v4870
        %v4872 = vsel %vm4864, %v4851, %v4854
        %v4873 = vsel %vm4867, %v4860, 920167782
        %v4874 = vsel %vm4866, %v4857, %v4873
        %v4875 = vsel %vm4865, %v4872, %v4874
        %v4876 = vsel %vm4864, %v4854, %v4857
        %v4877 = vsel %vm4867, %v4863, 1326507024
        %v4878 = vsel %vm4866, %v4860, %v4877
        %v4879 = vsel %vm4865, %v4876, %v4878
        %v4880 = vshll.u32 %v4840, 8
        %v4881 = vand.u32 %v4880, 65535
        %v4882 = vshrl.u32 %v4880, 16
        %v4883 = vand.u32 %v4879, 65535
        %v4884 = vshrl.u32 %v4879, 16
        %v4885 = vmul.u32 %v4881, %v4883
        %v4886 = vmul.u32 %v4881, %v4884
        %v4887 = vmul.u32 %v4882, %v4883
        %v4888 = vmul.u32 %v4882, %v4884
        %v4889 = vshll.u32 %v4886, 16
        %v4890 = vshrl.u32 %v4886, 16
        %v4891 = vshll.u32 %v4887, 16
        %v4892 = vshrl.u32 %v4887, 16
        %vm4893 = vc.u32 %v4885, %v4889
        %v4894 = vsel %vm4893, 1, 0
        %v4895 = vadd.s32 %v4885, %v4889
        %v4896 = vadd.s32 %v4888, %v4894
        %vm4897 = vc.u32 %v4895, %v4891
        %v4898 = vsel %vm4897, 1, 0
        %v4899 = vadd.s32 %v4895, %v4891
        %v4900 = vadd.s32 %v4896, %v4898
        %v4901 = vadd.s32 %v4900, %v4890
        %v4902 = vadd.s32 %v4901, %v4892
        %v4903 = vand.u32 %v4880, 65535
        %v4904 = vshrl.u32 %v4880, 16
        %v4905 = vand.u32 %v4875, 65535
        %v4906 = vshrl.u32 %v4875, 16
        %v4907 = vmul.u32 %v4903, %v4905
        %v4908 = vmul.u32 %v4903, %v4906
        %v4909 = vmul.u32 %v4904, %v4905
        %v4910 = vmul.u32 %v4904, %v4906
        %v4911 = vshll.u32 %v4908, 16
        %v4912 = vshrl.u32 %v4908, 16
        %v4913 = vshll.u32 %v4909, 16
        %v4914 = vshrl.u32 %v4909, 16
        %vm4915 = vc.u32 %v4907, %v4911
        %v4916 = vsel %vm4915, 1, 0
        %v4917 = vadd.s32 %v4907, %v4911
        %v4918 = vadd.s32 %v4910, %v4916
        %vm4919 = vc.u32 %v4917, %v4913
        %v4920 = vsel %vm4919, 1, 0
        %v4921 = vadd.s32 %v4917, %v4913
        %v4922 = vadd.s32 %v4918, %v4920
        %v4923 = vadd.s32 %v4922, %v4912
        %v4924 = vadd.s32 %v4923, %v4914
        %v4925 = vmul.u32 %v4880, %v4871
        %v4926 = vadd.s32 %v4902, %v4921
        %vm4927 = vc.u32 %v4902, %v4921
        %v4928 = vadd.s32 %v4924, 1
        %v4929 = vsel %vm4927, %v4928, %v4924
        %v4930 = vadd.s32 %v4925, %v4929
        %v4931 = vadd.s32 %v4930, 536870912
        %v4932 = vshrl.u32 %v4931, 30
        %v4933 = vshll.u32 %v4932, 30
        %v4934 = vsub.s32 %v4930, %v4933
        %vm4935 = vcmp.lt.s32.totalorder %v4934, 0
        %v4936 = vsub.s32 0, %v4934
        %v4937 = vsel %vm4935, %v4936, %v4934
        %v4938 = vclz %v4937
        %v4939 = vsub.s32 %v4938, 2
        %vm4940 = vcmp.gt.s32.totalorder 0, %v4939
        %v4941 = vsel %vm4940, 0, %v4939
        %v4942 = vsub.s32 32, %v4941
        %v4943 = vshll.u32 %v4934, %v4941
        %v4944 = vshrl.u32 %v4926, %v4942
        %v4945 = vor.u32 %v4943, %v4944
        %v4946 = vsub.s32 4294967266, %v4941
        %v4947 = vadd.s32 %v4946, 127
        %v4948 = vshll.u32 %v4947, 23
        %v4949 = vor.u32 4788187, %v4948
        %v4950 = vand.u32 2147483647, %v4949
        %v4952 = vcvt.s32.f32 %v4945
        %v4953 = vmul.f32 %v4952, %v4950
        %v4954 = vxor.u32 %v4953, 2147483648
        %v4955 = vsel %vm4834, %v4954, %v4953
        %v4956 = vsub.s32 4, %v4932
        %v4957 = vsel %vm4834, %v4956, %v4932
        %v4958 = vsel %vm4833, %v537, %v4955
        %v4959 = vsel %vm4833, 0, %v4957
        %v4960 = vmul.f32 %v4958, %v4958
        %v4961 = vmul.f32 %v4960, -0.001358992
        %v4962 = vadd.f32 %v4961, 0.041655596
        %v4963 = vmul.f32 %v4960, %v4962
        %v4964 = vadd.f32 %v4963, -0.4999988
        %v4965 = vmul.f32 %v4960, %v4964
        %v4966 = vadd.f32 1.0, %v4965
        %v4967 = vmul.f32 %v4958, %v4958
        %v4968 = vmul.f32 %v4967, -0.00019511016
        %v4969 = vadd.f32 %v4968, 0.008332121
        %v4970 = vmul.f32 %v4967, %v4969
        %v4971 = vadd.f32 %v4970, -0.16666654
        %v4972 = vmul.f32 %v4967, %v4971
        %v4973 = vadd.f32 %v4972, 1.0
        %v4974 = vmul.f32 %v4973, %v4958
        %vm4975 = vweird.f32 %v537
        %v4976 = vadd.s32 %v4959, 3
        %v4977 = vand.u32 %v4976, 3
        %vm4978 = vcmp.lt.s32.totalorder %v4977, 2
        %vm4979 = vcmp.eq.s32.totalorder %v4977, 0
        %v4980 = vxor.u32 %v4974, 2147483648
        %v4981 = vsel %vm4979, %v4966, %v4980
        %vm4982 = vcmp.eq.s32.totalorder %v4977, 2
        %v4983 = vxor.u32 %v4966, 2147483648
        %v4984 = vsel %vm4982, %v4983, %v4974
        %v4985 = vsel %vm4978, %v4981, %v4984
        %v4986 = vsel %vm4975, nan, %v4985
        %v4987 = vand.u32 2147483647, %v540
        %vm4988 = vcmp.le.f32.partialorder %v4987, 0.7853982
        %vm4989 = vcmp.lt.s32.totalorder %v540, 0
        %v4990 = vand.u32 %v540, 2139095040
        %v4991 = vshrl.u32 %v4990, 23
        %v4992 = vsub.s32 %v4991, 127
        %v4993 = vand.u32 2147483647, %v540
        %v4994 = vand.u32 %v4993, 8388607
        %v4995 = vor.u32 %v4994, 8388608
        %v4996 = vsub.s32 0, %v4995
        %v4997 = vadd.s32 %v4992, 1
        %vm4998 = vcmp.gt.s32.totalorder %v4997, 0
        %v4999 = vsel %vm4998, %v4997, 0
        %v5000 = vshrl.u32 %v4999, 5
        %v5001 = vand.u32 %v4999, 31
        %v5002 = vsub.s32 32, %v5001
        %v5003 = vshrl.u32 683565275, %v5002
        %v5004 = vshll.u32 683565275, %v5001
        %v5005 = vshrl.u32 2475754826, %v5002
        %v5006 = vor.u32 %v5004, %v5005
        %v5007 = vshll.u32 2475754826, %v5001
        %v5008 = vshrl.u32 2131351028, %v5002
        %v5009 = vor.u32 %v5007, %v5008
        %v5010 = vshll.u32 2131351028, %v5001
        %v5011 = vshrl.u32 2102212464, %v5002
        %v5012 = vor.u32 %v5010, %v5011
        %v5013 = vshll.u32 2102212464, %v5001
        %v5014 = vshrl.u32 920167782, %v5002
        %v5015 = vor.u32 %v5013, %v5014
        %v5016 = vshll.u32 920167782, %v5001
        %v5017 = vshrl.u32 1326507024, %v5002
        %v5018 = vor.u32 %v5016, %v5017
        %vm5019 = vcmp.lt.s32.totalorder %v5000, 1
        %vm5020 = vcmp.lt.s32.totalorder %v5000, 2
        %vm5021 = vcmp.lt.s32.totalorder %v5000, 3
        %vm5022 = vcmp.lt.s32.totalorder %v5000, 4
        %v5023 = vsel %vm5019, %v5003, %v5006
        %v5024 = vsel %vm5022, %v5012, 2102212464
        %v5025 = vsel %vm5021, %v5009, %v5024
        %v5026 = vsel %vm5020, %v5023, %v5025
        %v5027 = vsel %vm5019, %v5006, %v5009
        %v5028 = vsel %vm5022, %v5015, 920167782
        %v5029 = vsel %vm5021, %v5012, %v5028
        %v5030 = vsel %vm5020, %v5027, %v5029
        %v5031 = vsel %vm5019, %v5009, %v5012
        %v5032 = vsel %vm5022, %v5018, 1326507024
        %v5033 = vsel %vm5021, %v5015, %v5032
        %v5034 = vsel %vm5020, %v5031, %v5033
        %v5035 = vshll.u32 %v4995, 8
        %v5036 = vand.u32 %v5035, 65535
        %v5037 = vshrl.u32 %v5035, 16
        %v5038 = vand.u32 %v5034, 65535
        %v5039 = vshrl.u32 %v5034, 16
        %v5040 = vmul.u32 %v5036, %v5038
        %v5041 = vmul.u32 %v5036, %v5039
        %v5042 = vmul.u32 %v5037, %v5038
        %v5043 = vmul.u32 %v5037, %v5039
        %v5044 = vshll.u32 %v5041, 16
        %v5045 = vshrl.u32 %v5041, 16
        %v5046 = vshll.u32 %v5042, 16
        %v5047 = vshrl.u32 %v5042, 16
        %vm5048 = vc.u32 %v5040, %v5044
        %v5049 = vsel %vm5048, 1, 0
        %v5050 = vadd.s32 %v5040, %v5044
        %v5051 = vadd.s32 %v5043, %v5049
        %vm5052 = vc.u32 %v5050, %v5046
        %v5053 = vsel %vm5052, 1, 0
        %v5054 = vadd.s32 %v5050, %v5046
        %v5055 = vadd.s32 %v5051, %v5053
        %v5056 = vadd.s32 %v5055, %v5045
        %v5057 = vadd.s32 %v5056, %v5047
        %v5058 = vand.u32 %v5035, 65535
        %v5059 = vshrl.u32 %v5035, 16
        %v5060 = vand.u32 %v5030, 65535
        %v5061 = vshrl.u32 %v5030, 16
        %v5062 = vmul.u32 %v5058, %v5060
        %v5063 = vmul.u32 %v5058, %v5061
        %v5064 = vmul.u32 %v5059, %v5060
        %v5065 = vmul.u32 %v5059, %v5061
        %v5066 = vshll.u32 %v5063, 16
        %v5067 = vshrl.u32 %v5063, 16
        %v5068 = vshll.u32 %v5064, 16
        %v5069 = vshrl.u32 %v5064, 16
        %vm5070 = vc.u32 %v5062, %v5066
        %v5071 = vsel %vm5070, 1, 0
        %v5072 = vadd.s32 %v5062, %v5066
        %v5073 = vadd.s32 %v5065, %v5071
        %vm5074 = vc.u32 %v5072, %v5068
        %v5075 = vsel %vm5074, 1, 0
        %v5076 = vadd.s32 %v5072, %v5068
        %v5077 = vadd.s32 %v5073, %v5075
        %v5078 = vadd.s32 %v5077, %v5067
        %v5079 = vadd.s32 %v5078, %v5069
        %v5080 = vmul.u32 %v5035, %v5026
        %v5081 = vadd.s32 %v5057, %v5076
        %vm5082 = vc.u32 %v5057, %v5076
        %v5083 = vadd.s32 %v5079, 1
        %v5084 = vsel %vm5082, %v5083, %v5079
        %v5085 = vadd.s32 %v5080, %v5084
        %v5086 = vadd.s32 %v5085, 536870912
        %v5087 = vshrl.u32 %v5086, 30
        %v5088 = vshll.u32 %v5087, 30
        %v5089 = vsub.s32 %v5085, %v5088
        %vm5090 = vcmp.lt.s32.totalorder %v5089, 0
        %v5091 = vsub.s32 0, %v5089
        %v5092 = vsel %vm5090, %v5091, %v5089
        %v5093 = vclz %v5092
        %v5094 = vsub.s32 %v5093, 2
        %vm5095 = vcmp.gt.s32.totalorder 0, %v5094
        %v5096 = vsel %vm5095, 0, %v5094
        %v5097 = vsub.s32 32, %v5096
        %v5098 = vshll.u32 %v5089, %v5096
        %v5099 = vshrl.u32 %v5081, %v5097
        %v5100 = vor.u32 %v5098, %v5099
        %v5101 = vsub.s32 4294967266, %v5096
        %v5102 = vadd.s32 %v5101, 127
        %v5103 = vshll.u32 %v5102, 23
        %v5104 = vor.u32 4788187, %v5103
        %v5105 = vand.u32 2147483647, %v5104
        %v5107 = vcvt.s32.f32 %v5100
        %v5108 = vmul.f32 %v5107, %v5105
        %v5109 = vxor.u32 %v5108, 2147483648
        %v5110 = vsel %vm4989, %v5109, %v5108
        %v5111 = vsub.s32 4, %v5087
        %v5112 = vsel %vm4989, %v5111, %v5087
        %v5113 = vsel %vm4988, %v540, %v5110
        %v5114 = vsel %vm4988, 0, %v5112
        %v5115 = vmul.f32 %v5113, %v5113
        %v5116 = vmul.f32 %v5115, -0.001358992
        %v5117 = vadd.f32 %v5116, 0.041655596
        %v5118 = vmul.f32 %v5115, %v5117
        %v5119 = vadd.f32 %v5118, -0.4999988
        %v5120 = vmul.f32 %v5115, %v5119
        %v5121 = vadd.f32 1.0, %v5120
        %v5122 = vmul.f32 %v5113, %v5113
        %v5123 = vmul.f32 %v5122, -0.00019511016
        %v5124 = vadd.f32 %v5123, 0.008332121
        %v5125 = vmul.f32 %v5122, %v5124
        %v5126 = vadd.f32 %v5125, -0.16666654
        %v5127 = vmul.f32 %v5122, %v5126
        %v5128 = vadd.f32 %v5127, 1.0
        %v5129 = vmul.f32 %v5128, %v5113
        %vm5130 = vweird.f32 %v540
        %v5131 = vadd.s32 %v5114, 3
        %v5132 = vand.u32 %v5131, 3
        %vm5133 = vcmp.lt.s32.totalorder %v5132, 2
        %vm5134 = vcmp.eq.s32.totalorder %v5132, 0
        %v5135 = vxor.u32 %v5129, 2147483648
        %v5136 = vsel %vm5134, %v5121, %v5135
        %vm5137 = vcmp.eq.s32.totalorder %v5132, 2
        %v5138 = vxor.u32 %v5121, 2147483648
        %v5139 = vsel %vm5137, %v5138, %v5129
        %v5140 = vsel %vm5133, %v5136, %v5139
        %v5141 = vsel %vm5130, nan, %v5140
        %v5142 = vand.u32 2147483647, %v543
        %vm5143 = vcmp.le.f32.partialorder %v5142, 0.7853982
        %vm5144 = vcmp.lt.s32.totalorder %v543, 0
        %v5145 = vand.u32 %v543, 2139095040
        %v5146 = vshrl.u32 %v5145, 23
        %v5147 = vsub.s32 %v5146, 127
        %v5148 = vand.u32 2147483647, %v543
        %v5149 = vand.u32 %v5148, 8388607
        %v5150 = vor.u32 %v5149, 8388608
        %v5151 = vsub.s32 0, %v5150
        %v5152 = vadd.s32 %v5147, 1
        %vm5153 = vcmp.gt.s32.totalorder %v5152, 0
        %v5154 = vsel %vm5153, %v5152, 0
        %v5155 = vshrl.u32 %v5154, 5
        %v5156 = vand.u32 %v5154, 31
        %v5157 = vsub.s32 32, %v5156
        %v5158 = vshrl.u32 683565275, %v5157
        %v5159 = vshll.u32 683565275, %v5156
        %v5160 = vshrl.u32 2475754826, %v5157
        %v5161 = vor.u32 %v5159, %v5160
        %v5162 = vshll.u32 2475754826, %v5156
        %v5163 = vshrl.u32 2131351028, %v5157
        %v5164 = vor.u32 %v5162, %v5163
        %v5165 = vshll.u32 2131351028, %v5156
        %v5166 = vshrl.u32 2102212464, %v5157
        %v5167 = vor.u32 %v5165, %v5166
        %v5168 = vshll.u32 2102212464, %v5156
        %v5169 = vshrl.u32 920167782, %v5157
        %v5170 = vor.u32 %v5168, %v5169
        %v5171 = vshll.u32 920167782, %v5156
        %v5172 = vshrl.u32 1326507024, %v5157
        %v5173 = vor.u32 %v5171, %v5172
        %vm5174 = vcmp.lt.s32.totalorder %v5155, 1
        %vm5175 = vcmp.lt.s32.totalorder %v5155, 2
        %vm5176 = vcmp.lt.s32.totalorder %v5155, 3
        %vm5177 = vcmp.lt.s32.totalorder %v5155, 4
        %v5178 = vsel %vm5174, %v5158, %v5161
        %v5179 = vsel %vm5177, %v5167, 2102212464
        %v5180 = vsel %vm5176, %v5164, %v5179
        %v5181 = vsel %vm5175, %v5178, %v5180
        %v5182 = vsel %vm5174, %v5161, %v5164
        %v5183 = vsel %vm5177, %v5170, 920167782
        %v5184 = vsel %vm5176, %v5167, %v5183
        %v5185 = vsel %vm5175, %v5182, %v5184
        %v5186 = vsel %vm5174, %v5164, %v5167
        %v5187 = vsel %vm5177, %v5173, 1326507024
        %v5188 = vsel %vm5176, %v5170, %v5187
        %v5189 = vsel %vm5175, %v5186, %v5188
        %v5190 = vshll.u32 %v5150, 8
        %v5191 = vand.u32 %v5190, 65535
        %v5192 = vshrl.u32 %v5190, 16
        %v5193 = vand.u32 %v5189, 65535
        %v5194 = vshrl.u32 %v5189, 16
        %v5195 = vmul.u32 %v5191, %v5193
        %v5196 = vmul.u32 %v5191, %v5194
        %v5197 = vmul.u32 %v5192, %v5193
        %v5198 = vmul.u32 %v5192, %v5194
        %v5199 = vshll.u32 %v5196, 16
        %v5200 = vshrl.u32 %v5196, 16
        %v5201 = vshll.u32 %v5197, 16
        %v5202 = vshrl.u32 %v5197, 16
        %vm5203 = vc.u32 %v5195, %v5199
        %v5204 = vsel %vm5203, 1, 0
        %v5205 = vadd.s32 %v5195, %v5199
        %v5206 = vadd.s32 %v5198, %v5204
        %vm5207 = vc.u32 %v5205, %v5201
        %v5208 = vsel %vm5207, 1, 0
        %v5209 = vadd.s32 %v5205, %v5201
        %v5210 = vadd.s32 %v5206, %v5208
        %v5211 = vadd.s32 %v5210, %v5200
        %v5212 = vadd.s32 %v5211, %v5202
        %v5213 = vand.u32 %v5190, 65535
        %v5214 = vshrl.u32 %v5190, 16
        %v5215 = vand.u32 %v5185, 65535
        %v5216 = vshrl.u32 %v5185, 16
        %v5217 = vmul.u32 %v5213, %v5215
        %v5218 = vmul.u32 %v5213, %v5216
        %v5219 = vmul.u32 %v5214, %v5215
        %v5220 = vmul.u32 %v5214, %v5216
        %v5221 = vshll.u32 %v5218, 16
        %v5222 = vshrl.u32 %v5218, 16
        %v5223 = vshll.u32 %v5219, 16
        %v5224 = vshrl.u32 %v5219, 16
        %vm5225 = vc.u32 %v5217, %v5221
        %v5226 = vsel %vm5225, 1, 0
        %v5227 = vadd.s32 %v5217, %v5221
        %v5228 = vadd.s32 %v5220, %v5226
        %vm5229 = vc.u32 %v5227, %v5223
        %v5230 = vsel %vm5229, 1, 0
        %v5231 = vadd.s32 %v5227, %v5223
        %v5232 = vadd.s32 %v5228, %v5230
        %v5233 = vadd.s32 %v5232, %v5222
        %v5234 = vadd.s32 %v5233, %v5224
        %v5235 = vmul.u32 %v5190, %v5181
        %v5236 = vadd.s32 %v5212, %v5231
        %vm5237 = vc.u32 %v5212, %v5231
        %v5238 = vadd.s32 %v5234, 1
        %v5239 = vsel %vm5237, %v5238, %v5234
        %v5240 = vadd.s32 %v5235, %v5239
        %v5241 = vadd.s32 %v5240, 536870912
        %v5242 = vshrl.u32 %v5241, 30
        %v5243 = vshll.u32 %v5242, 30
        %v5244 = vsub.s32 %v5240, %v5243
        %vm5245 = vcmp.lt.s32.totalorder %v5244, 0
        %v5246 = vsub.s32 0, %v5244
        %v5247 = vsel %vm5245, %v5246, %v5244
        %v5248 = vclz %v5247
        %v5249 = vsub.s32 %v5248, 2
        %vm5250 = vcmp.gt.s32.totalorder 0, %v5249
        %v5251 = vsel %vm5250, 0, %v5249
        %v5252 = vsub.s32 32, %v5251
        %v5253 = vshll.u32 %v5244, %v5251
        %v5254 = vshrl.u32 %v5236, %v5252
        %v5255 = vor.u32 %v5253, %v5254
        %v5256 = vsub.s32 4294967266, %v5251
        %v5257 = vadd.s32 %v5256, 127
        %v5258 = vshll.u32 %v5257, 23
        %v5259 = vor.u32 4788187, %v5258
        %v5260 = vand.u32 2147483647, %v5259
        %v5262 = vcvt.s32.f32 %v5255
        %v5263 = vmul.f32 %v5262, %v5260
        %v5264 = vxor.u32 %v5263, 2147483648
        %v5265 = vsel %vm5144, %v5264, %v5263
        %v5266 = vsub.s32 4, %v5242
        %v5267 = vsel %vm5144, %v5266, %v5242
        %v5268 = vsel %vm5143, %v543, %v5265
        %v5269 = vsel %vm5143, 0, %v5267
        %v5270 = vmul.f32 %v5268, %v5268
        %v5271 = vmul.f32 %v5270, -0.001358992
        %v5272 = vadd.f32 %v5271, 0.041655596
        %v5273 = vmul.f32 %v5270, %v5272
        %v5274 = vadd.f32 %v5273, -0.4999988
        %v5275 = vmul.f32 %v5270, %v5274
        %v5276 = vadd.f32 1.0, %v5275
        %v5277 = vmul.f32 %v5268, %v5268
        %v5278 = vmul.f32 %v5277, -0.00019511016
        %v5279 = vadd.f32 %v5278, 0.008332121
        %v5280 = vmul.f32 %v5277, %v5279
        %v5281 = vadd.f32 %v5280, -0.16666654
        %v5282 = vmul.f32 %v5277, %v5281
        %v5283 = vadd.f32 %v5282, 1.0
        %v5284 = vmul.f32 %v5283, %v5268
        %vm5285 = vweird.f32 %v543
        %v5286 = vadd.s32 %v5269, 3
        %v5287 = vand.u32 %v5286, 3
        %vm5288 = vcmp.lt.s32.totalorder %v5287, 2
        %vm5289 = vcmp.eq.s32.totalorder %v5287, 0
        %v5290 = vxor.u32 %v5284, 2147483648
        %v5291 = vsel %vm5289, %v5276, %v5290
        %vm5292 = vcmp.eq.s32.totalorder %v5287, 2
        %v5293 = vxor.u32 %v5276, 2147483648
        %v5294 = vsel %vm5292, %v5293, %v5284
        %v5295 = vsel %vm5288, %v5291, %v5294
        %v5296 = vsel %vm5285, nan, %v5295
        %v5297 = vand.u32 2147483647, %v546
        %vm5298 = vcmp.le.f32.partialorder %v5297, 0.7853982
        %vm5299 = vcmp.lt.s32.totalorder %v546, 0
        %v5300 = vand.u32 %v546, 2139095040
        %v5301 = vshrl.u32 %v5300, 23
        %v5302 = vsub.s32 %v5301, 127
        %v5303 = vand.u32 2147483647, %v546
        %v5304 = vand.u32 %v5303, 8388607
        %v5305 = vor.u32 %v5304, 8388608
        %v5306 = vsub.s32 0, %v5305
        %v5307 = vadd.s32 %v5302, 1
        %vm5308 = vcmp.gt.s32.totalorder %v5307, 0
        %v5309 = vsel %vm5308, %v5307, 0
        %v5310 = vshrl.u32 %v5309, 5
        %v5311 = vand.u32 %v5309, 31
        %v5312 = vsub.s32 32, %v5311
        %v5313 = vshrl.u32 683565275, %v5312
        %v5314 = vshll.u32 683565275, %v5311
        %v5315 = vshrl.u32 2475754826, %v5312
        %v5316 = vor.u32 %v5314, %v5315
        %v5317 = vshll.u32 2475754826, %v5311
        %v5318 = vshrl.u32 2131351028, %v5312
        %v5319 = vor.u32 %v5317, %v5318
        %v5320 = vshll.u32 2131351028, %v5311
        %v5321 = vshrl.u32 2102212464, %v5312
        %v5322 = vor.u32 %v5320, %v5321
        %v5323 = vshll.u32 2102212464, %v5311
        %v5324 = vshrl.u32 920167782, %v5312
        %v5325 = vor.u32 %v5323, %v5324
        %v5326 = vshll.u32 920167782, %v5311
        %v5327 = vshrl.u32 1326507024, %v5312
        %v5328 = vor.u32 %v5326, %v5327
        %vm5329 = vcmp.lt.s32.totalorder %v5310, 1
        %vm5330 = vcmp.lt.s32.totalorder %v5310, 2
        %vm5331 = vcmp.lt.s32.totalorder %v5310, 3
        %vm5332 = vcmp.lt.s32.totalorder %v5310, 4
        %v5333 = vsel %vm5329, %v5313, %v5316
        %v5334 = vsel %vm5332, %v5322, 2102212464
        %v5335 = vsel %vm5331, %v5319, %v5334
        %v5336 = vsel %vm5330, %v5333, %v5335
        %v5337 = vsel %vm5329, %v5316, %v5319
        %v5338 = vsel %vm5332, %v5325, 920167782
        %v5339 = vsel %vm5331, %v5322, %v5338
        %v5340 = vsel %vm5330, %v5337, %v5339
        %v5341 = vsel %vm5329, %v5319, %v5322
        %v5342 = vsel %vm5332, %v5328, 1326507024
        %v5343 = vsel %vm5331, %v5325, %v5342
        %v5344 = vsel %vm5330, %v5341, %v5343
        %v5345 = vshll.u32 %v5305, 8
        %v5346 = vand.u32 %v5345, 65535
        %v5347 = vshrl.u32 %v5345, 16
        %v5348 = vand.u32 %v5344, 65535
        %v5349 = vshrl.u32 %v5344, 16
        %v5350 = vmul.u32 %v5346, %v5348
        %v5351 = vmul.u32 %v5346, %v5349
        %v5352 = vmul.u32 %v5347, %v5348
        %v5353 = vmul.u32 %v5347, %v5349
        %v5354 = vshll.u32 %v5351, 16
        %v5355 = vshrl.u32 %v5351, 16
        %v5356 = vshll.u32 %v5352, 16
        %v5357 = vshrl.u32 %v5352, 16
        %vm5358 = vc.u32 %v5350, %v5354
        %v5359 = vsel %vm5358, 1, 0
        %v5360 = vadd.s32 %v5350, %v5354
        %v5361 = vadd.s32 %v5353, %v5359
        %vm5362 = vc.u32 %v5360, %v5356
        %v5363 = vsel %vm5362, 1, 0
        %v5364 = vadd.s32 %v5360, %v5356
        %v5365 = vadd.s32 %v5361, %v5363
        %v5366 = vadd.s32 %v5365, %v5355
        %v5367 = vadd.s32 %v5366, %v5357
        %v5368 = vand.u32 %v5345, 65535
        %v5369 = vshrl.u32 %v5345, 16
        %v5370 = vand.u32 %v5340, 65535
        %v5371 = vshrl.u32 %v5340, 16
        %v5372 = vmul.u32 %v5368, %v5370
        %v5373 = vmul.u32 %v5368, %v5371
        %v5374 = vmul.u32 %v5369, %v5370
        %v5375 = vmul.u32 %v5369, %v5371
        %v5376 = vshll.u32 %v5373, 16
        %v5377 = vshrl.u32 %v5373, 16
        %v5378 = vshll.u32 %v5374, 16
        %v5379 = vshrl.u32 %v5374, 16
        %vm5380 = vc.u32 %v5372, %v5376
        %v5381 = vsel %vm5380, 1, 0
        %v5382 = vadd.s32 %v5372, %v5376
        %v5383 = vadd.s32 %v5375, %v5381
        %vm5384 = vc.u32 %v5382, %v5378
        %v5385 = vsel %vm5384, 1, 0
        %v5386 = vadd.s32 %v5382, %v5378
        %v5387 = vadd.s32 %v5383, %v5385
        %v5388 = vadd.s32 %v5387, %v5377
        %v5389 = vadd.s32 %v5388, %v5379
        %v5390 = vmul.u32 %v5345, %v5336
        %v5391 = vadd.s32 %v5367, %v5386
        %vm5392 = vc.u32 %v5367, %v5386
        %v5393 = vadd.s32 %v5389, 1
        %v5394 = vsel %vm5392, %v5393, %v5389
        %v5395 = vadd.s32 %v5390, %v5394
        %v5396 = vadd.s32 %v5395, 536870912
        %v5397 = vshrl.u32 %v5396, 30
        %v5398 = vshll.u32 %v5397, 30
        %v5399 = vsub.s32 %v5395, %v5398
        %vm5400 = vcmp.lt.s32.totalorder %v5399, 0
        %v5401 = vsub.s32 0, %v5399
        %v5402 = vsel %vm5400, %v5401, %v5399
        %v5403 = vclz %v5402
        %v5404 = vsub.s32 %v5403, 2
        %vm5405 = vcmp.gt.s32.totalorder 0, %v5404
        %v5406 = vsel %vm5405, 0, %v5404
        %v5407 = vsub.s32 32, %v5406
        %v5408 = vshll.u32 %v5399, %v5406
        %v5409 = vshrl.u32 %v5391, %v5407
        %v5410 = vor.u32 %v5408, %v5409
        %v5411 = vsub.s32 4294967266, %v5406
        %v5412 = vadd.s32 %v5411, 127
        %v5413 = vshll.u32 %v5412, 23
        %v5414 = vor.u32 4788187, %v5413
        %v5415 = vand.u32 2147483647, %v5414
        %v5417 = vcvt.s32.f32 %v5410
        %v5418 = vmul.f32 %v5417, %v5415
        %v5419 = vxor.u32 %v5418, 2147483648
        %v5420 = vsel %vm5299, %v5419, %v5418
        %v5421 = vsub.s32 4, %v5397
        %v5422 = vsel %vm5299, %v5421, %v5397
        %v5423 = vsel %vm5298, %v546, %v5420
        %v5424 = vsel %vm5298, 0, %v5422
        %v5425 = vmul.f32 %v5423, %v5423
        %v5426 = vmul.f32 %v5425, -0.001358992
        %v5427 = vadd.f32 %v5426, 0.041655596
        %v5428 = vmul.f32 %v5425, %v5427
        %v5429 = vadd.f32 %v5428, -0.4999988
        %v5430 = vmul.f32 %v5425, %v5429
        %v5431 = vadd.f32 1.0, %v5430
        %v5432 = vmul.f32 %v5423, %v5423
        %v5433 = vmul.f32 %v5432, -0.00019511016
        %v5434 = vadd.f32 %v5433, 0.008332121
        %v5435 = vmul.f32 %v5432, %v5434
        %v5436 = vadd.f32 %v5435, -0.16666654
        %v5437 = vmul.f32 %v5432, %v5436
        %v5438 = vadd.f32 %v5437, 1.0
        %v5439 = vmul.f32 %v5438, %v5423
        %vm5440 = vweird.f32 %v546
        %v5441 = vadd.s32 %v5424, 3
        %v5442 = vand.u32 %v5441, 3
        %vm5443 = vcmp.lt.s32.totalorder %v5442, 2
        %vm5444 = vcmp.eq.s32.totalorder %v5442, 0
        %v5445 = vxor.u32 %v5439, 2147483648
        %v5446 = vsel %vm5444, %v5431, %v5445
        %vm5447 = vcmp.eq.s32.totalorder %v5442, 2
        %v5448 = vxor.u32 %v5431, 2147483648
        %v5449 = vsel %vm5447, %v5448, %v5439
        %v5450 = vsel %vm5443, %v5446, %v5449
        %v5451 = vsel %vm5440, nan, %v5450
        %v5452 = vand.u32 2147483647, %v549
        %vm5453 = vcmp.le.f32.partialorder %v5452, 0.7853982
        %vm5454 = vcmp.lt.s32.totalorder %v549, 0
        %v5455 = vand.u32 %v549, 2139095040
        %v5456 = vshrl.u32 %v5455, 23
        %v5457 = vsub.s32 %v5456, 127
        %v5458 = vand.u32 2147483647, %v549
        %v5459 = vand.u32 %v5458, 8388607
        %v5460 = vor.u32 %v5459, 8388608
        %v5461 = vsub.s32 0, %v5460
        %v5462 = vadd.s32 %v5457, 1
        %vm5463 = vcmp.gt.s32.totalorder %v5462, 0
        %v5464 = vsel %vm5463, %v5462, 0
        %v5465 = vshrl.u32 %v5464, 5
        %v5466 = vand.u32 %v5464, 31
        %v5467 = vsub.s32 32, %v5466
        %v5468 = vshrl.u32 683565275, %v5467
        %v5469 = vshll.u32 683565275, %v5466
        %v5470 = vshrl.u32 2475754826, %v5467
        %v5471 = vor.u32 %v5469, %v5470
        %v5472 = vshll.u32 2475754826, %v5466
        %v5473 = vshrl.u32 2131351028, %v5467
        %v5474 = vor.u32 %v5472, %v5473
        %v5475 = vshll.u32 2131351028, %v5466
        %v5476 = vshrl.u32 2102212464, %v5467
        %v5477 = vor.u32 %v5475, %v5476
        %v5478 = vshll.u32 2102212464, %v5466
        %v5479 = vshrl.u32 920167782, %v5467
        %v5480 = vor.u32 %v5478, %v5479
        %v5481 = vshll.u32 920167782, %v5466
        %v5482 = vshrl.u32 1326507024, %v5467
        %v5483 = vor.u32 %v5481, %v5482
        %vm5484 = vcmp.lt.s32.totalorder %v5465, 1
        %vm5485 = vcmp.lt.s32.totalorder %v5465, 2
        %vm5486 = vcmp.lt.s32.totalorder %v5465, 3
        %vm5487 = vcmp.lt.s32.totalorder %v5465, 4
        %v5488 = vsel %vm5484, %v5468, %v5471
        %v5489 = vsel %vm5487, %v5477, 2102212464
        %v5490 = vsel %vm5486, %v5474, %v5489
        %v5491 = vsel %vm5485, %v5488, %v5490
        %v5492 = vsel %vm5484, %v5471, %v5474
        %v5493 = vsel %vm5487, %v5480, 920167782
        %v5494 = vsel %vm5486, %v5477, %v5493
        %v5495 = vsel %vm5485, %v5492, %v5494
        %v5496 = vsel %vm5484, %v5474, %v5477
        %v5497 = vsel %vm5487, %v5483, 1326507024
        %v5498 = vsel %vm5486, %v5480, %v5497
        %v5499 = vsel %vm5485, %v5496, %v5498
        %v5500 = vshll.u32 %v5460, 8
        %v5501 = vand.u32 %v5500, 65535
        %v5502 = vshrl.u32 %v5500, 16
        %v5503 = vand.u32 %v5499, 65535
        %v5504 = vshrl.u32 %v5499, 16
        %v5505 = vmul.u32 %v5501, %v5503
        %v5506 = vmul.u32 %v5501, %v5504
        %v5507 = vmul.u32 %v5502, %v5503
        %v5508 = vmul.u32 %v5502, %v5504
        %v5509 = vshll.u32 %v5506, 16
        %v5510 = vshrl.u32 %v5506, 16
        %v5511 = vshll.u32 %v5507, 16
        %v5512 = vshrl.u32 %v5507, 16
        %vm5513 = vc.u32 %v5505, %v5509
        %v5514 = vsel %vm5513, 1, 0
        %v5515 = vadd.s32 %v5505, %v5509
        %v5516 = vadd.s32 %v5508, %v5514
        %vm5517 = vc.u32 %v5515, %v5511
        %v5518 = vsel %vm5517, 1, 0
        %v5519 = vadd.s32 %v5515, %v5511
        %v5520 = vadd.s32 %v5516, %v5518
        %v5521 = vadd.s32 %v5520, %v5510
        %v5522 = vadd.s32 %v5521, %v5512
        %v5523 = vand.u32 %v5500, 65535
        %v5524 = vshrl.u32 %v5500, 16
        %v5525 = vand.u32 %v5495, 65535
        %v5526 = vshrl.u32 %v5495, 16
        %v5527 = vmul.u32 %v5523, %v5525
        %v5528 = vmul.u32 %v5523, %v5526
        %v5529 = vmul.u32 %v5524, %v5525
        %v5530 = vmul.u32 %v5524, %v5526
        %v5531 = vshll.u32 %v5528, 16
        %v5532 = vshrl.u32 %v5528, 16
        %v5533 = vshll.u32 %v5529, 16
        %v5534 = vshrl.u32 %v5529, 16
        %vm5535 = vc.u32 %v5527, %v5531
        %v5536 = vsel %vm5535, 1, 0
        %v5537 = vadd.s32 %v5527, %v5531
        %v5538 = vadd.s32 %v5530, %v5536
        %vm5539 = vc.u32 %v5537, %v5533
        %v5540 = vsel %vm5539, 1, 0
        %v5541 = vadd.s32 %v5537, %v5533
        %v5542 = vadd.s32 %v5538, %v5540
        %v5543 = vadd.s32 %v5542, %v5532
        %v5544 = vadd.s32 %v5543, %v5534
        %v5545 = vmul.u32 %v5500, %v5491
        %v5546 = vadd.s32 %v5522, %v5541
        %vm5547 = vc.u32 %v5522, %v5541
        %v5548 = vadd.s32 %v5544, 1
        %v5549 = vsel %vm5547, %v5548, %v5544
        %v5550 = vadd.s32 %v5545, %v5549
        %v5551 = vadd.s32 %v5550, 536870912
        %v5552 = vshrl.u32 %v5551, 30
        %v5553 = vshll.u32 %v5552, 30
        %v5554 = vsub.s32 %v5550, %v5553
        %vm5555 = vcmp.lt.s32.totalorder %v5554, 0
        %v5556 = vsub.s32 0, %v5554
        %v5557 = vsel %vm5555, %v5556, %v5554
        %v5558 = vclz %v5557
        %v5559 = vsub.s32 %v5558, 2
        %vm5560 = vcmp.gt.s32.totalorder 0, %v5559
        %v5561 = vsel %vm5560, 0, %v5559
        %v5562 = vsub.s32 32, %v5561
        %v5563 = vshll.u32 %v5554, %v5561
        %v5564 = vshrl.u32 %v5546, %v5562
        %v5565 = vor.u32 %v5563, %v5564
        %v5566 = vsub.s32 4294967266, %v5561
        %v5567 = vadd.s32 %v5566, 127
        %v5568 = vshll.u32 %v5567, 23
        %v5569 = vor.u32 4788187, %v5568
        %v5570 = vand.u32 2147483647, %v5569
        %v5572 = vcvt.s32.f32 %v5565
        %v5573 = vmul.f32 %v5572, %v5570
        %v5574 = vxor.u32 %v5573, 2147483648
        %v5575 = vsel %vm5454, %v5574, %v5573
        %v5576 = vsub.s32 4, %v5552
        %v5577 = vsel %vm5454, %v5576, %v5552
        %v5578 = vsel %vm5453, %v549, %v5575
        %v5579 = vsel %vm5453, 0, %v5577
        %v5580 = vmul.f32 %v5578, %v5578
        %v5581 = vmul.f32 %v5580, -0.001358992
        %v5582 = vadd.f32 %v5581, 0.041655596
        %v5583 = vmul.f32 %v5580, %v5582
        %v5584 = vadd.f32 %v5583, -0.4999988
        %v5585 = vmul.f32 %v5580, %v5584
        %v5586 = vadd.f32 1.0, %v5585
        %v5587 = vmul.f32 %v5578, %v5578
        %v5588 = vmul.f32 %v5587, -0.00019511016
        %v5589 = vadd.f32 %v5588, 0.008332121
        %v5590 = vmul.f32 %v5587, %v5589
        %v5591 = vadd.f32 %v5590, -0.16666654
        %v5592 = vmul.f32 %v5587, %v5591
        %v5593 = vadd.f32 %v5592, 1.0
        %v5594 = vmul.f32 %v5593, %v5578
        %vm5595 = vweird.f32 %v549
        %v5596 = vadd.s32 %v5579, 3
        %v5597 = vand.u32 %v5596, 3
        %vm5598 = vcmp.lt.s32.totalorder %v5597, 2
        %vm5599 = vcmp.eq.s32.totalorder %v5597, 0
        %v5600 = vxor.u32 %v5594, 2147483648
        %v5601 = vsel %vm5599, %v5586, %v5600
        %vm5602 = vcmp.eq.s32.totalorder %v5597, 2
        %v5603 = vxor.u32 %v5586, 2147483648
        %v5604 = vsel %vm5602, %v5603, %v5594
        %v5605 = vsel %vm5598, %v5601, %v5604
        %v5606 = vsel %vm5595, nan, %v5605
        %v5607 = vand.u32 2147483647, %v552
        %vm5608 = vcmp.le.f32.partialorder %v5607, 0.7853982
        %vm5609 = vcmp.lt.s32.totalorder %v552, 0
        %v5610 = vand.u32 %v552, 2139095040
        %v5611 = vshrl.u32 %v5610, 23
        %v5612 = vsub.s32 %v5611, 127
        %v5613 = vand.u32 2147483647, %v552
        %v5614 = vand.u32 %v5613, 8388607
        %v5615 = vor.u32 %v5614, 8388608
        %v5616 = vsub.s32 0, %v5615
        %v5617 = vadd.s32 %v5612, 1
        %vm5618 = vcmp.gt.s32.totalorder %v5617, 0
        %v5619 = vsel %vm5618, %v5617, 0
        %v5620 = vshrl.u32 %v5619, 5
        %v5621 = vand.u32 %v5619, 31
        %v5622 = vsub.s32 32, %v5621
        %v5623 = vshrl.u32 683565275, %v5622
        %v5624 = vshll.u32 683565275, %v5621
        %v5625 = vshrl.u32 2475754826, %v5622
        %v5626 = vor.u32 %v5624, %v5625
        %v5627 = vshll.u32 2475754826, %v5621
        %v5628 = vshrl.u32 2131351028, %v5622
        %v5629 = vor.u32 %v5627, %v5628
        %v5630 = vshll.u32 2131351028, %v5621
        %v5631 = vshrl.u32 2102212464, %v5622
        %v5632 = vor.u32 %v5630, %v5631
        %v5633 = vshll.u32 2102212464, %v5621
        %v5634 = vshrl.u32 920167782, %v5622
        %v5635 = vor.u32 %v5633, %v5634
        %v5636 = vshll.u32 920167782, %v5621
        %v5637 = vshrl.u32 1326507024, %v5622
        %v5638 = vor.u32 %v5636, %v5637
        %vm5639 = vcmp.lt.s32.totalorder %v5620, 1
        %vm5640 = vcmp.lt.s32.totalorder %v5620, 2
        %vm5641 = vcmp.lt.s32.totalorder %v5620, 3
        %vm5642 = vcmp.lt.s32.totalorder %v5620, 4
        %v5643 = vsel %vm5639, %v5623, %v5626
        %v5644 = vsel %vm5642, %v5632, 2102212464
        %v5645 = vsel %vm5641, %v5629, %v5644
        %v5646 = vsel %vm5640, %v5643, %v5645
        %v5647 = vsel %vm5639, %v5626, %v5629
        %v5648 = vsel %vm5642, %v5635, 920167782
        %v5649 = vsel %vm5641, %v5632, %v5648
        %v5650 = vsel %vm5640, %v5647, %v5649
        %v5651 = vsel %vm5639, %v5629, %v5632
        %v5652 = vsel %vm5642, %v5638, 1326507024
        %v5653 = vsel %vm5641, %v5635, %v5652
        %v5654 = vsel %vm5640, %v5651, %v5653
        %v5655 = vshll.u32 %v5615, 8
        %v5656 = vand.u32 %v5655, 65535
        %v5657 = vshrl.u32 %v5655, 16
        %v5658 = vand.u32 %v5654, 65535
        %v5659 = vshrl.u32 %v5654, 16
        %v5660 = vmul.u32 %v5656, %v5658
        %v5661 = vmul.u32 %v5656, %v5659
        %v5662 = vmul.u32 %v5657, %v5658
        %v5663 = vmul.u32 %v5657, %v5659
        %v5664 = vshll.u32 %v5661, 16
        %v5665 = vshrl.u32 %v5661, 16
        %v5666 = vshll.u32 %v5662, 16
        %v5667 = vshrl.u32 %v5662, 16
        %vm5668 = vc.u32 %v5660, %v5664
        %v5669 = vsel %vm5668, 1, 0
        %v5670 = vadd.s32 %v5660, %v5664
        %v5671 = vadd.s32 %v5663, %v5669
        %vm5672 = vc.u32 %v5670, %v5666
        %v5673 = vsel %vm5672, 1, 0
        %v5674 = vadd.s32 %v5670, %v5666
        %v5675 = vadd.s32 %v5671, %v5673
        %v5676 = vadd.s32 %v5675, %v5665
        %v5677 = vadd.s32 %v5676, %v5667
        %v5678 = vand.u32 %v5655, 65535
        %v5679 = vshrl.u32 %v5655, 16
        %v5680 = vand.u32 %v5650, 65535
        %v5681 = vshrl.u32 %v5650, 16
        %v5682 = vmul.u32 %v5678, %v5680
        %v5683 = vmul.u32 %v5678, %v5681
        %v5684 = vmul.u32 %v5679, %v5680
        %v5685 = vmul.u32 %v5679, %v5681
        %v5686 = vshll.u32 %v5683, 16
        %v5687 = vshrl.u32 %v5683, 16
        %v5688 = vshll.u32 %v5684, 16
        %v5689 = vshrl.u32 %v5684, 16
        %vm5690 = vc.u32 %v5682, %v5686
        %v5691 = vsel %vm5690, 1, 0
        %v5692 = vadd.s32 %v5682, %v5686
        %v5693 = vadd.s32 %v5685, %v5691
        %vm5694 = vc.u32 %v5692, %v5688
        %v5695 = vsel %vm5694, 1, 0
        %v5696 = vadd.s32 %v5692, %v5688
        %v5697 = vadd.s32 %v5693, %v5695
        %v5698 = vadd.s32 %v5697, %v5687
        %v5699 = vadd.s32 %v5698, %v5689
        %v5700 = vmul.u32 %v5655, %v5646
        %v5701 = vadd.s32 %v5677, %v5696
        %vm5702 = vc.u32 %v5677, %v5696
        %v5703 = vadd.s32 %v5699, 1
        %v5704 = vsel %vm5702, %v5703, %v5699
        %v5705 = vadd.s32 %v5700, %v5704
        %v5706 = vadd.s32 %v5705, 536870912
        %v5707 = vshrl.u32 %v5706, 30
        %v5708 = vshll.u32 %v5707, 30
        %v5709 = vsub.s32 %v5705, %v5708
        %vm5710 = vcmp.lt.s32.totalorder %v5709, 0
        %v5711 = vsub.s32 0, %v5709
        %v5712 = vsel %vm5710, %v5711, %v5709
        %v5713 = vclz %v5712
        %v5714 = vsub.s32 %v5713, 2
        %vm5715 = vcmp.gt.s32.totalorder 0, %v5714
        %v5716 = vsel %vm5715, 0, %v5714
        %v5717 = vsub.s32 32, %v5716
        %v5718 = vshll.u32 %v5709, %v5716
        %v5719 = vshrl.u32 %v5701, %v5717
        %v5720 = vor.u32 %v5718, %v5719
        %v5721 = vsub.s32 4294967266, %v5716
        %v5722 = vadd.s32 %v5721, 127
        %v5723 = vshll.u32 %v5722, 23
        %v5724 = vor.u32 4788187, %v5723
        %v5725 = vand.u32 2147483647, %v5724
        %v5727 = vcvt.s32.f32 %v5720
        %v5728 = vmul.f32 %v5727, %v5725
        %v5729 = vxor.u32 %v5728, 2147483648
        %v5730 = vsel %vm5609, %v5729, %v5728
        %v5731 = vsub.s32 4, %v5707
        %v5732 = vsel %vm5609, %v5731, %v5707
        %v5733 = vsel %vm5608, %v552, %v5730
        %v5734 = vsel %vm5608, 0, %v5732
        %v5735 = vmul.f32 %v5733, %v5733
        %v5736 = vmul.f32 %v5735, -0.001358992
        %v5737 = vadd.f32 %v5736, 0.041655596
        %v5738 = vmul.f32 %v5735, %v5737
        %v5739 = vadd.f32 %v5738, -0.4999988
        %v5740 = vmul.f32 %v5735, %v5739
        %v5741 = vadd.f32 1.0, %v5740
        %v5742 = vmul.f32 %v5733, %v5733
        %v5743 = vmul.f32 %v5742, -0.00019511016
        %v5744 = vadd.f32 %v5743, 0.008332121
        %v5745 = vmul.f32 %v5742, %v5744
        %v5746 = vadd.f32 %v5745, -0.16666654
        %v5747 = vmul.f32 %v5742, %v5746
        %v5748 = vadd.f32 %v5747, 1.0
        %v5749 = vmul.f32 %v5748, %v5733
        %vm5750 = vweird.f32 %v552
        %v5751 = vadd.s32 %v5734, 3
        %v5752 = vand.u32 %v5751, 3
        %vm5753 = vcmp.lt.s32.totalorder %v5752, 2
        %vm5754 = vcmp.eq.s32.totalorder %v5752, 0
        %v5755 = vxor.u32 %v5749, 2147483648
        %v5756 = vsel %vm5754, %v5741, %v5755
        %vm5757 = vcmp.eq.s32.totalorder %v5752, 2
        %v5758 = vxor.u32 %v5741, 2147483648
        %v5759 = vsel %vm5757, %v5758, %v5749
        %v5760 = vsel %vm5753, %v5756, %v5759
        %v5761 = vsel %vm5750, nan, %v5760
        %v5762 = vand.u32 2147483647, %v555
        %vm5763 = vcmp.le.f32.partialorder %v5762, 0.7853982
        %vm5764 = vcmp.lt.s32.totalorder %v555, 0
        %v5765 = vand.u32 %v555, 2139095040
        %v5766 = vshrl.u32 %v5765, 23
        %v5767 = vsub.s32 %v5766, 127
        %v5768 = vand.u32 2147483647, %v555
        %v5769 = vand.u32 %v5768, 8388607
        %v5770 = vor.u32 %v5769, 8388608
        %v5771 = vsub.s32 0, %v5770
        %v5772 = vadd.s32 %v5767, 1
        %vm5773 = vcmp.gt.s32.totalorder %v5772, 0
        %v5774 = vsel %vm5773, %v5772, 0
        %v5775 = vshrl.u32 %v5774, 5
        %v5776 = vand.u32 %v5774, 31
        %v5777 = vsub.s32 32, %v5776
        %v5778 = vshrl.u32 683565275, %v5777
        %v5779 = vshll.u32 683565275, %v5776
        %v5780 = vshrl.u32 2475754826, %v5777
        %v5781 = vor.u32 %v5779, %v5780
        %v5782 = vshll.u32 2475754826, %v5776
        %v5783 = vshrl.u32 2131351028, %v5777
        %v5784 = vor.u32 %v5782, %v5783
        %v5785 = vshll.u32 2131351028, %v5776
        %v5786 = vshrl.u32 2102212464, %v5777
        %v5787 = vor.u32 %v5785, %v5786
        %v5788 = vshll.u32 2102212464, %v5776
        %v5789 = vshrl.u32 920167782, %v5777
        %v5790 = vor.u32 %v5788, %v5789
        %v5791 = vshll.u32 920167782, %v5776
        %v5792 = vshrl.u32 1326507024, %v5777
        %v5793 = vor.u32 %v5791, %v5792
        %vm5794 = vcmp.lt.s32.totalorder %v5775, 1
        %vm5795 = vcmp.lt.s32.totalorder %v5775, 2
        %vm5796 = vcmp.lt.s32.totalorder %v5775, 3
        %vm5797 = vcmp.lt.s32.totalorder %v5775, 4
        %v5798 = vsel %vm5794, %v5778, %v5781
        %v5799 = vsel %vm5797, %v5787, 2102212464
        %v5800 = vsel %vm5796, %v5784, %v5799
        %v5801 = vsel %vm5795, %v5798, %v5800
        %v5802 = vsel %vm5794, %v5781, %v5784
        %v5803 = vsel %vm5797, %v5790, 920167782
        %v5804 = vsel %vm5796, %v5787, %v5803
        %v5805 = vsel %vm5795, %v5802, %v5804
        %v5806 = vsel %vm5794, %v5784, %v5787
        %v5807 = vsel %vm5797, %v5793, 1326507024
        %v5808 = vsel %vm5796, %v5790, %v5807
        %v5809 = vsel %vm5795, %v5806, %v5808
        %v5810 = vshll.u32 %v5770, 8
        %v5811 = vand.u32 %v5810, 65535
        %v5812 = vshrl.u32 %v5810, 16
        %v5813 = vand.u32 %v5809, 65535
        %v5814 = vshrl.u32 %v5809, 16
        %v5815 = vmul.u32 %v5811, %v5813
        %v5816 = vmul.u32 %v5811, %v5814
        %v5817 = vmul.u32 %v5812, %v5813
        %v5818 = vmul.u32 %v5812, %v5814
        %v5819 = vshll.u32 %v5816, 16
        %v5820 = vshrl.u32 %v5816, 16
        %v5821 = vshll.u32 %v5817, 16
        %v5822 = vshrl.u32 %v5817, 16
        %vm5823 = vc.u32 %v5815, %v5819
        %v5824 = vsel %vm5823, 1, 0
        %v5825 = vadd.s32 %v5815, %v5819
        %v5826 = vadd.s32 %v5818, %v5824
        %vm5827 = vc.u32 %v5825, %v5821
        %v5828 = vsel %vm5827, 1, 0
        %v5829 = vadd.s32 %v5825, %v5821
        %v5830 = vadd.s32 %v5826, %v5828
        %v5831 = vadd.s32 %v5830, %v5820
        %v5832 = vadd.s32 %v5831, %v5822
        %v5833 = vand.u32 %v5810, 65535
        %v5834 = vshrl.u32 %v5810, 16
        %v5835 = vand.u32 %v5805, 65535
        %v5836 = vshrl.u32 %v5805, 16
        %v5837 = vmul.u32 %v5833, %v5835
        %v5838 = vmul.u32 %v5833, %v5836
        %v5839 = vmul.u32 %v5834, %v5835
        %v5840 = vmul.u32 %v5834, %v5836
        %v5841 = vshll.u32 %v5838, 16
        %v5842 = vshrl.u32 %v5838, 16
        %v5843 = vshll.u32 %v5839, 16
        %v5844 = vshrl.u32 %v5839, 16
        %vm5845 = vc.u32 %v5837, %v5841
        %v5846 = vsel %vm5845, 1, 0
        %v5847 = vadd.s32 %v5837, %v5841
        %v5848 = vadd.s32 %v5840, %v5846
        %vm5849 = vc.u32 %v5847, %v5843
        %v5850 = vsel %vm5849, 1, 0
        %v5851 = vadd.s32 %v5847, %v5843
        %v5852 = vadd.s32 %v5848, %v5850
        %v5853 = vadd.s32 %v5852, %v5842
        %v5854 = vadd.s32 %v5853, %v5844
        %v5855 = vmul.u32 %v5810, %v5801
        %v5856 = vadd.s32 %v5832, %v5851
        %vm5857 = vc.u32 %v5832, %v5851
        %v5858 = vadd.s32 %v5854, 1
        %v5859 = vsel %vm5857, %v5858, %v5854
        %v5860 = vadd.s32 %v5855, %v5859
        %v5861 = vadd.s32 %v5860, 536870912
        %v5862 = vshrl.u32 %v5861, 30
        %v5863 = vshll.u32 %v5862, 30
        %v5864 = vsub.s32 %v5860, %v5863
        %vm5865 = vcmp.lt.s32.totalorder %v5864, 0
        %v5866 = vsub.s32 0, %v5864
        %v5867 = vsel %vm5865, %v5866, %v5864
        %v5868 = vclz %v5867
        %v5869 = vsub.s32 %v5868, 2
        %vm5870 = vcmp.gt.s32.totalorder 0, %v5869
        %v5871 = vsel %vm5870, 0, %v5869
        %v5872 = vsub.s32 32, %v5871
        %v5873 = vshll.u32 %v5864, %v5871
        %v5874 = vshrl.u32 %v5856, %v5872
        %v5875 = vor.u32 %v5873, %v5874
        %v5876 = vsub.s32 4294967266, %v5871
        %v5877 = vadd.s32 %v5876, 127
        %v5878 = vshll.u32 %v5877, 23
        %v5879 = vor.u32 4788187, %v5878
        %v5880 = vand.u32 2147483647, %v5879
        %v5882 = vcvt.s32.f32 %v5875
        %v5883 = vmul.f32 %v5882, %v5880
        %v5884 = vxor.u32 %v5883, 2147483648
        %v5885 = vsel %vm5764, %v5884, %v5883
        %v5886 = vsub.s32 4, %v5862
        %v5887 = vsel %vm5764, %v5886, %v5862
        %v5888 = vsel %vm5763, %v555, %v5885
        %v5889 = vsel %vm5763, 0, %v5887
        %v5890 = vmul.f32 %v5888, %v5888
        %v5891 = vmul.f32 %v5890, -0.001358992
        %v5892 = vadd.f32 %v5891, 0.041655596
        %v5893 = vmul.f32 %v5890, %v5892
        %v5894 = vadd.f32 %v5893, -0.4999988
        %v5895 = vmul.f32 %v5890, %v5894
        %v5896 = vadd.f32 1.0, %v5895
        %v5897 = vmul.f32 %v5888, %v5888
        %v5898 = vmul.f32 %v5897, -0.00019511016
        %v5899 = vadd.f32 %v5898, 0.008332121
        %v5900 = vmul.f32 %v5897, %v5899
        %v5901 = vadd.f32 %v5900, -0.16666654
        %v5902 = vmul.f32 %v5897, %v5901
        %v5903 = vadd.f32 %v5902, 1.0
        %v5904 = vmul.f32 %v5903, %v5888
        %vm5905 = vweird.f32 %v555
        %v5906 = vadd.s32 %v5889, 3
        %v5907 = vand.u32 %v5906, 3
        %vm5908 = vcmp.lt.s32.totalorder %v5907, 2
        %vm5909 = vcmp.eq.s32.totalorder %v5907, 0
        %v5910 = vxor.u32 %v5904, 2147483648
        %v5911 = vsel %vm5909, %v5896, %v5910
        %vm5912 = vcmp.eq.s32.totalorder %v5907, 2
        %v5913 = vxor.u32 %v5896, 2147483648
        %v5914 = vsel %vm5912, %v5913, %v5904
        %v5915 = vsel %vm5908, %v5911, %v5914
        %v5916 = vsel %vm5905, nan, %v5915
        %v5917 = vand.u32 2147483647, %v558
        %vm5918 = vcmp.le.f32.partialorder %v5917, 0.7853982
        %vm5919 = vcmp.lt.s32.totalorder %v558, 0
        %v5920 = vand.u32 %v558, 2139095040
        %v5921 = vshrl.u32 %v5920, 23
        %v5922 = vsub.s32 %v5921, 127
        %v5923 = vand.u32 2147483647, %v558
        %v5924 = vand.u32 %v5923, 8388607
        %v5925 = vor.u32 %v5924, 8388608
        %v5926 = vsub.s32 0, %v5925
        %v5927 = vadd.s32 %v5922, 1
        %vm5928 = vcmp.gt.s32.totalorder %v5927, 0
        %v5929 = vsel %vm5928, %v5927, 0
        %v5930 = vshrl.u32 %v5929, 5
        %v5931 = vand.u32 %v5929, 31
        %v5932 = vsub.s32 32, %v5931
        %v5933 = vshrl.u32 683565275, %v5932
        %v5934 = vshll.u32 683565275, %v5931
        %v5935 = vshrl.u32 2475754826, %v5932
        %v5936 = vor.u32 %v5934, %v5935
        %v5937 = vshll.u32 2475754826, %v5931
        %v5938 = vshrl.u32 2131351028, %v5932
        %v5939 = vor.u32 %v5937, %v5938
        %v5940 = vshll.u32 2131351028, %v5931
        %v5941 = vshrl.u32 2102212464, %v5932
        %v5942 = vor.u32 %v5940, %v5941
        %v5943 = vshll.u32 2102212464, %v5931
        %v5944 = vshrl.u32 920167782, %v5932
        %v5945 = vor.u32 %v5943, %v5944
        %v5946 = vshll.u32 920167782, %v5931
        %v5947 = vshrl.u32 1326507024, %v5932
        %v5948 = vor.u32 %v5946, %v5947
        %vm5949 = vcmp.lt.s32.totalorder %v5930, 1
        %vm5950 = vcmp.lt.s32.totalorder %v5930, 2
        %vm5951 = vcmp.lt.s32.totalorder %v5930, 3
        %vm5952 = vcmp.lt.s32.totalorder %v5930, 4
        %v5953 = vsel %vm5949, %v5933, %v5936
        %v5954 = vsel %vm5952, %v5942, 2102212464
        %v5955 = vsel %vm5951, %v5939, %v5954
        %v5956 = vsel %vm5950, %v5953, %v5955
        %v5957 = vsel %vm5949, %v5936, %v5939
        %v5958 = vsel %vm5952, %v5945, 920167782
        %v5959 = vsel %vm5951, %v5942, %v5958
        %v5960 = vsel %vm5950, %v5957, %v5959
        %v5961 = vsel %vm5949, %v5939, %v5942
        %v5962 = vsel %vm5952, %v5948, 1326507024
        %v5963 = vsel %vm5951, %v5945, %v5962
        %v5964 = vsel %vm5950, %v5961, %v5963
        %v5965 = vshll.u32 %v5925, 8
        %v5966 = vand.u32 %v5965, 65535
        %v5967 = vshrl.u32 %v5965, 16
        %v5968 = vand.u32 %v5964, 65535
        %v5969 = vshrl.u32 %v5964, 16
        %v5970 = vmul.u32 %v5966, %v5968
        %v5971 = vmul.u32 %v5966, %v5969
        %v5972 = vmul.u32 %v5967, %v5968
        %v5973 = vmul.u32 %v5967, %v5969
        %v5974 = vshll.u32 %v5971, 16
        %v5975 = vshrl.u32 %v5971, 16
        %v5976 = vshll.u32 %v5972, 16
        %v5977 = vshrl.u32 %v5972, 16
        %vm5978 = vc.u32 %v5970, %v5974
        %v5979 = vsel %vm5978, 1, 0
        %v5980 = vadd.s32 %v5970, %v5974
        %v5981 = vadd.s32 %v5973, %v5979
        %vm5982 = vc.u32 %v5980, %v5976
        %v5983 = vsel %vm5982, 1, 0
        %v5984 = vadd.s32 %v5980, %v5976
        %v5985 = vadd.s32 %v5981, %v5983
        %v5986 = vadd.s32 %v5985, %v5975
        %v5987 = vadd.s32 %v5986, %v5977
        %v5988 = vand.u32 %v5965, 65535
        %v5989 = vshrl.u32 %v5965, 16
        %v5990 = vand.u32 %v5960, 65535
        %v5991 = vshrl.u32 %v5960, 16
        %v5992 = vmul.u32 %v5988, %v5990
        %v5993 = vmul.u32 %v5988, %v5991
        %v5994 = vmul.u32 %v5989, %v5990
        %v5995 = vmul.u32 %v5989, %v5991
        %v5996 = vshll.u32 %v5993, 16
        %v5997 = vshrl.u32 %v5993, 16
        %v5998 = vshll.u32 %v5994, 16
        %v5999 = vshrl.u32 %v5994, 16
        %vm6000 = vc.u32 %v5992, %v5996
        %v6001 = vsel %vm6000, 1, 0
        %v6002 = vadd.s32 %v5992, %v5996
        %v6003 = vadd.s32 %v5995, %v6001
        %vm6004 = vc.u32 %v6002, %v5998
        %v6005 = vsel %vm6004, 1, 0
        %v6006 = vadd.s32 %v6002, %v5998
        %v6007 = vadd.s32 %v6003, %v6005
        %v6008 = vadd.s32 %v6007, %v5997
        %v6009 = vadd.s32 %v6008, %v5999
        %v6010 = vmul.u32 %v5965, %v5956
        %v6011 = vadd.s32 %v5987, %v6006
        %vm6012 = vc.u32 %v5987, %v6006
        %v6013 = vadd.s32 %v6009, 1
        %v6014 = vsel %vm6012, %v6013, %v6009
        %v6015 = vadd.s32 %v6010, %v6014
        %v6016 = vadd.s32 %v6015, 536870912
        %v6017 = vshrl.u32 %v6016, 30
        %v6018 = vshll.u32 %v6017, 30
        %v6019 = vsub.s32 %v6015, %v6018
        %vm6020 = vcmp.lt.s32.totalorder %v6019, 0
        %v6021 = vsub.s32 0, %v6019
        %v6022 = vsel %vm6020, %v6021, %v6019
        %v6023 = vclz %v6022
        %v6024 = vsub.s32 %v6023, 2
        %vm6025 = vcmp.gt.s32.totalorder 0, %v6024
        %v6026 = vsel %vm6025, 0, %v6024
        %v6027 = vsub.s32 32, %v6026
        %v6028 = vshll.u32 %v6019, %v6026
        %v6029 = vshrl.u32 %v6011, %v6027
        %v6030 = vor.u32 %v6028, %v6029
        %v6031 = vsub.s32 4294967266, %v6026
        %v6032 = vadd.s32 %v6031, 127
        %v6033 = vshll.u32 %v6032, 23
        %v6034 = vor.u32 4788187, %v6033
        %v6035 = vand.u32 2147483647, %v6034
        %v6037 = vcvt.s32.f32 %v6030
        %v6038 = vmul.f32 %v6037, %v6035
        %v6039 = vxor.u32 %v6038, 2147483648
        %v6040 = vsel %vm5919, %v6039, %v6038
        %v6041 = vsub.s32 4, %v6017
        %v6042 = vsel %vm5919, %v6041, %v6017
        %v6043 = vsel %vm5918, %v558, %v6040
        %v6044 = vsel %vm5918, 0, %v6042
        %v6045 = vmul.f32 %v6043, %v6043
        %v6046 = vmul.f32 %v6045, -0.001358992
        %v6047 = vadd.f32 %v6046, 0.041655596
        %v6048 = vmul.f32 %v6045, %v6047
        %v6049 = vadd.f32 %v6048, -0.4999988
        %v6050 = vmul.f32 %v6045, %v6049
        %v6051 = vadd.f32 1.0, %v6050
        %v6052 = vmul.f32 %v6043, %v6043
        %v6053 = vmul.f32 %v6052, -0.00019511016
        %v6054 = vadd.f32 %v6053, 0.008332121
        %v6055 = vmul.f32 %v6052, %v6054
        %v6056 = vadd.f32 %v6055, -0.16666654
        %v6057 = vmul.f32 %v6052, %v6056
        %v6058 = vadd.f32 %v6057, 1.0
        %v6059 = vmul.f32 %v6058, %v6043
        %vm6060 = vweird.f32 %v558
        %v6061 = vadd.s32 %v6044, 3
        %v6062 = vand.u32 %v6061, 3
        %vm6063 = vcmp.lt.s32.totalorder %v6062, 2
        %vm6064 = vcmp.eq.s32.totalorder %v6062, 0
        %v6065 = vxor.u32 %v6059, 2147483648
        %v6066 = vsel %vm6064, %v6051, %v6065
        %vm6067 = vcmp.eq.s32.totalorder %v6062, 2
        %v6068 = vxor.u32 %v6051, 2147483648
        %v6069 = vsel %vm6067, %v6068, %v6059
        %v6070 = vsel %vm6063, %v6066, %v6069
        %v6071 = vsel %vm6060, nan, %v6070
        %v6072 = vand.u32 2147483647, %v561
        %vm6073 = vcmp.le.f32.partialorder %v6072, 0.7853982
        %vm6074 = vcmp.lt.s32.totalorder %v561, 0
        %v6075 = vand.u32 %v561, 2139095040
        %v6076 = vshrl.u32 %v6075, 23
        %v6077 = vsub.s32 %v6076, 127
        %v6078 = vand.u32 2147483647, %v561
        %v6079 = vand.u32 %v6078, 8388607
        %v6080 = vor.u32 %v6079, 8388608
        %v6081 = vsub.s32 0, %v6080
        %v6082 = vadd.s32 %v6077, 1
        %vm6083 = vcmp.gt.s32.totalorder %v6082, 0
        %v6084 = vsel %vm6083, %v6082, 0
        %v6085 = vshrl.u32 %v6084, 5
        %v6086 = vand.u32 %v6084, 31
        %v6087 = vsub.s32 32, %v6086
        %v6088 = vshrl.u32 683565275, %v6087
        %v6089 = vshll.u32 683565275, %v6086
        %v6090 = vshrl.u32 2475754826, %v6087
        %v6091 = vor.u32 %v6089, %v6090
        %v6092 = vshll.u32 2475754826, %v6086
        %v6093 = vshrl.u32 2131351028, %v6087
        %v6094 = vor.u32 %v6092, %v6093
        %v6095 = vshll.u32 2131351028, %v6086
        %v6096 = vshrl.u32 2102212464, %v6087
        %v6097 = vor.u32 %v6095, %v6096
        %v6098 = vshll.u32 2102212464, %v6086
        %v6099 = vshrl.u32 920167782, %v6087
        %v6100 = vor.u32 %v6098, %v6099
        %v6101 = vshll.u32 920167782, %v6086
        %v6102 = vshrl.u32 1326507024, %v6087
        %v6103 = vor.u32 %v6101, %v6102
        %vm6104 = vcmp.lt.s32.totalorder %v6085, 1
        %vm6105 = vcmp.lt.s32.totalorder %v6085, 2
        %vm6106 = vcmp.lt.s32.totalorder %v6085, 3
        %vm6107 = vcmp.lt.s32.totalorder %v6085, 4
        %v6108 = vsel %vm6104, %v6088, %v6091
        %v6109 = vsel %vm6107, %v6097, 2102212464
        %v6110 = vsel %vm6106, %v6094, %v6109
        %v6111 = vsel %vm6105, %v6108, %v6110
        %v6112 = vsel %vm6104, %v6091, %v6094
        %v6113 = vsel %vm6107, %v6100, 920167782
        %v6114 = vsel %vm6106, %v6097, %v6113
        %v6115 = vsel %vm6105, %v6112, %v6114
        %v6116 = vsel %vm6104, %v6094, %v6097
        %v6117 = vsel %vm6107, %v6103, 1326507024
        %v6118 = vsel %vm6106, %v6100, %v6117
        %v6119 = vsel %vm6105, %v6116, %v6118
        %v6120 = vshll.u32 %v6080, 8
        %v6121 = vand.u32 %v6120, 65535
        %v6122 = vshrl.u32 %v6120, 16
        %v6123 = vand.u32 %v6119, 65535
        %v6124 = vshrl.u32 %v6119, 16
        %v6125 = vmul.u32 %v6121, %v6123
        %v6126 = vmul.u32 %v6121, %v6124
        %v6127 = vmul.u32 %v6122, %v6123
        %v6128 = vmul.u32 %v6122, %v6124
        %v6129 = vshll.u32 %v6126, 16
        %v6130 = vshrl.u32 %v6126, 16
        %v6131 = vshll.u32 %v6127, 16
        %v6132 = vshrl.u32 %v6127, 16
        %vm6133 = vc.u32 %v6125, %v6129
        %v6134 = vsel %vm6133, 1, 0
        %v6135 = vadd.s32 %v6125, %v6129
        %v6136 = vadd.s32 %v6128, %v6134
        %vm6137 = vc.u32 %v6135, %v6131
        %v6138 = vsel %vm6137, 1, 0
        %v6139 = vadd.s32 %v6135, %v6131
        %v6140 = vadd.s32 %v6136, %v6138
        %v6141 = vadd.s32 %v6140, %v6130
        %v6142 = vadd.s32 %v6141, %v6132
        %v6143 = vand.u32 %v6120, 65535
        %v6144 = vshrl.u32 %v6120, 16
        %v6145 = vand.u32 %v6115, 65535
        %v6146 = vshrl.u32 %v6115, 16
        %v6147 = vmul.u32 %v6143, %v6145
        %v6148 = vmul.u32 %v6143, %v6146
        %v6149 = vmul.u32 %v6144, %v6145
        %v6150 = vmul.u32 %v6144, %v6146
        %v6151 = vshll.u32 %v6148, 16
        %v6152 = vshrl.u32 %v6148, 16
        %v6153 = vshll.u32 %v6149, 16
        %v6154 = vshrl.u32 %v6149, 16
        %vm6155 = vc.u32 %v6147, %v6151
        %v6156 = vsel %vm6155, 1, 0
        %v6157 = vadd.s32 %v6147, %v6151
        %v6158 = vadd.s32 %v6150, %v6156
        %vm6159 = vc.u32 %v6157, %v6153
        %v6160 = vsel %vm6159, 1, 0
        %v6161 = vadd.s32 %v6157, %v6153
        %v6162 = vadd.s32 %v6158, %v6160
        %v6163 = vadd.s32 %v6162, %v6152
        %v6164 = vadd.s32 %v6163, %v6154
        %v6165 = vmul.u32 %v6120, %v6111
        %v6166 = vadd.s32 %v6142, %v6161
        %vm6167 = vc.u32 %v6142, %v6161
        %v6168 = vadd.s32 %v6164, 1
        %v6169 = vsel %vm6167, %v6168, %v6164
        %v6170 = vadd.s32 %v6165, %v6169
        %v6171 = vadd.s32 %v6170, 536870912
        %v6172 = vshrl.u32 %v6171, 30
        %v6173 = vshll.u32 %v6172, 30
        %v6174 = vsub.s32 %v6170, %v6173
        %vm6175 = vcmp.lt.s32.totalorder %v6174, 0
        %v6176 = vsub.s32 0, %v6174
        %v6177 = vsel %vm6175, %v6176, %v6174
        %v6178 = vclz %v6177
        %v6179 = vsub.s32 %v6178, 2
        %vm6180 = vcmp.gt.s32.totalorder 0, %v6179
        %v6181 = vsel %vm6180, 0, %v6179
        %v6182 = vsub.s32 32, %v6181
        %v6183 = vshll.u32 %v6174, %v6181
        %v6184 = vshrl.u32 %v6166, %v6182
        %v6185 = vor.u32 %v6183, %v6184
        %v6186 = vsub.s32 4294967266, %v6181
        %v6187 = vadd.s32 %v6186, 127
        %v6188 = vshll.u32 %v6187, 23
        %v6189 = vor.u32 4788187, %v6188
        %v6190 = vand.u32 2147483647, %v6189
        %v6192 = vcvt.s32.f32 %v6185
        %v6193 = vmul.f32 %v6192, %v6190
        %v6194 = vxor.u32 %v6193, 2147483648
        %v6195 = vsel %vm6074, %v6194, %v6193
        %v6196 = vsub.s32 4, %v6172
        %v6197 = vsel %vm6074, %v6196, %v6172
        %v6198 = vsel %vm6073, %v561, %v6195
        %v6199 = vsel %vm6073, 0, %v6197
        %v6200 = vmul.f32 %v6198, %v6198
        %v6201 = vmul.f32 %v6200, -0.001358992
        %v6202 = vadd.f32 %v6201, 0.041655596
        %v6203 = vmul.f32 %v6200, %v6202
        %v6204 = vadd.f32 %v6203, -0.4999988
        %v6205 = vmul.f32 %v6200, %v6204
        %v6206 = vadd.f32 1.0, %v6205
        %v6207 = vmul.f32 %v6198, %v6198
        %v6208 = vmul.f32 %v6207, -0.00019511016
        %v6209 = vadd.f32 %v6208, 0.008332121
        %v6210 = vmul.f32 %v6207, %v6209
        %v6211 = vadd.f32 %v6210, -0.16666654
        %v6212 = vmul.f32 %v6207, %v6211
        %v6213 = vadd.f32 %v6212, 1.0
        %v6214 = vmul.f32 %v6213, %v6198
        %vm6215 = vweird.f32 %v561
        %v6216 = vadd.s32 %v6199, 3
        %v6217 = vand.u32 %v6216, 3
        %vm6218 = vcmp.lt.s32.totalorder %v6217, 2
        %vm6219 = vcmp.eq.s32.totalorder %v6217, 0
        %v6220 = vxor.u32 %v6214, 2147483648
        %v6221 = vsel %vm6219, %v6206, %v6220
        %vm6222 = vcmp.eq.s32.totalorder %v6217, 2
        %v6223 = vxor.u32 %v6206, 2147483648
        %v6224 = vsel %vm6222, %v6223, %v6214
        %v6225 = vsel %vm6218, %v6221, %v6224
        %v6226 = vsel %vm6215, nan, %v6225
        %v6227 = vand.u32 2147483647, %v564
        %vm6228 = vcmp.le.f32.partialorder %v6227, 0.7853982
        %vm6229 = vcmp.lt.s32.totalorder %v564, 0
        %v6230 = vand.u32 %v564, 2139095040
        %v6231 = vshrl.u32 %v6230, 23
        %v6232 = vsub.s32 %v6231, 127
        %v6233 = vand.u32 2147483647, %v564
        %v6234 = vand.u32 %v6233, 8388607
        %v6235 = vor.u32 %v6234, 8388608
        %v6236 = vsub.s32 0, %v6235
        %v6237 = vadd.s32 %v6232, 1
        %vm6238 = vcmp.gt.s32.totalorder %v6237, 0
        %v6239 = vsel %vm6238, %v6237, 0
        %v6240 = vshrl.u32 %v6239, 5
        %v6241 = vand.u32 %v6239, 31
        %v6242 = vsub.s32 32, %v6241
        %v6243 = vshrl.u32 683565275, %v6242
        %v6244 = vshll.u32 683565275, %v6241
        %v6245 = vshrl.u32 2475754826, %v6242
        %v6246 = vor.u32 %v6244, %v6245
        %v6247 = vshll.u32 2475754826, %v6241
        %v6248 = vshrl.u32 2131351028, %v6242
        %v6249 = vor.u32 %v6247, %v6248
        %v6250 = vshll.u32 2131351028, %v6241
        %v6251 = vshrl.u32 2102212464, %v6242
        %v6252 = vor.u32 %v6250, %v6251
        %v6253 = vshll.u32 2102212464, %v6241
        %v6254 = vshrl.u32 920167782, %v6242
        %v6255 = vor.u32 %v6253, %v6254
        %v6256 = vshll.u32 920167782, %v6241
        %v6257 = vshrl.u32 1326507024, %v6242
        %v6258 = vor.u32 %v6256, %v6257
        %vm6259 = vcmp.lt.s32.totalorder %v6240, 1
        %vm6260 = vcmp.lt.s32.totalorder %v6240, 2
        %vm6261 = vcmp.lt.s32.totalorder %v6240, 3
        %vm6262 = vcmp.lt.s32.totalorder %v6240, 4
        %v6263 = vsel %vm6259, %v6243, %v6246
        %v6264 = vsel %vm6262, %v6252, 2102212464
        %v6265 = vsel %vm6261, %v6249, %v6264
        %v6266 = vsel %vm6260, %v6263, %v6265
        %v6267 = vsel %vm6259, %v6246, %v6249
        %v6268 = vsel %vm6262, %v6255, 920167782
        %v6269 = vsel %vm6261, %v6252, %v6268
        %v6270 = vsel %vm6260, %v6267, %v6269
        %v6271 = vsel %vm6259, %v6249, %v6252
        %v6272 = vsel %vm6262, %v6258, 1326507024
        %v6273 = vsel %vm6261, %v6255, %v6272
        %v6274 = vsel %vm6260, %v6271, %v6273
        %v6275 = vshll.u32 %v6235, 8
        %v6276 = vand.u32 %v6275, 65535
        %v6277 = vshrl.u32 %v6275, 16
        %v6278 = vand.u32 %v6274, 65535
        %v6279 = vshrl.u32 %v6274, 16
        %v6280 = vmul.u32 %v6276, %v6278
        %v6281 = vmul.u32 %v6276, %v6279
        %v6282 = vmul.u32 %v6277, %v6278
        %v6283 = vmul.u32 %v6277, %v6279
        %v6284 = vshll.u32 %v6281, 16
        %v6285 = vshrl.u32 %v6281, 16
        %v6286 = vshll.u32 %v6282, 16
        %v6287 = vshrl.u32 %v6282, 16
        %vm6288 = vc.u32 %v6280, %v6284
        %v6289 = vsel %vm6288, 1, 0
        %v6290 = vadd.s32 %v6280, %v6284
        %v6291 = vadd.s32 %v6283, %v6289
        %vm6292 = vc.u32 %v6290, %v6286
        %v6293 = vsel %vm6292, 1, 0
        %v6294 = vadd.s32 %v6290, %v6286
        %v6295 = vadd.s32 %v6291, %v6293
        %v6296 = vadd.s32 %v6295, %v6285
        %v6297 = vadd.s32 %v6296, %v6287
        %v6298 = vand.u32 %v6275, 65535
        %v6299 = vshrl.u32 %v6275, 16
        %v6300 = vand.u32 %v6270, 65535
        %v6301 = vshrl.u32 %v6270, 16
        %v6302 = vmul.u32 %v6298, %v6300
        %v6303 = vmul.u32 %v6298, %v6301
        %v6304 = vmul.u32 %v6299, %v6300
        %v6305 = vmul.u32 %v6299, %v6301
        %v6306 = vshll.u32 %v6303, 16
        %v6307 = vshrl.u32 %v6303, 16
        %v6308 = vshll.u32 %v6304, 16
        %v6309 = vshrl.u32 %v6304, 16
        %vm6310 = vc.u32 %v6302, %v6306
        %v6311 = vsel %vm6310, 1, 0
        %v6312 = vadd.s32 %v6302, %v6306
        %v6313 = vadd.s32 %v6305, %v6311
        %vm6314 = vc.u32 %v6312, %v6308
        %v6315 = vsel %vm6314, 1, 0
        %v6316 = vadd.s32 %v6312, %v6308
        %v6317 = vadd.s32 %v6313, %v6315
        %v6318 = vadd.s32 %v6317, %v6307
        %v6319 = vadd.s32 %v6318, %v6309
        %v6320 = vmul.u32 %v6275, %v6266
        %v6321 = vadd.s32 %v6297, %v6316
        %vm6322 = vc.u32 %v6297, %v6316
        %v6323 = vadd.s32 %v6319, 1
        %v6324 = vsel %vm6322, %v6323, %v6319
        %v6325 = vadd.s32 %v6320, %v6324
        %v6326 = vadd.s32 %v6325, 536870912
        %v6327 = vshrl.u32 %v6326, 30
        %v6328 = vshll.u32 %v6327, 30
        %v6329 = vsub.s32 %v6325, %v6328
        %vm6330 = vcmp.lt.s32.totalorder %v6329, 0
        %v6331 = vsub.s32 0, %v6329
        %v6332 = vsel %vm6330, %v6331, %v6329
        %v6333 = vclz %v6332
        %v6334 = vsub.s32 %v6333, 2
        %vm6335 = vcmp.gt.s32.totalorder 0, %v6334
        %v6336 = vsel %vm6335, 0, %v6334
        %v6337 = vsub.s32 32, %v6336
        %v6338 = vshll.u32 %v6329, %v6336
        %v6339 = vshrl.u32 %v6321, %v6337
        %v6340 = vor.u32 %v6338, %v6339
        %v6341 = vsub.s32 4294967266, %v6336
        %v6342 = vadd.s32 %v6341, 127
        %v6343 = vshll.u32 %v6342, 23
        %v6344 = vor.u32 4788187, %v6343
        %v6345 = vand.u32 2147483647, %v6344
        %v6347 = vcvt.s32.f32 %v6340
        %v6348 = vmul.f32 %v6347, %v6345
        %v6349 = vxor.u32 %v6348, 2147483648
        %v6350 = vsel %vm6229, %v6349, %v6348
        %v6351 = vsub.s32 4, %v6327
        %v6352 = vsel %vm6229, %v6351, %v6327
        %v6353 = vsel %vm6228, %v564, %v6350
        %v6354 = vsel %vm6228, 0, %v6352
        %v6355 = vmul.f32 %v6353, %v6353
        %v6356 = vmul.f32 %v6355, -0.001358992
        %v6357 = vadd.f32 %v6356, 0.041655596
        %v6358 = vmul.f32 %v6355, %v6357
        %v6359 = vadd.f32 %v6358, -0.4999988
        %v6360 = vmul.f32 %v6355, %v6359
        %v6361 = vadd.f32 1.0, %v6360
        %v6362 = vmul.f32 %v6353, %v6353
        %v6363 = vmul.f32 %v6362, -0.00019511016
        %v6364 = vadd.f32 %v6363, 0.008332121
        %v6365 = vmul.f32 %v6362, %v6364
        %v6366 = vadd.f32 %v6365, -0.16666654
        %v6367 = vmul.f32 %v6362, %v6366
        %v6368 = vadd.f32 %v6367, 1.0
        %v6369 = vmul.f32 %v6368, %v6353
        %vm6370 = vweird.f32 %v564
        %v6371 = vadd.s32 %v6354, 3
        %v6372 = vand.u32 %v6371, 3
        %vm6373 = vcmp.lt.s32.totalorder %v6372, 2
        %vm6374 = vcmp.eq.s32.totalorder %v6372, 0
        %v6375 = vxor.u32 %v6369, 2147483648
        %v6376 = vsel %vm6374, %v6361, %v6375
        %vm6377 = vcmp.eq.s32.totalorder %v6372, 2
        %v6378 = vxor.u32 %v6361, 2147483648
        %v6379 = vsel %vm6377, %v6378, %v6369
        %v6380 = vsel %vm6373, %v6376, %v6379
        %v6381 = vsel %vm6370, nan, %v6380
        %v6382 = vand.u32 2147483647, %v567
        %vm6383 = vcmp.le.f32.partialorder %v6382, 0.7853982
        %vm6384 = vcmp.lt.s32.totalorder %v567, 0
        %v6385 = vand.u32 %v567, 2139095040
        %v6386 = vshrl.u32 %v6385, 23
        %v6387 = vsub.s32 %v6386, 127
        %v6388 = vand.u32 2147483647, %v567
        %v6389 = vand.u32 %v6388, 8388607
        %v6390 = vor.u32 %v6389, 8388608
        %v6391 = vsub.s32 0, %v6390
        %v6392 = vadd.s32 %v6387, 1
        %vm6393 = vcmp.gt.s32.totalorder %v6392, 0
        %v6394 = vsel %vm6393, %v6392, 0
        %v6395 = vshrl.u32 %v6394, 5
        %v6396 = vand.u32 %v6394, 31
        %v6397 = vsub.s32 32, %v6396
        %v6398 = vshrl.u32 683565275, %v6397
        %v6399 = vshll.u32 683565275, %v6396
        %v6400 = vshrl.u32 2475754826, %v6397
        %v6401 = vor.u32 %v6399, %v6400
        %v6402 = vshll.u32 2475754826, %v6396
        %v6403 = vshrl.u32 2131351028, %v6397
        %v6404 = vor.u32 %v6402, %v6403
        %v6405 = vshll.u32 2131351028, %v6396
        %v6406 = vshrl.u32 2102212464, %v6397
        %v6407 = vor.u32 %v6405, %v6406
        %v6408 = vshll.u32 2102212464, %v6396
        %v6409 = vshrl.u32 920167782, %v6397
        %v6410 = vor.u32 %v6408, %v6409
        %v6411 = vshll.u32 920167782, %v6396
        %v6412 = vshrl.u32 1326507024, %v6397
        %v6413 = vor.u32 %v6411, %v6412
        %vm6414 = vcmp.lt.s32.totalorder %v6395, 1
        %vm6415 = vcmp.lt.s32.totalorder %v6395, 2
        %vm6416 = vcmp.lt.s32.totalorder %v6395, 3
        %vm6417 = vcmp.lt.s32.totalorder %v6395, 4
        %v6418 = vsel %vm6414, %v6398, %v6401
        %v6419 = vsel %vm6417, %v6407, 2102212464
        %v6420 = vsel %vm6416, %v6404, %v6419
        %v6421 = vsel %vm6415, %v6418, %v6420
        %v6422 = vsel %vm6414, %v6401, %v6404
        %v6423 = vsel %vm6417, %v6410, 920167782
        %v6424 = vsel %vm6416, %v6407, %v6423
        %v6425 = vsel %vm6415, %v6422, %v6424
        %v6426 = vsel %vm6414, %v6404, %v6407
        %v6427 = vsel %vm6417, %v6413, 1326507024
        %v6428 = vsel %vm6416, %v6410, %v6427
        %v6429 = vsel %vm6415, %v6426, %v6428
        %v6430 = vshll.u32 %v6390, 8
        %v6431 = vand.u32 %v6430, 65535
        %v6432 = vshrl.u32 %v6430, 16
        %v6433 = vand.u32 %v6429, 65535
        %v6434 = vshrl.u32 %v6429, 16
        %v6435 = vmul.u32 %v6431, %v6433
        %v6436 = vmul.u32 %v6431, %v6434
        %v6437 = vmul.u32 %v6432, %v6433
        %v6438 = vmul.u32 %v6432, %v6434
        %v6439 = vshll.u32 %v6436, 16
        %v6440 = vshrl.u32 %v6436, 16
        %v6441 = vshll.u32 %v6437, 16
        %v6442 = vshrl.u32 %v6437, 16
        %vm6443 = vc.u32 %v6435, %v6439
        %v6444 = vsel %vm6443, 1, 0
        %v6445 = vadd.s32 %v6435, %v6439
        %v6446 = vadd.s32 %v6438, %v6444
        %vm6447 = vc.u32 %v6445, %v6441
        %v6448 = vsel %vm6447, 1, 0
        %v6449 = vadd.s32 %v6445, %v6441
        %v6450 = vadd.s32 %v6446, %v6448
        %v6451 = vadd.s32 %v6450, %v6440
        %v6452 = vadd.s32 %v6451, %v6442
        %v6453 = vand.u32 %v6430, 65535
        %v6454 = vshrl.u32 %v6430, 16
        %v6455 = vand.u32 %v6425, 65535
        %v6456 = vshrl.u32 %v6425, 16
        %v6457 = vmul.u32 %v6453, %v6455
        %v6458 = vmul.u32 %v6453, %v6456
        %v6459 = vmul.u32 %v6454, %v6455
        %v6460 = vmul.u32 %v6454, %v6456
        %v6461 = vshll.u32 %v6458, 16
        %v6462 = vshrl.u32 %v6458, 16
        %v6463 = vshll.u32 %v6459, 16
        %v6464 = vshrl.u32 %v6459, 16
        %vm6465 = vc.u32 %v6457, %v6461
        %v6466 = vsel %vm6465, 1, 0
        %v6467 = vadd.s32 %v6457, %v6461
        %v6468 = vadd.s32 %v6460, %v6466
        %vm6469 = vc.u32 %v6467, %v6463
        %v6470 = vsel %vm6469, 1, 0
        %v6471 = vadd.s32 %v6467, %v6463
        %v6472 = vadd.s32 %v6468, %v6470
        %v6473 = vadd.s32 %v6472, %v6462
        %v6474 = vadd.s32 %v6473, %v6464
        %v6475 = vmul.u32 %v6430, %v6421
        %v6476 = vadd.s32 %v6452, %v6471
        %vm6477 = vc.u32 %v6452, %v6471
        %v6478 = vadd.s32 %v6474, 1
        %v6479 = vsel %vm6477, %v6478, %v6474
        %v6480 = vadd.s32 %v6475, %v6479
        %v6481 = vadd.s32 %v6480, 536870912
        %v6482 = vshrl.u32 %v6481, 30
        %v6483 = vshll.u32 %v6482, 30
        %v6484 = vsub.s32 %v6480, %v6483
        %vm6485 = vcmp.lt.s32.totalorder %v6484, 0
        %v6486 = vsub.s32 0, %v6484
        %v6487 = vsel %vm6485, %v6486, %v6484
        %v6488 = vclz %v6487
        %v6489 = vsub.s32 %v6488, 2
        %vm6490 = vcmp.gt.s32.totalorder 0, %v6489
        %v6491 = vsel %vm6490, 0, %v6489
        %v6492 = vsub.s32 32, %v6491
        %v6493 = vshll.u32 %v6484, %v6491
        %v6494 = vshrl.u32 %v6476, %v6492
        %v6495 = vor.u32 %v6493, %v6494
        %v6496 = vsub.s32 4294967266, %v6491
        %v6497 = vadd.s32 %v6496, 127
        %v6498 = vshll.u32 %v6497, 23
        %v6499 = vor.u32 4788187, %v6498
        %v6500 = vand.u32 2147483647, %v6499
        %v6502 = vcvt.s32.f32 %v6495
        %v6503 = vmul.f32 %v6502, %v6500
        %v6504 = vxor.u32 %v6503, 2147483648
        %v6505 = vsel %vm6384, %v6504, %v6503
        %v6506 = vsub.s32 4, %v6482
        %v6507 = vsel %vm6384, %v6506, %v6482
        %v6508 = vsel %vm6383, %v567, %v6505
        %v6509 = vsel %vm6383, 0, %v6507
        %v6510 = vmul.f32 %v6508, %v6508
        %v6511 = vmul.f32 %v6510, -0.001358992
        %v6512 = vadd.f32 %v6511, 0.041655596
        %v6513 = vmul.f32 %v6510, %v6512
        %v6514 = vadd.f32 %v6513, -0.4999988
        %v6515 = vmul.f32 %v6510, %v6514
        %v6516 = vadd.f32 1.0, %v6515
        %v6517 = vmul.f32 %v6508, %v6508
        %v6518 = vmul.f32 %v6517, -0.00019511016
        %v6519 = vadd.f32 %v6518, 0.008332121
        %v6520 = vmul.f32 %v6517, %v6519
        %v6521 = vadd.f32 %v6520, -0.16666654
        %v6522 = vmul.f32 %v6517, %v6521
        %v6523 = vadd.f32 %v6522, 1.0
        %v6524 = vmul.f32 %v6523, %v6508
        %vm6525 = vweird.f32 %v567
        %v6526 = vadd.s32 %v6509, 3
        %v6527 = vand.u32 %v6526, 3
        %vm6528 = vcmp.lt.s32.totalorder %v6527, 2
        %vm6529 = vcmp.eq.s32.totalorder %v6527, 0
        %v6530 = vxor.u32 %v6524, 2147483648
        %v6531 = vsel %vm6529, %v6516, %v6530
        %vm6532 = vcmp.eq.s32.totalorder %v6527, 2
        %v6533 = vxor.u32 %v6516, 2147483648
        %v6534 = vsel %vm6532, %v6533, %v6524
        %v6535 = vsel %vm6528, %v6531, %v6534
        %v6536 = vsel %vm6525, nan, %v6535
        %v6537 = vand.u32 2147483647, %v570
        %vm6538 = vcmp.le.f32.partialorder %v6537, 0.7853982
        %vm6539 = vcmp.lt.s32.totalorder %v570, 0
        %v6540 = vand.u32 %v570, 2139095040
        %v6541 = vshrl.u32 %v6540, 23
        %v6542 = vsub.s32 %v6541, 127
        %v6543 = vand.u32 2147483647, %v570
        %v6544 = vand.u32 %v6543, 8388607
        %v6545 = vor.u32 %v6544, 8388608
        %v6546 = vsub.s32 0, %v6545
        %v6547 = vadd.s32 %v6542, 1
        %vm6548 = vcmp.gt.s32.totalorder %v6547, 0
        %v6549 = vsel %vm6548, %v6547, 0
        %v6550 = vshrl.u32 %v6549, 5
        %v6551 = vand.u32 %v6549, 31
        %v6552 = vsub.s32 32, %v6551
        %v6553 = vshrl.u32 683565275, %v6552
        %v6554 = vshll.u32 683565275, %v6551
        %v6555 = vshrl.u32 2475754826, %v6552
        %v6556 = vor.u32 %v6554, %v6555
        %v6557 = vshll.u32 2475754826, %v6551
        %v6558 = vshrl.u32 2131351028, %v6552
        %v6559 = vor.u32 %v6557, %v6558
        %v6560 = vshll.u32 2131351028, %v6551
        %v6561 = vshrl.u32 2102212464, %v6552
        %v6562 = vor.u32 %v6560, %v6561
        %v6563 = vshll.u32 2102212464, %v6551
        %v6564 = vshrl.u32 920167782, %v6552
        %v6565 = vor.u32 %v6563, %v6564
        %v6566 = vshll.u32 920167782, %v6551
        %v6567 = vshrl.u32 1326507024, %v6552
        %v6568 = vor.u32 %v6566, %v6567
        %vm6569 = vcmp.lt.s32.totalorder %v6550, 1
        %vm6570 = vcmp.lt.s32.totalorder %v6550, 2
        %vm6571 = vcmp.lt.s32.totalorder %v6550, 3
        %vm6572 = vcmp.lt.s32.totalorder %v6550, 4
        %v6573 = vsel %vm6569, %v6553, %v6556
        %v6574 = vsel %vm6572, %v6562, 2102212464
        %v6575 = vsel %vm6571, %v6559, %v6574
        %v6576 = vsel %vm6570, %v6573, %v6575
        %v6577 = vsel %vm6569, %v6556, %v6559
        %v6578 = vsel %vm6572, %v6565, 920167782
        %v6579 = vsel %vm6571, %v6562, %v6578
        %v6580 = vsel %vm6570, %v6577, %v6579
        %v6581 = vsel %vm6569, %v6559, %v6562
        %v6582 = vsel %vm6572, %v6568, 1326507024
        %v6583 = vsel %vm6571, %v6565, %v6582
        %v6584 = vsel %vm6570, %v6581, %v6583
        %v6585 = vshll.u32 %v6545, 8
        %v6586 = vand.u32 %v6585, 65535
        %v6587 = vshrl.u32 %v6585, 16
        %v6588 = vand.u32 %v6584, 65535
        %v6589 = vshrl.u32 %v6584, 16
        %v6590 = vmul.u32 %v6586, %v6588
        %v6591 = vmul.u32 %v6586, %v6589
        %v6592 = vmul.u32 %v6587, %v6588
        %v6593 = vmul.u32 %v6587, %v6589
        %v6594 = vshll.u32 %v6591, 16
        %v6595 = vshrl.u32 %v6591, 16
        %v6596 = vshll.u32 %v6592, 16
        %v6597 = vshrl.u32 %v6592, 16
        %vm6598 = vc.u32 %v6590, %v6594
        %v6599 = vsel %vm6598, 1, 0
        %v6600 = vadd.s32 %v6590, %v6594
        %v6601 = vadd.s32 %v6593, %v6599
        %vm6602 = vc.u32 %v6600, %v6596
        %v6603 = vsel %vm6602, 1, 0
        %v6604 = vadd.s32 %v6600, %v6596
        %v6605 = vadd.s32 %v6601, %v6603
        %v6606 = vadd.s32 %v6605, %v6595
        %v6607 = vadd.s32 %v6606, %v6597
        %v6608 = vand.u32 %v6585, 65535
        %v6609 = vshrl.u32 %v6585, 16
        %v6610 = vand.u32 %v6580, 65535
        %v6611 = vshrl.u32 %v6580, 16
        %v6612 = vmul.u32 %v6608, %v6610
        %v6613 = vmul.u32 %v6608, %v6611
        %v6614 = vmul.u32 %v6609, %v6610
        %v6615 = vmul.u32 %v6609, %v6611
        %v6616 = vshll.u32 %v6613, 16
        %v6617 = vshrl.u32 %v6613, 16
        %v6618 = vshll.u32 %v6614, 16
        %v6619 = vshrl.u32 %v6614, 16
        %vm6620 = vc.u32 %v6612, %v6616
        %v6621 = vsel %vm6620, 1, 0
        %v6622 = vadd.s32 %v6612, %v6616
        %v6623 = vadd.s32 %v6615, %v6621
        %vm6624 = vc.u32 %v6622, %v6618
        %v6625 = vsel %vm6624, 1, 0
        %v6626 = vadd.s32 %v6622, %v6618
        %v6627 = vadd.s32 %v6623, %v6625
        %v6628 = vadd.s32 %v6627, %v6617
        %v6629 = vadd.s32 %v6628, %v6619
        %v6630 = vmul.u32 %v6585, %v6576
        %v6631 = vadd.s32 %v6607, %v6626
        %vm6632 = vc.u32 %v6607, %v6626
        %v6633 = vadd.s32 %v6629, 1
        %v6634 = vsel %vm6632, %v6633, %v6629
        %v6635 = vadd.s32 %v6630, %v6634
        %v6636 = vadd.s32 %v6635, 536870912
        %v6637 = vshrl.u32 %v6636, 30
        %v6638 = vshll.u32 %v6637, 30
        %v6639 = vsub.s32 %v6635, %v6638
        %vm6640 = vcmp.lt.s32.totalorder %v6639, 0
        %v6641 = vsub.s32 0, %v6639
        %v6642 = vsel %vm6640, %v6641, %v6639
        %v6643 = vclz %v6642
        %v6644 = vsub.s32 %v6643, 2
        %vm6645 = vcmp.gt.s32.totalorder 0, %v6644
        %v6646 = vsel %vm6645, 0, %v6644
        %v6647 = vsub.s32 32, %v6646
        %v6648 = vshll.u32 %v6639, %v6646
        %v6649 = vshrl.u32 %v6631, %v6647
        %v6650 = vor.u32 %v6648, %v6649
        %v6651 = vsub.s32 4294967266, %v6646
        %v6652 = vadd.s32 %v6651, 127
        %v6653 = vshll.u32 %v6652, 23
        %v6654 = vor.u32 4788187, %v6653
        %v6655 = vand.u32 2147483647, %v6654
        %v6657 = vcvt.s32.f32 %v6650
        %v6658 = vmul.f32 %v6657, %v6655
        %v6659 = vxor.u32 %v6658, 2147483648
        %v6660 = vsel %vm6539, %v6659, %v6658
        %v6661 = vsub.s32 4, %v6637
        %v6662 = vsel %vm6539, %v6661, %v6637
        %v6663 = vsel %vm6538, %v570, %v6660
        %v6664 = vsel %vm6538, 0, %v6662
        %v6665 = vmul.f32 %v6663, %v6663
        %v6666 = vmul.f32 %v6665, -0.001358992
        %v6667 = vadd.f32 %v6666, 0.041655596
        %v6668 = vmul.f32 %v6665, %v6667
        %v6669 = vadd.f32 %v6668, -0.4999988
        %v6670 = vmul.f32 %v6665, %v6669
        %v6671 = vadd.f32 1.0, %v6670
        %v6672 = vmul.f32 %v6663, %v6663
        %v6673 = vmul.f32 %v6672, -0.00019511016
        %v6674 = vadd.f32 %v6673, 0.008332121
        %v6675 = vmul.f32 %v6672, %v6674
        %v6676 = vadd.f32 %v6675, -0.16666654
        %v6677 = vmul.f32 %v6672, %v6676
        %v6678 = vadd.f32 %v6677, 1.0
        %v6679 = vmul.f32 %v6678, %v6663
        %vm6680 = vweird.f32 %v570
        %v6681 = vadd.s32 %v6664, 3
        %v6682 = vand.u32 %v6681, 3
        %vm6683 = vcmp.lt.s32.totalorder %v6682, 2
        %vm6684 = vcmp.eq.s32.totalorder %v6682, 0
        %v6685 = vxor.u32 %v6679, 2147483648
        %v6686 = vsel %vm6684, %v6671, %v6685
        %vm6687 = vcmp.eq.s32.totalorder %v6682, 2
        %v6688 = vxor.u32 %v6671, 2147483648
        %v6689 = vsel %vm6687, %v6688, %v6679
        %v6690 = vsel %vm6683, %v6686, %v6689
        %v6691 = vsel %vm6680, nan, %v6690
        %v6692 = vand.u32 2147483647, %v573
        %vm6693 = vcmp.le.f32.partialorder %v6692, 0.7853982
        %vm6694 = vcmp.lt.s32.totalorder %v573, 0
        %v6695 = vand.u32 %v573, 2139095040
        %v6696 = vshrl.u32 %v6695, 23
        %v6697 = vsub.s32 %v6696, 127
        %v6698 = vand.u32 2147483647, %v573
        %v6699 = vand.u32 %v6698, 8388607
        %v6700 = vor.u32 %v6699, 8388608
        %v6701 = vsub.s32 0, %v6700
        %v6702 = vadd.s32 %v6697, 1
        %vm6703 = vcmp.gt.s32.totalorder %v6702, 0
        %v6704 = vsel %vm6703, %v6702, 0
        %v6705 = vshrl.u32 %v6704, 5
        %v6706 = vand.u32 %v6704, 31
        %v6707 = vsub.s32 32, %v6706
        %v6708 = vshrl.u32 683565275, %v6707
        %v6709 = vshll.u32 683565275, %v6706
        %v6710 = vshrl.u32 2475754826, %v6707
        %v6711 = vor.u32 %v6709, %v6710
        %v6712 = vshll.u32 2475754826, %v6706
        %v6713 = vshrl.u32 2131351028, %v6707
        %v6714 = vor.u32 %v6712, %v6713
        %v6715 = vshll.u32 2131351028, %v6706
        %v6716 = vshrl.u32 2102212464, %v6707
        %v6717 = vor.u32 %v6715, %v6716
        %v6718 = vshll.u32 2102212464, %v6706
        %v6719 = vshrl.u32 920167782, %v6707
        %v6720 = vor.u32 %v6718, %v6719
        %v6721 = vshll.u32 920167782, %v6706
        %v6722 = vshrl.u32 1326507024, %v6707
        %v6723 = vor.u32 %v6721, %v6722
        %vm6724 = vcmp.lt.s32.totalorder %v6705, 1
        %vm6725 = vcmp.lt.s32.totalorder %v6705, 2
        %vm6726 = vcmp.lt.s32.totalorder %v6705, 3
        %vm6727 = vcmp.lt.s32.totalorder %v6705, 4
        %v6728 = vsel %vm6724, %v6708, %v6711
        %v6729 = vsel %vm6727, %v6717, 2102212464
        %v6730 = vsel %vm6726, %v6714, %v6729
        %v6731 = vsel %vm6725, %v6728, %v6730
        %v6732 = vsel %vm6724, %v6711, %v6714
        %v6733 = vsel %vm6727, %v6720, 920167782
        %v6734 = vsel %vm6726, %v6717, %v6733
        %v6735 = vsel %vm6725, %v6732, %v6734
        %v6736 = vsel %vm6724, %v6714, %v6717
        %v6737 = vsel %vm6727, %v6723, 1326507024
        %v6738 = vsel %vm6726, %v6720, %v6737
        %v6739 = vsel %vm6725, %v6736, %v6738
        %v6740 = vshll.u32 %v6700, 8
        %v6741 = vand.u32 %v6740, 65535
        %v6742 = vshrl.u32 %v6740, 16
        %v6743 = vand.u32 %v6739, 65535
        %v6744 = vshrl.u32 %v6739, 16
        %v6745 = vmul.u32 %v6741, %v6743
        %v6746 = vmul.u32 %v6741, %v6744
        %v6747 = vmul.u32 %v6742, %v6743
        %v6748 = vmul.u32 %v6742, %v6744
        %v6749 = vshll.u32 %v6746, 16
        %v6750 = vshrl.u32 %v6746, 16
        %v6751 = vshll.u32 %v6747, 16
        %v6752 = vshrl.u32 %v6747, 16
        %vm6753 = vc.u32 %v6745, %v6749
        %v6754 = vsel %vm6753, 1, 0
        %v6755 = vadd.s32 %v6745, %v6749
        %v6756 = vadd.s32 %v6748, %v6754
        %vm6757 = vc.u32 %v6755, %v6751
        %v6758 = vsel %vm6757, 1, 0
        %v6759 = vadd.s32 %v6755, %v6751
        %v6760 = vadd.s32 %v6756, %v6758
        %v6761 = vadd.s32 %v6760, %v6750
        %v6762 = vadd.s32 %v6761, %v6752
        %v6763 = vand.u32 %v6740, 65535
        %v6764 = vshrl.u32 %v6740, 16
        %v6765 = vand.u32 %v6735, 65535
        %v6766 = vshrl.u32 %v6735, 16
        %v6767 = vmul.u32 %v6763, %v6765
        %v6768 = vmul.u32 %v6763, %v6766
        %v6769 = vmul.u32 %v6764, %v6765
        %v6770 = vmul.u32 %v6764, %v6766
        %v6771 = vshll.u32 %v6768, 16
        %v6772 = vshrl.u32 %v6768, 16
        %v6773 = vshll.u32 %v6769, 16
        %v6774 = vshrl.u32 %v6769, 16
        %vm6775 = vc.u32 %v6767, %v6771
        %v6776 = vsel %vm6775, 1, 0
        %v6777 = vadd.s32 %v6767, %v6771
        %v6778 = vadd.s32 %v6770, %v6776
        %vm6779 = vc.u32 %v6777, %v6773
        %v6780 = vsel %vm6779, 1, 0
        %v6781 = vadd.s32 %v6777, %v6773
        %v6782 = vadd.s32 %v6778, %v6780
        %v6783 = vadd.s32 %v6782, %v6772
        %v6784 = vadd.s32 %v6783, %v6774
        %v6785 = vmul.u32 %v6740, %v6731
        %v6786 = vadd.s32 %v6762, %v6781
        %vm6787 = vc.u32 %v6762, %v6781
        %v6788 = vadd.s32 %v6784, 1
        %v6789 = vsel %vm6787, %v6788, %v6784
        %v6790 = vadd.s32 %v6785, %v6789
        %v6791 = vadd.s32 %v6790, 536870912
        %v6792 = vshrl.u32 %v6791, 30
        %v6793 = vshll.u32 %v6792, 30
        %v6794 = vsub.s32 %v6790, %v6793
        %vm6795 = vcmp.lt.s32.totalorder %v6794, 0
        %v6796 = vsub.s32 0, %v6794
        %v6797 = vsel %vm6795, %v6796, %v6794
        %v6798 = vclz %v6797
        %v6799 = vsub.s32 %v6798, 2
        %vm6800 = vcmp.gt.s32.totalorder 0, %v6799
        %v6801 = vsel %vm6800, 0, %v6799
        %v6802 = vsub.s32 32, %v6801
        %v6803 = vshll.u32 %v6794, %v6801
        %v6804 = vshrl.u32 %v6786, %v6802
        %v6805 = vor.u32 %v6803, %v6804
        %v6806 = vsub.s32 4294967266, %v6801
        %v6807 = vadd.s32 %v6806, 127
        %v6808 = vshll.u32 %v6807, 23
        %v6809 = vor.u32 4788187, %v6808
        %v6810 = vand.u32 2147483647, %v6809
        %v6812 = vcvt.s32.f32 %v6805
        %v6813 = vmul.f32 %v6812, %v6810
        %v6814 = vxor.u32 %v6813, 2147483648
        %v6815 = vsel %vm6694, %v6814, %v6813
        %v6816 = vsub.s32 4, %v6792
        %v6817 = vsel %vm6694, %v6816, %v6792
        %v6818 = vsel %vm6693, %v573, %v6815
        %v6819 = vsel %vm6693, 0, %v6817
        %v6820 = vmul.f32 %v6818, %v6818
        %v6821 = vmul.f32 %v6820, -0.001358992
        %v6822 = vadd.f32 %v6821, 0.041655596
        %v6823 = vmul.f32 %v6820, %v6822
        %v6824 = vadd.f32 %v6823, -0.4999988
        %v6825 = vmul.f32 %v6820, %v6824
        %v6826 = vadd.f32 1.0, %v6825
        %v6827 = vmul.f32 %v6818, %v6818
        %v6828 = vmul.f32 %v6827, -0.00019511016
        %v6829 = vadd.f32 %v6828, 0.008332121
        %v6830 = vmul.f32 %v6827, %v6829
        %v6831 = vadd.f32 %v6830, -0.16666654
        %v6832 = vmul.f32 %v6827, %v6831
        %v6833 = vadd.f32 %v6832, 1.0
        %v6834 = vmul.f32 %v6833, %v6818
        %vm6835 = vweird.f32 %v573
        %v6836 = vadd.s32 %v6819, 3
        %v6837 = vand.u32 %v6836, 3
        %vm6838 = vcmp.lt.s32.totalorder %v6837, 2
        %vm6839 = vcmp.eq.s32.totalorder %v6837, 0
        %v6840 = vxor.u32 %v6834, 2147483648
        %v6841 = vsel %vm6839, %v6826, %v6840
        %vm6842 = vcmp.eq.s32.totalorder %v6837, 2
        %v6843 = vxor.u32 %v6826, 2147483648
        %v6844 = vsel %vm6842, %v6843, %v6834
        %v6845 = vsel %vm6838, %v6841, %v6844
        %v6846 = vsel %vm6835, nan, %v6845
        %v6847 = vand.u32 2147483647, %v576
        %vm6848 = vcmp.le.f32.partialorder %v6847, 0.7853982
        %vm6849 = vcmp.lt.s32.totalorder %v576, 0
        %v6850 = vand.u32 %v576, 2139095040
        %v6851 = vshrl.u32 %v6850, 23
        %v6852 = vsub.s32 %v6851, 127
        %v6853 = vand.u32 2147483647, %v576
        %v6854 = vand.u32 %v6853, 8388607
        %v6855 = vor.u32 %v6854, 8388608
        %v6856 = vsub.s32 0, %v6855
        %v6857 = vadd.s32 %v6852, 1
        %vm6858 = vcmp.gt.s32.totalorder %v6857, 0
        %v6859 = vsel %vm6858, %v6857, 0
        %v6860 = vshrl.u32 %v6859, 5
        %v6861 = vand.u32 %v6859, 31
        %v6862 = vsub.s32 32, %v6861
        %v6863 = vshrl.u32 683565275, %v6862
        %v6864 = vshll.u32 683565275, %v6861
        %v6865 = vshrl.u32 2475754826, %v6862
        %v6866 = vor.u32 %v6864, %v6865
        %v6867 = vshll.u32 2475754826, %v6861
        %v6868 = vshrl.u32 2131351028, %v6862
        %v6869 = vor.u32 %v6867, %v6868
        %v6870 = vshll.u32 2131351028, %v6861
        %v6871 = vshrl.u32 2102212464, %v6862
        %v6872 = vor.u32 %v6870, %v6871
        %v6873 = vshll.u32 2102212464, %v6861
        %v6874 = vshrl.u32 920167782, %v6862
        %v6875 = vor.u32 %v6873, %v6874
        %v6876 = vshll.u32 920167782, %v6861
        %v6877 = vshrl.u32 1326507024, %v6862
        %v6878 = vor.u32 %v6876, %v6877
        %vm6879 = vcmp.lt.s32.totalorder %v6860, 1
        %vm6880 = vcmp.lt.s32.totalorder %v6860, 2
        %vm6881 = vcmp.lt.s32.totalorder %v6860, 3
        %vm6882 = vcmp.lt.s32.totalorder %v6860, 4
        %v6883 = vsel %vm6879, %v6863, %v6866
        %v6884 = vsel %vm6882, %v6872, 2102212464
        %v6885 = vsel %vm6881, %v6869, %v6884
        %v6886 = vsel %vm6880, %v6883, %v6885
        %v6887 = vsel %vm6879, %v6866, %v6869
        %v6888 = vsel %vm6882, %v6875, 920167782
        %v6889 = vsel %vm6881, %v6872, %v6888
        %v6890 = vsel %vm6880, %v6887, %v6889
        %v6891 = vsel %vm6879, %v6869, %v6872
        %v6892 = vsel %vm6882, %v6878, 1326507024
        %v6893 = vsel %vm6881, %v6875, %v6892
        %v6894 = vsel %vm6880, %v6891, %v6893
        %v6895 = vshll.u32 %v6855, 8
        %v6896 = vand.u32 %v6895, 65535
        %v6897 = vshrl.u32 %v6895, 16
        %v6898 = vand.u32 %v6894, 65535
        %v6899 = vshrl.u32 %v6894, 16
        %v6900 = vmul.u32 %v6896, %v6898
        %v6901 = vmul.u32 %v6896, %v6899
        %v6902 = vmul.u32 %v6897, %v6898
        %v6903 = vmul.u32 %v6897, %v6899
        %v6904 = vshll.u32 %v6901, 16
        %v6905 = vshrl.u32 %v6901, 16
        %v6906 = vshll.u32 %v6902, 16
        %v6907 = vshrl.u32 %v6902, 16
        %vm6908 = vc.u32 %v6900, %v6904
        %v6909 = vsel %vm6908, 1, 0
        %v6910 = vadd.s32 %v6900, %v6904
        %v6911 = vadd.s32 %v6903, %v6909
        %vm6912 = vc.u32 %v6910, %v6906
        %v6913 = vsel %vm6912, 1, 0
        %v6914 = vadd.s32 %v6910, %v6906
        %v6915 = vadd.s32 %v6911, %v6913
        %v6916 = vadd.s32 %v6915, %v6905
        %v6917 = vadd.s32 %v6916, %v6907
        %v6918 = vand.u32 %v6895, 65535
        %v6919 = vshrl.u32 %v6895, 16
        %v6920 = vand.u32 %v6890, 65535
        %v6921 = vshrl.u32 %v6890, 16
        %v6922 = vmul.u32 %v6918, %v6920
        %v6923 = vmul.u32 %v6918, %v6921
        %v6924 = vmul.u32 %v6919, %v6920
        %v6925 = vmul.u32 %v6919, %v6921
        %v6926 = vshll.u32 %v6923, 16
        %v6927 = vshrl.u32 %v6923, 16
        %v6928 = vshll.u32 %v6924, 16
        %v6929 = vshrl.u32 %v6924, 16
        %vm6930 = vc.u32 %v6922, %v6926
        %v6931 = vsel %vm6930, 1, 0
        %v6932 = vadd.s32 %v6922, %v6926
        %v6933 = vadd.s32 %v6925, %v6931
        %vm6934 = vc.u32 %v6932, %v6928
        %v6935 = vsel %vm6934, 1, 0
        %v6936 = vadd.s32 %v6932, %v6928
        %v6937 = vadd.s32 %v6933, %v6935
        %v6938 = vadd.s32 %v6937, %v6927
        %v6939 = vadd.s32 %v6938, %v6929
        %v6940 = vmul.u32 %v6895, %v6886
        %v6941 = vadd.s32 %v6917, %v6936
        %vm6942 = vc.u32 %v6917, %v6936
        %v6943 = vadd.s32 %v6939, 1
        %v6944 = vsel %vm6942, %v6943, %v6939
        %v6945 = vadd.s32 %v6940, %v6944
        %v6946 = vadd.s32 %v6945, 536870912
        %v6947 = vshrl.u32 %v6946, 30
        %v6948 = vshll.u32 %v6947, 30
        %v6949 = vsub.s32 %v6945, %v6948
        %vm6950 = vcmp.lt.s32.totalorder %v6949, 0
        %v6951 = vsub.s32 0, %v6949
        %v6952 = vsel %vm6950, %v6951, %v6949
        %v6953 = vclz %v6952
        %v6954 = vsub.s32 %v6953, 2
        %vm6955 = vcmp.gt.s32.totalorder 0, %v6954
        %v6956 = vsel %vm6955, 0, %v6954
        %v6957 = vsub.s32 32, %v6956
        %v6958 = vshll.u32 %v6949, %v6956
        %v6959 = vshrl.u32 %v6941, %v6957
        %v6960 = vor.u32 %v6958, %v6959
        %v6961 = vsub.s32 4294967266, %v6956
        %v6962 = vadd.s32 %v6961, 127
        %v6963 = vshll.u32 %v6962, 23
        %v6964 = vor.u32 4788187, %v6963
        %v6965 = vand.u32 2147483647, %v6964
        %v6967 = vcvt.s32.f32 %v6960
        %v6968 = vmul.f32 %v6967, %v6965
        %v6969 = vxor.u32 %v6968, 2147483648
        %v6970 = vsel %vm6849, %v6969, %v6968
        %v6971 = vsub.s32 4, %v6947
        %v6972 = vsel %vm6849, %v6971, %v6947
        %v6973 = vsel %vm6848, %v576, %v6970
        %v6974 = vsel %vm6848, 0, %v6972
        %v6975 = vmul.f32 %v6973, %v6973
        %v6976 = vmul.f32 %v6975, -0.001358992
        %v6977 = vadd.f32 %v6976, 0.041655596
        %v6978 = vmul.f32 %v6975, %v6977
        %v6979 = vadd.f32 %v6978, -0.4999988
        %v6980 = vmul.f32 %v6975, %v6979
        %v6981 = vadd.f32 1.0, %v6980
        %v6982 = vmul.f32 %v6973, %v6973
        %v6983 = vmul.f32 %v6982, -0.00019511016
        %v6984 = vadd.f32 %v6983, 0.008332121
        %v6985 = vmul.f32 %v6982, %v6984
        %v6986 = vadd.f32 %v6985, -0.16666654
        %v6987 = vmul.f32 %v6982, %v6986
        %v6988 = vadd.f32 %v6987, 1.0
        %v6989 = vmul.f32 %v6988, %v6973
        %vm6990 = vweird.f32 %v576
        %v6991 = vadd.s32 %v6974, 3
        %v6992 = vand.u32 %v6991, 3
        %vm6993 = vcmp.lt.s32.totalorder %v6992, 2
        %vm6994 = vcmp.eq.s32.totalorder %v6992, 0
        %v6995 = vxor.u32 %v6989, 2147483648
        %v6996 = vsel %vm6994, %v6981, %v6995
        %vm6997 = vcmp.eq.s32.totalorder %v6992, 2
        %v6998 = vxor.u32 %v6981, 2147483648
        %v6999 = vsel %vm6997, %v6998, %v6989
        %v7000 = vsel %vm6993, %v6996, %v6999
        %v7001 = vsel %vm6990, nan, %v7000
        %v7002 = vand.u32 2147483647, %v579
        %vm7003 = vcmp.le.f32.partialorder %v7002, 0.7853982
        %vm7004 = vcmp.lt.s32.totalorder %v579, 0
        %v7005 = vand.u32 %v579, 2139095040
        %v7006 = vshrl.u32 %v7005, 23
        %v7007 = vsub.s32 %v7006, 127
        %v7008 = vand.u32 2147483647, %v579
        %v7009 = vand.u32 %v7008, 8388607
        %v7010 = vor.u32 %v7009, 8388608
        %v7011 = vsub.s32 0, %v7010
        %v7012 = vadd.s32 %v7007, 1
        %vm7013 = vcmp.gt.s32.totalorder %v7012, 0
        %v7014 = vsel %vm7013, %v7012, 0
        %v7015 = vshrl.u32 %v7014, 5
        %v7016 = vand.u32 %v7014, 31
        %v7017 = vsub.s32 32, %v7016
        %v7018 = vshrl.u32 683565275, %v7017
        %v7019 = vshll.u32 683565275, %v7016
        %v7020 = vshrl.u32 2475754826, %v7017
        %v7021 = vor.u32 %v7019, %v7020
        %v7022 = vshll.u32 2475754826, %v7016
        %v7023 = vshrl.u32 2131351028, %v7017
        %v7024 = vor.u32 %v7022, %v7023
        %v7025 = vshll.u32 2131351028, %v7016
        %v7026 = vshrl.u32 2102212464, %v7017
        %v7027 = vor.u32 %v7025, %v7026
        %v7028 = vshll.u32 2102212464, %v7016
        %v7029 = vshrl.u32 920167782, %v7017
        %v7030 = vor.u32 %v7028, %v7029
        %v7031 = vshll.u32 920167782, %v7016
        %v7032 = vshrl.u32 1326507024, %v7017
        %v7033 = vor.u32 %v7031, %v7032
        %vm7034 = vcmp.lt.s32.totalorder %v7015, 1
        %vm7035 = vcmp.lt.s32.totalorder %v7015, 2
        %vm7036 = vcmp.lt.s32.totalorder %v7015, 3
        %vm7037 = vcmp.lt.s32.totalorder %v7015, 4
        %v7038 = vsel %vm7034, %v7018, %v7021
        %v7039 = vsel %vm7037, %v7027, 2102212464
        %v7040 = vsel %vm7036, %v7024, %v7039
        %v7041 = vsel %vm7035, %v7038, %v7040
        %v7042 = vsel %vm7034, %v7021, %v7024
        %v7043 = vsel %vm7037, %v7030, 920167782
        %v7044 = vsel %vm7036, %v7027, %v7043
        %v7045 = vsel %vm7035, %v7042, %v7044
        %v7046 = vsel %vm7034, %v7024, %v7027
        %v7047 = vsel %vm7037, %v7033, 1326507024
        %v7048 = vsel %vm7036, %v7030, %v7047
        %v7049 = vsel %vm7035, %v7046, %v7048
        %v7050 = vshll.u32 %v7010, 8
        %v7051 = vand.u32 %v7050, 65535
        %v7052 = vshrl.u32 %v7050, 16
        %v7053 = vand.u32 %v7049, 65535
        %v7054 = vshrl.u32 %v7049, 16
        %v7055 = vmul.u32 %v7051, %v7053
        %v7056 = vmul.u32 %v7051, %v7054
        %v7057 = vmul.u32 %v7052, %v7053
        %v7058 = vmul.u32 %v7052, %v7054
        %v7059 = vshll.u32 %v7056, 16
        %v7060 = vshrl.u32 %v7056, 16
        %v7061 = vshll.u32 %v7057, 16
        %v7062 = vshrl.u32 %v7057, 16
        %vm7063 = vc.u32 %v7055, %v7059
        %v7064 = vsel %vm7063, 1, 0
        %v7065 = vadd.s32 %v7055, %v7059
        %v7066 = vadd.s32 %v7058, %v7064
        %vm7067 = vc.u32 %v7065, %v7061
        %v7068 = vsel %vm7067, 1, 0
        %v7069 = vadd.s32 %v7065, %v7061
        %v7070 = vadd.s32 %v7066, %v7068
        %v7071 = vadd.s32 %v7070, %v7060
        %v7072 = vadd.s32 %v7071, %v7062
        %v7073 = vand.u32 %v7050, 65535
        %v7074 = vshrl.u32 %v7050, 16
        %v7075 = vand.u32 %v7045, 65535
        %v7076 = vshrl.u32 %v7045, 16
        %v7077 = vmul.u32 %v7073, %v7075
        %v7078 = vmul.u32 %v7073, %v7076
        %v7079 = vmul.u32 %v7074, %v7075
        %v7080 = vmul.u32 %v7074, %v7076
        %v7081 = vshll.u32 %v7078, 16
        %v7082 = vshrl.u32 %v7078, 16
        %v7083 = vshll.u32 %v7079, 16
        %v7084 = vshrl.u32 %v7079, 16
        %vm7085 = vc.u32 %v7077, %v7081
        %v7086 = vsel %vm7085, 1, 0
        %v7087 = vadd.s32 %v7077, %v7081
        %v7088 = vadd.s32 %v7080, %v7086
        %vm7089 = vc.u32 %v7087, %v7083
        %v7090 = vsel %vm7089, 1, 0
        %v7091 = vadd.s32 %v7087, %v7083
        %v7092 = vadd.s32 %v7088, %v7090
        %v7093 = vadd.s32 %v7092, %v7082
        %v7094 = vadd.s32 %v7093, %v7084
        %v7095 = vmul.u32 %v7050, %v7041
        %v7096 = vadd.s32 %v7072, %v7091
        %vm7097 = vc.u32 %v7072, %v7091
        %v7098 = vadd.s32 %v7094, 1
        %v7099 = vsel %vm7097, %v7098, %v7094
        %v7100 = vadd.s32 %v7095, %v7099
        %v7101 = vadd.s32 %v7100, 536870912
        %v7102 = vshrl.u32 %v7101, 30
        %v7103 = vshll.u32 %v7102, 30
        %v7104 = vsub.s32 %v7100, %v7103
        %vm7105 = vcmp.lt.s32.totalorder %v7104, 0
        %v7106 = vsub.s32 0, %v7104
        %v7107 = vsel %vm7105, %v7106, %v7104
        %v7108 = vclz %v7107
        %v7109 = vsub.s32 %v7108, 2
        %vm7110 = vcmp.gt.s32.totalorder 0, %v7109
        %v7111 = vsel %vm7110, 0, %v7109
        %v7112 = vsub.s32 32, %v7111
        %v7113 = vshll.u32 %v7104, %v7111
        %v7114 = vshrl.u32 %v7096, %v7112
        %v7115 = vor.u32 %v7113, %v7114
        %v7116 = vsub.s32 4294967266, %v7111
        %v7117 = vadd.s32 %v7116, 127
        %v7118 = vshll.u32 %v7117, 23
        %v7119 = vor.u32 4788187, %v7118
        %v7120 = vand.u32 2147483647, %v7119
        %v7122 = vcvt.s32.f32 %v7115
        %v7123 = vmul.f32 %v7122, %v7120
        %v7124 = vxor.u32 %v7123, 2147483648
        %v7125 = vsel %vm7004, %v7124, %v7123
        %v7126 = vsub.s32 4, %v7102
        %v7127 = vsel %vm7004, %v7126, %v7102
        %v7128 = vsel %vm7003, %v579, %v7125
        %v7129 = vsel %vm7003, 0, %v7127
        %v7130 = vmul.f32 %v7128, %v7128
        %v7131 = vmul.f32 %v7130, -0.001358992
        %v7132 = vadd.f32 %v7131, 0.041655596
        %v7133 = vmul.f32 %v7130, %v7132
        %v7134 = vadd.f32 %v7133, -0.4999988
        %v7135 = vmul.f32 %v7130, %v7134
        %v7136 = vadd.f32 1.0, %v7135
        %v7137 = vmul.f32 %v7128, %v7128
        %v7138 = vmul.f32 %v7137, -0.00019511016
        %v7139 = vadd.f32 %v7138, 0.008332121
        %v7140 = vmul.f32 %v7137, %v7139
        %v7141 = vadd.f32 %v7140, -0.16666654
        %v7142 = vmul.f32 %v7137, %v7141
        %v7143 = vadd.f32 %v7142, 1.0
        %v7144 = vmul.f32 %v7143, %v7128
        %vm7145 = vweird.f32 %v579
        %v7146 = vadd.s32 %v7129, 3
        %v7147 = vand.u32 %v7146, 3
        %vm7148 = vcmp.lt.s32.totalorder %v7147, 2
        %vm7149 = vcmp.eq.s32.totalorder %v7147, 0
        %v7150 = vxor.u32 %v7144, 2147483648
        %v7151 = vsel %vm7149, %v7136, %v7150
        %vm7152 = vcmp.eq.s32.totalorder %v7147, 2
        %v7153 = vxor.u32 %v7136, 2147483648
        %v7154 = vsel %vm7152, %v7153, %v7144
        %v7155 = vsel %vm7148, %v7151, %v7154
        %v7156 = vsel %vm7145, nan, %v7155
        %v7157 = vand.u32 2147483647, %v582
        %vm7158 = vcmp.le.f32.partialorder %v7157, 0.7853982
        %vm7159 = vcmp.lt.s32.totalorder %v582, 0
        %v7160 = vand.u32 %v582, 2139095040
        %v7161 = vshrl.u32 %v7160, 23
        %v7162 = vsub.s32 %v7161, 127
        %v7163 = vand.u32 2147483647, %v582
        %v7164 = vand.u32 %v7163, 8388607
        %v7165 = vor.u32 %v7164, 8388608
        %v7166 = vsub.s32 0, %v7165
        %v7167 = vadd.s32 %v7162, 1
        %vm7168 = vcmp.gt.s32.totalorder %v7167, 0
        %v7169 = vsel %vm7168, %v7167, 0
        %v7170 = vshrl.u32 %v7169, 5
        %v7171 = vand.u32 %v7169, 31
        %v7172 = vsub.s32 32, %v7171
        %v7173 = vshrl.u32 683565275, %v7172
        %v7174 = vshll.u32 683565275, %v7171
        %v7175 = vshrl.u32 2475754826, %v7172
        %v7176 = vor.u32 %v7174, %v7175
        %v7177 = vshll.u32 2475754826, %v7171
        %v7178 = vshrl.u32 2131351028, %v7172
        %v7179 = vor.u32 %v7177, %v7178
        %v7180 = vshll.u32 2131351028, %v7171
        %v7181 = vshrl.u32 2102212464, %v7172
        %v7182 = vor.u32 %v7180, %v7181
        %v7183 = vshll.u32 2102212464, %v7171
        %v7184 = vshrl.u32 920167782, %v7172
        %v7185 = vor.u32 %v7183, %v7184
        %v7186 = vshll.u32 920167782, %v7171
        %v7187 = vshrl.u32 1326507024, %v7172
        %v7188 = vor.u32 %v7186, %v7187
        %vm7189 = vcmp.lt.s32.totalorder %v7170, 1
        %vm7190 = vcmp.lt.s32.totalorder %v7170, 2
        %vm7191 = vcmp.lt.s32.totalorder %v7170, 3
        %vm7192 = vcmp.lt.s32.totalorder %v7170, 4
        %v7193 = vsel %vm7189, %v7173, %v7176
        %v7194 = vsel %vm7192, %v7182, 2102212464
        %v7195 = vsel %vm7191, %v7179, %v7194
        %v7196 = vsel %vm7190, %v7193, %v7195
        %v7197 = vsel %vm7189, %v7176, %v7179
        %v7198 = vsel %vm7192, %v7185, 920167782
        %v7199 = vsel %vm7191, %v7182, %v7198
        %v7200 = vsel %vm7190, %v7197, %v7199
        %v7201 = vsel %vm7189, %v7179, %v7182
        %v7202 = vsel %vm7192, %v7188, 1326507024
        %v7203 = vsel %vm7191, %v7185, %v7202
        %v7204 = vsel %vm7190, %v7201, %v7203
        %v7205 = vshll.u32 %v7165, 8
        %v7206 = vand.u32 %v7205, 65535
        %v7207 = vshrl.u32 %v7205, 16
        %v7208 = vand.u32 %v7204, 65535
        %v7209 = vshrl.u32 %v7204, 16
        %v7210 = vmul.u32 %v7206, %v7208
        %v7211 = vmul.u32 %v7206, %v7209
        %v7212 = vmul.u32 %v7207, %v7208
        %v7213 = vmul.u32 %v7207, %v7209
        %v7214 = vshll.u32 %v7211, 16
        %v7215 = vshrl.u32 %v7211, 16
        %v7216 = vshll.u32 %v7212, 16
        %v7217 = vshrl.u32 %v7212, 16
        %vm7218 = vc.u32 %v7210, %v7214
        %v7219 = vsel %vm7218, 1, 0
        %v7220 = vadd.s32 %v7210, %v7214
        %v7221 = vadd.s32 %v7213, %v7219
        %vm7222 = vc.u32 %v7220, %v7216
        %v7223 = vsel %vm7222, 1, 0
        %v7224 = vadd.s32 %v7220, %v7216
        %v7225 = vadd.s32 %v7221, %v7223
        %v7226 = vadd.s32 %v7225, %v7215
        %v7227 = vadd.s32 %v7226, %v7217
        %v7228 = vand.u32 %v7205, 65535
        %v7229 = vshrl.u32 %v7205, 16
        %v7230 = vand.u32 %v7200, 65535
        %v7231 = vshrl.u32 %v7200, 16
        %v7232 = vmul.u32 %v7228, %v7230
        %v7233 = vmul.u32 %v7228, %v7231
        %v7234 = vmul.u32 %v7229, %v7230
        %v7235 = vmul.u32 %v7229, %v7231
        %v7236 = vshll.u32 %v7233, 16
        %v7237 = vshrl.u32 %v7233, 16
        %v7238 = vshll.u32 %v7234, 16
        %v7239 = vshrl.u32 %v7234, 16
        %vm7240 = vc.u32 %v7232, %v7236
        %v7241 = vsel %vm7240, 1, 0
        %v7242 = vadd.s32 %v7232, %v7236
        %v7243 = vadd.s32 %v7235, %v7241
        %vm7244 = vc.u32 %v7242, %v7238
        %v7245 = vsel %vm7244, 1, 0
        %v7246 = vadd.s32 %v7242, %v7238
        %v7247 = vadd.s32 %v7243, %v7245
        %v7248 = vadd.s32 %v7247, %v7237
        %v7249 = vadd.s32 %v7248, %v7239
        %v7250 = vmul.u32 %v7205, %v7196
        %v7251 = vadd.s32 %v7227, %v7246
        %vm7252 = vc.u32 %v7227, %v7246
        %v7253 = vadd.s32 %v7249, 1
        %v7254 = vsel %vm7252, %v7253, %v7249
        %v7255 = vadd.s32 %v7250, %v7254
        %v7256 = vadd.s32 %v7255, 536870912
        %v7257 = vshrl.u32 %v7256, 30
        %v7258 = vshll.u32 %v7257, 30
        %v7259 = vsub.s32 %v7255, %v7258
        %vm7260 = vcmp.lt.s32.totalorder %v7259, 0
        %v7261 = vsub.s32 0, %v7259
        %v7262 = vsel %vm7260, %v7261, %v7259
        %v7263 = vclz %v7262
        %v7264 = vsub.s32 %v7263, 2
        %vm7265 = vcmp.gt.s32.totalorder 0, %v7264
        %v7266 = vsel %vm7265, 0, %v7264
        %v7267 = vsub.s32 32, %v7266
        %v7268 = vshll.u32 %v7259, %v7266
        %v7269 = vshrl.u32 %v7251, %v7267
        %v7270 = vor.u32 %v7268, %v7269
        %v7271 = vsub.s32 4294967266, %v7266
        %v7272 = vadd.s32 %v7271, 127
        %v7273 = vshll.u32 %v7272, 23
        %v7274 = vor.u32 4788187, %v7273
        %v7275 = vand.u32 2147483647, %v7274
        %v7277 = vcvt.s32.f32 %v7270
        %v7278 = vmul.f32 %v7277, %v7275
        %v7279 = vxor.u32 %v7278, 2147483648
        %v7280 = vsel %vm7159, %v7279, %v7278
        %v7281 = vsub.s32 4, %v7257
        %v7282 = vsel %vm7159, %v7281, %v7257
        %v7283 = vsel %vm7158, %v582, %v7280
        %v7284 = vsel %vm7158, 0, %v7282
        %v7285 = vmul.f32 %v7283, %v7283
        %v7286 = vmul.f32 %v7285, -0.001358992
        %v7287 = vadd.f32 %v7286, 0.041655596
        %v7288 = vmul.f32 %v7285, %v7287
        %v7289 = vadd.f32 %v7288, -0.4999988
        %v7290 = vmul.f32 %v7285, %v7289
        %v7291 = vadd.f32 1.0, %v7290
        %v7292 = vmul.f32 %v7283, %v7283
        %v7293 = vmul.f32 %v7292, -0.00019511016
        %v7294 = vadd.f32 %v7293, 0.008332121
        %v7295 = vmul.f32 %v7292, %v7294
        %v7296 = vadd.f32 %v7295, -0.16666654
        %v7297 = vmul.f32 %v7292, %v7296
        %v7298 = vadd.f32 %v7297, 1.0
        %v7299 = vmul.f32 %v7298, %v7283
        %vm7300 = vweird.f32 %v582
        %v7301 = vadd.s32 %v7284, 3
        %v7302 = vand.u32 %v7301, 3
        %vm7303 = vcmp.lt.s32.totalorder %v7302, 2
        %vm7304 = vcmp.eq.s32.totalorder %v7302, 0
        %v7305 = vxor.u32 %v7299, 2147483648
        %v7306 = vsel %vm7304, %v7291, %v7305
        %vm7307 = vcmp.eq.s32.totalorder %v7302, 2
        %v7308 = vxor.u32 %v7291, 2147483648
        %v7309 = vsel %vm7307, %v7308, %v7299
        %v7310 = vsel %vm7303, %v7306, %v7309
        %v7311 = vsel %vm7300, nan, %v7310
        %v7312 = vand.u32 2147483647, %v585
        %vm7313 = vcmp.le.f32.partialorder %v7312, 0.7853982
        %vm7314 = vcmp.lt.s32.totalorder %v585, 0
        %v7315 = vand.u32 %v585, 2139095040
        %v7316 = vshrl.u32 %v7315, 23
        %v7317 = vsub.s32 %v7316, 127
        %v7318 = vand.u32 2147483647, %v585
        %v7319 = vand.u32 %v7318, 8388607
        %v7320 = vor.u32 %v7319, 8388608
        %v7321 = vsub.s32 0, %v7320
        %v7322 = vadd.s32 %v7317, 1
        %vm7323 = vcmp.gt.s32.totalorder %v7322, 0
        %v7324 = vsel %vm7323, %v7322, 0
        %v7325 = vshrl.u32 %v7324, 5
        %v7326 = vand.u32 %v7324, 31
        %v7327 = vsub.s32 32, %v7326
        %v7328 = vshrl.u32 683565275, %v7327
        %v7329 = vshll.u32 683565275, %v7326
        %v7330 = vshrl.u32 2475754826, %v7327
        %v7331 = vor.u32 %v7329, %v7330
        %v7332 = vshll.u32 2475754826, %v7326
        %v7333 = vshrl.u32 2131351028, %v7327
        %v7334 = vor.u32 %v7332, %v7333
        %v7335 = vshll.u32 2131351028, %v7326
        %v7336 = vshrl.u32 2102212464, %v7327
        %v7337 = vor.u32 %v7335, %v7336
        %v7338 = vshll.u32 2102212464, %v7326
        %v7339 = vshrl.u32 920167782, %v7327
        %v7340 = vor.u32 %v7338, %v7339
        %v7341 = vshll.u32 920167782, %v7326
        %v7342 = vshrl.u32 1326507024, %v7327
        %v7343 = vor.u32 %v7341, %v7342
        %vm7344 = vcmp.lt.s32.totalorder %v7325, 1
        %vm7345 = vcmp.lt.s32.totalorder %v7325, 2
        %vm7346 = vcmp.lt.s32.totalorder %v7325, 3
        %vm7347 = vcmp.lt.s32.totalorder %v7325, 4
        %v7348 = vsel %vm7344, %v7328, %v7331
        %v7349 = vsel %vm7347, %v7337, 2102212464
        %v7350 = vsel %vm7346, %v7334, %v7349
        %v7351 = vsel %vm7345, %v7348, %v7350
        %v7352 = vsel %vm7344, %v7331, %v7334
        %v7353 = vsel %vm7347, %v7340, 920167782
        %v7354 = vsel %vm7346, %v7337, %v7353
        %v7355 = vsel %vm7345, %v7352, %v7354
        %v7356 = vsel %vm7344, %v7334, %v7337
        %v7357 = vsel %vm7347, %v7343, 1326507024
        %v7358 = vsel %vm7346, %v7340, %v7357
        %v7359 = vsel %vm7345, %v7356, %v7358
        %v7360 = vshll.u32 %v7320, 8
        %v7361 = vand.u32 %v7360, 65535
        %v7362 = vshrl.u32 %v7360, 16
        %v7363 = vand.u32 %v7359, 65535
        %v7364 = vshrl.u32 %v7359, 16
        %v7365 = vmul.u32 %v7361, %v7363
        %v7366 = vmul.u32 %v7361, %v7364
        %v7367 = vmul.u32 %v7362, %v7363
        %v7368 = vmul.u32 %v7362, %v7364
        %v7369 = vshll.u32 %v7366, 16
        %v7370 = vshrl.u32 %v7366, 16
        %v7371 = vshll.u32 %v7367, 16
        %v7372 = vshrl.u32 %v7367, 16
        %vm7373 = vc.u32 %v7365, %v7369
        %v7374 = vsel %vm7373, 1, 0
        %v7375 = vadd.s32 %v7365, %v7369
        %v7376 = vadd.s32 %v7368, %v7374
        %vm7377 = vc.u32 %v7375, %v7371
        %v7378 = vsel %vm7377, 1, 0
        %v7379 = vadd.s32 %v7375, %v7371
        %v7380 = vadd.s32 %v7376, %v7378
        %v7381 = vadd.s32 %v7380, %v7370
        %v7382 = vadd.s32 %v7381, %v7372
        %v7383 = vand.u32 %v7360, 65535
        %v7384 = vshrl.u32 %v7360, 16
        %v7385 = vand.u32 %v7355, 65535
        %v7386 = vshrl.u32 %v7355, 16
        %v7387 = vmul.u32 %v7383, %v7385
        %v7388 = vmul.u32 %v7383, %v7386
        %v7389 = vmul.u32 %v7384, %v7385
        %v7390 = vmul.u32 %v7384, %v7386
        %v7391 = vshll.u32 %v7388, 16
        %v7392 = vshrl.u32 %v7388, 16
        %v7393 = vshll.u32 %v7389, 16
        %v7394 = vshrl.u32 %v7389, 16
        %vm7395 = vc.u32 %v7387, %v7391
        %v7396 = vsel %vm7395, 1, 0
        %v7397 = vadd.s32 %v7387, %v7391
        %v7398 = vadd.s32 %v7390, %v7396
        %vm7399 = vc.u32 %v7397, %v7393
        %v7400 = vsel %vm7399, 1, 0
        %v7401 = vadd.s32 %v7397, %v7393
        %v7402 = vadd.s32 %v7398, %v7400
        %v7403 = vadd.s32 %v7402, %v7392
        %v7404 = vadd.s32 %v7403, %v7394
        %v7405 = vmul.u32 %v7360, %v7351
        %v7406 = vadd.s32 %v7382, %v7401
        %vm7407 = vc.u32 %v7382, %v7401
        %v7408 = vadd.s32 %v7404, 1
        %v7409 = vsel %vm7407, %v7408, %v7404
        %v7410 = vadd.s32 %v7405, %v7409
        %v7411 = vadd.s32 %v7410, 536870912
        %v7412 = vshrl.u32 %v7411, 30
        %v7413 = vshll.u32 %v7412, 30
        %v7414 = vsub.s32 %v7410, %v7413
        %vm7415 = vcmp.lt.s32.totalorder %v7414, 0
        %v7416 = vsub.s32 0, %v7414
        %v7417 = vsel %vm7415, %v7416, %v7414
        %v7418 = vclz %v7417
        %v7419 = vsub.s32 %v7418, 2
        %vm7420 = vcmp.gt.s32.totalorder 0, %v7419
        %v7421 = vsel %vm7420, 0, %v7419
        %v7422 = vsub.s32 32, %v7421
        %v7423 = vshll.u32 %v7414, %v7421
        %v7424 = vshrl.u32 %v7406, %v7422
        %v7425 = vor.u32 %v7423, %v7424
        %v7426 = vsub.s32 4294967266, %v7421
        %v7427 = vadd.s32 %v7426, 127
        %v7428 = vshll.u32 %v7427, 23
        %v7429 = vor.u32 4788187, %v7428
        %v7430 = vand.u32 2147483647, %v7429
        %v7432 = vcvt.s32.f32 %v7425
        %v7433 = vmul.f32 %v7432, %v7430
        %v7434 = vxor.u32 %v7433, 2147483648
        %v7435 = vsel %vm7314, %v7434, %v7433
        %v7436 = vsub.s32 4, %v7412
        %v7437 = vsel %vm7314, %v7436, %v7412
        %v7438 = vsel %vm7313, %v585, %v7435
        %v7439 = vsel %vm7313, 0, %v7437
        %v7440 = vmul.f32 %v7438, %v7438
        %v7441 = vmul.f32 %v7440, -0.001358992
        %v7442 = vadd.f32 %v7441, 0.041655596
        %v7443 = vmul.f32 %v7440, %v7442
        %v7444 = vadd.f32 %v7443, -0.4999988
        %v7445 = vmul.f32 %v7440, %v7444
        %v7446 = vadd.f32 1.0, %v7445
        %v7447 = vmul.f32 %v7438, %v7438
        %v7448 = vmul.f32 %v7447, -0.00019511016
        %v7449 = vadd.f32 %v7448, 0.008332121
        %v7450 = vmul.f32 %v7447, %v7449
        %v7451 = vadd.f32 %v7450, -0.16666654
        %v7452 = vmul.f32 %v7447, %v7451
        %v7453 = vadd.f32 %v7452, 1.0
        %v7454 = vmul.f32 %v7453, %v7438
        %vm7455 = vweird.f32 %v585
        %v7456 = vadd.s32 %v7439, 3
        %v7457 = vand.u32 %v7456, 3
        %vm7458 = vcmp.lt.s32.totalorder %v7457, 2
        %vm7459 = vcmp.eq.s32.totalorder %v7457, 0
        %v7460 = vxor.u32 %v7454, 2147483648
        %v7461 = vsel %vm7459, %v7446, %v7460
        %vm7462 = vcmp.eq.s32.totalorder %v7457, 2
        %v7463 = vxor.u32 %v7446, 2147483648
        %v7464 = vsel %vm7462, %v7463, %v7454
        %v7465 = vsel %vm7458, %v7461, %v7464
        %v7466 = vsel %vm7455, nan, %v7465
        %v7467 = vand.u32 2147483647, %v588
        %vm7468 = vcmp.le.f32.partialorder %v7467, 0.7853982
        %vm7469 = vcmp.lt.s32.totalorder %v588, 0
        %v7470 = vand.u32 %v588, 2139095040
        %v7471 = vshrl.u32 %v7470, 23
        %v7472 = vsub.s32 %v7471, 127
        %v7473 = vand.u32 2147483647, %v588
        %v7474 = vand.u32 %v7473, 8388607
        %v7475 = vor.u32 %v7474, 8388608
        %v7476 = vsub.s32 0, %v7475
        %v7477 = vadd.s32 %v7472, 1
        %vm7478 = vcmp.gt.s32.totalorder %v7477, 0
        %v7479 = vsel %vm7478, %v7477, 0
        %v7480 = vshrl.u32 %v7479, 5
        %v7481 = vand.u32 %v7479, 31
        %v7482 = vsub.s32 32, %v7481
        %v7483 = vshrl.u32 683565275, %v7482
        %v7484 = vshll.u32 683565275, %v7481
        %v7485 = vshrl.u32 2475754826, %v7482
        %v7486 = vor.u32 %v7484, %v7485
        %v7487 = vshll.u32 2475754826, %v7481
        %v7488 = vshrl.u32 2131351028, %v7482
        %v7489 = vor.u32 %v7487, %v7488
        %v7490 = vshll.u32 2131351028, %v7481
        %v7491 = vshrl.u32 2102212464, %v7482
        %v7492 = vor.u32 %v7490, %v7491
        %v7493 = vshll.u32 2102212464, %v7481
        %v7494 = vshrl.u32 920167782, %v7482
        %v7495 = vor.u32 %v7493, %v7494
        %v7496 = vshll.u32 920167782, %v7481
        %v7497 = vshrl.u32 1326507024, %v7482
        %v7498 = vor.u32 %v7496, %v7497
        %vm7499 = vcmp.lt.s32.totalorder %v7480, 1
        %vm7500 = vcmp.lt.s32.totalorder %v7480, 2
        %vm7501 = vcmp.lt.s32.totalorder %v7480, 3
        %vm7502 = vcmp.lt.s32.totalorder %v7480, 4
        %v7503 = vsel %vm7499, %v7483, %v7486
        %v7504 = vsel %vm7502, %v7492, 2102212464
        %v7505 = vsel %vm7501, %v7489, %v7504
        %v7506 = vsel %vm7500, %v7503, %v7505
        %v7507 = vsel %vm7499, %v7486, %v7489
        %v7508 = vsel %vm7502, %v7495, 920167782
        %v7509 = vsel %vm7501, %v7492, %v7508
        %v7510 = vsel %vm7500, %v7507, %v7509
        %v7511 = vsel %vm7499, %v7489, %v7492
        %v7512 = vsel %vm7502, %v7498, 1326507024
        %v7513 = vsel %vm7501, %v7495, %v7512
        %v7514 = vsel %vm7500, %v7511, %v7513
        %v7515 = vshll.u32 %v7475, 8
        %v7516 = vand.u32 %v7515, 65535
        %v7517 = vshrl.u32 %v7515, 16
        %v7518 = vand.u32 %v7514, 65535
        %v7519 = vshrl.u32 %v7514, 16
        %v7520 = vmul.u32 %v7516, %v7518
        %v7521 = vmul.u32 %v7516, %v7519
        %v7522 = vmul.u32 %v7517, %v7518
        %v7523 = vmul.u32 %v7517, %v7519
        %v7524 = vshll.u32 %v7521, 16
        %v7525 = vshrl.u32 %v7521, 16
        %v7526 = vshll.u32 %v7522, 16
        %v7527 = vshrl.u32 %v7522, 16
        %vm7528 = vc.u32 %v7520, %v7524
        %v7529 = vsel %vm7528, 1, 0
        %v7530 = vadd.s32 %v7520, %v7524
        %v7531 = vadd.s32 %v7523, %v7529
        %vm7532 = vc.u32 %v7530, %v7526
        %v7533 = vsel %vm7532, 1, 0
        %v7534 = vadd.s32 %v7530, %v7526
        %v7535 = vadd.s32 %v7531, %v7533
        %v7536 = vadd.s32 %v7535, %v7525
        %v7537 = vadd.s32 %v7536, %v7527
        %v7538 = vand.u32 %v7515, 65535
        %v7539 = vshrl.u32 %v7515, 16
        %v7540 = vand.u32 %v7510, 65535
        %v7541 = vshrl.u32 %v7510, 16
        %v7542 = vmul.u32 %v7538, %v7540
        %v7543 = vmul.u32 %v7538, %v7541
        %v7544 = vmul.u32 %v7539, %v7540
        %v7545 = vmul.u32 %v7539, %v7541
        %v7546 = vshll.u32 %v7543, 16
        %v7547 = vshrl.u32 %v7543, 16
        %v7548 = vshll.u32 %v7544, 16
        %v7549 = vshrl.u32 %v7544, 16
        %vm7550 = vc.u32 %v7542, %v7546
        %v7551 = vsel %vm7550, 1, 0
        %v7552 = vadd.s32 %v7542, %v7546
        %v7553 = vadd.s32 %v7545, %v7551
        %vm7554 = vc.u32 %v7552, %v7548
        %v7555 = vsel %vm7554, 1, 0
        %v7556 = vadd.s32 %v7552, %v7548
        %v7557 = vadd.s32 %v7553, %v7555
        %v7558 = vadd.s32 %v7557, %v7547
        %v7559 = vadd.s32 %v7558, %v7549
        %v7560 = vmul.u32 %v7515, %v7506
        %v7561 = vadd.s32 %v7537, %v7556
        %vm7562 = vc.u32 %v7537, %v7556
        %v7563 = vadd.s32 %v7559, 1
        %v7564 = vsel %vm7562, %v7563, %v7559
        %v7565 = vadd.s32 %v7560, %v7564
        %v7566 = vadd.s32 %v7565, 536870912
        %v7567 = vshrl.u32 %v7566, 30
        %v7568 = vshll.u32 %v7567, 30
        %v7569 = vsub.s32 %v7565, %v7568
        %vm7570 = vcmp.lt.s32.totalorder %v7569, 0
        %v7571 = vsub.s32 0, %v7569
        %v7572 = vsel %vm7570, %v7571, %v7569
        %v7573 = vclz %v7572
        %v7574 = vsub.s32 %v7573, 2
        %vm7575 = vcmp.gt.s32.totalorder 0, %v7574
        %v7576 = vsel %vm7575, 0, %v7574
        %v7577 = vsub.s32 32, %v7576
        %v7578 = vshll.u32 %v7569, %v7576
        %v7579 = vshrl.u32 %v7561, %v7577
        %v7580 = vor.u32 %v7578, %v7579
        %v7581 = vsub.s32 4294967266, %v7576
        %v7582 = vadd.s32 %v7581, 127
        %v7583 = vshll.u32 %v7582, 23
        %v7584 = vor.u32 4788187, %v7583
        %v7585 = vand.u32 2147483647, %v7584
        %v7587 = vcvt.s32.f32 %v7580
        %v7588 = vmul.f32 %v7587, %v7585
        %v7589 = vxor.u32 %v7588, 2147483648
        %v7590 = vsel %vm7469, %v7589, %v7588
        %v7591 = vsub.s32 4, %v7567
        %v7592 = vsel %vm7469, %v7591, %v7567
        %v7593 = vsel %vm7468, %v588, %v7590
        %v7594 = vsel %vm7468, 0, %v7592
        %v7595 = vmul.f32 %v7593, %v7593
        %v7596 = vmul.f32 %v7595, -0.001358992
        %v7597 = vadd.f32 %v7596, 0.041655596
        %v7598 = vmul.f32 %v7595, %v7597
        %v7599 = vadd.f32 %v7598, -0.4999988
        %v7600 = vmul.f32 %v7595, %v7599
        %v7601 = vadd.f32 1.0, %v7600
        %v7602 = vmul.f32 %v7593, %v7593
        %v7603 = vmul.f32 %v7602, -0.00019511016
        %v7604 = vadd.f32 %v7603, 0.008332121
        %v7605 = vmul.f32 %v7602, %v7604
        %v7606 = vadd.f32 %v7605, -0.16666654
        %v7607 = vmul.f32 %v7602, %v7606
        %v7608 = vadd.f32 %v7607, 1.0
        %v7609 = vmul.f32 %v7608, %v7593
        %vm7610 = vweird.f32 %v588
        %v7611 = vadd.s32 %v7594, 3
        %v7612 = vand.u32 %v7611, 3
        %vm7613 = vcmp.lt.s32.totalorder %v7612, 2
        %vm7614 = vcmp.eq.s32.totalorder %v7612, 0
        %v7615 = vxor.u32 %v7609, 2147483648
        %v7616 = vsel %vm7614, %v7601, %v7615
        %vm7617 = vcmp.eq.s32.totalorder %v7612, 2
        %v7618 = vxor.u32 %v7601, 2147483648
        %v7619 = vsel %vm7617, %v7618, %v7609
        %v7620 = vsel %vm7613, %v7616, %v7619
        %v7621 = vsel %vm7610, nan, %v7620
        %v7622 = vand.u32 2147483647, %v591
        %vm7623 = vcmp.le.f32.partialorder %v7622, 0.7853982
        %vm7624 = vcmp.lt.s32.totalorder %v591, 0
        %v7625 = vand.u32 %v591, 2139095040
        %v7626 = vshrl.u32 %v7625, 23
        %v7627 = vsub.s32 %v7626, 127
        %v7628 = vand.u32 2147483647, %v591
        %v7629 = vand.u32 %v7628, 8388607
        %v7630 = vor.u32 %v7629, 8388608
        %v7631 = vsub.s32 0, %v7630
        %v7632 = vadd.s32 %v7627, 1
        %vm7633 = vcmp.gt.s32.totalorder %v7632, 0
        %v7634 = vsel %vm7633, %v7632, 0
        %v7635 = vshrl.u32 %v7634, 5
        %v7636 = vand.u32 %v7634, 31
        %v7637 = vsub.s32 32, %v7636
        %v7638 = vshrl.u32 683565275, %v7637
        %v7639 = vshll.u32 683565275, %v7636
        %v7640 = vshrl.u32 2475754826, %v7637
        %v7641 = vor.u32 %v7639, %v7640
        %v7642 = vshll.u32 2475754826, %v7636
        %v7643 = vshrl.u32 2131351028, %v7637
        %v7644 = vor.u32 %v7642, %v7643
        %v7645 = vshll.u32 2131351028, %v7636
        %v7646 = vshrl.u32 2102212464, %v7637
        %v7647 = vor.u32 %v7645, %v7646
        %v7648 = vshll.u32 2102212464, %v7636
        %v7649 = vshrl.u32 920167782, %v7637
        %v7650 = vor.u32 %v7648, %v7649
        %v7651 = vshll.u32 920167782, %v7636
        %v7652 = vshrl.u32 1326507024, %v7637
        %v7653 = vor.u32 %v7651, %v7652
        %vm7654 = vcmp.lt.s32.totalorder %v7635, 1
        %vm7655 = vcmp.lt.s32.totalorder %v7635, 2
        %vm7656 = vcmp.lt.s32.totalorder %v7635, 3
        %vm7657 = vcmp.lt.s32.totalorder %v7635, 4
        %v7658 = vsel %vm7654, %v7638, %v7641
        %v7659 = vsel %vm7657, %v7647, 2102212464
        %v7660 = vsel %vm7656, %v7644, %v7659
        %v7661 = vsel %vm7655, %v7658, %v7660
        %v7662 = vsel %vm7654, %v7641, %v7644
        %v7663 = vsel %vm7657, %v7650, 920167782
        %v7664 = vsel %vm7656, %v7647, %v7663
        %v7665 = vsel %vm7655, %v7662, %v7664
        %v7666 = vsel %vm7654, %v7644, %v7647
        %v7667 = vsel %vm7657, %v7653, 1326507024
        %v7668 = vsel %vm7656, %v7650, %v7667
        %v7669 = vsel %vm7655, %v7666, %v7668
        %v7670 = vshll.u32 %v7630, 8
        %v7671 = vand.u32 %v7670, 65535
        %v7672 = vshrl.u32 %v7670, 16
        %v7673 = vand.u32 %v7669, 65535
        %v7674 = vshrl.u32 %v7669, 16
        %v7675 = vmul.u32 %v7671, %v7673
        %v7676 = vmul.u32 %v7671, %v7674
        %v7677 = vmul.u32 %v7672, %v7673
        %v7678 = vmul.u32 %v7672, %v7674
        %v7679 = vshll.u32 %v7676, 16
        %v7680 = vshrl.u32 %v7676, 16
        %v7681 = vshll.u32 %v7677, 16
        %v7682 = vshrl.u32 %v7677, 16
        %vm7683 = vc.u32 %v7675, %v7679
        %v7684 = vsel %vm7683, 1, 0
        %v7685 = vadd.s32 %v7675, %v7679
        %v7686 = vadd.s32 %v7678, %v7684
        %vm7687 = vc.u32 %v7685, %v7681
        %v7688 = vsel %vm7687, 1, 0
        %v7689 = vadd.s32 %v7685, %v7681
        %v7690 = vadd.s32 %v7686, %v7688
        %v7691 = vadd.s32 %v7690, %v7680
        %v7692 = vadd.s32 %v7691, %v7682
        %v7693 = vand.u32 %v7670, 65535
        %v7694 = vshrl.u32 %v7670, 16
        %v7695 = vand.u32 %v7665, 65535
        %v7696 = vshrl.u32 %v7665, 16
        %v7697 = vmul.u32 %v7693, %v7695
        %v7698 = vmul.u32 %v7693, %v7696
        %v7699 = vmul.u32 %v7694, %v7695
        %v7700 = vmul.u32 %v7694, %v7696
        %v7701 = vshll.u32 %v7698, 16
        %v7702 = vshrl.u32 %v7698, 16
        %v7703 = vshll.u32 %v7699, 16
        %v7704 = vshrl.u32 %v7699, 16
        %vm7705 = vc.u32 %v7697, %v7701
        %v7706 = vsel %vm7705, 1, 0
        %v7707 = vadd.s32 %v7697, %v7701
        %v7708 = vadd.s32 %v7700, %v7706
        %vm7709 = vc.u32 %v7707, %v7703
        %v7710 = vsel %vm7709, 1, 0
        %v7711 = vadd.s32 %v7707, %v7703
        %v7712 = vadd.s32 %v7708, %v7710
        %v7713 = vadd.s32 %v7712, %v7702
        %v7714 = vadd.s32 %v7713, %v7704
        %v7715 = vmul.u32 %v7670, %v7661
        %v7716 = vadd.s32 %v7692, %v7711
        %vm7717 = vc.u32 %v7692, %v7711
        %v7718 = vadd.s32 %v7714, 1
        %v7719 = vsel %vm7717, %v7718, %v7714
        %v7720 = vadd.s32 %v7715, %v7719
        %v7721 = vadd.s32 %v7720, 536870912
        %v7722 = vshrl.u32 %v7721, 30
        %v7723 = vshll.u32 %v7722, 30
        %v7724 = vsub.s32 %v7720, %v7723
        %vm7725 = vcmp.lt.s32.totalorder %v7724, 0
        %v7726 = vsub.s32 0, %v7724
        %v7727 = vsel %vm7725, %v7726, %v7724
        %v7728 = vclz %v7727
        %v7729 = vsub.s32 %v7728, 2
        %vm7730 = vcmp.gt.s32.totalorder 0, %v7729
        %v7731 = vsel %vm7730, 0, %v7729
        %v7732 = vsub.s32 32, %v7731
        %v7733 = vshll.u32 %v7724, %v7731
        %v7734 = vshrl.u32 %v7716, %v7732
        %v7735 = vor.u32 %v7733, %v7734
        %v7736 = vsub.s32 4294967266, %v7731
        %v7737 = vadd.s32 %v7736, 127
        %v7738 = vshll.u32 %v7737, 23
        %v7739 = vor.u32 4788187, %v7738
        %v7740 = vand.u32 2147483647, %v7739
        %v7742 = vcvt.s32.f32 %v7735
        %v7743 = vmul.f32 %v7742, %v7740
        %v7744 = vxor.u32 %v7743, 2147483648
        %v7745 = vsel %vm7624, %v7744, %v7743
        %v7746 = vsub.s32 4, %v7722
        %v7747 = vsel %vm7624, %v7746, %v7722
        %v7748 = vsel %vm7623, %v591, %v7745
        %v7749 = vsel %vm7623, 0, %v7747
        %v7750 = vmul.f32 %v7748, %v7748
        %v7751 = vmul.f32 %v7750, -0.001358992
        %v7752 = vadd.f32 %v7751, 0.041655596
        %v7753 = vmul.f32 %v7750, %v7752
        %v7754 = vadd.f32 %v7753, -0.4999988
        %v7755 = vmul.f32 %v7750, %v7754
        %v7756 = vadd.f32 1.0, %v7755
        %v7757 = vmul.f32 %v7748, %v7748
        %v7758 = vmul.f32 %v7757, -0.00019511016
        %v7759 = vadd.f32 %v7758, 0.008332121
        %v7760 = vmul.f32 %v7757, %v7759
        %v7761 = vadd.f32 %v7760, -0.16666654
        %v7762 = vmul.f32 %v7757, %v7761
        %v7763 = vadd.f32 %v7762, 1.0
        %v7764 = vmul.f32 %v7763, %v7748
        %vm7765 = vweird.f32 %v591
        %v7766 = vadd.s32 %v7749, 3
        %v7767 = vand.u32 %v7766, 3
        %vm7768 = vcmp.lt.s32.totalorder %v7767, 2
        %vm7769 = vcmp.eq.s32.totalorder %v7767, 0
        %v7770 = vxor.u32 %v7764, 2147483648
        %v7771 = vsel %vm7769, %v7756, %v7770
        %vm7772 = vcmp.eq.s32.totalorder %v7767, 2
        %v7773 = vxor.u32 %v7756, 2147483648
        %v7774 = vsel %vm7772, %v7773, %v7764
        %v7775 = vsel %vm7768, %v7771, %v7774
        %v7776 = vsel %vm7765, nan, %v7775
        %v7777 = vand.u32 2147483647, %v594
        %vm7778 = vcmp.le.f32.partialorder %v7777, 0.7853982
        %vm7779 = vcmp.lt.s32.totalorder %v594, 0
        %v7780 = vand.u32 %v594, 2139095040
        %v7781 = vshrl.u32 %v7780, 23
        %v7782 = vsub.s32 %v7781, 127
        %v7783 = vand.u32 2147483647, %v594
        %v7784 = vand.u32 %v7783, 8388607
        %v7785 = vor.u32 %v7784, 8388608
        %v7786 = vsub.s32 0, %v7785
        %v7787 = vadd.s32 %v7782, 1
        %vm7788 = vcmp.gt.s32.totalorder %v7787, 0
        %v7789 = vsel %vm7788, %v7787, 0
        %v7790 = vshrl.u32 %v7789, 5
        %v7791 = vand.u32 %v7789, 31
        %v7792 = vsub.s32 32, %v7791
        %v7793 = vshrl.u32 683565275, %v7792
        %v7794 = vshll.u32 683565275, %v7791
        %v7795 = vshrl.u32 2475754826, %v7792
        %v7796 = vor.u32 %v7794, %v7795
        %v7797 = vshll.u32 2475754826, %v7791
        %v7798 = vshrl.u32 2131351028, %v7792
        %v7799 = vor.u32 %v7797, %v7798
        %v7800 = vshll.u32 2131351028, %v7791
        %v7801 = vshrl.u32 2102212464, %v7792
        %v7802 = vor.u32 %v7800, %v7801
        %v7803 = vshll.u32 2102212464, %v7791
        %v7804 = vshrl.u32 920167782, %v7792
        %v7805 = vor.u32 %v7803, %v7804
        %v7806 = vshll.u32 920167782, %v7791
        %v7807 = vshrl.u32 1326507024, %v7792
        %v7808 = vor.u32 %v7806, %v7807
        %vm7809 = vcmp.lt.s32.totalorder %v7790, 1
        %vm7810 = vcmp.lt.s32.totalorder %v7790, 2
        %vm7811 = vcmp.lt.s32.totalorder %v7790, 3
        %vm7812 = vcmp.lt.s32.totalorder %v7790, 4
        %v7813 = vsel %vm7809, %v7793, %v7796
        %v7814 = vsel %vm7812, %v7802, 2102212464
        %v7815 = vsel %vm7811, %v7799, %v7814
        %v7816 = vsel %vm7810, %v7813, %v7815
        %v7817 = vsel %vm7809, %v7796, %v7799
        %v7818 = vsel %vm7812, %v7805, 920167782
        %v7819 = vsel %vm7811, %v7802, %v7818
        %v7820 = vsel %vm7810, %v7817, %v7819
        %v7821 = vsel %vm7809, %v7799, %v7802
        %v7822 = vsel %vm7812, %v7808, 1326507024
        %v7823 = vsel %vm7811, %v7805, %v7822
        %v7824 = vsel %vm7810, %v7821, %v7823
        %v7825 = vshll.u32 %v7785, 8
        %v7826 = vand.u32 %v7825, 65535
        %v7827 = vshrl.u32 %v7825, 16
        %v7828 = vand.u32 %v7824, 65535
        %v7829 = vshrl.u32 %v7824, 16
        %v7830 = vmul.u32 %v7826, %v7828
        %v7831 = vmul.u32 %v7826, %v7829
        %v7832 = vmul.u32 %v7827, %v7828
        %v7833 = vmul.u32 %v7827, %v7829
        %v7834 = vshll.u32 %v7831, 16
        %v7835 = vshrl.u32 %v7831, 16
        %v7836 = vshll.u32 %v7832, 16
        %v7837 = vshrl.u32 %v7832, 16
        %vm7838 = vc.u32 %v7830, %v7834
        %v7839 = vsel %vm7838, 1, 0
        %v7840 = vadd.s32 %v7830, %v7834
        %v7841 = vadd.s32 %v7833, %v7839
        %vm7842 = vc.u32 %v7840, %v7836
        %v7843 = vsel %vm7842, 1, 0
        %v7844 = vadd.s32 %v7840, %v7836
        %v7845 = vadd.s32 %v7841, %v7843
        %v7846 = vadd.s32 %v7845, %v7835
        %v7847 = vadd.s32 %v7846, %v7837
        %v7848 = vand.u32 %v7825, 65535
        %v7849 = vshrl.u32 %v7825, 16
        %v7850 = vand.u32 %v7820, 65535
        %v7851 = vshrl.u32 %v7820, 16
        %v7852 = vmul.u32 %v7848, %v7850
        %v7853 = vmul.u32 %v7848, %v7851
        %v7854 = vmul.u32 %v7849, %v7850
        %v7855 = vmul.u32 %v7849, %v7851
        %v7856 = vshll.u32 %v7853, 16
        %v7857 = vshrl.u32 %v7853, 16
        %v7858 = vshll.u32 %v7854, 16
        %v7859 = vshrl.u32 %v7854, 16
        %vm7860 = vc.u32 %v7852, %v7856
        %v7861 = vsel %vm7860, 1, 0
        %v7862 = vadd.s32 %v7852, %v7856
        %v7863 = vadd.s32 %v7855, %v7861
        %vm7864 = vc.u32 %v7862, %v7858
        %v7865 = vsel %vm7864, 1, 0
        %v7866 = vadd.s32 %v7862, %v7858
        %v7867 = vadd.s32 %v7863, %v7865
        %v7868 = vadd.s32 %v7867, %v7857
        %v7869 = vadd.s32 %v7868, %v7859
        %v7870 = vmul.u32 %v7825, %v7816
        %v7871 = vadd.s32 %v7847, %v7866
        %vm7872 = vc.u32 %v7847, %v7866
        %v7873 = vadd.s32 %v7869, 1
        %v7874 = vsel %vm7872, %v7873, %v7869
        %v7875 = vadd.s32 %v7870, %v7874
        %v7876 = vadd.s32 %v7875, 536870912
        %v7877 = vshrl.u32 %v7876, 30
        %v7878 = vshll.u32 %v7877, 30
        %v7879 = vsub.s32 %v7875, %v7878
        %vm7880 = vcmp.lt.s32.totalorder %v7879, 0
        %v7881 = vsub.s32 0, %v7879
        %v7882 = vsel %vm7880, %v7881, %v7879
        %v7883 = vclz %v7882
        %v7884 = vsub.s32 %v7883, 2
        %vm7885 = vcmp.gt.s32.totalorder 0, %v7884
        %v7886 = vsel %vm7885, 0, %v7884
        %v7887 = vsub.s32 32, %v7886
        %v7888 = vshll.u32 %v7879, %v7886
        %v7889 = vshrl.u32 %v7871, %v7887
        %v7890 = vor.u32 %v7888, %v7889
        %v7891 = vsub.s32 4294967266, %v7886
        %v7892 = vadd.s32 %v7891, 127
        %v7893 = vshll.u32 %v7892, 23
        %v7894 = vor.u32 4788187, %v7893
        %v7895 = vand.u32 2147483647, %v7894
        %v7897 = vcvt.s32.f32 %v7890
        %v7898 = vmul.f32 %v7897, %v7895
        %v7899 = vxor.u32 %v7898, 2147483648
        %v7900 = vsel %vm7779, %v7899, %v7898
        %v7901 = vsub.s32 4, %v7877
        %v7902 = vsel %vm7779, %v7901, %v7877
        %v7903 = vsel %vm7778, %v594, %v7900
        %v7904 = vsel %vm7778, 0, %v7902
        %v7905 = vmul.f32 %v7903, %v7903
        %v7906 = vmul.f32 %v7905, -0.001358992
        %v7907 = vadd.f32 %v7906, 0.041655596
        %v7908 = vmul.f32 %v7905, %v7907
        %v7909 = vadd.f32 %v7908, -0.4999988
        %v7910 = vmul.f32 %v7905, %v7909
        %v7911 = vadd.f32 1.0, %v7910
        %v7912 = vmul.f32 %v7903, %v7903
        %v7913 = vmul.f32 %v7912, -0.00019511016
        %v7914 = vadd.f32 %v7913, 0.008332121
        %v7915 = vmul.f32 %v7912, %v7914
        %v7916 = vadd.f32 %v7915, -0.16666654
        %v7917 = vmul.f32 %v7912, %v7916
        %v7918 = vadd.f32 %v7917, 1.0
        %v7919 = vmul.f32 %v7918, %v7903
        %vm7920 = vweird.f32 %v594
        %v7921 = vadd.s32 %v7904, 3
        %v7922 = vand.u32 %v7921, 3
        %vm7923 = vcmp.lt.s32.totalorder %v7922, 2
        %vm7924 = vcmp.eq.s32.totalorder %v7922, 0
        %v7925 = vxor.u32 %v7919, 2147483648
        %v7926 = vsel %vm7924, %v7911, %v7925
        %vm7927 = vcmp.eq.s32.totalorder %v7922, 2
        %v7928 = vxor.u32 %v7911, 2147483648
        %v7929 = vsel %vm7927, %v7928, %v7919
        %v7930 = vsel %vm7923, %v7926, %v7929
        %v7931 = vsel %vm7920, nan, %v7930
        %v7932 = vand.u32 2147483647, %v597
        %vm7933 = vcmp.le.f32.partialorder %v7932, 0.7853982
        %vm7934 = vcmp.lt.s32.totalorder %v597, 0
        %v7935 = vand.u32 %v597, 2139095040
        %v7936 = vshrl.u32 %v7935, 23
        %v7937 = vsub.s32 %v7936, 127
        %v7938 = vand.u32 2147483647, %v597
        %v7939 = vand.u32 %v7938, 8388607
        %v7940 = vor.u32 %v7939, 8388608
        %v7941 = vsub.s32 0, %v7940
        %v7942 = vadd.s32 %v7937, 1
        %vm7943 = vcmp.gt.s32.totalorder %v7942, 0
        %v7944 = vsel %vm7943, %v7942, 0
        %v7945 = vshrl.u32 %v7944, 5
        %v7946 = vand.u32 %v7944, 31
        %v7947 = vsub.s32 32, %v7946
        %v7948 = vshrl.u32 683565275, %v7947
        %v7949 = vshll.u32 683565275, %v7946
        %v7950 = vshrl.u32 2475754826, %v7947
        %v7951 = vor.u32 %v7949, %v7950
        %v7952 = vshll.u32 2475754826, %v7946
        %v7953 = vshrl.u32 2131351028, %v7947
        %v7954 = vor.u32 %v7952, %v7953
        %v7955 = vshll.u32 2131351028, %v7946
        %v7956 = vshrl.u32 2102212464, %v7947
        %v7957 = vor.u32 %v7955, %v7956
        %v7958 = vshll.u32 2102212464, %v7946
        %v7959 = vshrl.u32 920167782, %v7947
        %v7960 = vor.u32 %v7958, %v7959
        %v7961 = vshll.u32 920167782, %v7946
        %v7962 = vshrl.u32 1326507024, %v7947
        %v7963 = vor.u32 %v7961, %v7962
        %vm7964 = vcmp.lt.s32.totalorder %v7945, 1
        %vm7965 = vcmp.lt.s32.totalorder %v7945, 2
        %vm7966 = vcmp.lt.s32.totalorder %v7945, 3
        %vm7967 = vcmp.lt.s32.totalorder %v7945, 4
        %v7968 = vsel %vm7964, %v7948, %v7951
        %v7969 = vsel %vm7967, %v7957, 2102212464
        %v7970 = vsel %vm7966, %v7954, %v7969
        %v7971 = vsel %vm7965, %v7968, %v7970
        %v7972 = vsel %vm7964, %v7951, %v7954
        %v7973 = vsel %vm7967, %v7960, 920167782
        %v7974 = vsel %vm7966, %v7957, %v7973
        %v7975 = vsel %vm7965, %v7972, %v7974
        %v7976 = vsel %vm7964, %v7954, %v7957
        %v7977 = vsel %vm7967, %v7963, 1326507024
        %v7978 = vsel %vm7966, %v7960, %v7977
        %v7979 = vsel %vm7965, %v7976, %v7978
        %v7980 = vshll.u32 %v7940, 8
        %v7981 = vand.u32 %v7980, 65535
        %v7982 = vshrl.u32 %v7980, 16
        %v7983 = vand.u32 %v7979, 65535
        %v7984 = vshrl.u32 %v7979, 16
        %v7985 = vmul.u32 %v7981, %v7983
        %v7986 = vmul.u32 %v7981, %v7984
        %v7987 = vmul.u32 %v7982, %v7983
        %v7988 = vmul.u32 %v7982, %v7984
        %v7989 = vshll.u32 %v7986, 16
        %v7990 = vshrl.u32 %v7986, 16
        %v7991 = vshll.u32 %v7987, 16
        %v7992 = vshrl.u32 %v7987, 16
        %vm7993 = vc.u32 %v7985, %v7989
        %v7994 = vsel %vm7993, 1, 0
        %v7995 = vadd.s32 %v7985, %v7989
        %v7996 = vadd.s32 %v7988, %v7994
        %vm7997 = vc.u32 %v7995, %v7991
        %v7998 = vsel %vm7997, 1, 0
        %v7999 = vadd.s32 %v7995, %v7991
        %v8000 = vadd.s32 %v7996, %v7998
        %v8001 = vadd.s32 %v8000, %v7990
        %v8002 = vadd.s32 %v8001, %v7992
        %v8003 = vand.u32 %v7980, 65535
        %v8004 = vshrl.u32 %v7980, 16
        %v8005 = vand.u32 %v7975, 65535
        %v8006 = vshrl.u32 %v7975, 16
        %v8007 = vmul.u32 %v8003, %v8005
        %v8008 = vmul.u32 %v8003, %v8006
        %v8009 = vmul.u32 %v8004, %v8005
        %v8010 = vmul.u32 %v8004, %v8006
        %v8011 = vshll.u32 %v8008, 16
        %v8012 = vshrl.u32 %v8008, 16
        %v8013 = vshll.u32 %v8009, 16
        %v8014 = vshrl.u32 %v8009, 16
        %vm8015 = vc.u32 %v8007, %v8011
        %v8016 = vsel %vm8015, 1, 0
        %v8017 = vadd.s32 %v8007, %v8011
        %v8018 = vadd.s32 %v8010, %v8016
        %vm8019 = vc.u32 %v8017, %v8013
        %v8020 = vsel %vm8019, 1, 0
        %v8021 = vadd.s32 %v8017, %v8013
        %v8022 = vadd.s32 %v8018, %v8020
        %v8023 = vadd.s32 %v8022, %v8012
        %v8024 = vadd.s32 %v8023, %v8014
        %v8025 = vmul.u32 %v7980, %v7971
        %v8026 = vadd.s32 %v8002, %v8021
        %vm8027 = vc.u32 %v8002, %v8021
        %v8028 = vadd.s32 %v8024, 1
        %v8029 = vsel %vm8027, %v8028, %v8024
        %v8030 = vadd.s32 %v8025, %v8029
        %v8031 = vadd.s32 %v8030, 536870912
        %v8032 = vshrl.u32 %v8031, 30
        %v8033 = vshll.u32 %v8032, 30
        %v8034 = vsub.s32 %v8030, %v8033
        %vm8035 = vcmp.lt.s32.totalorder %v8034, 0
        %v8036 = vsub.s32 0, %v8034
        %v8037 = vsel %vm8035, %v8036, %v8034
        %v8038 = vclz %v8037
        %v8039 = vsub.s32 %v8038, 2
        %vm8040 = vcmp.gt.s32.totalorder 0, %v8039
        %v8041 = vsel %vm8040, 0, %v8039
        %v8042 = vsub.s32 32, %v8041
        %v8043 = vshll.u32 %v8034, %v8041
        %v8044 = vshrl.u32 %v8026, %v8042
        %v8045 = vor.u32 %v8043, %v8044
        %v8046 = vsub.s32 4294967266, %v8041
        %v8047 = vadd.s32 %v8046, 127
        %v8048 = vshll.u32 %v8047, 23
        %v8049 = vor.u32 4788187, %v8048
        %v8050 = vand.u32 2147483647, %v8049
        %v8052 = vcvt.s32.f32 %v8045
        %v8053 = vmul.f32 %v8052, %v8050
        %v8054 = vxor.u32 %v8053, 2147483648
        %v8055 = vsel %vm7934, %v8054, %v8053
        %v8056 = vsub.s32 4, %v8032
        %v8057 = vsel %vm7934, %v8056, %v8032
        %v8058 = vsel %vm7933, %v597, %v8055
        %v8059 = vsel %vm7933, 0, %v8057
        %v8060 = vmul.f32 %v8058, %v8058
        %v8061 = vmul.f32 %v8060, -0.001358992
        %v8062 = vadd.f32 %v8061, 0.041655596
        %v8063 = vmul.f32 %v8060, %v8062
        %v8064 = vadd.f32 %v8063, -0.4999988
        %v8065 = vmul.f32 %v8060, %v8064
        %v8066 = vadd.f32 1.0, %v8065
        %v8067 = vmul.f32 %v8058, %v8058
        %v8068 = vmul.f32 %v8067, -0.00019511016
        %v8069 = vadd.f32 %v8068, 0.008332121
        %v8070 = vmul.f32 %v8067, %v8069
        %v8071 = vadd.f32 %v8070, -0.16666654
        %v8072 = vmul.f32 %v8067, %v8071
        %v8073 = vadd.f32 %v8072, 1.0
        %v8074 = vmul.f32 %v8073, %v8058
        %vm8075 = vweird.f32 %v597
        %v8076 = vadd.s32 %v8059, 3
        %v8077 = vand.u32 %v8076, 3
        %vm8078 = vcmp.lt.s32.totalorder %v8077, 2
        %vm8079 = vcmp.eq.s32.totalorder %v8077, 0
        %v8080 = vxor.u32 %v8074, 2147483648
        %v8081 = vsel %vm8079, %v8066, %v8080
        %vm8082 = vcmp.eq.s32.totalorder %v8077, 2
        %v8083 = vxor.u32 %v8066, 2147483648
        %v8084 = vsel %vm8082, %v8083, %v8074
        %v8085 = vsel %vm8078, %v8081, %v8084
        %v8086 = vsel %vm8075, nan, %v8085
        %v8087 = vand.u32 2147483647, %v600
        %vm8088 = vcmp.le.f32.partialorder %v8087, 0.7853982
        %vm8089 = vcmp.lt.s32.totalorder %v600, 0
        %v8090 = vand.u32 %v600, 2139095040
        %v8091 = vshrl.u32 %v8090, 23
        %v8092 = vsub.s32 %v8091, 127
        %v8093 = vand.u32 2147483647, %v600
        %v8094 = vand.u32 %v8093, 8388607
        %v8095 = vor.u32 %v8094, 8388608
        %v8096 = vsub.s32 0, %v8095
        %v8097 = vadd.s32 %v8092, 1
        %vm8098 = vcmp.gt.s32.totalorder %v8097, 0
        %v8099 = vsel %vm8098, %v8097, 0
        %v8100 = vshrl.u32 %v8099, 5
        %v8101 = vand.u32 %v8099, 31
        %v8102 = vsub.s32 32, %v8101
        %v8103 = vshrl.u32 683565275, %v8102
        %v8104 = vshll.u32 683565275, %v8101
        %v8105 = vshrl.u32 2475754826, %v8102
        %v8106 = vor.u32 %v8104, %v8105
        %v8107 = vshll.u32 2475754826, %v8101
        %v8108 = vshrl.u32 2131351028, %v8102
        %v8109 = vor.u32 %v8107, %v8108
        %v8110 = vshll.u32 2131351028, %v8101
        %v8111 = vshrl.u32 2102212464, %v8102
        %v8112 = vor.u32 %v8110, %v8111
        %v8113 = vshll.u32 2102212464, %v8101
        %v8114 = vshrl.u32 920167782, %v8102
        %v8115 = vor.u32 %v8113, %v8114
        %v8116 = vshll.u32 920167782, %v8101
        %v8117 = vshrl.u32 1326507024, %v8102
        %v8118 = vor.u32 %v8116, %v8117
        %vm8119 = vcmp.lt.s32.totalorder %v8100, 1
        %vm8120 = vcmp.lt.s32.totalorder %v8100, 2
        %vm8121 = vcmp.lt.s32.totalorder %v8100, 3
        %vm8122 = vcmp.lt.s32.totalorder %v8100, 4
        %v8123 = vsel %vm8119, %v8103, %v8106
        %v8124 = vsel %vm8122, %v8112, 2102212464
        %v8125 = vsel %vm8121, %v8109, %v8124
        %v8126 = vsel %vm8120, %v8123, %v8125
        %v8127 = vsel %vm8119, %v8106, %v8109
        %v8128 = vsel %vm8122, %v8115, 920167782
        %v8129 = vsel %vm8121, %v8112, %v8128
        %v8130 = vsel %vm8120, %v8127, %v8129
        %v8131 = vsel %vm8119, %v8109, %v8112
        %v8132 = vsel %vm8122, %v8118, 1326507024
        %v8133 = vsel %vm8121, %v8115, %v8132
        %v8134 = vsel %vm8120, %v8131, %v8133
        %v8135 = vshll.u32 %v8095, 8
        %v8136 = vand.u32 %v8135, 65535
        %v8137 = vshrl.u32 %v8135, 16
        %v8138 = vand.u32 %v8134, 65535
        %v8139 = vshrl.u32 %v8134, 16
        %v8140 = vmul.u32 %v8136, %v8138
        %v8141 = vmul.u32 %v8136, %v8139
        %v8142 = vmul.u32 %v8137, %v8138
        %v8143 = vmul.u32 %v8137, %v8139
        %v8144 = vshll.u32 %v8141, 16
        %v8145 = vshrl.u32 %v8141, 16
        %v8146 = vshll.u32 %v8142, 16
        %v8147 = vshrl.u32 %v8142, 16
        %vm8148 = vc.u32 %v8140, %v8144
        %v8149 = vsel %vm8148, 1, 0
        %v8150 = vadd.s32 %v8140, %v8144
        %v8151 = vadd.s32 %v8143, %v8149
        %vm8152 = vc.u32 %v8150, %v8146
        %v8153 = vsel %vm8152, 1, 0
        %v8154 = vadd.s32 %v8150, %v8146
        %v8155 = vadd.s32 %v8151, %v8153
        %v8156 = vadd.s32 %v8155, %v8145
        %v8157 = vadd.s32 %v8156, %v8147
        %v8158 = vand.u32 %v8135, 65535
        %v8159 = vshrl.u32 %v8135, 16
        %v8160 = vand.u32 %v8130, 65535
        %v8161 = vshrl.u32 %v8130, 16
        %v8162 = vmul.u32 %v8158, %v8160
        %v8163 = vmul.u32 %v8158, %v8161
        %v8164 = vmul.u32 %v8159, %v8160
        %v8165 = vmul.u32 %v8159, %v8161
        %v8166 = vshll.u32 %v8163, 16
        %v8167 = vshrl.u32 %v8163, 16
        %v8168 = vshll.u32 %v8164, 16
        %v8169 = vshrl.u32 %v8164, 16
        %vm8170 = vc.u32 %v8162, %v8166
        %v8171 = vsel %vm8170, 1, 0
        %v8172 = vadd.s32 %v8162, %v8166
        %v8173 = vadd.s32 %v8165, %v8171
        %vm8174 = vc.u32 %v8172, %v8168
        %v8175 = vsel %vm8174, 1, 0
        %v8176 = vadd.s32 %v8172, %v8168
        %v8177 = vadd.s32 %v8173, %v8175
        %v8178 = vadd.s32 %v8177, %v8167
        %v8179 = vadd.s32 %v8178, %v8169
        %v8180 = vmul.u32 %v8135, %v8126
        %v8181 = vadd.s32 %v8157, %v8176
        %vm8182 = vc.u32 %v8157, %v8176
        %v8183 = vadd.s32 %v8179, 1
        %v8184 = vsel %vm8182, %v8183, %v8179
        %v8185 = vadd.s32 %v8180, %v8184
        %v8186 = vadd.s32 %v8185, 536870912
        %v8187 = vshrl.u32 %v8186, 30
        %v8188 = vshll.u32 %v8187, 30
        %v8189 = vsub.s32 %v8185, %v8188
        %vm8190 = vcmp.lt.s32.totalorder %v8189, 0
        %v8191 = vsub.s32 0, %v8189
        %v8192 = vsel %vm8190, %v8191, %v8189
        %v8193 = vclz %v8192
        %v8194 = vsub.s32 %v8193, 2
        %vm8195 = vcmp.gt.s32.totalorder 0, %v8194
        %v8196 = vsel %vm8195, 0, %v8194
        %v8197 = vsub.s32 32, %v8196
        %v8198 = vshll.u32 %v8189, %v8196
        %v8199 = vshrl.u32 %v8181, %v8197
        %v8200 = vor.u32 %v8198, %v8199
        %v8201 = vsub.s32 4294967266, %v8196
        %v8202 = vadd.s32 %v8201, 127
        %v8203 = vshll.u32 %v8202, 23
        %v8204 = vor.u32 4788187, %v8203
        %v8205 = vand.u32 2147483647, %v8204
        %v8207 = vcvt.s32.f32 %v8200
        %v8208 = vmul.f32 %v8207, %v8205
        %v8209 = vxor.u32 %v8208, 2147483648
        %v8210 = vsel %vm8089, %v8209, %v8208
        %v8211 = vsub.s32 4, %v8187
        %v8212 = vsel %vm8089, %v8211, %v8187
        %v8213 = vsel %vm8088, %v600, %v8210
        %v8214 = vsel %vm8088, 0, %v8212
        %v8215 = vmul.f32 %v8213, %v8213
        %v8216 = vmul.f32 %v8215, -0.001358992
        %v8217 = vadd.f32 %v8216, 0.041655596
        %v8218 = vmul.f32 %v8215, %v8217
        %v8219 = vadd.f32 %v8218, -0.4999988
        %v8220 = vmul.f32 %v8215, %v8219
        %v8221 = vadd.f32 1.0, %v8220
        %v8222 = vmul.f32 %v8213, %v8213
        %v8223 = vmul.f32 %v8222, -0.00019511016
        %v8224 = vadd.f32 %v8223, 0.008332121
        %v8225 = vmul.f32 %v8222, %v8224
        %v8226 = vadd.f32 %v8225, -0.16666654
        %v8227 = vmul.f32 %v8222, %v8226
        %v8228 = vadd.f32 %v8227, 1.0
        %v8229 = vmul.f32 %v8228, %v8213
        %vm8230 = vweird.f32 %v600
        %v8231 = vadd.s32 %v8214, 3
        %v8232 = vand.u32 %v8231, 3
        %vm8233 = vcmp.lt.s32.totalorder %v8232, 2
        %vm8234 = vcmp.eq.s32.totalorder %v8232, 0
        %v8235 = vxor.u32 %v8229, 2147483648
        %v8236 = vsel %vm8234, %v8221, %v8235
        %vm8237 = vcmp.eq.s32.totalorder %v8232, 2
        %v8238 = vxor.u32 %v8221, 2147483648
        %v8239 = vsel %vm8237, %v8238, %v8229
        %v8240 = vsel %vm8233, %v8236, %v8239
        %v8241 = vsel %vm8230, nan, %v8240
        %v8242 = vand.u32 2147483647, %v603
        %vm8243 = vcmp.le.f32.partialorder %v8242, 0.7853982
        %vm8244 = vcmp.lt.s32.totalorder %v603, 0
        %v8245 = vand.u32 %v603, 2139095040
        %v8246 = vshrl.u32 %v8245, 23
        %v8247 = vsub.s32 %v8246, 127
        %v8248 = vand.u32 2147483647, %v603
        %v8249 = vand.u32 %v8248, 8388607
        %v8250 = vor.u32 %v8249, 8388608
        %v8251 = vsub.s32 0, %v8250
        %v8252 = vadd.s32 %v8247, 1
        %vm8253 = vcmp.gt.s32.totalorder %v8252, 0
        %v8254 = vsel %vm8253, %v8252, 0
        %v8255 = vshrl.u32 %v8254, 5
        %v8256 = vand.u32 %v8254, 31
        %v8257 = vsub.s32 32, %v8256
        %v8258 = vshrl.u32 683565275, %v8257
        %v8259 = vshll.u32 683565275, %v8256
        %v8260 = vshrl.u32 2475754826, %v8257
        %v8261 = vor.u32 %v8259, %v8260
        %v8262 = vshll.u32 2475754826, %v8256
        %v8263 = vshrl.u32 2131351028, %v8257
        %v8264 = vor.u32 %v8262, %v8263
        %v8265 = vshll.u32 2131351028, %v8256
        %v8266 = vshrl.u32 2102212464, %v8257
        %v8267 = vor.u32 %v8265, %v8266
        %v8268 = vshll.u32 2102212464, %v8256
        %v8269 = vshrl.u32 920167782, %v8257
        %v8270 = vor.u32 %v8268, %v8269
        %v8271 = vshll.u32 920167782, %v8256
        %v8272 = vshrl.u32 1326507024, %v8257
        %v8273 = vor.u32 %v8271, %v8272
        %vm8274 = vcmp.lt.s32.totalorder %v8255, 1
        %vm8275 = vcmp.lt.s32.totalorder %v8255, 2
        %vm8276 = vcmp.lt.s32.totalorder %v8255, 3
        %vm8277 = vcmp.lt.s32.totalorder %v8255, 4
        %v8278 = vsel %vm8274, %v8258, %v8261
        %v8279 = vsel %vm8277, %v8267, 2102212464
        %v8280 = vsel %vm8276, %v8264, %v8279
        %v8281 = vsel %vm8275, %v8278, %v8280
        %v8282 = vsel %vm8274, %v8261, %v8264
        %v8283 = vsel %vm8277, %v8270, 920167782
        %v8284 = vsel %vm8276, %v8267, %v8283
        %v8285 = vsel %vm8275, %v8282, %v8284
        %v8286 = vsel %vm8274, %v8264, %v8267
        %v8287 = vsel %vm8277, %v8273, 1326507024
        %v8288 = vsel %vm8276, %v8270, %v8287
        %v8289 = vsel %vm8275, %v8286, %v8288
        %v8290 = vshll.u32 %v8250, 8
        %v8291 = vand.u32 %v8290, 65535
        %v8292 = vshrl.u32 %v8290, 16
        %v8293 = vand.u32 %v8289, 65535
        %v8294 = vshrl.u32 %v8289, 16
        %v8295 = vmul.u32 %v8291, %v8293
        %v8296 = vmul.u32 %v8291, %v8294
        %v8297 = vmul.u32 %v8292, %v8293
        %v8298 = vmul.u32 %v8292, %v8294
        %v8299 = vshll.u32 %v8296, 16
        %v8300 = vshrl.u32 %v8296, 16
        %v8301 = vshll.u32 %v8297, 16
        %v8302 = vshrl.u32 %v8297, 16
        %vm8303 = vc.u32 %v8295, %v8299
        %v8304 = vsel %vm8303, 1, 0
        %v8305 = vadd.s32 %v8295, %v8299
        %v8306 = vadd.s32 %v8298, %v8304
        %vm8307 = vc.u32 %v8305, %v8301
        %v8308 = vsel %vm8307, 1, 0
        %v8309 = vadd.s32 %v8305, %v8301
        %v8310 = vadd.s32 %v8306, %v8308
        %v8311 = vadd.s32 %v8310, %v8300
        %v8312 = vadd.s32 %v8311, %v8302
        %v8313 = vand.u32 %v8290, 65535
        %v8314 = vshrl.u32 %v8290, 16
        %v8315 = vand.u32 %v8285, 65535
        %v8316 = vshrl.u32 %v8285, 16
        %v8317 = vmul.u32 %v8313, %v8315
        %v8318 = vmul.u32 %v8313, %v8316
        %v8319 = vmul.u32 %v8314, %v8315
        %v8320 = vmul.u32 %v8314, %v8316
        %v8321 = vshll.u32 %v8318, 16
        %v8322 = vshrl.u32 %v8318, 16
        %v8323 = vshll.u32 %v8319, 16
        %v8324 = vshrl.u32 %v8319, 16
        %vm8325 = vc.u32 %v8317, %v8321
        %v8326 = vsel %vm8325, 1, 0
        %v8327 = vadd.s32 %v8317, %v8321
        %v8328 = vadd.s32 %v8320, %v8326
        %vm8329 = vc.u32 %v8327, %v8323
        %v8330 = vsel %vm8329, 1, 0
        %v8331 = vadd.s32 %v8327, %v8323
        %v8332 = vadd.s32 %v8328, %v8330
        %v8333 = vadd.s32 %v8332, %v8322
        %v8334 = vadd.s32 %v8333, %v8324
        %v8335 = vmul.u32 %v8290, %v8281
        %v8336 = vadd.s32 %v8312, %v8331
        %vm8337 = vc.u32 %v8312, %v8331
        %v8338 = vadd.s32 %v8334, 1
        %v8339 = vsel %vm8337, %v8338, %v8334
        %v8340 = vadd.s32 %v8335, %v8339
        %v8341 = vadd.s32 %v8340, 536870912
        %v8342 = vshrl.u32 %v8341, 30
        %v8343 = vshll.u32 %v8342, 30
        %v8344 = vsub.s32 %v8340, %v8343
        %vm8345 = vcmp.lt.s32.totalorder %v8344, 0
        %v8346 = vsub.s32 0, %v8344
        %v8347 = vsel %vm8345, %v8346, %v8344
        %v8348 = vclz %v8347
        %v8349 = vsub.s32 %v8348, 2
        %vm8350 = vcmp.gt.s32.totalorder 0, %v8349
        %v8351 = vsel %vm8350, 0, %v8349
        %v8352 = vsub.s32 32, %v8351
        %v8353 = vshll.u32 %v8344, %v8351
        %v8354 = vshrl.u32 %v8336, %v8352
        %v8355 = vor.u32 %v8353, %v8354
        %v8356 = vsub.s32 4294967266, %v8351
        %v8357 = vadd.s32 %v8356, 127
        %v8358 = vshll.u32 %v8357, 23
        %v8359 = vor.u32 4788187, %v8358
        %v8360 = vand.u32 2147483647, %v8359
        %v8362 = vcvt.s32.f32 %v8355
        %v8363 = vmul.f32 %v8362, %v8360
        %v8364 = vxor.u32 %v8363, 2147483648
        %v8365 = vsel %vm8244, %v8364, %v8363
        %v8366 = vsub.s32 4, %v8342
        %v8367 = vsel %vm8244, %v8366, %v8342
        %v8368 = vsel %vm8243, %v603, %v8365
        %v8369 = vsel %vm8243, 0, %v8367
        %v8370 = vmul.f32 %v8368, %v8368
        %v8371 = vmul.f32 %v8370, -0.001358992
        %v8372 = vadd.f32 %v8371, 0.041655596
        %v8373 = vmul.f32 %v8370, %v8372
        %v8374 = vadd.f32 %v8373, -0.4999988
        %v8375 = vmul.f32 %v8370, %v8374
        %v8376 = vadd.f32 1.0, %v8375
        %v8377 = vmul.f32 %v8368, %v8368
        %v8378 = vmul.f32 %v8377, -0.00019511016
        %v8379 = vadd.f32 %v8378, 0.008332121
        %v8380 = vmul.f32 %v8377, %v8379
        %v8381 = vadd.f32 %v8380, -0.16666654
        %v8382 = vmul.f32 %v8377, %v8381
        %v8383 = vadd.f32 %v8382, 1.0
        %v8384 = vmul.f32 %v8383, %v8368
        %vm8385 = vweird.f32 %v603
        %v8386 = vadd.s32 %v8369, 3
        %v8387 = vand.u32 %v8386, 3
        %vm8388 = vcmp.lt.s32.totalorder %v8387, 2
        %vm8389 = vcmp.eq.s32.totalorder %v8387, 0
        %v8390 = vxor.u32 %v8384, 2147483648
        %v8391 = vsel %vm8389, %v8376, %v8390
        %vm8392 = vcmp.eq.s32.totalorder %v8387, 2
        %v8393 = vxor.u32 %v8376, 2147483648
        %v8394 = vsel %vm8392, %v8393, %v8384
        %v8395 = vsel %vm8388, %v8391, %v8394
        %v8396 = vsel %vm8385, nan, %v8395
        %v8397 = vand.u32 2147483647, %v606
        %vm8398 = vcmp.le.f32.partialorder %v8397, 0.7853982
        %vm8399 = vcmp.lt.s32.totalorder %v606, 0
        %v8400 = vand.u32 %v606, 2139095040
        %v8401 = vshrl.u32 %v8400, 23
        %v8402 = vsub.s32 %v8401, 127
        %v8403 = vand.u32 2147483647, %v606
        %v8404 = vand.u32 %v8403, 8388607
        %v8405 = vor.u32 %v8404, 8388608
        %v8406 = vsub.s32 0, %v8405
        %v8407 = vadd.s32 %v8402, 1
        %vm8408 = vcmp.gt.s32.totalorder %v8407, 0
        %v8409 = vsel %vm8408, %v8407, 0
        %v8410 = vshrl.u32 %v8409, 5
        %v8411 = vand.u32 %v8409, 31
        %v8412 = vsub.s32 32, %v8411
        %v8413 = vshrl.u32 683565275, %v8412
        %v8414 = vshll.u32 683565275, %v8411
        %v8415 = vshrl.u32 2475754826, %v8412
        %v8416 = vor.u32 %v8414, %v8415
        %v8417 = vshll.u32 2475754826, %v8411
        %v8418 = vshrl.u32 2131351028, %v8412
        %v8419 = vor.u32 %v8417, %v8418
        %v8420 = vshll.u32 2131351028, %v8411
        %v8421 = vshrl.u32 2102212464, %v8412
        %v8422 = vor.u32 %v8420, %v8421
        %v8423 = vshll.u32 2102212464, %v8411
        %v8424 = vshrl.u32 920167782, %v8412
        %v8425 = vor.u32 %v8423, %v8424
        %v8426 = vshll.u32 920167782, %v8411
        %v8427 = vshrl.u32 1326507024, %v8412
        %v8428 = vor.u32 %v8426, %v8427
        %vm8429 = vcmp.lt.s32.totalorder %v8410, 1
        %vm8430 = vcmp.lt.s32.totalorder %v8410, 2
        %vm8431 = vcmp.lt.s32.totalorder %v8410, 3
        %vm8432 = vcmp.lt.s32.totalorder %v8410, 4
        %v8433 = vsel %vm8429, %v8413, %v8416
        %v8434 = vsel %vm8432, %v8422, 2102212464
        %v8435 = vsel %vm8431, %v8419, %v8434
        %v8436 = vsel %vm8430, %v8433, %v8435
        %v8437 = vsel %vm8429, %v8416, %v8419
        %v8438 = vsel %vm8432, %v8425, 920167782
        %v8439 = vsel %vm8431, %v8422, %v8438
        %v8440 = vsel %vm8430, %v8437, %v8439
        %v8441 = vsel %vm8429, %v8419, %v8422
        %v8442 = vsel %vm8432, %v8428, 1326507024
        %v8443 = vsel %vm8431, %v8425, %v8442
        %v8444 = vsel %vm8430, %v8441, %v8443
        %v8445 = vshll.u32 %v8405, 8
        %v8446 = vand.u32 %v8445, 65535
        %v8447 = vshrl.u32 %v8445, 16
        %v8448 = vand.u32 %v8444, 65535
        %v8449 = vshrl.u32 %v8444, 16
        %v8450 = vmul.u32 %v8446, %v8448
        %v8451 = vmul.u32 %v8446, %v8449
        %v8452 = vmul.u32 %v8447, %v8448
        %v8453 = vmul.u32 %v8447, %v8449
        %v8454 = vshll.u32 %v8451, 16
        %v8455 = vshrl.u32 %v8451, 16
        %v8456 = vshll.u32 %v8452, 16
        %v8457 = vshrl.u32 %v8452, 16
        %vm8458 = vc.u32 %v8450, %v8454
        %v8459 = vsel %vm8458, 1, 0
        %v8460 = vadd.s32 %v8450, %v8454
        %v8461 = vadd.s32 %v8453, %v8459
        %vm8462 = vc.u32 %v8460, %v8456
        %v8463 = vsel %vm8462, 1, 0
        %v8464 = vadd.s32 %v8460, %v8456
        %v8465 = vadd.s32 %v8461, %v8463
        %v8466 = vadd.s32 %v8465, %v8455
        %v8467 = vadd.s32 %v8466, %v8457
        %v8468 = vand.u32 %v8445, 65535
        %v8469 = vshrl.u32 %v8445, 16
        %v8470 = vand.u32 %v8440, 65535
        %v8471 = vshrl.u32 %v8440, 16
        %v8472 = vmul.u32 %v8468, %v8470
        %v8473 = vmul.u32 %v8468, %v8471
        %v8474 = vmul.u32 %v8469, %v8470
        %v8475 = vmul.u32 %v8469, %v8471
        %v8476 = vshll.u32 %v8473, 16
        %v8477 = vshrl.u32 %v8473, 16
        %v8478 = vshll.u32 %v8474, 16
        %v8479 = vshrl.u32 %v8474, 16
        %vm8480 = vc.u32 %v8472, %v8476
        %v8481 = vsel %vm8480, 1, 0
        %v8482 = vadd.s32 %v8472, %v8476
        %v8483 = vadd.s32 %v8475, %v8481
        %vm8484 = vc.u32 %v8482, %v8478
        %v8485 = vsel %vm8484, 1, 0
        %v8486 = vadd.s32 %v8482, %v8478
        %v8487 = vadd.s32 %v8483, %v8485
        %v8488 = vadd.s32 %v8487, %v8477
        %v8489 = vadd.s32 %v8488, %v8479
        %v8490 = vmul.u32 %v8445, %v8436
        %v8491 = vadd.s32 %v8467, %v8486
        %vm8492 = vc.u32 %v8467, %v8486
        %v8493 = vadd.s32 %v8489, 1
        %v8494 = vsel %vm8492, %v8493, %v8489
        %v8495 = vadd.s32 %v8490, %v8494
        %v8496 = vadd.s32 %v8495, 536870912
        %v8497 = vshrl.u32 %v8496, 30
        %v8498 = vshll.u32 %v8497, 30
        %v8499 = vsub.s32 %v8495, %v8498
        %vm8500 = vcmp.lt.s32.totalorder %v8499, 0
        %v8501 = vsub.s32 0, %v8499
        %v8502 = vsel %vm8500, %v8501, %v8499
        %v8503 = vclz %v8502
        %v8504 = vsub.s32 %v8503, 2
        %vm8505 = vcmp.gt.s32.totalorder 0, %v8504
        %v8506 = vsel %vm8505, 0, %v8504
        %v8507 = vsub.s32 32, %v8506
        %v8508 = vshll.u32 %v8499, %v8506
        %v8509 = vshrl.u32 %v8491, %v8507
        %v8510 = vor.u32 %v8508, %v8509
        %v8511 = vsub.s32 4294967266, %v8506
        %v8512 = vadd.s32 %v8511, 127
        %v8513 = vshll.u32 %v8512, 23
        %v8514 = vor.u32 4788187, %v8513
        %v8515 = vand.u32 2147483647, %v8514
        %v8517 = vcvt.s32.f32 %v8510
        %v8518 = vmul.f32 %v8517, %v8515
        %v8519 = vxor.u32 %v8518, 2147483648
        %v8520 = vsel %vm8399, %v8519, %v8518
        %v8521 = vsub.s32 4, %v8497
        %v8522 = vsel %vm8399, %v8521, %v8497
        %v8523 = vsel %vm8398, %v606, %v8520
        %v8524 = vsel %vm8398, 0, %v8522
        %v8525 = vmul.f32 %v8523, %v8523
        %v8526 = vmul.f32 %v8525, -0.001358992
        %v8527 = vadd.f32 %v8526, 0.041655596
        %v8528 = vmul.f32 %v8525, %v8527
        %v8529 = vadd.f32 %v8528, -0.4999988
        %v8530 = vmul.f32 %v8525, %v8529
        %v8531 = vadd.f32 1.0, %v8530
        %v8532 = vmul.f32 %v8523, %v8523
        %v8533 = vmul.f32 %v8532, -0.00019511016
        %v8534 = vadd.f32 %v8533, 0.008332121
        %v8535 = vmul.f32 %v8532, %v8534
        %v8536 = vadd.f32 %v8535, -0.16666654
        %v8537 = vmul.f32 %v8532, %v8536
        %v8538 = vadd.f32 %v8537, 1.0
        %v8539 = vmul.f32 %v8538, %v8523
        %vm8540 = vweird.f32 %v606
        %v8541 = vadd.s32 %v8524, 3
        %v8542 = vand.u32 %v8541, 3
        %vm8543 = vcmp.lt.s32.totalorder %v8542, 2
        %vm8544 = vcmp.eq.s32.totalorder %v8542, 0
        %v8545 = vxor.u32 %v8539, 2147483648
        %v8546 = vsel %vm8544, %v8531, %v8545
        %vm8547 = vcmp.eq.s32.totalorder %v8542, 2
        %v8548 = vxor.u32 %v8531, 2147483648
        %v8549 = vsel %vm8547, %v8548, %v8539
        %v8550 = vsel %vm8543, %v8546, %v8549
        %v8551 = vsel %vm8540, nan, %v8550
        %v8552 = vand.u32 2147483647, %v609
        %vm8553 = vcmp.le.f32.partialorder %v8552, 0.7853982
        %vm8554 = vcmp.lt.s32.totalorder %v609, 0
        %v8555 = vand.u32 %v609, 2139095040
        %v8556 = vshrl.u32 %v8555, 23
        %v8557 = vsub.s32 %v8556, 127
        %v8558 = vand.u32 2147483647, %v609
        %v8559 = vand.u32 %v8558, 8388607
        %v8560 = vor.u32 %v8559, 8388608
        %v8561 = vsub.s32 0, %v8560
        %v8562 = vadd.s32 %v8557, 1
        %vm8563 = vcmp.gt.s32.totalorder %v8562, 0
        %v8564 = vsel %vm8563, %v8562, 0
        %v8565 = vshrl.u32 %v8564, 5
        %v8566 = vand.u32 %v8564, 31
        %v8567 = vsub.s32 32, %v8566
        %v8568 = vshrl.u32 683565275, %v8567
        %v8569 = vshll.u32 683565275, %v8566
        %v8570 = vshrl.u32 2475754826, %v8567
        %v8571 = vor.u32 %v8569, %v8570
        %v8572 = vshll.u32 2475754826, %v8566
        %v8573 = vshrl.u32 2131351028, %v8567
        %v8574 = vor.u32 %v8572, %v8573
        %v8575 = vshll.u32 2131351028, %v8566
        %v8576 = vshrl.u32 2102212464, %v8567
        %v8577 = vor.u32 %v8575, %v8576
        %v8578 = vshll.u32 2102212464, %v8566
        %v8579 = vshrl.u32 920167782, %v8567
        %v8580 = vor.u32 %v8578, %v8579
        %v8581 = vshll.u32 920167782, %v8566
        %v8582 = vshrl.u32 1326507024, %v8567
        %v8583 = vor.u32 %v8581, %v8582
        %vm8584 = vcmp.lt.s32.totalorder %v8565, 1
        %vm8585 = vcmp.lt.s32.totalorder %v8565, 2
        %vm8586 = vcmp.lt.s32.totalorder %v8565, 3
        %vm8587 = vcmp.lt.s32.totalorder %v8565, 4
        %v8588 = vsel %vm8584, %v8568, %v8571
        %v8589 = vsel %vm8587, %v8577, 2102212464
        %v8590 = vsel %vm8586, %v8574, %v8589
        %v8591 = vsel %vm8585, %v8588, %v8590
        %v8592 = vsel %vm8584, %v8571, %v8574
        %v8593 = vsel %vm8587, %v8580, 920167782
        %v8594 = vsel %vm8586, %v8577, %v8593
        %v8595 = vsel %vm8585, %v8592, %v8594
        %v8596 = vsel %vm8584, %v8574, %v8577
        %v8597 = vsel %vm8587, %v8583, 1326507024
        %v8598 = vsel %vm8586, %v8580, %v8597
        %v8599 = vsel %vm8585, %v8596, %v8598
        %v8600 = vshll.u32 %v8560, 8
        %v8601 = vand.u32 %v8600, 65535
        %v8602 = vshrl.u32 %v8600, 16
        %v8603 = vand.u32 %v8599, 65535
        %v8604 = vshrl.u32 %v8599, 16
        %v8605 = vmul.u32 %v8601, %v8603
        %v8606 = vmul.u32 %v8601, %v8604
        %v8607 = vmul.u32 %v8602, %v8603
        %v8608 = vmul.u32 %v8602, %v8604
        %v8609 = vshll.u32 %v8606, 16
        %v8610 = vshrl.u32 %v8606, 16
        %v8611 = vshll.u32 %v8607, 16
        %v8612 = vshrl.u32 %v8607, 16
        %vm8613 = vc.u32 %v8605, %v8609
        %v8614 = vsel %vm8613, 1, 0
        %v8615 = vadd.s32 %v8605, %v8609
        %v8616 = vadd.s32 %v8608, %v8614
        %vm8617 = vc.u32 %v8615, %v8611
        %v8618 = vsel %vm8617, 1, 0
        %v8619 = vadd.s32 %v8615, %v8611
        %v8620 = vadd.s32 %v8616, %v8618
        %v8621 = vadd.s32 %v8620, %v8610
        %v8622 = vadd.s32 %v8621, %v8612
        %v8623 = vand.u32 %v8600, 65535
        %v8624 = vshrl.u32 %v8600, 16
        %v8625 = vand.u32 %v8595, 65535
        %v8626 = vshrl.u32 %v8595, 16
        %v8627 = vmul.u32 %v8623, %v8625
        %v8628 = vmul.u32 %v8623, %v8626
        %v8629 = vmul.u32 %v8624, %v8625
        %v8630 = vmul.u32 %v8624, %v8626
        %v8631 = vshll.u32 %v8628, 16
        %v8632 = vshrl.u32 %v8628, 16
        %v8633 = vshll.u32 %v8629, 16
        %v8634 = vshrl.u32 %v8629, 16
        %vm8635 = vc.u32 %v8627, %v8631
        %v8636 = vsel %vm8635, 1, 0
        %v8637 = vadd.s32 %v8627, %v8631
        %v8638 = vadd.s32 %v8630, %v8636
        %vm8639 = vc.u32 %v8637, %v8633
        %v8640 = vsel %vm8639, 1, 0
        %v8641 = vadd.s32 %v8637, %v8633
        %v8642 = vadd.s32 %v8638, %v8640
        %v8643 = vadd.s32 %v8642, %v8632
        %v8644 = vadd.s32 %v8643, %v8634
        %v8645 = vmul.u32 %v8600, %v8591
        %v8646 = vadd.s32 %v8622, %v8641
        %vm8647 = vc.u32 %v8622, %v8641
        %v8648 = vadd.s32 %v8644, 1
        %v8649 = vsel %vm8647, %v8648, %v8644
        %v8650 = vadd.s32 %v8645, %v8649
        %v8651 = vadd.s32 %v8650, 536870912
        %v8652 = vshrl.u32 %v8651, 30
        %v8653 = vshll.u32 %v8652, 30
        %v8654 = vsub.s32 %v8650, %v8653
        %vm8655 = vcmp.lt.s32.totalorder %v8654, 0
        %v8656 = vsub.s32 0, %v8654
        %v8657 = vsel %vm8655, %v8656, %v8654
        %v8658 = vclz %v8657
        %v8659 = vsub.s32 %v8658, 2
        %vm8660 = vcmp.gt.s32.totalorder 0, %v8659
        %v8661 = vsel %vm8660, 0, %v8659
        %v8662 = vsub.s32 32, %v8661
        %v8663 = vshll.u32 %v8654, %v8661
        %v8664 = vshrl.u32 %v8646, %v8662
        %v8665 = vor.u32 %v8663, %v8664
        %v8666 = vsub.s32 4294967266, %v8661
        %v8667 = vadd.s32 %v8666, 127
        %v8668 = vshll.u32 %v8667, 23
        %v8669 = vor.u32 4788187, %v8668
        %v8670 = vand.u32 2147483647, %v8669
        %v8672 = vcvt.s32.f32 %v8665
        %v8673 = vmul.f32 %v8672, %v8670
        %v8674 = vxor.u32 %v8673, 2147483648
        %v8675 = vsel %vm8554, %v8674, %v8673
        %v8676 = vsub.s32 4, %v8652
        %v8677 = vsel %vm8554, %v8676, %v8652
        %v8678 = vsel %vm8553, %v609, %v8675
        %v8679 = vsel %vm8553, 0, %v8677
        %v8680 = vmul.f32 %v8678, %v8678
        %v8681 = vmul.f32 %v8680, -0.001358992
        %v8682 = vadd.f32 %v8681, 0.041655596
        %v8683 = vmul.f32 %v8680, %v8682
        %v8684 = vadd.f32 %v8683, -0.4999988
        %v8685 = vmul.f32 %v8680, %v8684
        %v8686 = vadd.f32 1.0, %v8685
        %v8687 = vmul.f32 %v8678, %v8678
        %v8688 = vmul.f32 %v8687, -0.00019511016
        %v8689 = vadd.f32 %v8688, 0.008332121
        %v8690 = vmul.f32 %v8687, %v8689
        %v8691 = vadd.f32 %v8690, -0.16666654
        %v8692 = vmul.f32 %v8687, %v8691
        %v8693 = vadd.f32 %v8692, 1.0
        %v8694 = vmul.f32 %v8693, %v8678
        %vm8695 = vweird.f32 %v609
        %v8696 = vadd.s32 %v8679, 3
        %v8697 = vand.u32 %v8696, 3
        %vm8698 = vcmp.lt.s32.totalorder %v8697, 2
        %vm8699 = vcmp.eq.s32.totalorder %v8697, 0
        %v8700 = vxor.u32 %v8694, 2147483648
        %v8701 = vsel %vm8699, %v8686, %v8700
        %vm8702 = vcmp.eq.s32.totalorder %v8697, 2
        %v8703 = vxor.u32 %v8686, 2147483648
        %v8704 = vsel %vm8702, %v8703, %v8694
        %v8705 = vsel %vm8698, %v8701, %v8704
        %v8706 = vsel %vm8695, nan, %v8705
        %v8707 = vand.u32 2147483647, %v612
        %vm8708 = vcmp.le.f32.partialorder %v8707, 0.7853982
        %vm8709 = vcmp.lt.s32.totalorder %v612, 0
        %v8710 = vand.u32 %v612, 2139095040
        %v8711 = vshrl.u32 %v8710, 23
        %v8712 = vsub.s32 %v8711, 127
        %v8713 = vand.u32 2147483647, %v612
        %v8714 = vand.u32 %v8713, 8388607
        %v8715 = vor.u32 %v8714, 8388608
        %v8716 = vsub.s32 0, %v8715
        %v8717 = vadd.s32 %v8712, 1
        %vm8718 = vcmp.gt.s32.totalorder %v8717, 0
        %v8719 = vsel %vm8718, %v8717, 0
        %v8720 = vshrl.u32 %v8719, 5
        %v8721 = vand.u32 %v8719, 31
        %v8722 = vsub.s32 32, %v8721
        %v8723 = vshrl.u32 683565275, %v8722
        %v8724 = vshll.u32 683565275, %v8721
        %v8725 = vshrl.u32 2475754826, %v8722
        %v8726 = vor.u32 %v8724, %v8725
        %v8727 = vshll.u32 2475754826, %v8721
        %v8728 = vshrl.u32 2131351028, %v8722
        %v8729 = vor.u32 %v8727, %v8728
        %v8730 = vshll.u32 2131351028, %v8721
        %v8731 = vshrl.u32 2102212464, %v8722
        %v8732 = vor.u32 %v8730, %v8731
        %v8733 = vshll.u32 2102212464, %v8721
        %v8734 = vshrl.u32 920167782, %v8722
        %v8735 = vor.u32 %v8733, %v8734
        %v8736 = vshll.u32 920167782, %v8721
        %v8737 = vshrl.u32 1326507024, %v8722
        %v8738 = vor.u32 %v8736, %v8737
        %vm8739 = vcmp.lt.s32.totalorder %v8720, 1
        %vm8740 = vcmp.lt.s32.totalorder %v8720, 2
        %vm8741 = vcmp.lt.s32.totalorder %v8720, 3
        %vm8742 = vcmp.lt.s32.totalorder %v8720, 4
        %v8743 = vsel %vm8739, %v8723, %v8726
        %v8744 = vsel %vm8742, %v8732, 2102212464
        %v8745 = vsel %vm8741, %v8729, %v8744
        %v8746 = vsel %vm8740, %v8743, %v8745
        %v8747 = vsel %vm8739, %v8726, %v8729
        %v8748 = vsel %vm8742, %v8735, 920167782
        %v8749 = vsel %vm8741, %v8732, %v8748
        %v8750 = vsel %vm8740, %v8747, %v8749
        %v8751 = vsel %vm8739, %v8729, %v8732
        %v8752 = vsel %vm8742, %v8738, 1326507024
        %v8753 = vsel %vm8741, %v8735, %v8752
        %v8754 = vsel %vm8740, %v8751, %v8753
        %v8755 = vshll.u32 %v8715, 8
        %v8756 = vand.u32 %v8755, 65535
        %v8757 = vshrl.u32 %v8755, 16
        %v8758 = vand.u32 %v8754, 65535
        %v8759 = vshrl.u32 %v8754, 16
        %v8760 = vmul.u32 %v8756, %v8758
        %v8761 = vmul.u32 %v8756, %v8759
        %v8762 = vmul.u32 %v8757, %v8758
        %v8763 = vmul.u32 %v8757, %v8759
        %v8764 = vshll.u32 %v8761, 16
        %v8765 = vshrl.u32 %v8761, 16
        %v8766 = vshll.u32 %v8762, 16
        %v8767 = vshrl.u32 %v8762, 16
        %vm8768 = vc.u32 %v8760, %v8764
        %v8769 = vsel %vm8768, 1, 0
        %v8770 = vadd.s32 %v8760, %v8764
        %v8771 = vadd.s32 %v8763, %v8769
        %vm8772 = vc.u32 %v8770, %v8766
        %v8773 = vsel %vm8772, 1, 0
        %v8774 = vadd.s32 %v8770, %v8766
        %v8775 = vadd.s32 %v8771, %v8773
        %v8776 = vadd.s32 %v8775, %v8765
        %v8777 = vadd.s32 %v8776, %v8767
        %v8778 = vand.u32 %v8755, 65535
        %v8779 = vshrl.u32 %v8755, 16
        %v8780 = vand.u32 %v8750, 65535
        %v8781 = vshrl.u32 %v8750, 16
        %v8782 = vmul.u32 %v8778, %v8780
        %v8783 = vmul.u32 %v8778, %v8781
        %v8784 = vmul.u32 %v8779, %v8780
        %v8785 = vmul.u32 %v8779, %v8781
        %v8786 = vshll.u32 %v8783, 16
        %v8787 = vshrl.u32 %v8783, 16
        %v8788 = vshll.u32 %v8784, 16
        %v8789 = vshrl.u32 %v8784, 16
        %vm8790 = vc.u32 %v8782, %v8786
        %v8791 = vsel %vm8790, 1, 0
        %v8792 = vadd.s32 %v8782, %v8786
        %v8793 = vadd.s32 %v8785, %v8791
        %vm8794 = vc.u32 %v8792, %v8788
        %v8795 = vsel %vm8794, 1, 0
        %v8796 = vadd.s32 %v8792, %v8788
        %v8797 = vadd.s32 %v8793, %v8795
        %v8798 = vadd.s32 %v8797, %v8787
        %v8799 = vadd.s32 %v8798, %v8789
        %v8800 = vmul.u32 %v8755, %v8746
        %v8801 = vadd.s32 %v8777, %v8796
        %vm8802 = vc.u32 %v8777, %v8796
        %v8803 = vadd.s32 %v8799, 1
        %v8804 = vsel %vm8802, %v8803, %v8799
        %v8805 = vadd.s32 %v8800, %v8804
        %v8806 = vadd.s32 %v8805, 536870912
        %v8807 = vshrl.u32 %v8806, 30
        %v8808 = vshll.u32 %v8807, 30
        %v8809 = vsub.s32 %v8805, %v8808
        %vm8810 = vcmp.lt.s32.totalorder %v8809, 0
        %v8811 = vsub.s32 0, %v8809
        %v8812 = vsel %vm8810, %v8811, %v8809
        %v8813 = vclz %v8812
        %v8814 = vsub.s32 %v8813, 2
        %vm8815 = vcmp.gt.s32.totalorder 0, %v8814
        %v8816 = vsel %vm8815, 0, %v8814
        %v8817 = vsub.s32 32, %v8816
        %v8818 = vshll.u32 %v8809, %v8816
        %v8819 = vshrl.u32 %v8801, %v8817
        %v8820 = vor.u32 %v8818, %v8819
        %v8821 = vsub.s32 4294967266, %v8816
        %v8822 = vadd.s32 %v8821, 127
        %v8823 = vshll.u32 %v8822, 23
        %v8824 = vor.u32 4788187, %v8823
        %v8825 = vand.u32 2147483647, %v8824
        %v8827 = vcvt.s32.f32 %v8820
        %v8828 = vmul.f32 %v8827, %v8825
        %v8829 = vxor.u32 %v8828, 2147483648
        %v8830 = vsel %vm8709, %v8829, %v8828
        %v8831 = vsub.s32 4, %v8807
        %v8832 = vsel %vm8709, %v8831, %v8807
        %v8833 = vsel %vm8708, %v612, %v8830
        %v8834 = vsel %vm8708, 0, %v8832
        %v8835 = vmul.f32 %v8833, %v8833
        %v8836 = vmul.f32 %v8835, -0.001358992
        %v8837 = vadd.f32 %v8836, 0.041655596
        %v8838 = vmul.f32 %v8835, %v8837
        %v8839 = vadd.f32 %v8838, -0.4999988
        %v8840 = vmul.f32 %v8835, %v8839
        %v8841 = vadd.f32 1.0, %v8840
        %v8842 = vmul.f32 %v8833, %v8833
        %v8843 = vmul.f32 %v8842, -0.00019511016
        %v8844 = vadd.f32 %v8843, 0.008332121
        %v8845 = vmul.f32 %v8842, %v8844
        %v8846 = vadd.f32 %v8845, -0.16666654
        %v8847 = vmul.f32 %v8842, %v8846
        %v8848 = vadd.f32 %v8847, 1.0
        %v8849 = vmul.f32 %v8848, %v8833
        %vm8850 = vweird.f32 %v612
        %v8851 = vadd.s32 %v8834, 3
        %v8852 = vand.u32 %v8851, 3
        %vm8853 = vcmp.lt.s32.totalorder %v8852, 2
        %vm8854 = vcmp.eq.s32.totalorder %v8852, 0
        %v8855 = vxor.u32 %v8849, 2147483648
        %v8856 = vsel %vm8854, %v8841, %v8855
        %vm8857 = vcmp.eq.s32.totalorder %v8852, 2
        %v8858 = vxor.u32 %v8841, 2147483648
        %v8859 = vsel %vm8857, %v8858, %v8849
        %v8860 = vsel %vm8853, %v8856, %v8859
        %v8861 = vsel %vm8850, nan, %v8860
        %v8862 = vand.u32 2147483647, %v615
        %vm8863 = vcmp.le.f32.partialorder %v8862, 0.7853982
        %vm8864 = vcmp.lt.s32.totalorder %v615, 0
        %v8865 = vand.u32 %v615, 2139095040
        %v8866 = vshrl.u32 %v8865, 23
        %v8867 = vsub.s32 %v8866, 127
        %v8868 = vand.u32 2147483647, %v615
        %v8869 = vand.u32 %v8868, 8388607
        %v8870 = vor.u32 %v8869, 8388608
        %v8871 = vsub.s32 0, %v8870
        %v8872 = vadd.s32 %v8867, 1
        %vm8873 = vcmp.gt.s32.totalorder %v8872, 0
        %v8874 = vsel %vm8873, %v8872, 0
        %v8875 = vshrl.u32 %v8874, 5
        %v8876 = vand.u32 %v8874, 31
        %v8877 = vsub.s32 32, %v8876
        %v8878 = vshrl.u32 683565275, %v8877
        %v8879 = vshll.u32 683565275, %v8876
        %v8880 = vshrl.u32 2475754826, %v8877
        %v8881 = vor.u32 %v8879, %v8880
        %v8882 = vshll.u32 2475754826, %v8876
        %v8883 = vshrl.u32 2131351028, %v8877
        %v8884 = vor.u32 %v8882, %v8883
        %v8885 = vshll.u32 2131351028, %v8876
        %v8886 = vshrl.u32 2102212464, %v8877
        %v8887 = vor.u32 %v8885, %v8886
        %v8888 = vshll.u32 2102212464, %v8876
        %v8889 = vshrl.u32 920167782, %v8877
        %v8890 = vor.u32 %v8888, %v8889
        %v8891 = vshll.u32 920167782, %v8876
        %v8892 = vshrl.u32 1326507024, %v8877
        %v8893 = vor.u32 %v8891, %v8892
        %vm8894 = vcmp.lt.s32.totalorder %v8875, 1
        %vm8895 = vcmp.lt.s32.totalorder %v8875, 2
        %vm8896 = vcmp.lt.s32.totalorder %v8875, 3
        %vm8897 = vcmp.lt.s32.totalorder %v8875, 4
        %v8898 = vsel %vm8894, %v8878, %v8881
        %v8899 = vsel %vm8897, %v8887, 2102212464
        %v8900 = vsel %vm8896, %v8884, %v8899
        %v8901 = vsel %vm8895, %v8898, %v8900
        %v8902 = vsel %vm8894, %v8881, %v8884
        %v8903 = vsel %vm8897, %v8890, 920167782
        %v8904 = vsel %vm8896, %v8887, %v8903
        %v8905 = vsel %vm8895, %v8902, %v8904
        %v8906 = vsel %vm8894, %v8884, %v8887
        %v8907 = vsel %vm8897, %v8893, 1326507024
        %v8908 = vsel %vm8896, %v8890, %v8907
        %v8909 = vsel %vm8895, %v8906, %v8908
        %v8910 = vshll.u32 %v8870, 8
        %v8911 = vand.u32 %v8910, 65535
        %v8912 = vshrl.u32 %v8910, 16
        %v8913 = vand.u32 %v8909, 65535
        %v8914 = vshrl.u32 %v8909, 16
        %v8915 = vmul.u32 %v8911, %v8913
        %v8916 = vmul.u32 %v8911, %v8914
        %v8917 = vmul.u32 %v8912, %v8913
        %v8918 = vmul.u32 %v8912, %v8914
        %v8919 = vshll.u32 %v8916, 16
        %v8920 = vshrl.u32 %v8916, 16
        %v8921 = vshll.u32 %v8917, 16
        %v8922 = vshrl.u32 %v8917, 16
        %vm8923 = vc.u32 %v8915, %v8919
        %v8924 = vsel %vm8923, 1, 0
        %v8925 = vadd.s32 %v8915, %v8919
        %v8926 = vadd.s32 %v8918, %v8924
        %vm8927 = vc.u32 %v8925, %v8921
        %v8928 = vsel %vm8927, 1, 0
        %v8929 = vadd.s32 %v8925, %v8921
        %v8930 = vadd.s32 %v8926, %v8928
        %v8931 = vadd.s32 %v8930, %v8920
        %v8932 = vadd.s32 %v8931, %v8922
        %v8933 = vand.u32 %v8910, 65535
        %v8934 = vshrl.u32 %v8910, 16
        %v8935 = vand.u32 %v8905, 65535
        %v8936 = vshrl.u32 %v8905, 16
        %v8937 = vmul.u32 %v8933, %v8935
        %v8938 = vmul.u32 %v8933, %v8936
        %v8939 = vmul.u32 %v8934, %v8935
        %v8940 = vmul.u32 %v8934, %v8936
        %v8941 = vshll.u32 %v8938, 16
        %v8942 = vshrl.u32 %v8938, 16
        %v8943 = vshll.u32 %v8939, 16
        %v8944 = vshrl.u32 %v8939, 16
        %vm8945 = vc.u32 %v8937, %v8941
        %v8946 = vsel %vm8945, 1, 0
        %v8947 = vadd.s32 %v8937, %v8941
        %v8948 = vadd.s32 %v8940, %v8946
        %vm8949 = vc.u32 %v8947, %v8943
        %v8950 = vsel %vm8949, 1, 0
        %v8951 = vadd.s32 %v8947, %v8943
        %v8952 = vadd.s32 %v8948, %v8950
        %v8953 = vadd.s32 %v8952, %v8942
        %v8954 = vadd.s32 %v8953, %v8944
        %v8955 = vmul.u32 %v8910, %v8901
        %v8956 = vadd.s32 %v8932, %v8951
        %vm8957 = vc.u32 %v8932, %v8951
        %v8958 = vadd.s32 %v8954, 1
        %v8959 = vsel %vm8957, %v8958, %v8954
        %v8960 = vadd.s32 %v8955, %v8959
        %v8961 = vadd.s32 %v8960, 536870912
        %v8962 = vshrl.u32 %v8961, 30
        %v8963 = vshll.u32 %v8962, 30
        %v8964 = vsub.s32 %v8960, %v8963
        %vm8965 = vcmp.lt.s32.totalorder %v8964, 0
        %v8966 = vsub.s32 0, %v8964
        %v8967 = vsel %vm8965, %v8966, %v8964
        %v8968 = vclz %v8967
        %v8969 = vsub.s32 %v8968, 2
        %vm8970 = vcmp.gt.s32.totalorder 0, %v8969
        %v8971 = vsel %vm8970, 0, %v8969
        %v8972 = vsub.s32 32, %v8971
        %v8973 = vshll.u32 %v8964, %v8971
        %v8974 = vshrl.u32 %v8956, %v8972
        %v8975 = vor.u32 %v8973, %v8974
        %v8976 = vsub.s32 4294967266, %v8971
        %v8977 = vadd.s32 %v8976, 127
        %v8978 = vshll.u32 %v8977, 23
        %v8979 = vor.u32 4788187, %v8978
        %v8980 = vand.u32 2147483647, %v8979
        %v8982 = vcvt.s32.f32 %v8975
        %v8983 = vmul.f32 %v8982, %v8980
        %v8984 = vxor.u32 %v8983, 2147483648
        %v8985 = vsel %vm8864, %v8984, %v8983
        %v8986 = vsub.s32 4, %v8962
        %v8987 = vsel %vm8864, %v8986, %v8962
        %v8988 = vsel %vm8863, %v615, %v8985
        %v8989 = vsel %vm8863, 0, %v8987
        %v8990 = vmul.f32 %v8988, %v8988
        %v8991 = vmul.f32 %v8990, -0.001358992
        %v8992 = vadd.f32 %v8991, 0.041655596
        %v8993 = vmul.f32 %v8990, %v8992
        %v8994 = vadd.f32 %v8993, -0.4999988
        %v8995 = vmul.f32 %v8990, %v8994
        %v8996 = vadd.f32 1.0, %v8995
        %v8997 = vmul.f32 %v8988, %v8988
        %v8998 = vmul.f32 %v8997, -0.00019511016
        %v8999 = vadd.f32 %v8998, 0.008332121
        %v9000 = vmul.f32 %v8997, %v8999
        %v9001 = vadd.f32 %v9000, -0.16666654
        %v9002 = vmul.f32 %v8997, %v9001
        %v9003 = vadd.f32 %v9002, 1.0
        %v9004 = vmul.f32 %v9003, %v8988
        %vm9005 = vweird.f32 %v615
        %v9006 = vadd.s32 %v8989, 3
        %v9007 = vand.u32 %v9006, 3
        %vm9008 = vcmp.lt.s32.totalorder %v9007, 2
        %vm9009 = vcmp.eq.s32.totalorder %v9007, 0
        %v9010 = vxor.u32 %v9004, 2147483648
        %v9011 = vsel %vm9009, %v8996, %v9010
        %vm9012 = vcmp.eq.s32.totalorder %v9007, 2
        %v9013 = vxor.u32 %v8996, 2147483648
        %v9014 = vsel %vm9012, %v9013, %v9004
        %v9015 = vsel %vm9008, %v9011, %v9014
        %v9016 = vsel %vm9005, nan, %v9015
        %v9017 = vand.u32 2147483647, %v618
        %vm9018 = vcmp.le.f32.partialorder %v9017, 0.7853982
        %vm9019 = vcmp.lt.s32.totalorder %v618, 0
        %v9020 = vand.u32 %v618, 2139095040
        %v9021 = vshrl.u32 %v9020, 23
        %v9022 = vsub.s32 %v9021, 127
        %v9023 = vand.u32 2147483647, %v618
        %v9024 = vand.u32 %v9023, 8388607
        %v9025 = vor.u32 %v9024, 8388608
        %v9026 = vsub.s32 0, %v9025
        %v9027 = vadd.s32 %v9022, 1
        %vm9028 = vcmp.gt.s32.totalorder %v9027, 0
        %v9029 = vsel %vm9028, %v9027, 0
        %v9030 = vshrl.u32 %v9029, 5
        %v9031 = vand.u32 %v9029, 31
        %v9032 = vsub.s32 32, %v9031
        %v9033 = vshrl.u32 683565275, %v9032
        %v9034 = vshll.u32 683565275, %v9031
        %v9035 = vshrl.u32 2475754826, %v9032
        %v9036 = vor.u32 %v9034, %v9035
        %v9037 = vshll.u32 2475754826, %v9031
        %v9038 = vshrl.u32 2131351028, %v9032
        %v9039 = vor.u32 %v9037, %v9038
        %v9040 = vshll.u32 2131351028, %v9031
        %v9041 = vshrl.u32 2102212464, %v9032
        %v9042 = vor.u32 %v9040, %v9041
        %v9043 = vshll.u32 2102212464, %v9031
        %v9044 = vshrl.u32 920167782, %v9032
        %v9045 = vor.u32 %v9043, %v9044
        %v9046 = vshll.u32 920167782, %v9031
        %v9047 = vshrl.u32 1326507024, %v9032
        %v9048 = vor.u32 %v9046, %v9047
        %vm9049 = vcmp.lt.s32.totalorder %v9030, 1
        %vm9050 = vcmp.lt.s32.totalorder %v9030, 2
        %vm9051 = vcmp.lt.s32.totalorder %v9030, 3
        %vm9052 = vcmp.lt.s32.totalorder %v9030, 4
        %v9053 = vsel %vm9049, %v9033, %v9036
        %v9054 = vsel %vm9052, %v9042, 2102212464
        %v9055 = vsel %vm9051, %v9039, %v9054
        %v9056 = vsel %vm9050, %v9053, %v9055
        %v9057 = vsel %vm9049, %v9036, %v9039
        %v9058 = vsel %vm9052, %v9045, 920167782
        %v9059 = vsel %vm9051, %v9042, %v9058
        %v9060 = vsel %vm9050, %v9057, %v9059
        %v9061 = vsel %vm9049, %v9039, %v9042
        %v9062 = vsel %vm9052, %v9048, 1326507024
        %v9063 = vsel %vm9051, %v9045, %v9062
        %v9064 = vsel %vm9050, %v9061, %v9063
        %v9065 = vshll.u32 %v9025, 8
        %v9066 = vand.u32 %v9065, 65535
        %v9067 = vshrl.u32 %v9065, 16
        %v9068 = vand.u32 %v9064, 65535
        %v9069 = vshrl.u32 %v9064, 16
        %v9070 = vmul.u32 %v9066, %v9068
        %v9071 = vmul.u32 %v9066, %v9069
        %v9072 = vmul.u32 %v9067, %v9068
        %v9073 = vmul.u32 %v9067, %v9069
        %v9074 = vshll.u32 %v9071, 16
        %v9075 = vshrl.u32 %v9071, 16
        %v9076 = vshll.u32 %v9072, 16
        %v9077 = vshrl.u32 %v9072, 16
        %vm9078 = vc.u32 %v9070, %v9074
        %v9079 = vsel %vm9078, 1, 0
        %v9080 = vadd.s32 %v9070, %v9074
        %v9081 = vadd.s32 %v9073, %v9079
        %vm9082 = vc.u32 %v9080, %v9076
        %v9083 = vsel %vm9082, 1, 0
        %v9084 = vadd.s32 %v9080, %v9076
        %v9085 = vadd.s32 %v9081, %v9083
        %v9086 = vadd.s32 %v9085, %v9075
        %v9087 = vadd.s32 %v9086, %v9077
        %v9088 = vand.u32 %v9065, 65535
        %v9089 = vshrl.u32 %v9065, 16
        %v9090 = vand.u32 %v9060, 65535
        %v9091 = vshrl.u32 %v9060, 16
        %v9092 = vmul.u32 %v9088, %v9090
        %v9093 = vmul.u32 %v9088, %v9091
        %v9094 = vmul.u32 %v9089, %v9090
        %v9095 = vmul.u32 %v9089, %v9091
        %v9096 = vshll.u32 %v9093, 16
        %v9097 = vshrl.u32 %v9093, 16
        %v9098 = vshll.u32 %v9094, 16
        %v9099 = vshrl.u32 %v9094, 16
        %vm9100 = vc.u32 %v9092, %v9096
        %v9101 = vsel %vm9100, 1, 0
        %v9102 = vadd.s32 %v9092, %v9096
        %v9103 = vadd.s32 %v9095, %v9101
        %vm9104 = vc.u32 %v9102, %v9098
        %v9105 = vsel %vm9104, 1, 0
        %v9106 = vadd.s32 %v9102, %v9098
        %v9107 = vadd.s32 %v9103, %v9105
        %v9108 = vadd.s32 %v9107, %v9097
        %v9109 = vadd.s32 %v9108, %v9099
        %v9110 = vmul.u32 %v9065, %v9056
        %v9111 = vadd.s32 %v9087, %v9106
        %vm9112 = vc.u32 %v9087, %v9106
        %v9113 = vadd.s32 %v9109, 1
        %v9114 = vsel %vm9112, %v9113, %v9109
        %v9115 = vadd.s32 %v9110, %v9114
        %v9116 = vadd.s32 %v9115, 536870912
        %v9117 = vshrl.u32 %v9116, 30
        %v9118 = vshll.u32 %v9117, 30
        %v9119 = vsub.s32 %v9115, %v9118
        %vm9120 = vcmp.lt.s32.totalorder %v9119, 0
        %v9121 = vsub.s32 0, %v9119
        %v9122 = vsel %vm9120, %v9121, %v9119
        %v9123 = vclz %v9122
        %v9124 = vsub.s32 %v9123, 2
        %vm9125 = vcmp.gt.s32.totalorder 0, %v9124
        %v9126 = vsel %vm9125, 0, %v9124
        %v9127 = vsub.s32 32, %v9126
        %v9128 = vshll.u32 %v9119, %v9126
        %v9129 = vshrl.u32 %v9111, %v9127
        %v9130 = vor.u32 %v9128, %v9129
        %v9131 = vsub.s32 4294967266, %v9126
        %v9132 = vadd.s32 %v9131, 127
        %v9133 = vshll.u32 %v9132, 23
        %v9134 = vor.u32 4788187, %v9133
        %v9135 = vand.u32 2147483647, %v9134
        %v9137 = vcvt.s32.f32 %v9130
        %v9138 = vmul.f32 %v9137, %v9135
        %v9139 = vxor.u32 %v9138, 2147483648
        %v9140 = vsel %vm9019, %v9139, %v9138
        %v9141 = vsub.s32 4, %v9117
        %v9142 = vsel %vm9019, %v9141, %v9117
        %v9143 = vsel %vm9018, %v618, %v9140
        %v9144 = vsel %vm9018, 0, %v9142
        %v9145 = vmul.f32 %v9143, %v9143
        %v9146 = vmul.f32 %v9145, -0.001358992
        %v9147 = vadd.f32 %v9146, 0.041655596
        %v9148 = vmul.f32 %v9145, %v9147
        %v9149 = vadd.f32 %v9148, -0.4999988
        %v9150 = vmul.f32 %v9145, %v9149
        %v9151 = vadd.f32 1.0, %v9150
        %v9152 = vmul.f32 %v9143, %v9143
        %v9153 = vmul.f32 %v9152, -0.00019511016
        %v9154 = vadd.f32 %v9153, 0.008332121
        %v9155 = vmul.f32 %v9152, %v9154
        %v9156 = vadd.f32 %v9155, -0.16666654
        %v9157 = vmul.f32 %v9152, %v9156
        %v9158 = vadd.f32 %v9157, 1.0
        %v9159 = vmul.f32 %v9158, %v9143
        %vm9160 = vweird.f32 %v618
        %v9161 = vadd.s32 %v9144, 3
        %v9162 = vand.u32 %v9161, 3
        %vm9163 = vcmp.lt.s32.totalorder %v9162, 2
        %vm9164 = vcmp.eq.s32.totalorder %v9162, 0
        %v9165 = vxor.u32 %v9159, 2147483648
        %v9166 = vsel %vm9164, %v9151, %v9165
        %vm9167 = vcmp.eq.s32.totalorder %v9162, 2
        %v9168 = vxor.u32 %v9151, 2147483648
        %v9169 = vsel %vm9167, %v9168, %v9159
        %v9170 = vsel %vm9163, %v9166, %v9169
        %v9171 = vsel %vm9160, nan, %v9170
        %v9172 = vand.u32 2147483647, %v621
        %vm9173 = vcmp.le.f32.partialorder %v9172, 0.7853982
        %vm9174 = vcmp.lt.s32.totalorder %v621, 0
        %v9175 = vand.u32 %v621, 2139095040
        %v9176 = vshrl.u32 %v9175, 23
        %v9177 = vsub.s32 %v9176, 127
        %v9178 = vand.u32 2147483647, %v621
        %v9179 = vand.u32 %v9178, 8388607
        %v9180 = vor.u32 %v9179, 8388608
        %v9181 = vsub.s32 0, %v9180
        %v9182 = vadd.s32 %v9177, 1
        %vm9183 = vcmp.gt.s32.totalorder %v9182, 0
        %v9184 = vsel %vm9183, %v9182, 0
        %v9185 = vshrl.u32 %v9184, 5
        %v9186 = vand.u32 %v9184, 31
        %v9187 = vsub.s32 32, %v9186
        %v9188 = vshrl.u32 683565275, %v9187
        %v9189 = vshll.u32 683565275, %v9186
        %v9190 = vshrl.u32 2475754826, %v9187
        %v9191 = vor.u32 %v9189, %v9190
        %v9192 = vshll.u32 2475754826, %v9186
        %v9193 = vshrl.u32 2131351028, %v9187
        %v9194 = vor.u32 %v9192, %v9193
        %v9195 = vshll.u32 2131351028, %v9186
        %v9196 = vshrl.u32 2102212464, %v9187
        %v9197 = vor.u32 %v9195, %v9196
        %v9198 = vshll.u32 2102212464, %v9186
        %v9199 = vshrl.u32 920167782, %v9187
        %v9200 = vor.u32 %v9198, %v9199
        %v9201 = vshll.u32 920167782, %v9186
        %v9202 = vshrl.u32 1326507024, %v9187
        %v9203 = vor.u32 %v9201, %v9202
        %vm9204 = vcmp.lt.s32.totalorder %v9185, 1
        %vm9205 = vcmp.lt.s32.totalorder %v9185, 2
        %vm9206 = vcmp.lt.s32.totalorder %v9185, 3
        %vm9207 = vcmp.lt.s32.totalorder %v9185, 4
        %v9208 = vsel %vm9204, %v9188, %v9191
        %v9209 = vsel %vm9207, %v9197, 2102212464
        %v9210 = vsel %vm9206, %v9194, %v9209
        %v9211 = vsel %vm9205, %v9208, %v9210
        %v9212 = vsel %vm9204, %v9191, %v9194
        %v9213 = vsel %vm9207, %v9200, 920167782
        %v9214 = vsel %vm9206, %v9197, %v9213
        %v9215 = vsel %vm9205, %v9212, %v9214
        %v9216 = vsel %vm9204, %v9194, %v9197
        %v9217 = vsel %vm9207, %v9203, 1326507024
        %v9218 = vsel %vm9206, %v9200, %v9217
        %v9219 = vsel %vm9205, %v9216, %v9218
        %v9220 = vshll.u32 %v9180, 8
        %v9221 = vand.u32 %v9220, 65535
        %v9222 = vshrl.u32 %v9220, 16
        %v9223 = vand.u32 %v9219, 65535
        %v9224 = vshrl.u32 %v9219, 16
        %v9225 = vmul.u32 %v9221, %v9223
        %v9226 = vmul.u32 %v9221, %v9224
        %v9227 = vmul.u32 %v9222, %v9223
        %v9228 = vmul.u32 %v9222, %v9224
        %v9229 = vshll.u32 %v9226, 16
        %v9230 = vshrl.u32 %v9226, 16
        %v9231 = vshll.u32 %v9227, 16
        %v9232 = vshrl.u32 %v9227, 16
        %vm9233 = vc.u32 %v9225, %v9229
        %v9234 = vsel %vm9233, 1, 0
        %v9235 = vadd.s32 %v9225, %v9229
        %v9236 = vadd.s32 %v9228, %v9234
        %vm9237 = vc.u32 %v9235, %v9231
        %v9238 = vsel %vm9237, 1, 0
        %v9239 = vadd.s32 %v9235, %v9231
        %v9240 = vadd.s32 %v9236, %v9238
        %v9241 = vadd.s32 %v9240, %v9230
        %v9242 = vadd.s32 %v9241, %v9232
        %v9243 = vand.u32 %v9220, 65535
        %v9244 = vshrl.u32 %v9220, 16
        %v9245 = vand.u32 %v9215, 65535
        %v9246 = vshrl.u32 %v9215, 16
        %v9247 = vmul.u32 %v9243, %v9245
        %v9248 = vmul.u32 %v9243, %v9246
        %v9249 = vmul.u32 %v9244, %v9245
        %v9250 = vmul.u32 %v9244, %v9246
        %v9251 = vshll.u32 %v9248, 16
        %v9252 = vshrl.u32 %v9248, 16
        %v9253 = vshll.u32 %v9249, 16
        %v9254 = vshrl.u32 %v9249, 16
        %vm9255 = vc.u32 %v9247, %v9251
        %v9256 = vsel %vm9255, 1, 0
        %v9257 = vadd.s32 %v9247, %v9251
        %v9258 = vadd.s32 %v9250, %v9256
        %vm9259 = vc.u32 %v9257, %v9253
        %v9260 = vsel %vm9259, 1, 0
        %v9261 = vadd.s32 %v9257, %v9253
        %v9262 = vadd.s32 %v9258, %v9260
        %v9263 = vadd.s32 %v9262, %v9252
        %v9264 = vadd.s32 %v9263, %v9254
        %v9265 = vmul.u32 %v9220, %v9211
        %v9266 = vadd.s32 %v9242, %v9261
        %vm9267 = vc.u32 %v9242, %v9261
        %v9268 = vadd.s32 %v9264, 1
        %v9269 = vsel %vm9267, %v9268, %v9264
        %v9270 = vadd.s32 %v9265, %v9269
        %v9271 = vadd.s32 %v9270, 536870912
        %v9272 = vshrl.u32 %v9271, 30
        %v9273 = vshll.u32 %v9272, 30
        %v9274 = vsub.s32 %v9270, %v9273
        %vm9275 = vcmp.lt.s32.totalorder %v9274, 0
        %v9276 = vsub.s32 0, %v9274
        %v9277 = vsel %vm9275, %v9276, %v9274
        %v9278 = vclz %v9277
        %v9279 = vsub.s32 %v9278, 2
        %vm9280 = vcmp.gt.s32.totalorder 0, %v9279
        %v9281 = vsel %vm9280, 0, %v9279
        %v9282 = vsub.s32 32, %v9281
        %v9283 = vshll.u32 %v9274, %v9281
        %v9284 = vshrl.u32 %v9266, %v9282
        %v9285 = vor.u32 %v9283, %v9284
        %v9286 = vsub.s32 4294967266, %v9281
        %v9287 = vadd.s32 %v9286, 127
        %v9288 = vshll.u32 %v9287, 23
        %v9289 = vor.u32 4788187, %v9288
        %v9290 = vand.u32 2147483647, %v9289
        %v9292 = vcvt.s32.f32 %v9285
        %v9293 = vmul.f32 %v9292, %v9290
        %v9294 = vxor.u32 %v9293, 2147483648
        %v9295 = vsel %vm9174, %v9294, %v9293
        %v9296 = vsub.s32 4, %v9272
        %v9297 = vsel %vm9174, %v9296, %v9272
        %v9298 = vsel %vm9173, %v621, %v9295
        %v9299 = vsel %vm9173, 0, %v9297
        %v9300 = vmul.f32 %v9298, %v9298
        %v9301 = vmul.f32 %v9300, -0.001358992
        %v9302 = vadd.f32 %v9301, 0.041655596
        %v9303 = vmul.f32 %v9300, %v9302
        %v9304 = vadd.f32 %v9303, -0.4999988
        %v9305 = vmul.f32 %v9300, %v9304
        %v9306 = vadd.f32 1.0, %v9305
        %v9307 = vmul.f32 %v9298, %v9298
        %v9308 = vmul.f32 %v9307, -0.00019511016
        %v9309 = vadd.f32 %v9308, 0.008332121
        %v9310 = vmul.f32 %v9307, %v9309
        %v9311 = vadd.f32 %v9310, -0.16666654
        %v9312 = vmul.f32 %v9307, %v9311
        %v9313 = vadd.f32 %v9312, 1.0
        %v9314 = vmul.f32 %v9313, %v9298
        %vm9315 = vweird.f32 %v621
        %v9316 = vadd.s32 %v9299, 3
        %v9317 = vand.u32 %v9316, 3
        %vm9318 = vcmp.lt.s32.totalorder %v9317, 2
        %vm9319 = vcmp.eq.s32.totalorder %v9317, 0
        %v9320 = vxor.u32 %v9314, 2147483648
        %v9321 = vsel %vm9319, %v9306, %v9320
        %vm9322 = vcmp.eq.s32.totalorder %v9317, 2
        %v9323 = vxor.u32 %v9306, 2147483648
        %v9324 = vsel %vm9322, %v9323, %v9314
        %v9325 = vsel %vm9318, %v9321, %v9324
        %v9326 = vsel %vm9315, nan, %v9325
        %v9327 = vand.u32 2147483647, %v624
        %vm9328 = vcmp.le.f32.partialorder %v9327, 0.7853982
        %vm9329 = vcmp.lt.s32.totalorder %v624, 0
        %v9330 = vand.u32 %v624, 2139095040
        %v9331 = vshrl.u32 %v9330, 23
        %v9332 = vsub.s32 %v9331, 127
        %v9333 = vand.u32 2147483647, %v624
        %v9334 = vand.u32 %v9333, 8388607
        %v9335 = vor.u32 %v9334, 8388608
        %v9336 = vsub.s32 0, %v9335
        %v9337 = vadd.s32 %v9332, 1
        %vm9338 = vcmp.gt.s32.totalorder %v9337, 0
        %v9339 = vsel %vm9338, %v9337, 0
        %v9340 = vshrl.u32 %v9339, 5
        %v9341 = vand.u32 %v9339, 31
        %v9342 = vsub.s32 32, %v9341
        %v9343 = vshrl.u32 683565275, %v9342
        %v9344 = vshll.u32 683565275, %v9341
        %v9345 = vshrl.u32 2475754826, %v9342
        %v9346 = vor.u32 %v9344, %v9345
        %v9347 = vshll.u32 2475754826, %v9341
        %v9348 = vshrl.u32 2131351028, %v9342
        %v9349 = vor.u32 %v9347, %v9348
        %v9350 = vshll.u32 2131351028, %v9341
        %v9351 = vshrl.u32 2102212464, %v9342
        %v9352 = vor.u32 %v9350, %v9351
        %v9353 = vshll.u32 2102212464, %v9341
        %v9354 = vshrl.u32 920167782, %v9342
        %v9355 = vor.u32 %v9353, %v9354
        %v9356 = vshll.u32 920167782, %v9341
        %v9357 = vshrl.u32 1326507024, %v9342
        %v9358 = vor.u32 %v9356, %v9357
        %vm9359 = vcmp.lt.s32.totalorder %v9340, 1
        %vm9360 = vcmp.lt.s32.totalorder %v9340, 2
        %vm9361 = vcmp.lt.s32.totalorder %v9340, 3
        %vm9362 = vcmp.lt.s32.totalorder %v9340, 4
        %v9363 = vsel %vm9359, %v9343, %v9346
        %v9364 = vsel %vm9362, %v9352, 2102212464
        %v9365 = vsel %vm9361, %v9349, %v9364
        %v9366 = vsel %vm9360, %v9363, %v9365
        %v9367 = vsel %vm9359, %v9346, %v9349
        %v9368 = vsel %vm9362, %v9355, 920167782
        %v9369 = vsel %vm9361, %v9352, %v9368
        %v9370 = vsel %vm9360, %v9367, %v9369
        %v9371 = vsel %vm9359, %v9349, %v9352
        %v9372 = vsel %vm9362, %v9358, 1326507024
        %v9373 = vsel %vm9361, %v9355, %v9372
        %v9374 = vsel %vm9360, %v9371, %v9373
        %v9375 = vshll.u32 %v9335, 8
        %v9376 = vand.u32 %v9375, 65535
        %v9377 = vshrl.u32 %v9375, 16
        %v9378 = vand.u32 %v9374, 65535
        %v9379 = vshrl.u32 %v9374, 16
        %v9380 = vmul.u32 %v9376, %v9378
        %v9381 = vmul.u32 %v9376, %v9379
        %v9382 = vmul.u32 %v9377, %v9378
        %v9383 = vmul.u32 %v9377, %v9379
        %v9384 = vshll.u32 %v9381, 16
        %v9385 = vshrl.u32 %v9381, 16
        %v9386 = vshll.u32 %v9382, 16
        %v9387 = vshrl.u32 %v9382, 16
        %vm9388 = vc.u32 %v9380, %v9384
        %v9389 = vsel %vm9388, 1, 0
        %v9390 = vadd.s32 %v9380, %v9384
        %v9391 = vadd.s32 %v9383, %v9389
        %vm9392 = vc.u32 %v9390, %v9386
        %v9393 = vsel %vm9392, 1, 0
        %v9394 = vadd.s32 %v9390, %v9386
        %v9395 = vadd.s32 %v9391, %v9393
        %v9396 = vadd.s32 %v9395, %v9385
        %v9397 = vadd.s32 %v9396, %v9387
        %v9398 = vand.u32 %v9375, 65535
        %v9399 = vshrl.u32 %v9375, 16
        %v9400 = vand.u32 %v9370, 65535
        %v9401 = vshrl.u32 %v9370, 16
        %v9402 = vmul.u32 %v9398, %v9400
        %v9403 = vmul.u32 %v9398, %v9401
        %v9404 = vmul.u32 %v9399, %v9400
        %v9405 = vmul.u32 %v9399, %v9401
        %v9406 = vshll.u32 %v9403, 16
        %v9407 = vshrl.u32 %v9403, 16
        %v9408 = vshll.u32 %v9404, 16
        %v9409 = vshrl.u32 %v9404, 16
        %vm9410 = vc.u32 %v9402, %v9406
        %v9411 = vsel %vm9410, 1, 0
        %v9412 = vadd.s32 %v9402, %v9406
        %v9413 = vadd.s32 %v9405, %v9411
        %vm9414 = vc.u32 %v9412, %v9408
        %v9415 = vsel %vm9414, 1, 0
        %v9416 = vadd.s32 %v9412, %v9408
        %v9417 = vadd.s32 %v9413, %v9415
        %v9418 = vadd.s32 %v9417, %v9407
        %v9419 = vadd.s32 %v9418, %v9409
        %v9420 = vmul.u32 %v9375, %v9366
        %v9421 = vadd.s32 %v9397, %v9416
        %vm9422 = vc.u32 %v9397, %v9416
        %v9423 = vadd.s32 %v9419, 1
        %v9424 = vsel %vm9422, %v9423, %v9419
        %v9425 = vadd.s32 %v9420, %v9424
        %v9426 = vadd.s32 %v9425, 536870912
        %v9427 = vshrl.u32 %v9426, 30
        %v9428 = vshll.u32 %v9427, 30
        %v9429 = vsub.s32 %v9425, %v9428
        %vm9430 = vcmp.lt.s32.totalorder %v9429, 0
        %v9431 = vsub.s32 0, %v9429
        %v9432 = vsel %vm9430, %v9431, %v9429
        %v9433 = vclz %v9432
        %v9434 = vsub.s32 %v9433, 2
        %vm9435 = vcmp.gt.s32.totalorder 0, %v9434
        %v9436 = vsel %vm9435, 0, %v9434
        %v9437 = vsub.s32 32, %v9436
        %v9438 = vshll.u32 %v9429, %v9436
        %v9439 = vshrl.u32 %v9421, %v9437
        %v9440 = vor.u32 %v9438, %v9439
        %v9441 = vsub.s32 4294967266, %v9436
        %v9442 = vadd.s32 %v9441, 127
        %v9443 = vshll.u32 %v9442, 23
        %v9444 = vor.u32 4788187, %v9443
        %v9445 = vand.u32 2147483647, %v9444
        %v9447 = vcvt.s32.f32 %v9440
        %v9448 = vmul.f32 %v9447, %v9445
        %v9449 = vxor.u32 %v9448, 2147483648
        %v9450 = vsel %vm9329, %v9449, %v9448
        %v9451 = vsub.s32 4, %v9427
        %v9452 = vsel %vm9329, %v9451, %v9427
        %v9453 = vsel %vm9328, %v624, %v9450
        %v9454 = vsel %vm9328, 0, %v9452
        %v9455 = vmul.f32 %v9453, %v9453
        %v9456 = vmul.f32 %v9455, -0.001358992
        %v9457 = vadd.f32 %v9456, 0.041655596
        %v9458 = vmul.f32 %v9455, %v9457
        %v9459 = vadd.f32 %v9458, -0.4999988
        %v9460 = vmul.f32 %v9455, %v9459
        %v9461 = vadd.f32 1.0, %v9460
        %v9462 = vmul.f32 %v9453, %v9453
        %v9463 = vmul.f32 %v9462, -0.00019511016
        %v9464 = vadd.f32 %v9463, 0.008332121
        %v9465 = vmul.f32 %v9462, %v9464
        %v9466 = vadd.f32 %v9465, -0.16666654
        %v9467 = vmul.f32 %v9462, %v9466
        %v9468 = vadd.f32 %v9467, 1.0
        %v9469 = vmul.f32 %v9468, %v9453
        %vm9470 = vweird.f32 %v624
        %v9471 = vadd.s32 %v9454, 3
        %v9472 = vand.u32 %v9471, 3
        %vm9473 = vcmp.lt.s32.totalorder %v9472, 2
        %vm9474 = vcmp.eq.s32.totalorder %v9472, 0
        %v9475 = vxor.u32 %v9469, 2147483648
        %v9476 = vsel %vm9474, %v9461, %v9475
        %vm9477 = vcmp.eq.s32.totalorder %v9472, 2
        %v9478 = vxor.u32 %v9461, 2147483648
        %v9479 = vsel %vm9477, %v9478, %v9469
        %v9480 = vsel %vm9473, %v9476, %v9479
        %v9481 = vsel %vm9470, nan, %v9480
        %v9482 = vand.u32 2147483647, %v627
        %vm9483 = vcmp.le.f32.partialorder %v9482, 0.7853982
        %vm9484 = vcmp.lt.s32.totalorder %v627, 0
        %v9485 = vand.u32 %v627, 2139095040
        %v9486 = vshrl.u32 %v9485, 23
        %v9487 = vsub.s32 %v9486, 127
        %v9488 = vand.u32 2147483647, %v627
        %v9489 = vand.u32 %v9488, 8388607
        %v9490 = vor.u32 %v9489, 8388608
        %v9491 = vsub.s32 0, %v9490
        %v9492 = vadd.s32 %v9487, 1
        %vm9493 = vcmp.gt.s32.totalorder %v9492, 0
        %v9494 = vsel %vm9493, %v9492, 0
        %v9495 = vshrl.u32 %v9494, 5
        %v9496 = vand.u32 %v9494, 31
        %v9497 = vsub.s32 32, %v9496
        %v9498 = vshrl.u32 683565275, %v9497
        %v9499 = vshll.u32 683565275, %v9496
        %v9500 = vshrl.u32 2475754826, %v9497
        %v9501 = vor.u32 %v9499, %v9500
        %v9502 = vshll.u32 2475754826, %v9496
        %v9503 = vshrl.u32 2131351028, %v9497
        %v9504 = vor.u32 %v9502, %v9503
        %v9505 = vshll.u32 2131351028, %v9496
        %v9506 = vshrl.u32 2102212464, %v9497
        %v9507 = vor.u32 %v9505, %v9506
        %v9508 = vshll.u32 2102212464, %v9496
        %v9509 = vshrl.u32 920167782, %v9497
        %v9510 = vor.u32 %v9508, %v9509
        %v9511 = vshll.u32 920167782, %v9496
        %v9512 = vshrl.u32 1326507024, %v9497
        %v9513 = vor.u32 %v9511, %v9512
        %vm9514 = vcmp.lt.s32.totalorder %v9495, 1
        %vm9515 = vcmp.lt.s32.totalorder %v9495, 2
        %vm9516 = vcmp.lt.s32.totalorder %v9495, 3
        %vm9517 = vcmp.lt.s32.totalorder %v9495, 4
        %v9518 = vsel %vm9514, %v9498, %v9501
        %v9519 = vsel %vm9517, %v9507, 2102212464
        %v9520 = vsel %vm9516, %v9504, %v9519
        %v9521 = vsel %vm9515, %v9518, %v9520
        %v9522 = vsel %vm9514, %v9501, %v9504
        %v9523 = vsel %vm9517, %v9510, 920167782
        %v9524 = vsel %vm9516, %v9507, %v9523
        %v9525 = vsel %vm9515, %v9522, %v9524
        %v9526 = vsel %vm9514, %v9504, %v9507
        %v9527 = vsel %vm9517, %v9513, 1326507024
        %v9528 = vsel %vm9516, %v9510, %v9527
        %v9529 = vsel %vm9515, %v9526, %v9528
        %v9530 = vshll.u32 %v9490, 8
        %v9531 = vand.u32 %v9530, 65535
        %v9532 = vshrl.u32 %v9530, 16
        %v9533 = vand.u32 %v9529, 65535
        %v9534 = vshrl.u32 %v9529, 16
        %v9535 = vmul.u32 %v9531, %v9533
        %v9536 = vmul.u32 %v9531, %v9534
        %v9537 = vmul.u32 %v9532, %v9533
        %v9538 = vmul.u32 %v9532, %v9534
        %v9539 = vshll.u32 %v9536, 16
        %v9540 = vshrl.u32 %v9536, 16
        %v9541 = vshll.u32 %v9537, 16
        %v9542 = vshrl.u32 %v9537, 16
        %vm9543 = vc.u32 %v9535, %v9539
        %v9544 = vsel %vm9543, 1, 0
        %v9545 = vadd.s32 %v9535, %v9539
        %v9546 = vadd.s32 %v9538, %v9544
        %vm9547 = vc.u32 %v9545, %v9541
        %v9548 = vsel %vm9547, 1, 0
        %v9549 = vadd.s32 %v9545, %v9541
        %v9550 = vadd.s32 %v9546, %v9548
        %v9551 = vadd.s32 %v9550, %v9540
        %v9552 = vadd.s32 %v9551, %v9542
        %v9553 = vand.u32 %v9530, 65535
        %v9554 = vshrl.u32 %v9530, 16
        %v9555 = vand.u32 %v9525, 65535
        %v9556 = vshrl.u32 %v9525, 16
        %v9557 = vmul.u32 %v9553, %v9555
        %v9558 = vmul.u32 %v9553, %v9556
        %v9559 = vmul.u32 %v9554, %v9555
        %v9560 = vmul.u32 %v9554, %v9556
        %v9561 = vshll.u32 %v9558, 16
        %v9562 = vshrl.u32 %v9558, 16
        %v9563 = vshll.u32 %v9559, 16
        %v9564 = vshrl.u32 %v9559, 16
        %vm9565 = vc.u32 %v9557, %v9561
        %v9566 = vsel %vm9565, 1, 0
        %v9567 = vadd.s32 %v9557, %v9561
        %v9568 = vadd.s32 %v9560, %v9566
        %vm9569 = vc.u32 %v9567, %v9563
        %v9570 = vsel %vm9569, 1, 0
        %v9571 = vadd.s32 %v9567, %v9563
        %v9572 = vadd.s32 %v9568, %v9570
        %v9573 = vadd.s32 %v9572, %v9562
        %v9574 = vadd.s32 %v9573, %v9564
        %v9575 = vmul.u32 %v9530, %v9521
        %v9576 = vadd.s32 %v9552, %v9571
        %vm9577 = vc.u32 %v9552, %v9571
        %v9578 = vadd.s32 %v9574, 1
        %v9579 = vsel %vm9577, %v9578, %v9574
        %v9580 = vadd.s32 %v9575, %v9579
        %v9581 = vadd.s32 %v9580, 536870912
        %v9582 = vshrl.u32 %v9581, 30
        %v9583 = vshll.u32 %v9582, 30
        %v9584 = vsub.s32 %v9580, %v9583
        %vm9585 = vcmp.lt.s32.totalorder %v9584, 0
        %v9586 = vsub.s32 0, %v9584
        %v9587 = vsel %vm9585, %v9586, %v9584
        %v9588 = vclz %v9587
        %v9589 = vsub.s32 %v9588, 2
        %vm9590 = vcmp.gt.s32.totalorder 0, %v9589
        %v9591 = vsel %vm9590, 0, %v9589
        %v9592 = vsub.s32 32, %v9591
        %v9593 = vshll.u32 %v9584, %v9591
        %v9594 = vshrl.u32 %v9576, %v9592
        %v9595 = vor.u32 %v9593, %v9594
        %v9596 = vsub.s32 4294967266, %v9591
        %v9597 = vadd.s32 %v9596, 127
        %v9598 = vshll.u32 %v9597, 23
        %v9599 = vor.u32 4788187, %v9598
        %v9600 = vand.u32 2147483647, %v9599
        %v9602 = vcvt.s32.f32 %v9595
        %v9603 = vmul.f32 %v9602, %v9600
        %v9604 = vxor.u32 %v9603, 2147483648
        %v9605 = vsel %vm9484, %v9604, %v9603
        %v9606 = vsub.s32 4, %v9582
        %v9607 = vsel %vm9484, %v9606, %v9582
        %v9608 = vsel %vm9483, %v627, %v9605
        %v9609 = vsel %vm9483, 0, %v9607
        %v9610 = vmul.f32 %v9608, %v9608
        %v9611 = vmul.f32 %v9610, -0.001358992
        %v9612 = vadd.f32 %v9611, 0.041655596
        %v9613 = vmul.f32 %v9610, %v9612
        %v9614 = vadd.f32 %v9613, -0.4999988
        %v9615 = vmul.f32 %v9610, %v9614
        %v9616 = vadd.f32 1.0, %v9615
        %v9617 = vmul.f32 %v9608, %v9608
        %v9618 = vmul.f32 %v9617, -0.00019511016
        %v9619 = vadd.f32 %v9618, 0.008332121
        %v9620 = vmul.f32 %v9617, %v9619
        %v9621 = vadd.f32 %v9620, -0.16666654
        %v9622 = vmul.f32 %v9617, %v9621
        %v9623 = vadd.f32 %v9622, 1.0
        %v9624 = vmul.f32 %v9623, %v9608
        %vm9625 = vweird.f32 %v627
        %v9626 = vadd.s32 %v9609, 3
        %v9627 = vand.u32 %v9626, 3
        %vm9628 = vcmp.lt.s32.totalorder %v9627, 2
        %vm9629 = vcmp.eq.s32.totalorder %v9627, 0
        %v9630 = vxor.u32 %v9624, 2147483648
        %v9631 = vsel %vm9629, %v9616, %v9630
        %vm9632 = vcmp.eq.s32.totalorder %v9627, 2
        %v9633 = vxor.u32 %v9616, 2147483648
        %v9634 = vsel %vm9632, %v9633, %v9624
        %v9635 = vsel %vm9628, %v9631, %v9634
        %v9636 = vsel %vm9625, nan, %v9635
        %v9637 = vand.u32 2147483647, %v630
        %vm9638 = vcmp.le.f32.partialorder %v9637, 0.7853982
        %vm9639 = vcmp.lt.s32.totalorder %v630, 0
        %v9640 = vand.u32 %v630, 2139095040
        %v9641 = vshrl.u32 %v9640, 23
        %v9642 = vsub.s32 %v9641, 127
        %v9643 = vand.u32 2147483647, %v630
        %v9644 = vand.u32 %v9643, 8388607
        %v9645 = vor.u32 %v9644, 8388608
        %v9646 = vsub.s32 0, %v9645
        %v9647 = vadd.s32 %v9642, 1
        %vm9648 = vcmp.gt.s32.totalorder %v9647, 0
        %v9649 = vsel %vm9648, %v9647, 0
        %v9650 = vshrl.u32 %v9649, 5
        %v9651 = vand.u32 %v9649, 31
        %v9652 = vsub.s32 32, %v9651
        %v9653 = vshrl.u32 683565275, %v9652
        %v9654 = vshll.u32 683565275, %v9651
        %v9655 = vshrl.u32 2475754826, %v9652
        %v9656 = vor.u32 %v9654, %v9655
        %v9657 = vshll.u32 2475754826, %v9651
        %v9658 = vshrl.u32 2131351028, %v9652
        %v9659 = vor.u32 %v9657, %v9658
        %v9660 = vshll.u32 2131351028, %v9651
        %v9661 = vshrl.u32 2102212464, %v9652
        %v9662 = vor.u32 %v9660, %v9661
        %v9663 = vshll.u32 2102212464, %v9651
        %v9664 = vshrl.u32 920167782, %v9652
        %v9665 = vor.u32 %v9663, %v9664
        %v9666 = vshll.u32 920167782, %v9651
        %v9667 = vshrl.u32 1326507024, %v9652
        %v9668 = vor.u32 %v9666, %v9667
        %vm9669 = vcmp.lt.s32.totalorder %v9650, 1
        %vm9670 = vcmp.lt.s32.totalorder %v9650, 2
        %vm9671 = vcmp.lt.s32.totalorder %v9650, 3
        %vm9672 = vcmp.lt.s32.totalorder %v9650, 4
        %v9673 = vsel %vm9669, %v9653, %v9656
        %v9674 = vsel %vm9672, %v9662, 2102212464
        %v9675 = vsel %vm9671, %v9659, %v9674
        %v9676 = vsel %vm9670, %v9673, %v9675
        %v9677 = vsel %vm9669, %v9656, %v9659
        %v9678 = vsel %vm9672, %v9665, 920167782
        %v9679 = vsel %vm9671, %v9662, %v9678
        %v9680 = vsel %vm9670, %v9677, %v9679
        %v9681 = vsel %vm9669, %v9659, %v9662
        %v9682 = vsel %vm9672, %v9668, 1326507024
        %v9683 = vsel %vm9671, %v9665, %v9682
        %v9684 = vsel %vm9670, %v9681, %v9683
        %v9685 = vshll.u32 %v9645, 8
        %v9686 = vand.u32 %v9685, 65535
        %v9687 = vshrl.u32 %v9685, 16
        %v9688 = vand.u32 %v9684, 65535
        %v9689 = vshrl.u32 %v9684, 16
        %v9690 = vmul.u32 %v9686, %v9688
        %v9691 = vmul.u32 %v9686, %v9689
        %v9692 = vmul.u32 %v9687, %v9688
        %v9693 = vmul.u32 %v9687, %v9689
        %v9694 = vshll.u32 %v9691, 16
        %v9695 = vshrl.u32 %v9691, 16
        %v9696 = vshll.u32 %v9692, 16
        %v9697 = vshrl.u32 %v9692, 16
        %vm9698 = vc.u32 %v9690, %v9694
        %v9699 = vsel %vm9698, 1, 0
        %v9700 = vadd.s32 %v9690, %v9694
        %v9701 = vadd.s32 %v9693, %v9699
        %vm9702 = vc.u32 %v9700, %v9696
        %v9703 = vsel %vm9702, 1, 0
        %v9704 = vadd.s32 %v9700, %v9696
        %v9705 = vadd.s32 %v9701, %v9703
        %v9706 = vadd.s32 %v9705, %v9695
        %v9707 = vadd.s32 %v9706, %v9697
        %v9708 = vand.u32 %v9685, 65535
        %v9709 = vshrl.u32 %v9685, 16
        %v9710 = vand.u32 %v9680, 65535
        %v9711 = vshrl.u32 %v9680, 16
        %v9712 = vmul.u32 %v9708, %v9710
        %v9713 = vmul.u32 %v9708, %v9711
        %v9714 = vmul.u32 %v9709, %v9710
        %v9715 = vmul.u32 %v9709, %v9711
        %v9716 = vshll.u32 %v9713, 16
        %v9717 = vshrl.u32 %v9713, 16
        %v9718 = vshll.u32 %v9714, 16
        %v9719 = vshrl.u32 %v9714, 16
        %vm9720 = vc.u32 %v9712, %v9716
        %v9721 = vsel %vm9720, 1, 0
        %v9722 = vadd.s32 %v9712, %v9716
        %v9723 = vadd.s32 %v9715, %v9721
        %vm9724 = vc.u32 %v9722, %v9718
        %v9725 = vsel %vm9724, 1, 0
        %v9726 = vadd.s32 %v9722, %v9718
        %v9727 = vadd.s32 %v9723, %v9725
        %v9728 = vadd.s32 %v9727, %v9717
        %v9729 = vadd.s32 %v9728, %v9719
        %v9730 = vmul.u32 %v9685, %v9676
        %v9731 = vadd.s32 %v9707, %v9726
        %vm9732 = vc.u32 %v9707, %v9726
        %v9733 = vadd.s32 %v9729, 1
        %v9734 = vsel %vm9732, %v9733, %v9729
        %v9735 = vadd.s32 %v9730, %v9734
        %v9736 = vadd.s32 %v9735, 536870912
        %v9737 = vshrl.u32 %v9736, 30
        %v9738 = vshll.u32 %v9737, 30
        %v9739 = vsub.s32 %v9735, %v9738
        %vm9740 = vcmp.lt.s32.totalorder %v9739, 0
        %v9741 = vsub.s32 0, %v9739
        %v9742 = vsel %vm9740, %v9741, %v9739
        %v9743 = vclz %v9742
        %v9744 = vsub.s32 %v9743, 2
        %vm9745 = vcmp.gt.s32.totalorder 0, %v9744
        %v9746 = vsel %vm9745, 0, %v9744
        %v9747 = vsub.s32 32, %v9746
        %v9748 = vshll.u32 %v9739, %v9746
        %v9749 = vshrl.u32 %v9731, %v9747
        %v9750 = vor.u32 %v9748, %v9749
        %v9751 = vsub.s32 4294967266, %v9746
        %v9752 = vadd.s32 %v9751, 127
        %v9753 = vshll.u32 %v9752, 23
        %v9754 = vor.u32 4788187, %v9753
        %v9755 = vand.u32 2147483647, %v9754
        %v9757 = vcvt.s32.f32 %v9750
        %v9758 = vmul.f32 %v9757, %v9755
        %v9759 = vxor.u32 %v9758, 2147483648
        %v9760 = vsel %vm9639, %v9759, %v9758
        %v9761 = vsub.s32 4, %v9737
        %v9762 = vsel %vm9639, %v9761, %v9737
        %v9763 = vsel %vm9638, %v630, %v9760
        %v9764 = vsel %vm9638, 0, %v9762
        %v9765 = vmul.f32 %v9763, %v9763
        %v9766 = vmul.f32 %v9765, -0.001358992
        %v9767 = vadd.f32 %v9766, 0.041655596
        %v9768 = vmul.f32 %v9765, %v9767
        %v9769 = vadd.f32 %v9768, -0.4999988
        %v9770 = vmul.f32 %v9765, %v9769
        %v9771 = vadd.f32 1.0, %v9770
        %v9772 = vmul.f32 %v9763, %v9763
        %v9773 = vmul.f32 %v9772, -0.00019511016
        %v9774 = vadd.f32 %v9773, 0.008332121
        %v9775 = vmul.f32 %v9772, %v9774
        %v9776 = vadd.f32 %v9775, -0.16666654
        %v9777 = vmul.f32 %v9772, %v9776
        %v9778 = vadd.f32 %v9777, 1.0
        %v9779 = vmul.f32 %v9778, %v9763
        %vm9780 = vweird.f32 %v630
        %v9781 = vadd.s32 %v9764, 3
        %v9782 = vand.u32 %v9781, 3
        %vm9783 = vcmp.lt.s32.totalorder %v9782, 2
        %vm9784 = vcmp.eq.s32.totalorder %v9782, 0
        %v9785 = vxor.u32 %v9779, 2147483648
        %v9786 = vsel %vm9784, %v9771, %v9785
        %vm9787 = vcmp.eq.s32.totalorder %v9782, 2
        %v9788 = vxor.u32 %v9771, 2147483648
        %v9789 = vsel %vm9787, %v9788, %v9779
        %v9790 = vsel %vm9783, %v9786, %v9789
        %v9791 = vsel %vm9780, nan, %v9790
        %v9792 = vand.u32 2147483647, %v633
        %vm9793 = vcmp.le.f32.partialorder %v9792, 0.7853982
        %vm9794 = vcmp.lt.s32.totalorder %v633, 0
        %v9795 = vand.u32 %v633, 2139095040
        %v9796 = vshrl.u32 %v9795, 23
        %v9797 = vsub.s32 %v9796, 127
        %v9798 = vand.u32 2147483647, %v633
        %v9799 = vand.u32 %v9798, 8388607
        %v9800 = vor.u32 %v9799, 8388608
        %v9801 = vsub.s32 0, %v9800
        %v9802 = vadd.s32 %v9797, 1
        %vm9803 = vcmp.gt.s32.totalorder %v9802, 0
        %v9804 = vsel %vm9803, %v9802, 0
        %v9805 = vshrl.u32 %v9804, 5
        %v9806 = vand.u32 %v9804, 31
        %v9807 = vsub.s32 32, %v9806
        %v9808 = vshrl.u32 683565275, %v9807
        %v9809 = vshll.u32 683565275, %v9806
        %v9810 = vshrl.u32 2475754826, %v9807
        %v9811 = vor.u32 %v9809, %v9810
        %v9812 = vshll.u32 2475754826, %v9806
        %v9813 = vshrl.u32 2131351028, %v9807
        %v9814 = vor.u32 %v9812, %v9813
        %v9815 = vshll.u32 2131351028, %v9806
        %v9816 = vshrl.u32 2102212464, %v9807
        %v9817 = vor.u32 %v9815, %v9816
        %v9818 = vshll.u32 2102212464, %v9806
        %v9819 = vshrl.u32 920167782, %v9807
        %v9820 = vor.u32 %v9818, %v9819
        %v9821 = vshll.u32 920167782, %v9806
        %v9822 = vshrl.u32 1326507024, %v9807
        %v9823 = vor.u32 %v9821, %v9822
        %vm9824 = vcmp.lt.s32.totalorder %v9805, 1
        %vm9825 = vcmp.lt.s32.totalorder %v9805, 2
        %vm9826 = vcmp.lt.s32.totalorder %v9805, 3
        %vm9827 = vcmp.lt.s32.totalorder %v9805, 4
        %v9828 = vsel %vm9824, %v9808, %v9811
        %v9829 = vsel %vm9827, %v9817, 2102212464
        %v9830 = vsel %vm9826, %v9814, %v9829
        %v9831 = vsel %vm9825, %v9828, %v9830
        %v9832 = vsel %vm9824, %v9811, %v9814
        %v9833 = vsel %vm9827, %v9820, 920167782
        %v9834 = vsel %vm9826, %v9817, %v9833
        %v9835 = vsel %vm9825, %v9832, %v9834
        %v9836 = vsel %vm9824, %v9814, %v9817
        %v9837 = vsel %vm9827, %v9823, 1326507024
        %v9838 = vsel %vm9826, %v9820, %v9837
        %v9839 = vsel %vm9825, %v9836, %v9838
        %v9840 = vshll.u32 %v9800, 8
        %v9841 = vand.u32 %v9840, 65535
        %v9842 = vshrl.u32 %v9840, 16
        %v9843 = vand.u32 %v9839, 65535
        %v9844 = vshrl.u32 %v9839, 16
        %v9845 = vmul.u32 %v9841, %v9843
        %v9846 = vmul.u32 %v9841, %v9844
        %v9847 = vmul.u32 %v9842, %v9843
        %v9848 = vmul.u32 %v9842, %v9844
        %v9849 = vshll.u32 %v9846, 16
        %v9850 = vshrl.u32 %v9846, 16
        %v9851 = vshll.u32 %v9847, 16
        %v9852 = vshrl.u32 %v9847, 16
        %vm9853 = vc.u32 %v9845, %v9849
        %v9854 = vsel %vm9853, 1, 0
        %v9855 = vadd.s32 %v9845, %v9849
        %v9856 = vadd.s32 %v9848, %v9854
        %vm9857 = vc.u32 %v9855, %v9851
        %v9858 = vsel %vm9857, 1, 0
        %v9859 = vadd.s32 %v9855, %v9851
        %v9860 = vadd.s32 %v9856, %v9858
        %v9861 = vadd.s32 %v9860, %v9850
        %v9862 = vadd.s32 %v9861, %v9852
        %v9863 = vand.u32 %v9840, 65535
        %v9864 = vshrl.u32 %v9840, 16
        %v9865 = vand.u32 %v9835, 65535
        %v9866 = vshrl.u32 %v9835, 16
        %v9867 = vmul.u32 %v9863, %v9865
        %v9868 = vmul.u32 %v9863, %v9866
        %v9869 = vmul.u32 %v9864, %v9865
        %v9870 = vmul.u32 %v9864, %v9866
        %v9871 = vshll.u32 %v9868, 16
        %v9872 = vshrl.u32 %v9868, 16
        %v9873 = vshll.u32 %v9869, 16
        %v9874 = vshrl.u32 %v9869, 16
        %vm9875 = vc.u32 %v9867, %v9871
        %v9876 = vsel %vm9875, 1, 0
        %v9877 = vadd.s32 %v9867, %v9871
        %v9878 = vadd.s32 %v9870, %v9876
        %vm9879 = vc.u32 %v9877, %v9873
        %v9880 = vsel %vm9879, 1, 0
        %v9881 = vadd.s32 %v9877, %v9873
        %v9882 = vadd.s32 %v9878, %v9880
        %v9883 = vadd.s32 %v9882, %v9872
        %v9884 = vadd.s32 %v9883, %v9874
        %v9885 = vmul.u32 %v9840, %v9831
        %v9886 = vadd.s32 %v9862, %v9881
        %vm9887 = vc.u32 %v9862, %v9881
        %v9888 = vadd.s32 %v9884, 1
        %v9889 = vsel %vm9887, %v9888, %v9884
        %v9890 = vadd.s32 %v9885, %v9889
        %v9891 = vadd.s32 %v9890, 536870912
        %v9892 = vshrl.u32 %v9891, 30
        %v9893 = vshll.u32 %v9892, 30
        %v9894 = vsub.s32 %v9890, %v9893
        %vm9895 = vcmp.lt.s32.totalorder %v9894, 0
        %v9896 = vsub.s32 0, %v9894
        %v9897 = vsel %vm9895, %v9896, %v9894
        %v9898 = vclz %v9897
        %v9899 = vsub.s32 %v9898, 2
        %vm9900 = vcmp.gt.s32.totalorder 0, %v9899
        %v9901 = vsel %vm9900, 0, %v9899
        %v9902 = vsub.s32 32, %v9901
        %v9903 = vshll.u32 %v9894, %v9901
        %v9904 = vshrl.u32 %v9886, %v9902
        %v9905 = vor.u32 %v9903, %v9904
        %v9906 = vsub.s32 4294967266, %v9901
        %v9907 = vadd.s32 %v9906, 127
        %v9908 = vshll.u32 %v9907, 23
        %v9909 = vor.u32 4788187, %v9908
        %v9910 = vand.u32 2147483647, %v9909
        %v9912 = vcvt.s32.f32 %v9905
        %v9913 = vmul.f32 %v9912, %v9910
        %v9914 = vxor.u32 %v9913, 2147483648
        %v9915 = vsel %vm9794, %v9914, %v9913
        %v9916 = vsub.s32 4, %v9892
        %v9917 = vsel %vm9794, %v9916, %v9892
        %v9918 = vsel %vm9793, %v633, %v9915
        %v9919 = vsel %vm9793, 0, %v9917
        %v9920 = vmul.f32 %v9918, %v9918
        %v9921 = vmul.f32 %v9920, -0.001358992
        %v9922 = vadd.f32 %v9921, 0.041655596
        %v9923 = vmul.f32 %v9920, %v9922
        %v9924 = vadd.f32 %v9923, -0.4999988
        %v9925 = vmul.f32 %v9920, %v9924
        %v9926 = vadd.f32 1.0, %v9925
        %v9927 = vmul.f32 %v9918, %v9918
        %v9928 = vmul.f32 %v9927, -0.00019511016
        %v9929 = vadd.f32 %v9928, 0.008332121
        %v9930 = vmul.f32 %v9927, %v9929
        %v9931 = vadd.f32 %v9930, -0.16666654
        %v9932 = vmul.f32 %v9927, %v9931
        %v9933 = vadd.f32 %v9932, 1.0
        %v9934 = vmul.f32 %v9933, %v9918
        %vm9935 = vweird.f32 %v633
        %v9936 = vadd.s32 %v9919, 3
        %v9937 = vand.u32 %v9936, 3
        %vm9938 = vcmp.lt.s32.totalorder %v9937, 2
        %vm9939 = vcmp.eq.s32.totalorder %v9937, 0
        %v9940 = vxor.u32 %v9934, 2147483648
        %v9941 = vsel %vm9939, %v9926, %v9940
        %vm9942 = vcmp.eq.s32.totalorder %v9937, 2
        %v9943 = vxor.u32 %v9926, 2147483648
        %v9944 = vsel %vm9942, %v9943, %v9934
        %v9945 = vsel %vm9938, %v9941, %v9944
        %v9946 = vsel %vm9935, nan, %v9945
        %v9947 = vand.u32 2147483647, %v636
        %vm9948 = vcmp.le.f32.partialorder %v9947, 0.7853982
        %vm9949 = vcmp.lt.s32.totalorder %v636, 0
        %v9950 = vand.u32 %v636, 2139095040
        %v9951 = vshrl.u32 %v9950, 23
        %v9952 = vsub.s32 %v9951, 127
        %v9953 = vand.u32 2147483647, %v636
        %v9954 = vand.u32 %v9953, 8388607
        %v9955 = vor.u32 %v9954, 8388608
        %v9956 = vsub.s32 0, %v9955
        %v9957 = vadd.s32 %v9952, 1
        %vm9958 = vcmp.gt.s32.totalorder %v9957, 0
        %v9959 = vsel %vm9958, %v9957, 0
        %v9960 = vshrl.u32 %v9959, 5
        %v9961 = vand.u32 %v9959, 31
        %v9962 = vsub.s32 32, %v9961
        %v9963 = vshrl.u32 683565275, %v9962
        %v9964 = vshll.u32 683565275, %v9961
        %v9965 = vshrl.u32 2475754826, %v9962
        %v9966 = vor.u32 %v9964, %v9965
        %v9967 = vshll.u32 2475754826, %v9961
        %v9968 = vshrl.u32 2131351028, %v9962
        %v9969 = vor.u32 %v9967, %v9968
        %v9970 = vshll.u32 2131351028, %v9961
        %v9971 = vshrl.u32 2102212464, %v9962
        %v9972 = vor.u32 %v9970, %v9971
        %v9973 = vshll.u32 2102212464, %v9961
        %v9974 = vshrl.u32 920167782, %v9962
        %v9975 = vor.u32 %v9973, %v9974
        %v9976 = vshll.u32 920167782, %v9961
        %v9977 = vshrl.u32 1326507024, %v9962
        %v9978 = vor.u32 %v9976, %v9977
        %vm9979 = vcmp.lt.s32.totalorder %v9960, 1
        %vm9980 = vcmp.lt.s32.totalorder %v9960, 2
        %vm9981 = vcmp.lt.s32.totalorder %v9960, 3
        %vm9982 = vcmp.lt.s32.totalorder %v9960, 4
        %v9983 = vsel %vm9979, %v9963, %v9966
        %v9984 = vsel %vm9982, %v9972, 2102212464
        %v9985 = vsel %vm9981, %v9969, %v9984
        %v9986 = vsel %vm9980, %v9983, %v9985
        %v9987 = vsel %vm9979, %v9966, %v9969
        %v9988 = vsel %vm9982, %v9975, 920167782
        %v9989 = vsel %vm9981, %v9972, %v9988
        %v9990 = vsel %vm9980, %v9987, %v9989
        %v9991 = vsel %vm9979, %v9969, %v9972
        %v9992 = vsel %vm9982, %v9978, 1326507024
        %v9993 = vsel %vm9981, %v9975, %v9992
        %v9994 = vsel %vm9980, %v9991, %v9993
        %v9995 = vshll.u32 %v9955, 8
        %v9996 = vand.u32 %v9995, 65535
        %v9997 = vshrl.u32 %v9995, 16
        %v9998 = vand.u32 %v9994, 65535
        %v9999 = vshrl.u32 %v9994, 16
        %v10000 = vmul.u32 %v9996, %v9998
        %v10001 = vmul.u32 %v9996, %v9999
        %v10002 = vmul.u32 %v9997, %v9998
        %v10003 = vmul.u32 %v9997, %v9999
        %v10004 = vshll.u32 %v10001, 16
        %v10005 = vshrl.u32 %v10001, 16
        %v10006 = vshll.u32 %v10002, 16
        %v10007 = vshrl.u32 %v10002, 16
        %vm10008 = vc.u32 %v10000, %v10004
        %v10009 = vsel %vm10008, 1, 0
        %v10010 = vadd.s32 %v10000, %v10004
        %v10011 = vadd.s32 %v10003, %v10009
        %vm10012 = vc.u32 %v10010, %v10006
        %v10013 = vsel %vm10012, 1, 0
        %v10014 = vadd.s32 %v10010, %v10006
        %v10015 = vadd.s32 %v10011, %v10013
        %v10016 = vadd.s32 %v10015, %v10005
        %v10017 = vadd.s32 %v10016, %v10007
        %v10018 = vand.u32 %v9995, 65535
        %v10019 = vshrl.u32 %v9995, 16
        %v10020 = vand.u32 %v9990, 65535
        %v10021 = vshrl.u32 %v9990, 16
        %v10022 = vmul.u32 %v10018, %v10020
        %v10023 = vmul.u32 %v10018, %v10021
        %v10024 = vmul.u32 %v10019, %v10020
        %v10025 = vmul.u32 %v10019, %v10021
        %v10026 = vshll.u32 %v10023, 16
        %v10027 = vshrl.u32 %v10023, 16
        %v10028 = vshll.u32 %v10024, 16
        %v10029 = vshrl.u32 %v10024, 16
        %vm10030 = vc.u32 %v10022, %v10026
        %v10031 = vsel %vm10030, 1, 0
        %v10032 = vadd.s32 %v10022, %v10026
        %v10033 = vadd.s32 %v10025, %v10031
        %vm10034 = vc.u32 %v10032, %v10028
        %v10035 = vsel %vm10034, 1, 0
        %v10036 = vadd.s32 %v10032, %v10028
        %v10037 = vadd.s32 %v10033, %v10035
        %v10038 = vadd.s32 %v10037, %v10027
        %v10039 = vadd.s32 %v10038, %v10029
        %v10040 = vmul.u32 %v9995, %v9986
        %v10041 = vadd.s32 %v10017, %v10036
        %vm10042 = vc.u32 %v10017, %v10036
        %v10043 = vadd.s32 %v10039, 1
        %v10044 = vsel %vm10042, %v10043, %v10039
        %v10045 = vadd.s32 %v10040, %v10044
        %v10046 = vadd.s32 %v10045, 536870912
        %v10047 = vshrl.u32 %v10046, 30
        %v10048 = vshll.u32 %v10047, 30
        %v10049 = vsub.s32 %v10045, %v10048
        %vm10050 = vcmp.lt.s32.totalorder %v10049, 0
        %v10051 = vsub.s32 0, %v10049
        %v10052 = vsel %vm10050, %v10051, %v10049
        %v10053 = vclz %v10052
        %v10054 = vsub.s32 %v10053, 2
        %vm10055 = vcmp.gt.s32.totalorder 0, %v10054
        %v10056 = vsel %vm10055, 0, %v10054
        %v10057 = vsub.s32 32, %v10056
        %v10058 = vshll.u32 %v10049, %v10056
        %v10059 = vshrl.u32 %v10041, %v10057
        %v10060 = vor.u32 %v10058, %v10059
        %v10061 = vsub.s32 4294967266, %v10056
        %v10062 = vadd.s32 %v10061, 127
        %v10063 = vshll.u32 %v10062, 23
        %v10064 = vor.u32 4788187, %v10063
        %v10065 = vand.u32 2147483647, %v10064
        %v10067 = vcvt.s32.f32 %v10060
        %v10068 = vmul.f32 %v10067, %v10065
        %v10069 = vxor.u32 %v10068, 2147483648
        %v10070 = vsel %vm9949, %v10069, %v10068
        %v10071 = vsub.s32 4, %v10047
        %v10072 = vsel %vm9949, %v10071, %v10047
        %v10073 = vsel %vm9948, %v636, %v10070
        %v10074 = vsel %vm9948, 0, %v10072
        %v10075 = vmul.f32 %v10073, %v10073
        %v10076 = vmul.f32 %v10075, -0.001358992
        %v10077 = vadd.f32 %v10076, 0.041655596
        %v10078 = vmul.f32 %v10075, %v10077
        %v10079 = vadd.f32 %v10078, -0.4999988
        %v10080 = vmul.f32 %v10075, %v10079
        %v10081 = vadd.f32 1.0, %v10080
        %v10082 = vmul.f32 %v10073, %v10073
        %v10083 = vmul.f32 %v10082, -0.00019511016
        %v10084 = vadd.f32 %v10083, 0.008332121
        %v10085 = vmul.f32 %v10082, %v10084
        %v10086 = vadd.f32 %v10085, -0.16666654
        %v10087 = vmul.f32 %v10082, %v10086
        %v10088 = vadd.f32 %v10087, 1.0
        %v10089 = vmul.f32 %v10088, %v10073
        %vm10090 = vweird.f32 %v636
        %v10091 = vadd.s32 %v10074, 3
        %v10092 = vand.u32 %v10091, 3
        %vm10093 = vcmp.lt.s32.totalorder %v10092, 2
        %vm10094 = vcmp.eq.s32.totalorder %v10092, 0
        %v10095 = vxor.u32 %v10089, 2147483648
        %v10096 = vsel %vm10094, %v10081, %v10095
        %vm10097 = vcmp.eq.s32.totalorder %v10092, 2
        %v10098 = vxor.u32 %v10081, 2147483648
        %v10099 = vsel %vm10097, %v10098, %v10089
        %v10100 = vsel %vm10093, %v10096, %v10099
        %v10101 = vsel %vm10090, nan, %v10100
        %v10102 = vand.u32 2147483647, %v639
        %vm10103 = vcmp.le.f32.partialorder %v10102, 0.7853982
        %vm10104 = vcmp.lt.s32.totalorder %v639, 0
        %v10105 = vand.u32 %v639, 2139095040
        %v10106 = vshrl.u32 %v10105, 23
        %v10107 = vsub.s32 %v10106, 127
        %v10108 = vand.u32 2147483647, %v639
        %v10109 = vand.u32 %v10108, 8388607
        %v10110 = vor.u32 %v10109, 8388608
        %v10111 = vsub.s32 0, %v10110
        %v10112 = vadd.s32 %v10107, 1
        %vm10113 = vcmp.gt.s32.totalorder %v10112, 0
        %v10114 = vsel %vm10113, %v10112, 0
        %v10115 = vshrl.u32 %v10114, 5
        %v10116 = vand.u32 %v10114, 31
        %v10117 = vsub.s32 32, %v10116
        %v10118 = vshrl.u32 683565275, %v10117
        %v10119 = vshll.u32 683565275, %v10116
        %v10120 = vshrl.u32 2475754826, %v10117
        %v10121 = vor.u32 %v10119, %v10120
        %v10122 = vshll.u32 2475754826, %v10116
        %v10123 = vshrl.u32 2131351028, %v10117
        %v10124 = vor.u32 %v10122, %v10123
        %v10125 = vshll.u32 2131351028, %v10116
        %v10126 = vshrl.u32 2102212464, %v10117
        %v10127 = vor.u32 %v10125, %v10126
        %v10128 = vshll.u32 2102212464, %v10116
        %v10129 = vshrl.u32 920167782, %v10117
        %v10130 = vor.u32 %v10128, %v10129
        %v10131 = vshll.u32 920167782, %v10116
        %v10132 = vshrl.u32 1326507024, %v10117
        %v10133 = vor.u32 %v10131, %v10132
        %vm10134 = vcmp.lt.s32.totalorder %v10115, 1
        %vm10135 = vcmp.lt.s32.totalorder %v10115, 2
        %vm10136 = vcmp.lt.s32.totalorder %v10115, 3
        %vm10137 = vcmp.lt.s32.totalorder %v10115, 4
        %v10138 = vsel %vm10134, %v10118, %v10121
        %v10139 = vsel %vm10137, %v10127, 2102212464
        %v10140 = vsel %vm10136, %v10124, %v10139
        %v10141 = vsel %vm10135, %v10138, %v10140
        %v10142 = vsel %vm10134, %v10121, %v10124
        %v10143 = vsel %vm10137, %v10130, 920167782
        %v10144 = vsel %vm10136, %v10127, %v10143
        %v10145 = vsel %vm10135, %v10142, %v10144
        %v10146 = vsel %vm10134, %v10124, %v10127
        %v10147 = vsel %vm10137, %v10133, 1326507024
        %v10148 = vsel %vm10136, %v10130, %v10147
        %v10149 = vsel %vm10135, %v10146, %v10148
        %v10150 = vshll.u32 %v10110, 8
        %v10151 = vand.u32 %v10150, 65535
        %v10152 = vshrl.u32 %v10150, 16
        %v10153 = vand.u32 %v10149, 65535
        %v10154 = vshrl.u32 %v10149, 16
        %v10155 = vmul.u32 %v10151, %v10153
        %v10156 = vmul.u32 %v10151, %v10154
        %v10157 = vmul.u32 %v10152, %v10153
        %v10158 = vmul.u32 %v10152, %v10154
        %v10159 = vshll.u32 %v10156, 16
        %v10160 = vshrl.u32 %v10156, 16
        %v10161 = vshll.u32 %v10157, 16
        %v10162 = vshrl.u32 %v10157, 16
        %vm10163 = vc.u32 %v10155, %v10159
        %v10164 = vsel %vm10163, 1, 0
        %v10165 = vadd.s32 %v10155, %v10159
        %v10166 = vadd.s32 %v10158, %v10164
        %vm10167 = vc.u32 %v10165, %v10161
        %v10168 = vsel %vm10167, 1, 0
        %v10169 = vadd.s32 %v10165, %v10161
        %v10170 = vadd.s32 %v10166, %v10168
        %v10171 = vadd.s32 %v10170, %v10160
        %v10172 = vadd.s32 %v10171, %v10162
        %v10173 = vand.u32 %v10150, 65535
        %v10174 = vshrl.u32 %v10150, 16
        %v10175 = vand.u32 %v10145, 65535
        %v10176 = vshrl.u32 %v10145, 16
        %v10177 = vmul.u32 %v10173, %v10175
        %v10178 = vmul.u32 %v10173, %v10176
        %v10179 = vmul.u32 %v10174, %v10175
        %v10180 = vmul.u32 %v10174, %v10176
        %v10181 = vshll.u32 %v10178, 16
        %v10182 = vshrl.u32 %v10178, 16
        %v10183 = vshll.u32 %v10179, 16
        %v10184 = vshrl.u32 %v10179, 16
        %vm10185 = vc.u32 %v10177, %v10181
        %v10186 = vsel %vm10185, 1, 0
        %v10187 = vadd.s32 %v10177, %v10181
        %v10188 = vadd.s32 %v10180, %v10186
        %vm10189 = vc.u32 %v10187, %v10183
        %v10190 = vsel %vm10189, 1, 0
        %v10191 = vadd.s32 %v10187, %v10183
        %v10192 = vadd.s32 %v10188, %v10190
        %v10193 = vadd.s32 %v10192, %v10182
        %v10194 = vadd.s32 %v10193, %v10184
        %v10195 = vmul.u32 %v10150, %v10141
        %v10196 = vadd.s32 %v10172, %v10191
        %vm10197 = vc.u32 %v10172, %v10191
        %v10198 = vadd.s32 %v10194, 1
        %v10199 = vsel %vm10197, %v10198, %v10194
        %v10200 = vadd.s32 %v10195, %v10199
        %v10201 = vadd.s32 %v10200, 536870912
        %v10202 = vshrl.u32 %v10201, 30
        %v10203 = vshll.u32 %v10202, 30
        %v10204 = vsub.s32 %v10200, %v10203
        %vm10205 = vcmp.lt.s32.totalorder %v10204, 0
        %v10206 = vsub.s32 0, %v10204
        %v10207 = vsel %vm10205, %v10206, %v10204
        %v10208 = vclz %v10207
        %v10209 = vsub.s32 %v10208, 2
        %vm10210 = vcmp.gt.s32.totalorder 0, %v10209
        %v10211 = vsel %vm10210, 0, %v10209
        %v10212 = vsub.s32 32, %v10211
        %v10213 = vshll.u32 %v10204, %v10211
        %v10214 = vshrl.u32 %v10196, %v10212
        %v10215 = vor.u32 %v10213, %v10214
        %v10216 = vsub.s32 4294967266, %v10211
        %v10217 = vadd.s32 %v10216, 127
        %v10218 = vshll.u32 %v10217, 23
        %v10219 = vor.u32 4788187, %v10218
        %v10220 = vand.u32 2147483647, %v10219
        %v10222 = vcvt.s32.f32 %v10215
        %v10223 = vmul.f32 %v10222, %v10220
        %v10224 = vxor.u32 %v10223, 2147483648
        %v10225 = vsel %vm10104, %v10224, %v10223
        %v10226 = vsub.s32 4, %v10202
        %v10227 = vsel %vm10104, %v10226, %v10202
        %v10228 = vsel %vm10103, %v639, %v10225
        %v10229 = vsel %vm10103, 0, %v10227
        %v10230 = vmul.f32 %v10228, %v10228
        %v10231 = vmul.f32 %v10230, -0.001358992
        %v10232 = vadd.f32 %v10231, 0.041655596
        %v10233 = vmul.f32 %v10230, %v10232
        %v10234 = vadd.f32 %v10233, -0.4999988
        %v10235 = vmul.f32 %v10230, %v10234
        %v10236 = vadd.f32 1.0, %v10235
        %v10237 = vmul.f32 %v10228, %v10228
        %v10238 = vmul.f32 %v10237, -0.00019511016
        %v10239 = vadd.f32 %v10238, 0.008332121
        %v10240 = vmul.f32 %v10237, %v10239
        %v10241 = vadd.f32 %v10240, -0.16666654
        %v10242 = vmul.f32 %v10237, %v10241
        %v10243 = vadd.f32 %v10242, 1.0
        %v10244 = vmul.f32 %v10243, %v10228
        %vm10245 = vweird.f32 %v639
        %v10246 = vadd.s32 %v10229, 3
        %v10247 = vand.u32 %v10246, 3
        %vm10248 = vcmp.lt.s32.totalorder %v10247, 2
        %vm10249 = vcmp.eq.s32.totalorder %v10247, 0
        %v10250 = vxor.u32 %v10244, 2147483648
        %v10251 = vsel %vm10249, %v10236, %v10250
        %vm10252 = vcmp.eq.s32.totalorder %v10247, 2
        %v10253 = vxor.u32 %v10236, 2147483648
        %v10254 = vsel %vm10252, %v10253, %v10244
        %v10255 = vsel %vm10248, %v10251, %v10254
        %v10256 = vsel %vm10245, nan, %v10255
        %v10257 = vand.u32 2147483647, %v642
        %vm10258 = vcmp.le.f32.partialorder %v10257, 0.7853982
        %vm10259 = vcmp.lt.s32.totalorder %v642, 0
        %v10260 = vand.u32 %v642, 2139095040
        %v10261 = vshrl.u32 %v10260, 23
        %v10262 = vsub.s32 %v10261, 127
        %v10263 = vand.u32 2147483647, %v642
        %v10264 = vand.u32 %v10263, 8388607
        %v10265 = vor.u32 %v10264, 8388608
        %v10266 = vsub.s32 0, %v10265
        %v10267 = vadd.s32 %v10262, 1
        %vm10268 = vcmp.gt.s32.totalorder %v10267, 0
        %v10269 = vsel %vm10268, %v10267, 0
        %v10270 = vshrl.u32 %v10269, 5
        %v10271 = vand.u32 %v10269, 31
        %v10272 = vsub.s32 32, %v10271
        %v10273 = vshrl.u32 683565275, %v10272
        %v10274 = vshll.u32 683565275, %v10271
        %v10275 = vshrl.u32 2475754826, %v10272
        %v10276 = vor.u32 %v10274, %v10275
        %v10277 = vshll.u32 2475754826, %v10271
        %v10278 = vshrl.u32 2131351028, %v10272
        %v10279 = vor.u32 %v10277, %v10278
        %v10280 = vshll.u32 2131351028, %v10271
        %v10281 = vshrl.u32 2102212464, %v10272
        %v10282 = vor.u32 %v10280, %v10281
        %v10283 = vshll.u32 2102212464, %v10271
        %v10284 = vshrl.u32 920167782, %v10272
        %v10285 = vor.u32 %v10283, %v10284
        %v10286 = vshll.u32 920167782, %v10271
        %v10287 = vshrl.u32 1326507024, %v10272
        %v10288 = vor.u32 %v10286, %v10287
        %vm10289 = vcmp.lt.s32.totalorder %v10270, 1
        %vm10290 = vcmp.lt.s32.totalorder %v10270, 2
        %vm10291 = vcmp.lt.s32.totalorder %v10270, 3
        %vm10292 = vcmp.lt.s32.totalorder %v10270, 4
        %v10293 = vsel %vm10289, %v10273, %v10276
        %v10294 = vsel %vm10292, %v10282, 2102212464
        %v10295 = vsel %vm10291, %v10279, %v10294
        %v10296 = vsel %vm10290, %v10293, %v10295
        %v10297 = vsel %vm10289, %v10276, %v10279
        %v10298 = vsel %vm10292, %v10285, 920167782
        %v10299 = vsel %vm10291, %v10282, %v10298
        %v10300 = vsel %vm10290, %v10297, %v10299
        %v10301 = vsel %vm10289, %v10279, %v10282
        %v10302 = vsel %vm10292, %v10288, 1326507024
        %v10303 = vsel %vm10291, %v10285, %v10302
        %v10304 = vsel %vm10290, %v10301, %v10303
        %v10305 = vshll.u32 %v10265, 8
        %v10306 = vand.u32 %v10305, 65535
        %v10307 = vshrl.u32 %v10305, 16
        %v10308 = vand.u32 %v10304, 65535
        %v10309 = vshrl.u32 %v10304, 16
        %v10310 = vmul.u32 %v10306, %v10308
        %v10311 = vmul.u32 %v10306, %v10309
        %v10312 = vmul.u32 %v10307, %v10308
        %v10313 = vmul.u32 %v10307, %v10309
        %v10314 = vshll.u32 %v10311, 16
        %v10315 = vshrl.u32 %v10311, 16
        %v10316 = vshll.u32 %v10312, 16
        %v10317 = vshrl.u32 %v10312, 16
        %vm10318 = vc.u32 %v10310, %v10314
        %v10319 = vsel %vm10318, 1, 0
        %v10320 = vadd.s32 %v10310, %v10314
        %v10321 = vadd.s32 %v10313, %v10319
        %vm10322 = vc.u32 %v10320, %v10316
        %v10323 = vsel %vm10322, 1, 0
        %v10324 = vadd.s32 %v10320, %v10316
        %v10325 = vadd.s32 %v10321, %v10323
        %v10326 = vadd.s32 %v10325, %v10315
        %v10327 = vadd.s32 %v10326, %v10317
        %v10328 = vand.u32 %v10305, 65535
        %v10329 = vshrl.u32 %v10305, 16
        %v10330 = vand.u32 %v10300, 65535
        %v10331 = vshrl.u32 %v10300, 16
        %v10332 = vmul.u32 %v10328, %v10330
        %v10333 = vmul.u32 %v10328, %v10331
        %v10334 = vmul.u32 %v10329, %v10330
        %v10335 = vmul.u32 %v10329, %v10331
        %v10336 = vshll.u32 %v10333, 16
        %v10337 = vshrl.u32 %v10333, 16
        %v10338 = vshll.u32 %v10334, 16
        %v10339 = vshrl.u32 %v10334, 16
        %vm10340 = vc.u32 %v10332, %v10336
        %v10341 = vsel %vm10340, 1, 0
        %v10342 = vadd.s32 %v10332, %v10336
        %v10343 = vadd.s32 %v10335, %v10341
        %vm10344 = vc.u32 %v10342, %v10338
        %v10345 = vsel %vm10344, 1, 0
        %v10346 = vadd.s32 %v10342, %v10338
        %v10347 = vadd.s32 %v10343, %v10345
        %v10348 = vadd.s32 %v10347, %v10337
        %v10349 = vadd.s32 %v10348, %v10339
        %v10350 = vmul.u32 %v10305, %v10296
        %v10351 = vadd.s32 %v10327, %v10346
        %vm10352 = vc.u32 %v10327, %v10346
        %v10353 = vadd.s32 %v10349, 1
        %v10354 = vsel %vm10352, %v10353, %v10349
        %v10355 = vadd.s32 %v10350, %v10354
        %v10356 = vadd.s32 %v10355, 536870912
        %v10357 = vshrl.u32 %v10356, 30
        %v10358 = vshll.u32 %v10357, 30
        %v10359 = vsub.s32 %v10355, %v10358
        %vm10360 = vcmp.lt.s32.totalorder %v10359, 0
        %v10361 = vsub.s32 0, %v10359
        %v10362 = vsel %vm10360, %v10361, %v10359
        %v10363 = vclz %v10362
        %v10364 = vsub.s32 %v10363, 2
        %vm10365 = vcmp.gt.s32.totalorder 0, %v10364
        %v10366 = vsel %vm10365, 0, %v10364
        %v10367 = vsub.s32 32, %v10366
        %v10368 = vshll.u32 %v10359, %v10366
        %v10369 = vshrl.u32 %v10351, %v10367
        %v10370 = vor.u32 %v10368, %v10369
        %v10371 = vsub.s32 4294967266, %v10366
        %v10372 = vadd.s32 %v10371, 127
        %v10373 = vshll.u32 %v10372, 23
        %v10374 = vor.u32 4788187, %v10373
        %v10375 = vand.u32 2147483647, %v10374
        %v10377 = vcvt.s32.f32 %v10370
        %v10378 = vmul.f32 %v10377, %v10375
        %v10379 = vxor.u32 %v10378, 2147483648
        %v10380 = vsel %vm10259, %v10379, %v10378
        %v10381 = vsub.s32 4, %v10357
        %v10382 = vsel %vm10259, %v10381, %v10357
        %v10383 = vsel %vm10258, %v642, %v10380
        %v10384 = vsel %vm10258, 0, %v10382
        %v10385 = vmul.f32 %v10383, %v10383
        %v10386 = vmul.f32 %v10385, -0.001358992
        %v10387 = vadd.f32 %v10386, 0.041655596
        %v10388 = vmul.f32 %v10385, %v10387
        %v10389 = vadd.f32 %v10388, -0.4999988
        %v10390 = vmul.f32 %v10385, %v10389
        %v10391 = vadd.f32 1.0, %v10390
        %v10392 = vmul.f32 %v10383, %v10383
        %v10393 = vmul.f32 %v10392, -0.00019511016
        %v10394 = vadd.f32 %v10393, 0.008332121
        %v10395 = vmul.f32 %v10392, %v10394
        %v10396 = vadd.f32 %v10395, -0.16666654
        %v10397 = vmul.f32 %v10392, %v10396
        %v10398 = vadd.f32 %v10397, 1.0
        %v10399 = vmul.f32 %v10398, %v10383
        %vm10400 = vweird.f32 %v642
        %v10401 = vadd.s32 %v10384, 3
        %v10402 = vand.u32 %v10401, 3
        %vm10403 = vcmp.lt.s32.totalorder %v10402, 2
        %vm10404 = vcmp.eq.s32.totalorder %v10402, 0
        %v10405 = vxor.u32 %v10399, 2147483648
        %v10406 = vsel %vm10404, %v10391, %v10405
        %vm10407 = vcmp.eq.s32.totalorder %v10402, 2
        %v10408 = vxor.u32 %v10391, 2147483648
        %v10409 = vsel %vm10407, %v10408, %v10399
        %v10410 = vsel %vm10403, %v10406, %v10409
        %v10411 = vsel %vm10400, nan, %v10410
        %v10412 = vand.u32 2147483647, %v645
        %vm10413 = vcmp.le.f32.partialorder %v10412, 0.7853982
        %vm10414 = vcmp.lt.s32.totalorder %v645, 0
        %v10415 = vand.u32 %v645, 2139095040
        %v10416 = vshrl.u32 %v10415, 23
        %v10417 = vsub.s32 %v10416, 127
        %v10418 = vand.u32 2147483647, %v645
        %v10419 = vand.u32 %v10418, 8388607
        %v10420 = vor.u32 %v10419, 8388608
        %v10421 = vsub.s32 0, %v10420
        %v10422 = vadd.s32 %v10417, 1
        %vm10423 = vcmp.gt.s32.totalorder %v10422, 0
        %v10424 = vsel %vm10423, %v10422, 0
        %v10425 = vshrl.u32 %v10424, 5
        %v10426 = vand.u32 %v10424, 31
        %v10427 = vsub.s32 32, %v10426
        %v10428 = vshrl.u32 683565275, %v10427
        %v10429 = vshll.u32 683565275, %v10426
        %v10430 = vshrl.u32 2475754826, %v10427
        %v10431 = vor.u32 %v10429, %v10430
        %v10432 = vshll.u32 2475754826, %v10426
        %v10433 = vshrl.u32 2131351028, %v10427
        %v10434 = vor.u32 %v10432, %v10433
        %v10435 = vshll.u32 2131351028, %v10426
        %v10436 = vshrl.u32 2102212464, %v10427
        %v10437 = vor.u32 %v10435, %v10436
        %v10438 = vshll.u32 2102212464, %v10426
        %v10439 = vshrl.u32 920167782, %v10427
        %v10440 = vor.u32 %v10438, %v10439
        %v10441 = vshll.u32 920167782, %v10426
        %v10442 = vshrl.u32 1326507024, %v10427
        %v10443 = vor.u32 %v10441, %v10442
        %vm10444 = vcmp.lt.s32.totalorder %v10425, 1
        %vm10445 = vcmp.lt.s32.totalorder %v10425, 2
        %vm10446 = vcmp.lt.s32.totalorder %v10425, 3
        %vm10447 = vcmp.lt.s32.totalorder %v10425, 4
        %v10448 = vsel %vm10444, %v10428, %v10431
        %v10449 = vsel %vm10447, %v10437, 2102212464
        %v10450 = vsel %vm10446, %v10434, %v10449
        %v10451 = vsel %vm10445, %v10448, %v10450
        %v10452 = vsel %vm10444, %v10431, %v10434
        %v10453 = vsel %vm10447, %v10440, 920167782
        %v10454 = vsel %vm10446, %v10437, %v10453
        %v10455 = vsel %vm10445, %v10452, %v10454
        %v10456 = vsel %vm10444, %v10434, %v10437
        %v10457 = vsel %vm10447, %v10443, 1326507024
        %v10458 = vsel %vm10446, %v10440, %v10457
        %v10459 = vsel %vm10445, %v10456, %v10458
        %v10460 = vshll.u32 %v10420, 8
        %v10461 = vand.u32 %v10460, 65535
        %v10462 = vshrl.u32 %v10460, 16
        %v10463 = vand.u32 %v10459, 65535
        %v10464 = vshrl.u32 %v10459, 16
        %v10465 = vmul.u32 %v10461, %v10463
        %v10466 = vmul.u32 %v10461, %v10464
        %v10467 = vmul.u32 %v10462, %v10463
        %v10468 = vmul.u32 %v10462, %v10464
        %v10469 = vshll.u32 %v10466, 16
        %v10470 = vshrl.u32 %v10466, 16
        %v10471 = vshll.u32 %v10467, 16
        %v10472 = vshrl.u32 %v10467, 16
        %vm10473 = vc.u32 %v10465, %v10469
        %v10474 = vsel %vm10473, 1, 0
        %v10475 = vadd.s32 %v10465, %v10469
        %v10476 = vadd.s32 %v10468, %v10474
        %vm10477 = vc.u32 %v10475, %v10471
        %v10478 = vsel %vm10477, 1, 0
        %v10479 = vadd.s32 %v10475, %v10471
        %v10480 = vadd.s32 %v10476, %v10478
        %v10481 = vadd.s32 %v10480, %v10470
        %v10482 = vadd.s32 %v10481, %v10472
        %v10483 = vand.u32 %v10460, 65535
        %v10484 = vshrl.u32 %v10460, 16
        %v10485 = vand.u32 %v10455, 65535
        %v10486 = vshrl.u32 %v10455, 16
        %v10487 = vmul.u32 %v10483, %v10485
        %v10488 = vmul.u32 %v10483, %v10486
        %v10489 = vmul.u32 %v10484, %v10485
        %v10490 = vmul.u32 %v10484, %v10486
        %v10491 = vshll.u32 %v10488, 16
        %v10492 = vshrl.u32 %v10488, 16
        %v10493 = vshll.u32 %v10489, 16
        %v10494 = vshrl.u32 %v10489, 16
        %vm10495 = vc.u32 %v10487, %v10491
        %v10496 = vsel %vm10495, 1, 0
        %v10497 = vadd.s32 %v10487, %v10491
        %v10498 = vadd.s32 %v10490, %v10496
        %vm10499 = vc.u32 %v10497, %v10493
        %v10500 = vsel %vm10499, 1, 0
        %v10501 = vadd.s32 %v10497, %v10493
        %v10502 = vadd.s32 %v10498, %v10500
        %v10503 = vadd.s32 %v10502, %v10492
        %v10504 = vadd.s32 %v10503, %v10494
        %v10505 = vmul.u32 %v10460, %v10451
        %v10506 = vadd.s32 %v10482, %v10501
        %vm10507 = vc.u32 %v10482, %v10501
        %v10508 = vadd.s32 %v10504, 1
        %v10509 = vsel %vm10507, %v10508, %v10504
        %v10510 = vadd.s32 %v10505, %v10509
        %v10511 = vadd.s32 %v10510, 536870912
        %v10512 = vshrl.u32 %v10511, 30
        %v10513 = vshll.u32 %v10512, 30
        %v10514 = vsub.s32 %v10510, %v10513
        %vm10515 = vcmp.lt.s32.totalorder %v10514, 0
        %v10516 = vsub.s32 0, %v10514
        %v10517 = vsel %vm10515, %v10516, %v10514
        %v10518 = vclz %v10517
        %v10519 = vsub.s32 %v10518, 2
        %vm10520 = vcmp.gt.s32.totalorder 0, %v10519
        %v10521 = vsel %vm10520, 0, %v10519
        %v10522 = vsub.s32 32, %v10521
        %v10523 = vshll.u32 %v10514, %v10521
        %v10524 = vshrl.u32 %v10506, %v10522
        %v10525 = vor.u32 %v10523, %v10524
        %v10526 = vsub.s32 4294967266, %v10521
        %v10527 = vadd.s32 %v10526, 127
        %v10528 = vshll.u32 %v10527, 23
        %v10529 = vor.u32 4788187, %v10528
        %v10530 = vand.u32 2147483647, %v10529
        %v10532 = vcvt.s32.f32 %v10525
        %v10533 = vmul.f32 %v10532, %v10530
        %v10534 = vxor.u32 %v10533, 2147483648
        %v10535 = vsel %vm10414, %v10534, %v10533
        %v10536 = vsub.s32 4, %v10512
        %v10537 = vsel %vm10414, %v10536, %v10512
        %v10538 = vsel %vm10413, %v645, %v10535
        %v10539 = vsel %vm10413, 0, %v10537
        %v10540 = vmul.f32 %v10538, %v10538
        %v10541 = vmul.f32 %v10540, -0.001358992
        %v10542 = vadd.f32 %v10541, 0.041655596
        %v10543 = vmul.f32 %v10540, %v10542
        %v10544 = vadd.f32 %v10543, -0.4999988
        %v10545 = vmul.f32 %v10540, %v10544
        %v10546 = vadd.f32 1.0, %v10545
        %v10547 = vmul.f32 %v10538, %v10538
        %v10548 = vmul.f32 %v10547, -0.00019511016
        %v10549 = vadd.f32 %v10548, 0.008332121
        %v10550 = vmul.f32 %v10547, %v10549
        %v10551 = vadd.f32 %v10550, -0.16666654
        %v10552 = vmul.f32 %v10547, %v10551
        %v10553 = vadd.f32 %v10552, 1.0
        %v10554 = vmul.f32 %v10553, %v10538
        %vm10555 = vweird.f32 %v645
        %v10556 = vadd.s32 %v10539, 3
        %v10557 = vand.u32 %v10556, 3
        %vm10558 = vcmp.lt.s32.totalorder %v10557, 2
        %vm10559 = vcmp.eq.s32.totalorder %v10557, 0
        %v10560 = vxor.u32 %v10554, 2147483648
        %v10561 = vsel %vm10559, %v10546, %v10560
        %vm10562 = vcmp.eq.s32.totalorder %v10557, 2
        %v10563 = vxor.u32 %v10546, 2147483648
        %v10564 = vsel %vm10562, %v10563, %v10554
        %v10565 = vsel %vm10558, %v10561, %v10564
        %v10566 = vsel %vm10555, nan, %v10565
        %v10567 = vmul.f32 %v801, %v801
        %v10568 = vmul.f32 %v956, %v956
        %v10569 = vmul.f32 %v1111, %v1111
        %v10570 = vmul.f32 %v1266, %v1266
        %v10571 = vmul.f32 %v1421, %v1421
        %v10572 = vmul.f32 %v1576, %v1576
        %v10573 = vmul.f32 %v1731, %v1731
        %v10574 = vmul.f32 %v1886, %v1886
        %v10575 = vmul.f32 %v2041, %v2041
        %v10576 = vmul.f32 %v2196, %v2196
        %v10577 = vmul.f32 %v2351, %v2351
        %v10578 = vmul.f32 %v2506, %v2506
        %v10579 = vmul.f32 %v2661, %v2661
        %v10580 = vmul.f32 %v2816, %v2816
        %v10581 = vmul.f32 %v2971, %v2971
        %v10582 = vmul.f32 %v3126, %v3126
        %v10583 = vmul.f32 %v3281, %v3281
        %v10584 = vmul.f32 %v3436, %v3436
        %v10585 = vmul.f32 %v3591, %v3591
        %v10586 = vmul.f32 %v3746, %v3746
        %v10587 = vmul.f32 %v3901, %v3901
        %v10588 = vmul.f32 %v4056, %v4056
        %v10589 = vmul.f32 %v4211, %v4211
        %v10590 = vmul.f32 %v4366, %v4366
        %v10591 = vmul.f32 %v4521, %v4521
        %v10592 = vmul.f32 %v4676, %v4676
        %v10593 = vmul.f32 %v4831, %v4831
        %v10594 = vmul.f32 %v4986, %v4986
        %v10595 = vmul.f32 %v5141, %v5141
        %v10596 = vmul.f32 %v5296, %v5296
        %v10597 = vmul.f32 %v5451, %v5451
        %v10598 = vmul.f32 %v5606, %v5606
        %v10599 = vmul.f32 %v5761, %v5761
        %v10600 = vmul.f32 %v5916, %v5916
        %v10601 = vmul.f32 %v6071, %v6071
        %v10602 = vmul.f32 %v6226, %v6226
        %v10603 = vmul.f32 %v6381, %v6381
        %v10604 = vmul.f32 %v6536, %v6536
        %v10605 = vmul.f32 %v6691, %v6691
        %v10606 = vmul.f32 %v6846, %v6846
        %v10607 = vmul.f32 %v7001, %v7001
        %v10608 = vmul.f32 %v7156, %v7156
        %v10609 = vmul.f32 %v7311, %v7311
        %v10610 = vmul.f32 %v7466, %v7466
        %v10611 = vmul.f32 %v7621, %v7621
        %v10612 = vmul.f32 %v7776, %v7776
        %v10613 = vmul.f32 %v7931, %v7931
        %v10614 = vmul.f32 %v8086, %v8086
        %v10615 = vmul.f32 %v8241, %v8241
        %v10616 = vmul.f32 %v8396, %v8396
        %v10617 = vmul.f32 %v8551, %v8551
        %v10618 = vmul.f32 %v8706, %v8706
        %v10619 = vmul.f32 %v8861, %v8861
        %v10620 = vmul.f32 %v9016, %v9016
        %v10621 = vmul.f32 %v9171, %v9171
        %v10622 = vmul.f32 %v9326, %v9326
        %v10623 = vmul.f32 %v9481, %v9481
        %v10624 = vmul.f32 %v9636, %v9636
        %v10625 = vmul.f32 %v9791, %v9791
        %v10626 = vmul.f32 %v9946, %v9946
        %v10627 = vmul.f32 %v10101, %v10101
        %v10628 = vmul.f32 %v10256, %v10256
        %v10629 = vmul.f32 %v10411, %v10411
        %v10630 = vmul.f32 %v10566, %v10566
        %v10631 = vmul.f32 %v10567, -1.6976527
        %v10632 = vmul.f32 %v10568, -1.6976527
        %v10633 = vmul.f32 %v10569, -1.6976527
        %v10634 = vmul.f32 %v10570, -1.6976527
        %v10635 = vmul.f32 %v10571, -1.6976527
        %v10636 = vmul.f32 %v10572, -1.6976527
        %v10637 = vmul.f32 %v10573, -1.6976527
        %v10638 = vmul.f32 %v10574, -1.6976527
        %v10639 = vmul.f32 %v10575, -1.6976527
        %v10640 = vmul.f32 %v10576, -1.6976527
        %v10641 = vmul.f32 %v10577, -1.6976527
        %v10642 = vmul.f32 %v10578, -1.6976527
        %v10643 = vmul.f32 %v10579, -1.6976527
        %v10644 = vmul.f32 %v10580, -1.6976527
        %v10645 = vmul.f32 %v10581, -1.6976527
        %v10646 = vmul.f32 %v10582, -1.6976527
        %v10647 = vmul.f32 %v10583, -1.6976527
        %v10648 = vmul.f32 %v10584, -1.6976527
        %v10649 = vmul.f32 %v10585, -1.6976527
        %v10650 = vmul.f32 %v10586, -1.6976527
        %v10651 = vmul.f32 %v10587, -1.6976527
        %v10652 = vmul.f32 %v10588, -1.6976527
        %v10653 = vmul.f32 %v10589, -1.6976527
        %v10654 = vmul.f32 %v10590, -1.6976527
        %v10655 = vmul.f32 %v10591, -1.6976527
        %v10656 = vmul.f32 %v10592, -1.6976527
        %v10657 = vmul.f32 %v10593, -1.6976527
        %v10658 = vmul.f32 %v10594, -1.6976527
        %v10659 = vmul.f32 %v10595, -1.6976527
        %v10660 = vmul.f32 %v10596, -1.6976527
        %v10661 = vmul.f32 %v10597, -1.6976527
        %v10662 = vmul.f32 %v10598, -1.6976527
        %v10663 = vmul.f32 %v10599, -1.6976527
        %v10664 = vmul.f32 %v10600, -1.6976527
        %v10665 = vmul.f32 %v10601, -1.6976527
        %v10666 = vmul.f32 %v10602, -1.6976527
        %v10667 = vmul.f32 %v10603, -1.6976527
        %v10668 = vmul.f32 %v10604, -1.6976527
        %v10669 = vmul.f32 %v10605, -1.6976527
        %v10670 = vmul.f32 %v10606, -1.6976527
        %v10671 = vmul.f32 %v10607, -1.6976527
        %v10672 = vmul.f32 %v10608, -1.6976527
        %v10673 = vmul.f32 %v10609, -1.6976527
        %v10674 = vmul.f32 %v10610, -1.6976527
        %v10675 = vmul.f32 %v10611, -1.6976527
        %v10676 = vmul.f32 %v10612, -1.6976527
        %v10677 = vmul.f32 %v10613, -1.6976527
        %v10678 = vmul.f32 %v10614, -1.6976527
        %v10679 = vmul.f32 %v10615, -1.6976527
        %v10680 = vmul.f32 %v10616, -1.6976527
        %v10681 = vmul.f32 %v10617, -1.6976527
        %v10682 = vmul.f32 %v10618, -1.6976527
        %v10683 = vmul.f32 %v10619, -1.6976527
        %v10684 = vmul.f32 %v10620, -1.6976527
        %v10685 = vmul.f32 %v10621, -1.6976527
        %v10686 = vmul.f32 %v10622, -1.6976527
        %v10687 = vmul.f32 %v10623, -1.6976527
        %v10688 = vmul.f32 %v10624, -1.6976527
        %v10689 = vmul.f32 %v10625, -1.6976527
        %v10690 = vmul.f32 %v10626, -1.6976527
        %v10691 = vmul.f32 %v10627, -1.6976527
        %v10692 = vmul.f32 %v10628, -1.6976527
        %v10693 = vmul.f32 %v10629, -1.6976527
        %v10694 = vmul.f32 %v10630, -1.6976527
        %v10695 = vadd.f32 %v10631, 2.546479
        %v10696 = vadd.f32 %v10632, 2.546479
        %v10697 = vadd.f32 %v10633, 2.546479
        %v10698 = vadd.f32 %v10634, 2.546479
        %v10699 = vadd.f32 %v10635, 2.546479
        %v10700 = vadd.f32 %v10636, 2.546479
        %v10701 = vadd.f32 %v10637, 2.546479
        %v10702 = vadd.f32 %v10638, 2.546479
        %v10703 = vadd.f32 %v10639, 2.546479
        %v10704 = vadd.f32 %v10640, 2.546479
        %v10705 = vadd.f32 %v10641, 2.546479
        %v10706 = vadd.f32 %v10642, 2.546479
        %v10707 = vadd.f32 %v10643, 2.546479
        %v10708 = vadd.f32 %v10644, 2.546479
        %v10709 = vadd.f32 %v10645, 2.546479
        %v10710 = vadd.f32 %v10646, 2.546479
        %v10711 = vadd.f32 %v10647, 2.546479
        %v10712 = vadd.f32 %v10648, 2.546479
        %v10713 = vadd.f32 %v10649, 2.546479
        %v10714 = vadd.f32 %v10650, 2.546479
        %v10715 = vadd.f32 %v10651, 2.546479
        %v10716 = vadd.f32 %v10652, 2.546479
        %v10717 = vadd.f32 %v10653, 2.546479
        %v10718 = vadd.f32 %v10654, 2.546479
        %v10719 = vadd.f32 %v10655, 2.546479
        %v10720 = vadd.f32 %v10656, 2.546479
        %v10721 = vadd.f32 %v10657, 2.546479
        %v10722 = vadd.f32 %v10658, 2.546479
        %v10723 = vadd.f32 %v10659, 2.546479
        %v10724 = vadd.f32 %v10660, 2.546479
        %v10725 = vadd.f32 %v10661, 2.546479
        %v10726 = vadd.f32 %v10662, 2.546479
        %v10727 = vadd.f32 %v10663, 2.546479
        %v10728 = vadd.f32 %v10664, 2.546479
        %v10729 = vadd.f32 %v10665, 2.546479
        %v10730 = vadd.f32 %v10666, 2.546479
        %v10731 = vadd.f32 %v10667, 2.546479
        %v10732 = vadd.f32 %v10668, 2.546479
        %v10733 = vadd.f32 %v10669, 2.546479
        %v10734 = vadd.f32 %v10670, 2.546479
        %v10735 = vadd.f32 %v10671, 2.546479
        %v10736 = vadd.f32 %v10672, 2.546479
        %v10737 = vadd.f32 %v10673, 2.546479
        %v10738 = vadd.f32 %v10674, 2.546479
        %v10739 = vadd.f32 %v10675, 2.546479
        %v10740 = vadd.f32 %v10676, 2.546479
        %v10741 = vadd.f32 %v10677, 2.546479
        %v10742 = vadd.f32 %v10678, 2.546479
        %v10743 = vadd.f32 %v10679, 2.546479
        %v10744 = vadd.f32 %v10680, 2.546479
        %v10745 = vadd.f32 %v10681, 2.546479
        %v10746 = vadd.f32 %v10682, 2.546479
        %v10747 = vadd.f32 %v10683, 2.546479
        %v10748 = vadd.f32 %v10684, 2.546479
        %v10749 = vadd.f32 %v10685, 2.546479
        %v10750 = vadd.f32 %v10686, 2.546479
        %v10751 = vadd.f32 %v10687, 2.546479
        %v10752 = vadd.f32 %v10688, 2.546479
        %v10753 = vadd.f32 %v10689, 2.546479
        %v10754 = vadd.f32 %v10690, 2.546479
        %v10755 = vadd.f32 %v10691, 2.546479
        %v10756 = vadd.f32 %v10692, 2.546479
        %v10757 = vadd.f32 %v10693, 2.546479
        %v10758 = vadd.f32 %v10694, 2.546479
        %v10759 = vmul.f32 %v801, %v10695
        %v10760 = vmul.f32 %v956, %v10696
        %v10761 = vmul.f32 %v1111, %v10697
        %v10762 = vmul.f32 %v1266, %v10698
        %v10763 = vmul.f32 %v1421, %v10699
        %v10764 = vmul.f32 %v1576, %v10700
        %v10765 = vmul.f32 %v1731, %v10701
        %v10766 = vmul.f32 %v1886, %v10702
        %v10767 = vmul.f32 %v2041, %v10703
        %v10768 = vmul.f32 %v2196, %v10704
        %v10769 = vmul.f32 %v2351, %v10705
        %v10770 = vmul.f32 %v2506, %v10706
        %v10771 = vmul.f32 %v2661, %v10707
        %v10772 = vmul.f32 %v2816, %v10708
        %v10773 = vmul.f32 %v2971, %v10709
        %v10774 = vmul.f32 %v3126, %v10710
        %v10775 = vmul.f32 %v3281, %v10711
        %v10776 = vmul.f32 %v3436, %v10712
        %v10777 = vmul.f32 %v3591, %v10713
        %v10778 = vmul.f32 %v3746, %v10714
        %v10779 = vmul.f32 %v3901, %v10715
        %v10780 = vmul.f32 %v4056, %v10716
        %v10781 = vmul.f32 %v4211, %v10717
        %v10782 = vmul.f32 %v4366, %v10718
        %v10783 = vmul.f32 %v4521, %v10719
        %v10784 = vmul.f32 %v4676, %v10720
        %v10785 = vmul.f32 %v4831, %v10721
        %v10786 = vmul.f32 %v4986, %v10722
        %v10787 = vmul.f32 %v5141, %v10723
        %v10788 = vmul.f32 %v5296, %v10724
        %v10789 = vmul.f32 %v5451, %v10725
        %v10790 = vmul.f32 %v5606, %v10726
        %v10791 = vmul.f32 %v5761, %v10727
        %v10792 = vmul.f32 %v5916, %v10728
        %v10793 = vmul.f32 %v6071, %v10729
        %v10794 = vmul.f32 %v6226, %v10730
        %v10795 = vmul.f32 %v6381, %v10731
        %v10796 = vmul.f32 %v6536, %v10732
        %v10797 = vmul.f32 %v6691, %v10733
        %v10798 = vmul.f32 %v6846, %v10734
        %v10799 = vmul.f32 %v7001, %v10735
        %v10800 = vmul.f32 %v7156, %v10736
        %v10801 = vmul.f32 %v7311, %v10737
        %v10802 = vmul.f32 %v7466, %v10738
        %v10803 = vmul.f32 %v7621, %v10739
        %v10804 = vmul.f32 %v7776, %v10740
        %v10805 = vmul.f32 %v7931, %v10741
        %v10806 = vmul.f32 %v8086, %v10742
        %v10807 = vmul.f32 %v8241, %v10743
        %v10808 = vmul.f32 %v8396, %v10744
        %v10809 = vmul.f32 %v8551, %v10745
        %v10810 = vmul.f32 %v8706, %v10746
        %v10811 = vmul.f32 %v8861, %v10747
        %v10812 = vmul.f32 %v9016, %v10748
        %v10813 = vmul.f32 %v9171, %v10749
        %v10814 = vmul.f32 %v9326, %v10750
        %v10815 = vmul.f32 %v9481, %v10751
        %v10816 = vmul.f32 %v9636, %v10752
        %v10817 = vmul.f32 %v9791, %v10753
        %v10818 = vmul.f32 %v9946, %v10754
        %v10819 = vmul.f32 %v10101, %v10755
        %v10820 = vmul.f32 %v10256, %v10756
        %v10821 = vmul.f32 %v10411, %v10757
        %v10822 = vmul.f32 %v10566, %v10758
        %10823 = vst [vmem:[%s164] sm:$0xff] %v10759
        %10824 = vst [vmem:[%s164 + $0x8] sm:$0xff] %v10760
        %10825 = vst [vmem:[%s164 + $0x10] sm:$0xff] %v10761
        %10826 = vst [vmem:[%s164 + $0x18] sm:$0xff] %v10762
        %10827 = vst [vmem:[%s164 + $0x20] sm:$0xff] %v10763
        %10828 = vst [vmem:[%s164 + $0x28] sm:$0xff] %v10764
        %10829 = vst [vmem:[%s164 + $0x30] sm:$0xff] %v10765
        %10830 = vst [vmem:[%s164 + $0x38] sm:$0xff] %v10766
        %10831 = vst [vmem:[%s164 + $0x40] sm:$0xff] %v10767
        %10832 = vst [vmem:[%s164 + $0x48] sm:$0xff] %v10768
        %10833 = vst [vmem:[%s164 + $0x50] sm:$0xff] %v10769
        %10834 = vst [vmem:[%s164 + $0x58] sm:$0xff] %v10770
        %10835 = vst [vmem:[%s164 + $0x60] sm:$0xff] %v10771
        %10836 = vst [vmem:[%s164 + $0x68] sm:$0xff] %v10772
        %10837 = vst [vmem:[%s164 + $0x70] sm:$0xff] %v10773
        %10838 = vst [vmem:[%s164 + $0x78] sm:$0xff] %v10774
        %10839 = vst [vmem:[%s164 + $0x80] sm:$0xff] %v10775
        %10840 = vst [vmem:[%s164 + $0x88] sm:$0xff] %v10776
        %10841 = vst [vmem:[%s164 + $0x90] sm:$0xff] %v10777
        %10842 = vst [vmem:[%s164 + $0x98] sm:$0xff] %v10778
        %10843 = vst [vmem:[%s164 + $0xa0] sm:$0xff] %v10779
        %10844 = vst [vmem:[%s164 + $0xa8] sm:$0xff] %v10780
        %10845 = vst [vmem:[%s164 + $0xb0] sm:$0xff] %v10781
        %10846 = vst [vmem:[%s164 + $0xb8] sm:$0xff] %v10782
        %10847 = vst [vmem:[%s164 + $0xc0] sm:$0xff] %v10783
        %10848 = vst [vmem:[%s164 + $0xc8] sm:$0xff] %v10784
        %10849 = vst [vmem:[%s164 + $0xd0] sm:$0xff] %v10785
        %10850 = vst [vmem:[%s164 + $0xd8] sm:$0xff] %v10786
        %10851 = vst [vmem:[%s164 + $0xe0] sm:$0xff] %v10787
        %10852 = vst [vmem:[%s164 + $0xe8] sm:$0xff] %v10788
        %10853 = vst [vmem:[%s164 + $0xf0] sm:$0xff] %v10789
        %10854 = vst [vmem:[%s164 + $0xf8] sm:$0xff] %v10790
        %10855 = vst [vmem:[%s164 + $0x100] sm:$0xff] %v10791
        %10856 = vst [vmem:[%s164 + $0x108] sm:$0xff] %v10792
        %10857 = vst [vmem:[%s164 + $0x110] sm:$0xff] %v10793
        %10858 = vst [vmem:[%s164 + $0x118] sm:$0xff] %v10794
        %10859 = vst [vmem:[%s164 + $0x120] sm:$0xff] %v10795
        %10860 = vst [vmem:[%s164 + $0x128] sm:$0xff] %v10796
        %10861 = vst [vmem:[%s164 + $0x130] sm:$0xff] %v10797
        %10862 = vst [vmem:[%s164 + $0x138] sm:$0xff] %v10798
        %10863 = vst [vmem:[%s164 + $0x140] sm:$0xff] %v10799
        %10864 = vst [vmem:[%s164 + $0x148] sm:$0xff] %v10800
        %10865 = vst [vmem:[%s164 + $0x150] sm:$0xff] %v10801
        %10866 = vst [vmem:[%s164 + $0x158] sm:$0xff] %v10802
        %10867 = vst [vmem:[%s164 + $0x160] sm:$0xff] %v10803
        %10868 = vst [vmem:[%s164 + $0x168] sm:$0xff] %v10804
        %10869 = vst [vmem:[%s164 + $0x170] sm:$0xff] %v10805
        %10870 = vst [vmem:[%s164 + $0x178] sm:$0xff] %v10806
        %10871 = vst [vmem:[%s164 + $0x180] sm:$0xff] %v10807
        %10872 = vst [vmem:[%s164 + $0x188] sm:$0xff] %v10808
        %10873 = vst [vmem:[%s164 + $0x190] sm:$0xff] %v10809
        %10874 = vst [vmem:[%s164 + $0x198] sm:$0xff] %v10810
        %10875 = vst [vmem:[%s164 + $0x1a0] sm:$0xff] %v10811
        %10876 = vst [vmem:[%s164 + $0x1a8] sm:$0xff] %v10812
        %10877 = vst [vmem:[%s164 + $0x1b0] sm:$0xff] %v10813
        %10878 = vst [vmem:[%s164 + $0x1b8] sm:$0xff] %v10814
        %10879 = vst [vmem:[%s164 + $0x1c0] sm:$0xff] %v10815
        %10880 = vst [vmem:[%s164 + $0x1c8] sm:$0xff] %v10816
        %10881 = vst [vmem:[%s164 + $0x1d0] sm:$0xff] %v10817
        %10882 = vst [vmem:[%s164 + $0x1d8] sm:$0xff] %v10818
        %10883 = vst [vmem:[%s164 + $0x1e0] sm:$0xff] %v10819
        %10884 = vst [vmem:[%s164 + $0x1e8] sm:$0xff] %v10820
        %10885 = vst [vmem:[%s164 + $0x1f0] sm:$0xff] %v10821
        %10886 = vst [vmem:[%s164 + $0x1f8] sm:$0xff] %v10822
        %s10887 = sand.u32 %s93, 1
        %s10888 = scalar_lea.sflag [#allocation3], %s10887
        %s10889 = sand.u32 %s93, 1
        %s10890 = smul.addr %s10889, 512
        %s10891 = scalar_lea.vmem [#allocation2], %s10890
        // Predicated region
        $region33: #{tpu_custom_call.1} parent=31 // pred_check
          %p10892 = pneg %p103
        $region34: #{tpu_custom_call.1} parent=31 // pred_check_branch
          %10894 = sbr.rel (%p10892) target = $region36
        $region35: #{tpu_custom_call.1} parent=31 // pred_region
          %s10895 = smul.u32 64, %s17
          %10897 = vsyncadd %s10888, 0
          %s10898 = smul.addr %s10895, 8
          %s10899 = scalar_lea.hbm %s3, %s10898
          %s10900 = sshll.u32 %s10891, 4
          %s10901 = int_to_ptr.vmem [resolvable:$true] %s10900
          %s10902 = sshll.u32 %s10899, 4
          %s10903 = int_to_ptr.hbm [resolvable:$true] %s10902
          %10908 = dma.vmem_to_hbm [thread:$0]  %s10901, 8192, %s10903, %s10888, 128, 128, 8
        $region36: #{tpu_custom_call.1} parent=31 // pred_fallthru
          _
      $region32: #{tpu_custom_call.1} parent=5 // pred_fallthru
        _
      %p10909 = scmp.le.s32.totalorder 2, %s12
      // Predicated region
      $region37: #{tpu_custom_call.1} parent=5 // pred_check
        %p10910 = pneg %p10909
      $region38: #{tpu_custom_call.1} parent=5 // pred_check_branch
        %10912 = sbr.rel (%p10910) target = $region40
      $region39: #{tpu_custom_call.1} parent=5 // pred_region
        %s10913 = ssub.s32 %s12, 2
        // Predicated region
        $region41: #{tpu_custom_call.1} parent=39 // pred_check
          %p10914 = pneg %p109
        $region42: #{tpu_custom_call.1} parent=39 // pred_check_branch
          %10916 = sbr.rel (%p10914) target = $region44
        $region43: #{tpu_custom_call.1} parent=39 // pred_region
          %s10917 = sand.u32 %s94, 1
          %s10918 = scalar_lea.sflag [#allocation3], %s10917
          %s10919 = sand.u32 %s94, 1
          %s10920 = smul.addr %s10919, 512
          %s10921 = scalar_lea.vmem [#allocation2], %s10920
          %10923 = dma.done %s10918, 8192
        $region44: #{tpu_custom_call.1} parent=39 // pred_fallthru
          _
      $region40: #{tpu_custom_call.1} parent=5 // pred_fallthru
        _
    $region6: #{tpu_custom_call.1} parent=1 // loop_footer
      %s16 = sadd.s32 1, %s12
    $region7: #{tpu_custom_call.1} parent=1 // loop_footer_branch
      %11 = sbr.rel target = $region3
    $region8: #{tpu_custom_call.1} parent=1 // loop_exit
      _
    %10924 = vsyncpa [#allocation3], 1
    %s10925 = scalar_lea.sflag [#allocation3], 1
    %10926 = vsyncpa %s10925, 1

</llo_original>
